<compile_context>
chip_gen: v5e
topology: v5e:2x2
jax: 0.10.0
libtpu: 0.0.40
codegen_flags: <defaults>
</compile_context>

<pallas_src>
import functools

import jax
import jax.numpy as jnp
from jax.experimental import pallas as pl
from jax.experimental.pallas import tpu as pltpu

_SQRT1_2 = 0.7071067811865476

# Set True to replace the EUP approximate reciprocal inside the GELU-erf
# rational by an exact divide (for tight f32 parity testing).
_EXACT_GELU_RECIPROCAL = False


# ----------------------------------------------------------------------------
# Exact (erf-based) GELU.
# TODO(synk): Mosaic has no native erf; Abramowitz & Stegun 7.1.26 polynomial
# (|err| < 1.5e-7) is used -- well below the bf16-matmul noise floor here.
# ----------------------------------------------------------------------------
def _gelu_erf(x):
    z = x * _SQRT1_2
    az = jnp.abs(z)
    denom = 1.0 + 0.3275911 * az
    if _EXACT_GELU_RECIPROCAL:
        t = 1.0 / denom
    else:
        t = pl.reciprocal(denom, approx=True)          # EUP slot -> ~free
    poly = ((((1.061405429 * t - 1.453152027) * t + 1.421413741) * t
             - 0.284496736) * t + 0.254829592) * t
    erf_az = 1.0 - poly * jnp.exp(-az * az)
    erf_z = jnp.where(z >= 0.0, erf_az, -erf_az)
    return 0.5 * x * (1.0 + erf_z)


# ----------------------------------------------------------------------------
# Fused kernel: one batch image per grid step.
#   conv1(3x3, pad=1) -> GN(32) -> GELU  (kept in VMEM)
#   conv2(3x3, pad=1) -> GN(32) -> GELU -> ConvTranspose2d(k=2, s=2) epilogue
# Convs: halo scratch + 9 accumulating (H*W, Cin)@(Cin, C) bf16 matmuls.
# Up-conv: stride == kernel, so it is one (H*W, Cmid)@(Cmid, 4*Cout) matmul;
# output stays lane-dense (..., 4*Cout).
# ----------------------------------------------------------------------------
def _decoder_kernel(x_ref, pool_ref, w1_ref, b1_ref, g1_ref, be1_ref,
                    w2_ref, b2_ref, g2_ref, be2_ref, wt_ref, bt_ref,
                    o_ref, xpad_ref, hpad_ref, *, H, W, num_groups, eps):
    pool = pool_ref[...]                               # (Cmid, Cmid) block-diag

    def zero_border(pad_ref):
        # Only the 1-pixel halo is zeroed each step (interior is fully
        # overwritten below).  Step-local => safe under any grid schedule /
        # multi-core sharding of the 'parallel' batch axis.
        c = pad_ref.shape[-1]
        dt = pad_ref.dtype
        pad_ref[pl.ds(0, 1), :, :] = jnp.zeros((1, W + 2, c), dt)
        pad_ref[pl.ds(H + 1, 1), :, :] = jnp.zeros((1, W + 2, c), dt)
        pad_ref[:, pl.ds(0, 1), :] = jnp.zeros((H + 2, 1, c), dt)
        pad_ref[:, pl.ds(W + 1, 1), :] = jnp.zeros((H + 2, 1, c), dt)

    def conv3x3_gn_gelu(pad_ref, w_ref, b_resid, gamma, beta):
        # pad_ref: (H+2, W+2, Cin) bf16 halo buffer (border zero, interior set)
        # w_ref:   (9, Cin, C) bf16 taps, tap t = dy*3 + dx
        cin = w_ref.shape[1]
        C = w_ref.shape[2]
        cg = C // num_groups
        inv_count = 1.0 / float(H * W * cg)

        acc = jnp.zeros((H * W, C), jnp.float32)
        for dy in range(3):
            for dx in range(3):
                lhs = pad_ref[dy:dy + H, dx:dx + W, :].reshape(H * W, cin)
                acc = acc + jnp.dot(lhs, w_ref[dy * 3 + dx],
                                    preferred_element_type=jnp.float32)

        # GroupNorm (torch semantics: biased variance over group-channels x H x W),
        # two-pass / centered.  Conv bias is folded into the mean subtraction:
        #   (acc + b) - mean_g(acc + b) == acc - (mean_g(acc) - b_resid)
        # with b_resid = b - mean_g(b) precomputed on the host.
        s = jnp.sum(acc, axis=0, keepdims=True)                        # (1, C)
        mean = jnp.dot(s, pool, preferred_element_type=jnp.float32) * inv_count
        xc = acc - (mean - b_resid)                                    # centered
        ssq = jnp.sum(xc * xc, axis=0, keepdims=True)                  # (1, C)
        var = jnp.dot(ssq, pool, preferred_element_type=jnp.float32) * inv_count
        scale = jax.lax.rsqrt(var + eps) * gamma                       # (1, C) row op
        return _gelu_erf(xc * scale + beta)                            # (H*W, C) f32

    # ---- stage 1: conv1 -> GN -> GELU ------------------------------------
    zero_border(xpad_ref)
    xpad_ref[pl.ds(1, H), pl.ds(1, W), :] = x_ref[0].astype(xpad_ref.dtype)
    y1 = conv3x3_gn_gelu(xpad_ref, w1_ref, b1_ref[...], g1_ref[...], be1_ref[...])

    # stage-1 result goes straight into the interior of the conv-2 halo buffer
    # (no HBM round trip; the zero halo doubles as conv-2's padding).
    zero_border(hpad_ref)
    hpad_ref[pl.ds(1, H), pl.ds(1, W), :] = (
        y1.reshape(H, W, -1).astype(hpad_ref.dtype))

    # ---- stage 2: conv2 -> GN -> GELU -> 2x2 up-conv epilogue ------------
    y2 = conv3x3_gn_gelu(hpad_ref, w2_ref, b2_ref[...], g2_ref[...], be2_ref[...])
    z = jnp.dot(y2.astype(wt_ref.dtype), wt_ref[...],
                preferred_element_type=jnp.float32) + bt_ref[...]      # (H*W, 4*Cout)
    o_ref[0] = z.reshape(H, W, -1).astype(o_ref.dtype)


# ----------------------------------------------------------------------------
# Parameter init (weight layouts documented below) and public wrapper.
# ----------------------------------------------------------------------------
def init_decoder_params(key, in_channels, middle_channels, out_channels):
    ks = jax.random.split(key, 10)

    def conv_w(k, cin, cout):
        scale = 1.0 / jnp.sqrt(jnp.float32(cin * 9))
        return scale * jax.random.normal(k, (9, cin, cout), jnp.float32)

    return {
        # conv1/2: taps (9, Cin, Cout), tap t = dy*3+dx == torch w[co, ci, dy, dx]
        # permuted to [t, ci, co].
        "w1": conv_w(ks[0], in_channels, middle_channels),
        "b1": 0.01 * jax.random.normal(ks[1], (middle_channels,), jnp.float32),
        "g1": 1.0 + 0.01 * jax.random.normal(ks[2], (middle_channels,), jnp.float32),
        "be1": 0.01 * jax.random.normal(ks[3], (middle_channels,), jnp.float32),
        "w2": conv_w(ks[4], middle_channels, middle_channels),
        "b2": 0.01 * jax.random.normal(ks[5], (middle_channels,), jnp.float32),
        "g2": 1.0 + 0.01 * jax.random.normal(ks[6], (middle_channels,), jnp.float32),
        "be2": 0.01 * jax.random.normal(ks[7], (middle_channels,), jnp.float32),
        # ConvTranspose2d: (Cmid, dy, dx, Cout) == torch wt[ci, co, dy, dx] permuted.
        "wt": (1.0 / jnp.sqrt(jnp.float32(middle_channels * 4)))
              * jax.random.normal(ks[8], (middle_channels, 2, 2, out_channels),
                                  jnp.float32),
        "bt": 0.01 * jax.random.normal(ks[9], (out_channels,), jnp.float32),
    }


def _group_bias_residual(b, num_groups):
    # b - group_mean(b): lets the kernel fold the conv bias into the GN mean.
    C = b.shape[0]
    cg = C // num_groups
    gm = jnp.mean(b.reshape(num_groups, cg), axis=1, keepdims=True)
    return (b.reshape(num_groups, cg) - gm).reshape(C)


def decoder_block(params, x_nchw, num_groups=32, eps=1e-5):
    # Public boundary: NCHW (PyTorch convention); the kernel runs NHWC.
    Cin = params["w1"].shape[1]
    Cmid = params["w1"].shape[-1]
    Cout = params["wt"].shape[-1]
    assert Cmid % num_groups == 0, "GroupNorm requires num_groups | middle_channels"

    x = jnp.transpose(x_nchw, (0, 2, 3, 1))            # NCHW -> NHWC
    N, H, W, _ = x.shape

    # Host-side constant prep (tiny; traced once under jit).
    gid = jnp.arange(Cmid) // (Cmid // num_groups)
    pool = (gid[:, None] == gid[None, :]).astype(jnp.float32)       # (Cmid, Cmid)
    w1 = params["w1"].astype(jnp.bfloat16)                          # (9, Cin, Cmid)
    w2 = params["w2"].astype(jnp.bfloat16)                          # (9, Cmid, Cmid)
    wt = params["wt"].reshape(Cmid, 4 * Cout).astype(jnp.bfloat16)  # (Cmid, 4*Cout)
    b1r = _group_bias_residual(params["b1"], num_groups).reshape(1, Cmid).astype(jnp.float32)
    b2r = _group_bias_residual(params["b2"], num_groups).reshape(1, Cmid).astype(jnp.float32)
    g1 = params["g1"].reshape(1, Cmid).astype(jnp.float32)
    be1 = params["be1"].reshape(1, Cmid).astype(jnp.float32)
    g2 = params["g2"].reshape(1, Cmid).astype(jnp.float32)
    be2 = params["be2"].reshape(1, Cmid).astype(jnp.float32)
    bt4 = jnp.tile(params["bt"], 4).reshape(1, 4 * Cout).astype(jnp.float32)

    z = pl.pallas_call(
        functools.partial(_decoder_kernel, H=H, W=W,
                          num_groups=num_groups, eps=float(eps)),
        out_shape=jax.ShapeDtypeStruct((N, H, W, 4 * Cout), jnp.float32),
        grid=(N,),
        in_specs=[
            pl.BlockSpec((1, H, W, Cin), lambda n: (n, 0, 0, 0)),    # x (per image)
            pl.BlockSpec((Cmid, Cmid), lambda n: (0, 0)),            # GN pool matrix
            pl.BlockSpec((9, Cin, Cmid), lambda n: (0, 0, 0)),       # conv1 taps
            pl.BlockSpec((1, Cmid), lambda n: (0, 0)),               # b1 residual
            pl.BlockSpec((1, Cmid), lambda n: (0, 0)),               # gamma1
            pl.BlockSpec((1, Cmid), lambda n: (0, 0)),               # beta1
            pl.BlockSpec((9, Cmid, Cmid), lambda n: (0, 0, 0)),      # conv2 taps
            pl.BlockSpec((1, Cmid), lambda n: (0, 0)),               # b2 residual
            pl.BlockSpec((1, Cmid), lambda n: (0, 0)),               # gamma2
            pl.BlockSpec((1, Cmid), lambda n: (0, 0)),               # beta2
            pl.BlockSpec((Cmid, 4 * Cout), lambda n: (0, 0)),        # up-conv weight
            pl.BlockSpec((1, 4 * Cout), lambda n: (0, 0)),           # up-conv bias
        ],
        out_specs=pl.BlockSpec((1, H, W, 4 * Cout), lambda n: (n, 0, 0, 0)),
        scratch_shapes=[
            pltpu.VMEM((H + 2, W + 2, Cin), jnp.bfloat16),           # conv1 halo
            pltpu.VMEM((H + 2, W + 2, Cmid), jnp.bfloat16),          # conv2 halo (fused h)
        ],
        compiler_params=pltpu.CompilerParams(
            dimension_semantics=("parallel",)),
    )(x, pool, w1, b1r, g1, be1, w2, b2r, g2, be2, wt, bt4)

    # Single boundary op: de-interleave the lane-dense 2x2 taps and NHWC -> NCHW.
    z = z.reshape(N, H, W, 2, 2, Cout).transpose(0, 5, 1, 3, 2, 4)
    return z.reshape(N, Cout, 2 * H, 2 * W)


# ----------------------------------------------------------------------------
# Pure-JAX reference (for parity testing against the torch module semantics).
# ----------------------------------------------------------------------------
def _reference_forward(params, x_nchw, num_groups=32, eps=1e-5):
    x = jnp.transpose(x_nchw, (0, 2, 3, 1))

    def conv3x3(h, w_taps, b):
        w = w_taps.reshape(3, 3, w_taps.shape[1], w_taps.shape[2])   # (dy, dx, ci, co)
        y = jax.lax.conv_general_dilated(
            h, w, window_strides=(1, 1), padding="SAME",
            dimension_numbers=("NHWC", "HWIO", "NHWC"))
        return y + b

    def group_norm(h, gamma, beta):
        n, hh, ww, c = h.shape
        cg = c // num_groups
        hg = h.reshape(n, hh, ww, num_groups, cg)
        mean = jnp.mean(hg, axis=(1, 2, 4), keepdims=True)
        var = jnp.mean((hg - mean) ** 2, axis=(1, 2, 4), keepdims=True)
        hn = ((hg - mean) / jnp.sqrt(var + eps)).reshape(n, hh, ww, c)
        return hn * gamma + beta

    gelu = functools.partial(jax.nn.gelu, approximate=False)
    h = gelu(group_norm(conv3x3(x, params["w1"], params["b1"]),
                        params["g1"], params["be1"]))
    h = gelu(group_norm(conv3x3(h, params["w2"], params["b2"]),
                        params["g2"], params["be2"]))
    n, hh, ww, _ = h.shape
    cout = params["wt"].shape[-1]
    z = jnp.einsum("nhwc,cyxo->nhywxo", h, params["wt"])
    z = z.reshape(n, 2 * hh, 2 * ww, cout) + params["bt"]
    return jnp.transpose(z, (0, 3, 1, 2))


if __name__ == "__main__":
    # GroupNorm(32, Cmid) requires 32 | Cmid.
    N, Cin, Cmid, Cout, H, W = 2, 64, 64, 32, 16, 16
    key = jax.random.PRNGKey(0)
    kx, kp = jax.random.split(key)
    x = jax.random.normal(kx, (N, Cin, H, W), jnp.float32)
    params = init_decoder_params(kp, Cin, Cmid, Cout)

    fwd = jax.jit(functools.partial(decoder_block, num_groups=32))
    out = jax.block_until_ready(fwd(params, x))

    assert out.shape == (N, Cout, 2 * H, 2 * W), out.shape
    assert bool(jnp.all(jnp.isfinite(out)))

    # Parity vs. pure-JAX reference (loose tolerance: bf16 MXU operands + erf
    # polynomial vs. exact f32 path).
    ref = _reference_forward(params, x, num_groups=32)
    rel = float(jnp.linalg.norm(out - ref) / jnp.linalg.norm(ref))
    assert rel < 5e-2, f"relative error too large: {rel}"

    print("KERNEL_OK")
</pallas_src>

<mosaic_0001>
module attributes {stable_mosaic.version = 11 : i64} {
  func.func @_decoder_kernel(%arg0: i32, %arg1: memref<1x16x16x64xf32, #tpu.memory_space<vmem>>, %arg2: memref<64x64xf32, #tpu.memory_space<vmem>>, %arg3: memref<9x64x64xbf16, #tpu.memory_space<vmem>>, %arg4: memref<1x64xf32, #tpu.memory_space<vmem>>, %arg5: memref<1x64xf32, #tpu.memory_space<vmem>>, %arg6: memref<1x64xf32, #tpu.memory_space<vmem>>, %arg7: memref<9x64x64xbf16, #tpu.memory_space<vmem>>, %arg8: memref<1x64xf32, #tpu.memory_space<vmem>>, %arg9: memref<1x64xf32, #tpu.memory_space<vmem>>, %arg10: memref<1x64xf32, #tpu.memory_space<vmem>>, %arg11: memref<64x128xbf16, #tpu.memory_space<vmem>>, %arg12: memref<1x128xf32, #tpu.memory_space<vmem>>, %arg13: memref<1x16x16x128xf32, #tpu.memory_space<vmem>>, %arg14: memref<18x18x64xbf16, #tpu.memory_space<vmem>>, %arg15: memref<18x18x64xbf16, #tpu.memory_space<vmem>>) attributes {dimension_semantics = [#tpu.dimension_semantics<parallel>], iteration_bounds = array<i64: 2>, scalar_prefetch = 0 : i64, scratch_operands = 2 : i64, tpu.core_type = #tpu.core_type<tc>, window_params = [{transform_indices = @transform_0, window_bounds = array<i64: 1, 16, 16, 64>}, {pipeline_mode = #tpu.pipeline_mode<synchronous>, transform_indices = @transform_1, window_bounds = array<i64: 64, 64>}, {pipeline_mode = #tpu.pipeline_mode<synchronous>, transform_indices = @transform_2, window_bounds = array<i64: 9, 64, 64>}, {pipeline_mode = #tpu.pipeline_mode<synchronous>, transform_indices = @transform_3, window_bounds = array<i64: 1, 64>}, {pipeline_mode = #tpu.pipeline_mode<synchronous>, transform_indices = @transform_4, window_bounds = array<i64: 1, 64>}, {pipeline_mode = #tpu.pipeline_mode<synchronous>, transform_indices = @transform_5, window_bounds = array<i64: 1, 64>}, {pipeline_mode = #tpu.pipeline_mode<synchronous>, transform_indices = @transform_6, window_bounds = array<i64: 9, 64, 64>}, {pipeline_mode = #tpu.pipeline_mode<synchronous>, transform_indices = @transform_7, window_bounds = array<i64: 1, 64>}, {pipeline_mode = #tpu.pipeline_mode<synchronous>, transform_indices = @transform_8, window_bounds = array<i64: 1, 64>}, {pipeline_mode = #tpu.pipeline_mode<synchronous>, transform_indices = @transform_9, window_bounds = array<i64: 1, 64>}, {pipeline_mode = #tpu.pipeline_mode<synchronous>, transform_indices = @transform_10, window_bounds = array<i64: 64, 128>}, {pipeline_mode = #tpu.pipeline_mode<synchronous>, transform_indices = @transform_11, window_bounds = array<i64: 1, 128>}, {transform_indices = @transform_12, window_bounds = array<i64: 1, 16, 16, 128>}]} {
    %c0 = arith.constant 0 : index
    %c0_0 = arith.constant 0 : index
    %0 = vector.load %arg2[%c0, %c0_0] : memref<64x64xf32, #tpu.memory_space<vmem>>, vector<64x64xf32>
    %cst = arith.constant 0.000000e+00 : bf16
    %1 = vector.broadcast %cst : bf16 to vector<1x18x64xbf16>
    %c0_1 = arith.constant 0 : index
    %c0_2 = arith.constant 0 : index
    %c0_3 = arith.constant 0 : index
    %2 = vector.load %arg14[%c0_1, %c0_2, %c0_3] : memref<18x18x64xbf16, #tpu.memory_space<vmem>>, vector<1x18x64xbf16>
    tpu.vector_store %arg14[%c0_1, %c0_2, %c0_3], %1 {strides = array<i32>} : memref<18x18x64xbf16, #tpu.memory_space<vmem>>, vector<1x18x64xbf16>,
    %cst_4 = arith.constant 0.000000e+00 : bf16
    %3 = vector.broadcast %cst_4 : bf16 to vector<1x18x64xbf16>
    %c17 = arith.constant 17 : index
    %c0_5 = arith.constant 0 : index
    %c0_6 = arith.constant 0 : index
    %4 = vector.load %arg14[%c17, %c0_5, %c0_6] : memref<18x18x64xbf16, #tpu.memory_space<vmem>>, vector<1x18x64xbf16>
    tpu.vector_store %arg14[%c17, %c0_5, %c0_6], %3 {strides = array<i32>} : memref<18x18x64xbf16, #tpu.memory_space<vmem>>, vector<1x18x64xbf16>,
    %cst_7 = arith.constant 0.000000e+00 : bf16
    %5 = vector.broadcast %cst_7 : bf16 to vector<18x1x64xbf16>
    %c0_8 = arith.constant 0 : index
    %c0_9 = arith.constant 0 : index
    %c0_10 = arith.constant 0 : index
    %6 = vector.load %arg14[%c0_8, %c0_9, %c0_10] : memref<18x18x64xbf16, #tpu.memory_space<vmem>>, vector<18x1x64xbf16>
    tpu.vector_store %arg14[%c0_8, %c0_9, %c0_10], %5 {strides = array<i32>} : memref<18x18x64xbf16, #tpu.memory_space<vmem>>, vector<18x1x64xbf16>,
    %cst_11 = arith.constant 0.000000e+00 : bf16
    %7 = vector.broadcast %cst_11 : bf16 to vector<18x1x64xbf16>
    %c0_12 = arith.constant 0 : index
    %c17_13 = arith.constant 17 : index
    %c0_14 = arith.constant 0 : index
    %8 = vector.load %arg14[%c0_12, %c17_13, %c0_14] : memref<18x18x64xbf16, #tpu.memory_space<vmem>>, vector<18x1x64xbf16>
    tpu.vector_store %arg14[%c0_12, %c17_13, %c0_14], %7 {strides = array<i32>} : memref<18x18x64xbf16, #tpu.memory_space<vmem>>, vector<18x1x64xbf16>,
    %c0_15 = arith.constant 0 : index
    %c0_16 = arith.constant 0 : index
    %c0_17 = arith.constant 0 : index
    %c0_18 = arith.constant 0 : index
    %9 = vector.load %arg1[%c0_15, %c0_16, %c0_17, %c0_18] : memref<1x16x16x64xf32, #tpu.memory_space<vmem>>, vector<1x16x16x64xf32>
    %10 = vector.shape_cast %9 : vector<1x16x16x64xf32> to vector<16x16x64xf32>
    %11 = arith.truncf %10 : vector<16x16x64xf32> to vector<16x16x64xbf16>
    %c1 = arith.constant 1 : index
    %c1_19 = arith.constant 1 : index
    %c0_20 = arith.constant 0 : index
    %12 = vector.load %arg14[%c1, %c1_19, %c0_20] : memref<18x18x64xbf16, #tpu.memory_space<vmem>>, vector<16x16x64xbf16>
    tpu.vector_store %arg14[%c1, %c1_19, %c0_20], %11 {strides = array<i32>} : memref<18x18x64xbf16, #tpu.memory_space<vmem>>, vector<16x16x64xbf16>,
    %c0_21 = arith.constant 0 : index
    %c0_22 = arith.constant 0 : index
    %13 = vector.load %arg4[%c0_21, %c0_22] : memref<1x64xf32, #tpu.memory_space<vmem>>, vector<1x64xf32>
    %c0_23 = arith.constant 0 : index
    %c0_24 = arith.constant 0 : index
    %14 = vector.load %arg5[%c0_23, %c0_24] : memref<1x64xf32, #tpu.memory_space<vmem>>, vector<1x64xf32>
    %c0_25 = arith.constant 0 : index
    %c0_26 = arith.constant 0 : index
    %15 = vector.load %arg6[%c0_25, %c0_26] : memref<1x64xf32, #tpu.memory_space<vmem>>, vector<1x64xf32>
    %cst_27 = arith.constant 0.000000e+00 : f32
    %16 = vector.broadcast %cst_27 : f32 to vector<256x64xf32>
    %c0_28 = arith.constant 0 : index
    %c0_29 = arith.constant 0 : index
    %c0_30 = arith.constant 0 : index
    %17 = vector.load %arg14[%c0_28, %c0_29, %c0_30] : memref<18x18x64xbf16, #tpu.memory_space<vmem>>, vector<16x16x64xbf16>
    %18 = vector.shape_cast %17 : vector<16x16x64xbf16> to vector<256x64xbf16>
    %c0_31 = arith.constant 0 : index
    %c0_32 = arith.constant 0 : index
    %c0_33 = arith.constant 0 : index
    %19 = vector.load %arg3[%c0_31, %c0_32, %c0_33] : memref<9x64x64xbf16, #tpu.memory_space<vmem>>, vector<1x64x64xbf16>
    %20 = vector.shape_cast %19 : vector<1x64x64xbf16> to vector<64x64xbf16>
    %cst_34 = arith.constant dense<0.000000e+00> : vector<256x64xf32>
    %21 = tpu.matmul %18, %20, %cst_34 {dimension_numbers = #tpu.dot_dimension_numbers<[1], [0], [0], [1], [0, 0, 1, 1], [], []>} : vector<256x64xbf16>, vector<64x64xbf16>, vector<256x64xf32> -> vector<256x64xf32>
    %22 = arith.addf %16, %21 : vector<256x64xf32>
    %c0_35 = arith.constant 0 : index
    %c1_36 = arith.constant 1 : index
    %c0_37 = arith.constant 0 : index
    %23 = vector.load %arg14[%c0_35, %c1_36, %c0_37] : memref<18x18x64xbf16, #tpu.memory_space<vmem>>, vector<16x16x64xbf16>
    %24 = vector.shape_cast %23 : vector<16x16x64xbf16> to vector<256x64xbf16>
    %c1_38 = arith.constant 1 : index
    %c0_39 = arith.constant 0 : index
    %c0_40 = arith.constant 0 : index
    %25 = vector.load %arg3[%c1_38, %c0_39, %c0_40] : memref<9x64x64xbf16, #tpu.memory_space<vmem>>, vector<1x64x64xbf16>
    %26 = vector.shape_cast %25 : vector<1x64x64xbf16> to vector<64x64xbf16>
    %cst_41 = arith.constant dense<0.000000e+00> : vector<256x64xf32>
    %27 = tpu.matmul %24, %26, %cst_41 {dimension_numbers = #tpu.dot_dimension_numbers<[1], [0], [0], [1], [0, 0, 1, 1], [], []>} : vector<256x64xbf16>, vector<64x64xbf16>, vector<256x64xf32> -> vector<256x64xf32>
    %28 = arith.addf %22, %27 : vector<256x64xf32>
    %c0_42 = arith.constant 0 : index
    %c2 = arith.constant 2 : index
    %c0_43 = arith.constant 0 : index
    %29 = vector.load %arg14[%c0_42, %c2, %c0_43] : memref<18x18x64xbf16, #tpu.memory_space<vmem>>, vector<16x16x64xbf16>
    %30 = vector.shape_cast %29 : vector<16x16x64xbf16> to vector<256x64xbf16>
    %c2_44 = arith.constant 2 : index
    %c0_45 = arith.constant 0 : index
    %c0_46 = arith.constant 0 : index
    %31 = vector.load %arg3[%c2_44, %c0_45, %c0_46] : memref<9x64x64xbf16, #tpu.memory_space<vmem>>, vector<1x64x64xbf16>
    %32 = vector.shape_cast %31 : vector<1x64x64xbf16> to vector<64x64xbf16>
    %cst_47 = arith.constant dense<0.000000e+00> : vector<256x64xf32>
    %33 = tpu.matmul %30, %32, %cst_47 {dimension_numbers = #tpu.dot_dimension_numbers<[1], [0], [0], [1], [0, 0, 1, 1], [], []>} : vector<256x64xbf16>, vector<64x64xbf16>, vector<256x64xf32> -> vector<256x64xf32>
    %34 = arith.addf %28, %33 : vector<256x64xf32>
    %c1_48 = arith.constant 1 : index
    %c0_49 = arith.constant 0 : index
    %c0_50 = arith.constant 0 : index
    %35 = vector.load %arg14[%c1_48, %c0_49, %c0_50] : memref<18x18x64xbf16, #tpu.memory_space<vmem>>, vector<16x16x64xbf16>
    %36 = vector.shape_cast %35 : vector<16x16x64xbf16> to vector<256x64xbf16>
    %c3 = arith.constant 3 : index
    %c0_51 = arith.constant 0 : index
    %c0_52 = arith.constant 0 : index
    %37 = vector.load %arg3[%c3, %c0_51, %c0_52] : memref<9x64x64xbf16, #tpu.memory_space<vmem>>, vector<1x64x64xbf16>
    %38 = vector.shape_cast %37 : vector<1x64x64xbf16> to vector<64x64xbf16>
    %cst_53 = arith.constant dense<0.000000e+00> : vector<256x64xf32>
    %39 = tpu.matmul %36, %38, %cst_53 {dimension_numbers = #tpu.dot_dimension_numbers<[1], [0], [0], [1], [0, 0, 1, 1], [], []>} : vector<256x64xbf16>, vector<64x64xbf16>, vector<256x64xf32> -> vector<256x64xf32>
    %40 = arith.addf %34, %39 : vector<256x64xf32>
    %c1_54 = arith.constant 1 : index
    %c1_55 = arith.constant 1 : index
    %c0_56 = arith.constant 0 : index
    %41 = vector.load %arg14[%c1_54, %c1_55, %c0_56] : memref<18x18x64xbf16, #tpu.memory_space<vmem>>, vector<16x16x64xbf16>
    %42 = vector.shape_cast %41 : vector<16x16x64xbf16> to vector<256x64xbf16>
    %c4 = arith.constant 4 : index
    %c0_57 = arith.constant 0 : index
    %c0_58 = arith.constant 0 : index
    %43 = vector.load %arg3[%c4, %c0_57, %c0_58] : memref<9x64x64xbf16, #tpu.memory_space<vmem>>, vector<1x64x64xbf16>
    %44 = vector.shape_cast %43 : vector<1x64x64xbf16> to vector<64x64xbf16>
    %cst_59 = arith.constant dense<0.000000e+00> : vector<256x64xf32>
    %45 = tpu.matmul %42, %44, %cst_59 {dimension_numbers = #tpu.dot_dimension_numbers<[1], [0], [0], [1], [0, 0, 1, 1], [], []>} : vector<256x64xbf16>, vector<64x64xbf16>, vector<256x64xf32> -> vector<256x64xf32>
    %46 = arith.addf %40, %45 : vector<256x64xf32>
    %c1_60 = arith.constant 1 : index
    %c2_61 = arith.constant 2 : index
    %c0_62 = arith.constant 0 : index
    %47 = vector.load %arg14[%c1_60, %c2_61, %c0_62] : memref<18x18x64xbf16, #tpu.memory_space<vmem>>, vector<16x16x64xbf16>
    %48 = vector.shape_cast %47 : vector<16x16x64xbf16> to vector<256x64xbf16>
    %c5 = arith.constant 5 : index
    %c0_63 = arith.constant 0 : index
    %c0_64 = arith.constant 0 : index
    %49 = vector.load %arg3[%c5, %c0_63, %c0_64] : memref<9x64x64xbf16, #tpu.memory_space<vmem>>, vector<1x64x64xbf16>
    %50 = vector.shape_cast %49 : vector<1x64x64xbf16> to vector<64x64xbf16>
    %cst_65 = arith.constant dense<0.000000e+00> : vector<256x64xf32>
    %51 = tpu.matmul %48, %50, %cst_65 {dimension_numbers = #tpu.dot_dimension_numbers<[1], [0], [0], [1], [0, 0, 1, 1], [], []>} : vector<256x64xbf16>, vector<64x64xbf16>, vector<256x64xf32> -> vector<256x64xf32>
    %52 = arith.addf %46, %51 : vector<256x64xf32>
    %c2_66 = arith.constant 2 : index
    %c0_67 = arith.constant 0 : index
    %c0_68 = arith.constant 0 : index
    %53 = vector.load %arg14[%c2_66, %c0_67, %c0_68] : memref<18x18x64xbf16, #tpu.memory_space<vmem>>, vector<16x16x64xbf16>
    %54 = vector.shape_cast %53 : vector<16x16x64xbf16> to vector<256x64xbf16>
    %c6 = arith.constant 6 : index
    %c0_69 = arith.constant 0 : index
    %c0_70 = arith.constant 0 : index
    %55 = vector.load %arg3[%c6, %c0_69, %c0_70] : memref<9x64x64xbf16, #tpu.memory_space<vmem>>, vector<1x64x64xbf16>
    %56 = vector.shape_cast %55 : vector<1x64x64xbf16> to vector<64x64xbf16>
    %cst_71 = arith.constant dense<0.000000e+00> : vector<256x64xf32>
    %57 = tpu.matmul %54, %56, %cst_71 {dimension_numbers = #tpu.dot_dimension_numbers<[1], [0], [0], [1], [0, 0, 1, 1], [], []>} : vector<256x64xbf16>, vector<64x64xbf16>, vector<256x64xf32> -> vector<256x64xf32>
    %58 = arith.addf %52, %57 : vector<256x64xf32>
    %c2_72 = arith.constant 2 : index
    %c1_73 = arith.constant 1 : index
    %c0_74 = arith.constant 0 : index
    %59 = vector.load %arg14[%c2_72, %c1_73, %c0_74] : memref<18x18x64xbf16, #tpu.memory_space<vmem>>, vector<16x16x64xbf16>
    %60 = vector.shape_cast %59 : vector<16x16x64xbf16> to vector<256x64xbf16>
    %c7 = arith.constant 7 : index
    %c0_75 = arith.constant 0 : index
    %c0_76 = arith.constant 0 : index
    %61 = vector.load %arg3[%c7, %c0_75, %c0_76] : memref<9x64x64xbf16, #tpu.memory_space<vmem>>, vector<1x64x64xbf16>
    %62 = vector.shape_cast %61 : vector<1x64x64xbf16> to vector<64x64xbf16>
    %cst_77 = arith.constant dense<0.000000e+00> : vector<256x64xf32>
    %63 = tpu.matmul %60, %62, %cst_77 {dimension_numbers = #tpu.dot_dimension_numbers<[1], [0], [0], [1], [0, 0, 1, 1], [], []>} : vector<256x64xbf16>, vector<64x64xbf16>, vector<256x64xf32> -> vector<256x64xf32>
    %64 = arith.addf %58, %63 : vector<256x64xf32>
    %c2_78 = arith.constant 2 : index
    %c2_79 = arith.constant 2 : index
    %c0_80 = arith.constant 0 : index
    %65 = vector.load %arg14[%c2_78, %c2_79, %c0_80] : memref<18x18x64xbf16, #tpu.memory_space<vmem>>, vector<16x16x64xbf16>
    %66 = vector.shape_cast %65 : vector<16x16x64xbf16> to vector<256x64xbf16>
    %c8 = arith.constant 8 : index
    %c0_81 = arith.constant 0 : index
    %c0_82 = arith.constant 0 : index
    %67 = vector.load %arg3[%c8, %c0_81, %c0_82] : memref<9x64x64xbf16, #tpu.memory_space<vmem>>, vector<1x64x64xbf16>
    %68 = vector.shape_cast %67 : vector<1x64x64xbf16> to vector<64x64xbf16>
    %cst_83 = arith.constant dense<0.000000e+00> : vector<256x64xf32>
    %69 = tpu.matmul %66, %68, %cst_83 {dimension_numbers = #tpu.dot_dimension_numbers<[1], [0], [0], [1], [0, 0, 1, 1], [], []>} : vector<256x64xbf16>, vector<64x64xbf16>, vector<256x64xf32> -> vector<256x64xf32>
    %70 = arith.addf %64, %69 : vector<256x64xf32>
    %cst_84 = arith.constant dense<0.000000e+00> : vector<64xf32>
    %71 = vector.multi_reduction <add>, %70, %cst_84 [0] : vector<256x64xf32> to vector<64xf32>
    %72 = vector.shape_cast %71 : vector<64xf32> to vector<1x64xf32>
    %cst_85 = arith.constant dense<0.000000e+00> : vector<1x64xf32>
    %73 = tpu.matmul %72, %0, %cst_85 {dimension_numbers = #tpu.dot_dimension_numbers<[1], [0], [0], [1], [0, 0, 1, 1], [], []>} : vector<1x64xf32>, vector<64x64xf32>, vector<1x64xf32> -> vector<1x64xf32>
    %cst_86 = arith.constant 0.001953125 : f32
    %74 = vector.broadcast %cst_86 : f32 to vector<1x64xf32>
    %75 = arith.mulf %73, %74 : vector<1x64xf32>
    %76 = arith.subf %75, %13 : vector<1x64xf32>
    %77 = vector.broadcast %76 : vector<1x64xf32> to vector<256x64xf32>
    %78 = arith.subf %70, %77 : vector<256x64xf32>
    %79 = arith.mulf %78, %78 : vector<256x64xf32>
    %cst_87 = arith.constant dense<0.000000e+00> : vector<64xf32>
    %80 = vector.multi_reduction <add>, %79, %cst_87 [0] : vector<256x64xf32> to vector<64xf32>
    %81 = vector.shape_cast %80 : vector<64xf32> to vector<1x64xf32>
    %cst_88 = arith.constant dense<0.000000e+00> : vector<1x64xf32>
    %82 = tpu.matmul %81, %0, %cst_88 {dimension_numbers = #tpu.dot_dimension_numbers<[1], [0], [0], [1], [0, 0, 1, 1], [], []>} : vector<1x64xf32>, vector<64x64xf32>, vector<1x64xf32> -> vector<1x64xf32>
    %cst_89 = arith.constant 0.001953125 : f32
    %83 = vector.broadcast %cst_89 : f32 to vector<1x64xf32>
    %84 = arith.mulf %82, %83 : vector<1x64xf32>
    %cst_90 = arith.constant 9.99999974E-6 : f32
    %85 = vector.broadcast %cst_90 : f32 to vector<1x64xf32>
    %86 = arith.addf %84, %85 : vector<1x64xf32>
    %87 = math.rsqrt %86 : vector<1x64xf32>
    %88 = arith.mulf %87, %14 : vector<1x64xf32>
    %89 = vector.broadcast %88 : vector<1x64xf32> to vector<256x64xf32>
    %90 = arith.mulf %78, %89 : vector<256x64xf32>
    %91 = vector.broadcast %15 : vector<1x64xf32> to vector<256x64xf32>
    %92 = arith.addf %90, %91 : vector<256x64xf32>
    %cst_91 = arith.constant 0.707106769 : f32
    %93 = vector.broadcast %cst_91 : f32 to vector<256x64xf32>
    %94 = arith.mulf %92, %93 : vector<256x64xf32>
    %95 = math.absf %94 : vector<256x64xf32>
    %cst_92 = arith.constant 0.327591091 : f32
    %96 = vector.broadcast %cst_92 : f32 to vector<256x64xf32>
    %97 = arith.mulf %96, %95 : vector<256x64xf32>
    %cst_93 = arith.constant 1.000000e+00 : f32
    %98 = vector.broadcast %cst_93 : f32 to vector<256x64xf32>
    %99 = arith.addf %98, %97 : vector<256x64xf32>
    %100 = tpu.reciprocal %99 {approx = true} : vector<256x64xf32> -> vector<256x64xf32>
    %cst_94 = arith.constant 1.06140542 : f32
    %101 = vector.broadcast %cst_94 : f32 to vector<256x64xf32>
    %102 = arith.mulf %101, %100 : vector<256x64xf32>
    %cst_95 = arith.constant 1.45315206 : f32
    %103 = vector.broadcast %cst_95 : f32 to vector<256x64xf32>
    %104 = arith.subf %102, %103 : vector<256x64xf32>
    %105 = arith.mulf %104, %100 : vector<256x64xf32>
    %cst_96 = arith.constant 1.42141378 : f32
    %106 = vector.broadcast %cst_96 : f32 to vector<256x64xf32>
    %107 = arith.addf %105, %106 : vector<256x64xf32>
    %108 = arith.mulf %107, %100 : vector<256x64xf32>
    %cst_97 = arith.constant 0.284496725 : f32
    %109 = vector.broadcast %cst_97 : f32 to vector<256x64xf32>
    %110 = arith.subf %108, %109 : vector<256x64xf32>
    %111 = arith.mulf %110, %100 : vector<256x64xf32>
    %cst_98 = arith.constant 0.254829586 : f32
    %112 = vector.broadcast %cst_98 : f32 to vector<256x64xf32>
    %113 = arith.addf %111, %112 : vector<256x64xf32>
    %114 = arith.mulf %113, %100 : vector<256x64xf32>
    %cst_99 = arith.constant 0.000000e+00 : f32
    %115 = vector.broadcast %cst_99 : f32 to vector<256x64xf32>
    %116 = arith.subf %115, %95 : vector<256x64xf32>
    %117 = arith.mulf %116, %95 : vector<256x64xf32>
    %118 = math.exp %117 : vector<256x64xf32>
    %119 = arith.mulf %114, %118 : vector<256x64xf32>
    %cst_100 = arith.constant 1.000000e+00 : f32
    %120 = vector.broadcast %cst_100 : f32 to vector<256x64xf32>
    %121 = arith.subf %120, %119 : vector<256x64xf32>
    %cst_101 = arith.constant 0.000000e+00 : f32
    %122 = vector.broadcast %cst_101 : f32 to vector<256x64xf32>
    %123 = arith.cmpf oge, %94, %122 : vector<256x64xf32>
    %cst_102 = arith.constant 0.000000e+00 : f32
    %124 = vector.broadcast %cst_102 : f32 to vector<256x64xf32>
    %125 = arith.subf %124, %121 : vector<256x64xf32>
    %126 = arith.select %123, %121, %125 : vector<256x64xi1>, vector<256x64xf32>
    %cst_103 = arith.constant 5.000000e-01 : f32
    %127 = vector.broadcast %cst_103 : f32 to vector<256x64xf32>
    %128 = arith.mulf %127, %92 : vector<256x64xf32>
    %cst_104 = arith.constant 1.000000e+00 : f32
    %129 = vector.broadcast %cst_104 : f32 to vector<256x64xf32>
    %130 = arith.addf %129, %126 : vector<256x64xf32>
    %131 = arith.mulf %128, %130 : vector<256x64xf32>
    %cst_105 = arith.constant 0.000000e+00 : bf16
    %132 = vector.broadcast %cst_105 : bf16 to vector<1x18x64xbf16>
    %c0_106 = arith.constant 0 : index
    %c0_107 = arith.constant 0 : index
    %c0_108 = arith.constant 0 : index
    %133 = vector.load %arg15[%c0_106, %c0_107, %c0_108] : memref<18x18x64xbf16, #tpu.memory_space<vmem>>, vector<1x18x64xbf16>
    tpu.vector_store %arg15[%c0_106, %c0_107, %c0_108], %132 {strides = array<i32>} : memref<18x18x64xbf16, #tpu.memory_space<vmem>>, vector<1x18x64xbf16>,
    %cst_109 = arith.constant 0.000000e+00 : bf16
    %134 = vector.broadcast %cst_109 : bf16 to vector<1x18x64xbf16>
    %c17_110 = arith.constant 17 : index
    %c0_111 = arith.constant 0 : index
    %c0_112 = arith.constant 0 : index
    %135 = vector.load %arg15[%c17_110, %c0_111, %c0_112] : memref<18x18x64xbf16, #tpu.memory_space<vmem>>, vector<1x18x64xbf16>
    tpu.vector_store %arg15[%c17_110, %c0_111, %c0_112], %134 {strides = array<i32>} : memref<18x18x64xbf16, #tpu.memory_space<vmem>>, vector<1x18x64xbf16>,
    %cst_113 = arith.constant 0.000000e+00 : bf16
    %136 = vector.broadcast %cst_113 : bf16 to vector<18x1x64xbf16>
    %c0_114 = arith.constant 0 : index
    %c0_115 = arith.constant 0 : index
    %c0_116 = arith.constant 0 : index
    %137 = vector.load %arg15[%c0_114, %c0_115, %c0_116] : memref<18x18x64xbf16, #tpu.memory_space<vmem>>, vector<18x1x64xbf16>
    tpu.vector_store %arg15[%c0_114, %c0_115, %c0_116], %136 {strides = array<i32>} : memref<18x18x64xbf16, #tpu.memory_space<vmem>>, vector<18x1x64xbf16>,
    %cst_117 = arith.constant 0.000000e+00 : bf16
    %138 = vector.broadcast %cst_117 : bf16 to vector<18x1x64xbf16>
    %c0_118 = arith.constant 0 : index
    %c17_119 = arith.constant 17 : index
    %c0_120 = arith.constant 0 : index
    %139 = vector.load %arg15[%c0_118, %c17_119, %c0_120] : memref<18x18x64xbf16, #tpu.memory_space<vmem>>, vector<18x1x64xbf16>
    tpu.vector_store %arg15[%c0_118, %c17_119, %c0_120], %138 {strides = array<i32>} : memref<18x18x64xbf16, #tpu.memory_space<vmem>>, vector<18x1x64xbf16>,
    %140 = vector.shape_cast %131 : vector<256x64xf32> to vector<16x16x64xf32>
    %141 = arith.truncf %140 : vector<16x16x64xf32> to vector<16x16x64xbf16>
    %c1_121 = arith.constant 1 : index
    %c1_122 = arith.constant 1 : index
    %c0_123 = arith.constant 0 : index
    %142 = vector.load %arg15[%c1_121, %c1_122, %c0_123] : memref<18x18x64xbf16, #tpu.memory_space<vmem>>, vector<16x16x64xbf16>
    tpu.vector_store %arg15[%c1_121, %c1_122, %c0_123], %141 {strides = array<i32>} : memref<18x18x64xbf16, #tpu.memory_space<vmem>>, vector<16x16x64xbf16>,
    %c0_124 = arith.constant 0 : index
    %c0_125 = arith.constant 0 : index
    %143 = vector.load %arg8[%c0_124, %c0_125] : memref<1x64xf32, #tpu.memory_space<vmem>>, vector<1x64xf32>
    %c0_126 = arith.constant 0 : index
    %c0_127 = arith.constant 0 : index
    %144 = vector.load %arg9[%c0_126, %c0_127] : memref<1x64xf32, #tpu.memory_space<vmem>>, vector<1x64xf32>
    %c0_128 = arith.constant 0 : index
    %c0_129 = arith.constant 0 : index
    %145 = vector.load %arg10[%c0_128, %c0_129] : memref<1x64xf32, #tpu.memory_space<vmem>>, vector<1x64xf32>
    %cst_130 = arith.constant 0.000000e+00 : f32
    %146 = vector.broadcast %cst_130 : f32 to vector<256x64xf32>
    %c0_131 = arith.constant 0 : index
    %c0_132 = arith.constant 0 : index
    %c0_133 = arith.constant 0 : index
    %147 = vector.load %arg15[%c0_131, %c0_132, %c0_133] : memref<18x18x64xbf16, #tpu.memory_space<vmem>>, vector<16x16x64xbf16>
    %148 = vector.shape_cast %147 : vector<16x16x64xbf16> to vector<256x64xbf16>
    %c0_134 = arith.constant 0 : index
    %c0_135 = arith.constant 0 : index
    %c0_136 = arith.constant 0 : index
    %149 = vector.load %arg7[%c0_134, %c0_135, %c0_136] : memref<9x64x64xbf16, #tpu.memory_space<vmem>>, vector<1x64x64xbf16>
    %150 = vector.shape_cast %149 : vector<1x64x64xbf16> to vector<64x64xbf16>
    %cst_137 = arith.constant dense<0.000000e+00> : vector<256x64xf32>
    %151 = tpu.matmul %148, %150, %cst_137 {dimension_numbers = #tpu.dot_dimension_numbers<[1], [0], [0], [1], [0, 0, 1, 1], [], []>} : vector<256x64xbf16>, vector<64x64xbf16>, vector<256x64xf32> -> vector<256x64xf32>
    %152 = arith.addf %146, %151 : vector<256x64xf32>
    %c0_138 = arith.constant 0 : index
    %c1_139 = arith.constant 1 : index
    %c0_140 = arith.constant 0 : index
    %153 = vector.load %arg15[%c0_138, %c1_139, %c0_140] : memref<18x18x64xbf16, #tpu.memory_space<vmem>>, vector<16x16x64xbf16>
    %154 = vector.shape_cast %153 : vector<16x16x64xbf16> to vector<256x64xbf16>
    %c1_141 = arith.constant 1 : index
    %c0_142 = arith.constant 0 : index
    %c0_143 = arith.constant 0 : index
    %155 = vector.load %arg7[%c1_141, %c0_142, %c0_143] : memref<9x64x64xbf16, #tpu.memory_space<vmem>>, vector<1x64x64xbf16>
    %156 = vector.shape_cast %155 : vector<1x64x64xbf16> to vector<64x64xbf16>
    %cst_144 = arith.constant dense<0.000000e+00> : vector<256x64xf32>
    %157 = tpu.matmul %154, %156, %cst_144 {dimension_numbers = #tpu.dot_dimension_numbers<[1], [0], [0], [1], [0, 0, 1, 1], [], []>} : vector<256x64xbf16>, vector<64x64xbf16>, vector<256x64xf32> -> vector<256x64xf32>
    %158 = arith.addf %152, %157 : vector<256x64xf32>
    %c0_145 = arith.constant 0 : index
    %c2_146 = arith.constant 2 : index
    %c0_147 = arith.constant 0 : index
    %159 = vector.load %arg15[%c0_145, %c2_146, %c0_147] : memref<18x18x64xbf16, #tpu.memory_space<vmem>>, vector<16x16x64xbf16>
    %160 = vector.shape_cast %159 : vector<16x16x64xbf16> to vector<256x64xbf16>
    %c2_148 = arith.constant 2 : index
    %c0_149 = arith.constant 0 : index
    %c0_150 = arith.constant 0 : index
    %161 = vector.load %arg7[%c2_148, %c0_149, %c0_150] : memref<9x64x64xbf16, #tpu.memory_space<vmem>>, vector<1x64x64xbf16>
    %162 = vector.shape_cast %161 : vector<1x64x64xbf16> to vector<64x64xbf16>
    %cst_151 = arith.constant dense<0.000000e+00> : vector<256x64xf32>
    %163 = tpu.matmul %160, %162, %cst_151 {dimension_numbers = #tpu.dot_dimension_numbers<[1], [0], [0], [1], [0, 0, 1, 1], [], []>} : vector<256x64xbf16>, vector<64x64xbf16>, vector<256x64xf32> -> vector<256x64xf32>
    %164 = arith.addf %158, %163 : vector<256x64xf32>
    %c1_152 = arith.constant 1 : index
    %c0_153 = arith.constant 0 : index
    %c0_154 = arith.constant 0 : index
    %165 = vector.load %arg15[%c1_152, %c0_153, %c0_154] : memref<18x18x64xbf16, #tpu.memory_space<vmem>>, vector<16x16x64xbf16>
    %166 = vector.shape_cast %165 : vector<16x16x64xbf16> to vector<256x64xbf16>
    %c3_155 = arith.constant 3 : index
    %c0_156 = arith.constant 0 : index
    %c0_157 = arith.constant 0 : index
    %167 = vector.load %arg7[%c3_155, %c0_156, %c0_157] : memref<9x64x64xbf16, #tpu.memory_space<vmem>>, vector<1x64x64xbf16>
    %168 = vector.shape_cast %167 : vector<1x64x64xbf16> to vector<64x64xbf16>
    %cst_158 = arith.constant dense<0.000000e+00> : vector<256x64xf32>
    %169 = tpu.matmul %166, %168, %cst_158 {dimension_numbers = #tpu.dot_dimension_numbers<[1], [0], [0], [1], [0, 0, 1, 1], [], []>} : vector<256x64xbf16>, vector<64x64xbf16>, vector<256x64xf32> -> vector<256x64xf32>
    %170 = arith.addf %164, %169 : vector<256x64xf32>
    %c1_159 = arith.constant 1 : index
    %c1_160 = arith.constant 1 : index
    %c0_161 = arith.constant 0 : index
    %171 = vector.load %arg15[%c1_159, %c1_160, %c0_161] : memref<18x18x64xbf16, #tpu.memory_space<vmem>>, vector<16x16x64xbf16>
    %172 = vector.shape_cast %171 : vector<16x16x64xbf16> to vector<256x64xbf16>
    %c4_162 = arith.constant 4 : index
    %c0_163 = arith.constant 0 : index
    %c0_164 = arith.constant 0 : index
    %173 = vector.load %arg7[%c4_162, %c0_163, %c0_164] : memref<9x64x64xbf16, #tpu.memory_space<vmem>>, vector<1x64x64xbf16>
    %174 = vector.shape_cast %173 : vector<1x64x64xbf16> to vector<64x64xbf16>
    %cst_165 = arith.constant dense<0.000000e+00> : vector<256x64xf32>
    %175 = tpu.matmul %172, %174, %cst_165 {dimension_numbers = #tpu.dot_dimension_numbers<[1], [0], [0], [1], [0, 0, 1, 1], [], []>} : vector<256x64xbf16>, vector<64x64xbf16>, vector<256x64xf32> -> vector<256x64xf32>
    %176 = arith.addf %170, %175 : vector<256x64xf32>
    %c1_166 = arith.constant 1 : index
    %c2_167 = arith.constant 2 : index
    %c0_168 = arith.constant 0 : index
    %177 = vector.load %arg15[%c1_166, %c2_167, %c0_168] : memref<18x18x64xbf16, #tpu.memory_space<vmem>>, vector<16x16x64xbf16>
    %178 = vector.shape_cast %177 : vector<16x16x64xbf16> to vector<256x64xbf16>
    %c5_169 = arith.constant 5 : index
    %c0_170 = arith.constant 0 : index
    %c0_171 = arith.constant 0 : index
    %179 = vector.load %arg7[%c5_169, %c0_170, %c0_171] : memref<9x64x64xbf16, #tpu.memory_space<vmem>>, vector<1x64x64xbf16>
    %180 = vector.shape_cast %179 : vector<1x64x64xbf16> to vector<64x64xbf16>
    %cst_172 = arith.constant dense<0.000000e+00> : vector<256x64xf32>
    %181 = tpu.matmul %178, %180, %cst_172 {dimension_numbers = #tpu.dot_dimension_numbers<[1], [0], [0], [1], [0, 0, 1, 1], [], []>} : vector<256x64xbf16>, vector<64x64xbf16>, vector<256x64xf32> -> vector<256x64xf32>
    %182 = arith.addf %176, %181 : vector<256x64xf32>
    %c2_173 = arith.constant 2 : index
    %c0_174 = arith.constant 0 : index
    %c0_175 = arith.constant 0 : index
    %183 = vector.load %arg15[%c2_173, %c0_174, %c0_175] : memref<18x18x64xbf16, #tpu.memory_space<vmem>>, vector<16x16x64xbf16>
    %184 = vector.shape_cast %183 : vector<16x16x64xbf16> to vector<256x64xbf16>
    %c6_176 = arith.constant 6 : index
    %c0_177 = arith.constant 0 : index
    %c0_178 = arith.constant 0 : index
    %185 = vector.load %arg7[%c6_176, %c0_177, %c0_178] : memref<9x64x64xbf16, #tpu.memory_space<vmem>>, vector<1x64x64xbf16>
    %186 = vector.shape_cast %185 : vector<1x64x64xbf16> to vector<64x64xbf16>
    %cst_179 = arith.constant dense<0.000000e+00> : vector<256x64xf32>
    %187 = tpu.matmul %184, %186, %cst_179 {dimension_numbers = #tpu.dot_dimension_numbers<[1], [0], [0], [1], [0, 0, 1, 1], [], []>} : vector<256x64xbf16>, vector<64x64xbf16>, vector<256x64xf32> -> vector<256x64xf32>
    %188 = arith.addf %182, %187 : vector<256x64xf32>
    %c2_180 = arith.constant 2 : index
    %c1_181 = arith.constant 1 : index
    %c0_182 = arith.constant 0 : index
    %189 = vector.load %arg15[%c2_180, %c1_181, %c0_182] : memref<18x18x64xbf16, #tpu.memory_space<vmem>>, vector<16x16x64xbf16>
    %190 = vector.shape_cast %189 : vector<16x16x64xbf16> to vector<256x64xbf16>
    %c7_183 = arith.constant 7 : index
    %c0_184 = arith.constant 0 : index
    %c0_185 = arith.constant 0 : index
    %191 = vector.load %arg7[%c7_183, %c0_184, %c0_185] : memref<9x64x64xbf16, #tpu.memory_space<vmem>>, vector<1x64x64xbf16>
    %192 = vector.shape_cast %191 : vector<1x64x64xbf16> to vector<64x64xbf16>
    %cst_186 = arith.constant dense<0.000000e+00> : vector<256x64xf32>
    %193 = tpu.matmul %190, %192, %cst_186 {dimension_numbers = #tpu.dot_dimension_numbers<[1], [0], [0], [1], [0, 0, 1, 1], [], []>} : vector<256x64xbf16>, vector<64x64xbf16>, vector<256x64xf32> -> vector<256x64xf32>
    %194 = arith.addf %188, %193 : vector<256x64xf32>
    %c2_187 = arith.constant 2 : index
    %c2_188 = arith.constant 2 : index
    %c0_189 = arith.constant 0 : index
    %195 = vector.load %arg15[%c2_187, %c2_188, %c0_189] : memref<18x18x64xbf16, #tpu.memory_space<vmem>>, vector<16x16x64xbf16>
    %196 = vector.shape_cast %195 : vector<16x16x64xbf16> to vector<256x64xbf16>
    %c8_190 = arith.constant 8 : index
    %c0_191 = arith.constant 0 : index
    %c0_192 = arith.constant 0 : index
    %197 = vector.load %arg7[%c8_190, %c0_191, %c0_192] : memref<9x64x64xbf16, #tpu.memory_space<vmem>>, vector<1x64x64xbf16>
    %198 = vector.shape_cast %197 : vector<1x64x64xbf16> to vector<64x64xbf16>
    %cst_193 = arith.constant dense<0.000000e+00> : vector<256x64xf32>
    %199 = tpu.matmul %196, %198, %cst_193 {dimension_numbers = #tpu.dot_dimension_numbers<[1], [0], [0], [1], [0, 0, 1, 1], [], []>} : vector<256x64xbf16>, vector<64x64xbf16>, vector<256x64xf32> -> vector<256x64xf32>
    %200 = arith.addf %194, %199 : vector<256x64xf32>
    %cst_194 = arith.constant dense<0.000000e+00> : vector<64xf32>
    %201 = vector.multi_reduction <add>, %200, %cst_194 [0] : vector<256x64xf32> to vector<64xf32>
    %202 = vector.shape_cast %201 : vector<64xf32> to vector<1x64xf32>
    %cst_195 = arith.constant dense<0.000000e+00> : vector<1x64xf32>
    %203 = tpu.matmul %202, %0, %cst_195 {dimension_numbers = #tpu.dot_dimension_numbers<[1], [0], [0], [1], [0, 0, 1, 1], [], []>} : vector<1x64xf32>, vector<64x64xf32>, vector<1x64xf32> -> vector<1x64xf32>
    %cst_196 = arith.constant 0.001953125 : f32
    %204 = vector.broadcast %cst_196 : f32 to vector<1x64xf32>
    %205 = arith.mulf %203, %204 : vector<1x64xf32>
    %206 = arith.subf %205, %143 : vector<1x64xf32>
    %207 = vector.broadcast %206 : vector<1x64xf32> to vector<256x64xf32>
    %208 = arith.subf %200, %207 : vector<256x64xf32>
    %209 = arith.mulf %208, %208 : vector<256x64xf32>
    %cst_197 = arith.constant dense<0.000000e+00> : vector<64xf32>
    %210 = vector.multi_reduction <add>, %209, %cst_197 [0] : vector<256x64xf32> to vector<64xf32>
    %211 = vector.shape_cast %210 : vector<64xf32> to vector<1x64xf32>
    %cst_198 = arith.constant dense<0.000000e+00> : vector<1x64xf32>
    %212 = tpu.matmul %211, %0, %cst_198 {dimension_numbers = #tpu.dot_dimension_numbers<[1], [0], [0], [1], [0, 0, 1, 1], [], []>} : vector<1x64xf32>, vector<64x64xf32>, vector<1x64xf32> -> vector<1x64xf32>
    %cst_199 = arith.constant 0.001953125 : f32
    %213 = vector.broadcast %cst_199 : f32 to vector<1x64xf32>
    %214 = arith.mulf %212, %213 : vector<1x64xf32>
    %cst_200 = arith.constant 9.99999974E-6 : f32
    %215 = vector.broadcast %cst_200 : f32 to vector<1x64xf32>
    %216 = arith.addf %214, %215 : vector<1x64xf32>
    %217 = math.rsqrt %216 : vector<1x64xf32>
    %218 = arith.mulf %217, %144 : vector<1x64xf32>
    %219 = vector.broadcast %218 : vector<1x64xf32> to vector<256x64xf32>
    %220 = arith.mulf %208, %219 : vector<256x64xf32>
    %221 = vector.broadcast %145 : vector<1x64xf32> to vector<256x64xf32>
    %222 = arith.addf %220, %221 : vector<256x64xf32>
    %cst_201 = arith.constant 0.707106769 : f32
    %223 = vector.broadcast %cst_201 : f32 to vector<256x64xf32>
    %224 = arith.mulf %222, %223 : vector<256x64xf32>
    %225 = math.absf %224 : vector<256x64xf32>
    %cst_202 = arith.constant 0.327591091 : f32
    %226 = vector.broadcast %cst_202 : f32 to vector<256x64xf32>
    %227 = arith.mulf %226, %225 : vector<256x64xf32>
    %cst_203 = arith.constant 1.000000e+00 : f32
    %228 = vector.broadcast %cst_203 : f32 to vector<256x64xf32>
    %229 = arith.addf %228, %227 : vector<256x64xf32>
    %230 = tpu.reciprocal %229 {approx = true} : vector<256x64xf32> -> vector<256x64xf32>
    %cst_204 = arith.constant 1.06140542 : f32
    %231 = vector.broadcast %cst_204 : f32 to vector<256x64xf32>
    %232 = arith.mulf %231, %230 : vector<256x64xf32>
    %cst_205 = arith.constant 1.45315206 : f32
    %233 = vector.broadcast %cst_205 : f32 to vector<256x64xf32>
    %234 = arith.subf %232, %233 : vector<256x64xf32>
    %235 = arith.mulf %234, %230 : vector<256x64xf32>
    %cst_206 = arith.constant 1.42141378 : f32
    %236 = vector.broadcast %cst_206 : f32 to vector<256x64xf32>
    %237 = arith.addf %235, %236 : vector<256x64xf32>
    %238 = arith.mulf %237, %230 : vector<256x64xf32>
    %cst_207 = arith.constant 0.284496725 : f32
    %239 = vector.broadcast %cst_207 : f32 to vector<256x64xf32>
    %240 = arith.subf %238, %239 : vector<256x64xf32>
    %241 = arith.mulf %240, %230 : vector<256x64xf32>
    %cst_208 = arith.constant 0.254829586 : f32
    %242 = vector.broadcast %cst_208 : f32 to vector<256x64xf32>
    %243 = arith.addf %241, %242 : vector<256x64xf32>
    %244 = arith.mulf %243, %230 : vector<256x64xf32>
    %cst_209 = arith.constant 0.000000e+00 : f32
    %245 = vector.broadcast %cst_209 : f32 to vector<256x64xf32>
    %246 = arith.subf %245, %225 : vector<256x64xf32>
    %247 = arith.mulf %246, %225 : vector<256x64xf32>
    %248 = math.exp %247 : vector<256x64xf32>
    %249 = arith.mulf %244, %248 : vector<256x64xf32>
    %cst_210 = arith.constant 1.000000e+00 : f32
    %250 = vector.broadcast %cst_210 : f32 to vector<256x64xf32>
    %251 = arith.subf %250, %249 : vector<256x64xf32>
    %cst_211 = arith.constant 0.000000e+00 : f32
    %252 = vector.broadcast %cst_211 : f32 to vector<256x64xf32>
    %253 = arith.cmpf oge, %224, %252 : vector<256x64xf32>
    %cst_212 = arith.constant 0.000000e+00 : f32
    %254 = vector.broadcast %cst_212 : f32 to vector<256x64xf32>
    %255 = arith.subf %254, %251 : vector<256x64xf32>
    %256 = arith.select %253, %251, %255 : vector<256x64xi1>, vector<256x64xf32>
    %cst_213 = arith.constant 5.000000e-01 : f32
    %257 = vector.broadcast %cst_213 : f32 to vector<256x64xf32>
    %258 = arith.mulf %257, %222 : vector<256x64xf32>
    %cst_214 = arith.constant 1.000000e+00 : f32
    %259 = vector.broadcast %cst_214 : f32 to vector<256x64xf32>
    %260 = arith.addf %259, %256 : vector<256x64xf32>
    %261 = arith.mulf %258, %260 : vector<256x64xf32>
    %262 = arith.truncf %261 : vector<256x64xf32> to vector<256x64xbf16>
    %c0_215 = arith.constant 0 : index
    %c0_216 = arith.constant 0 : index
    %263 = vector.load %arg11[%c0_215, %c0_216] : memref<64x128xbf16, #tpu.memory_space<vmem>>, vector<64x128xbf16>
    %cst_217 = arith.constant dense<0.000000e+00> : vector<256x128xf32>
    %264 = tpu.matmul %262, %263, %cst_217 {dimension_numbers = #tpu.dot_dimension_numbers<[1], [0], [0], [1], [0, 0, 1, 1], [], []>} : vector<256x64xbf16>, vector<64x128xbf16>, vector<256x128xf32> -> vector<256x128xf32>
    %c0_218 = arith.constant 0 : index
    %c0_219 = arith.constant 0 : index
    %265 = vector.load %arg12[%c0_218, %c0_219] : memref<1x128xf32, #tpu.memory_space<vmem>>, vector<1x128xf32>
    %266 = vector.broadcast %265 : vector<1x128xf32> to vector<256x128xf32>
    %267 = arith.addf %264, %266 : vector<256x128xf32>
    %268 = vector.shape_cast %267 : vector<256x128xf32> to vector<16x16x128xf32>
    %c0_220 = arith.constant 0 : index
    %c0_221 = arith.constant 0 : index
    %c0_222 = arith.constant 0 : index
    %c0_223 = arith.constant 0 : index
    %269 = vector.load %arg13[%c0_220, %c0_221, %c0_222, %c0_223] : memref<1x16x16x128xf32, #tpu.memory_space<vmem>>, vector<1x16x16x128xf32>
    %270 = vector.shape_cast %269 : vector<1x16x16x128xf32> to vector<16x16x128xf32>
    %271 = vector.shape_cast %268 : vector<16x16x128xf32> to vector<1x16x16x128xf32>
    tpu.vector_store %arg13[%c0_220, %c0_221, %c0_222, %c0_223], %271 {strides = array<i32>} : memref<1x16x16x128xf32, #tpu.memory_space<vmem>>, vector<1x16x16x128xf32>,
    return
  }
  func.func @transform_0(%arg0: i32) -> (i32, i32, i32, i32) {
    %c0_i32 = arith.constant 0 : i32
    %c0_i32_0 = arith.constant 0 : i32
    %c0_i32_1 = arith.constant 0 : i32
    %c0_i32_2 = arith.constant 0 : i32
    return %arg0, %c0_i32, %c0_i32_0, %c0_i32_1 : i32, i32, i32, i32
  }
  func.func @transform_1(%arg0: i32) -> (i32, i32) {
    %c0_i32 = arith.constant 0 : i32
    %c0_i32_0 = arith.constant 0 : i32
    %c0_i32_1 = arith.constant 0 : i32
    return %c0_i32, %c0_i32_0 : i32, i32
  }
  func.func @transform_2(%arg0: i32) -> (i32, i32, i32) {
    %c0_i32 = arith.constant 0 : i32
    %c0_i32_0 = arith.constant 0 : i32
    %c0_i32_1 = arith.constant 0 : i32
    %c0_i32_2 = arith.constant 0 : i32
    return %c0_i32, %c0_i32_0, %c0_i32_1 : i32, i32, i32
  }
  func.func @transform_3(%arg0: i32) -> (i32, i32) {
    %c0_i32 = arith.constant 0 : i32
    %c0_i32_0 = arith.constant 0 : i32
    %c0_i32_1 = arith.constant 0 : i32
    return %c0_i32, %c0_i32_0 : i32, i32
  }
  func.func @transform_4(%arg0: i32) -> (i32, i32) {
    %c0_i32 = arith.constant 0 : i32
    %c0_i32_0 = arith.constant 0 : i32
    %c0_i32_1 = arith.constant 0 : i32
    return %c0_i32, %c0_i32_0 : i32, i32
  }
  func.func @transform_5(%arg0: i32) -> (i32, i32) {
    %c0_i32 = arith.constant 0 : i32
    %c0_i32_0 = arith.constant 0 : i32
    %c0_i32_1 = arith.constant 0 : i32
    return %c0_i32, %c0_i32_0 : i32, i32
  }
  func.func @transform_6(%arg0: i32) -> (i32, i32, i32) {
    %c0_i32 = arith.constant 0 : i32
    %c0_i32_0 = arith.constant 0 : i32
    %c0_i32_1 = arith.constant 0 : i32
    %c0_i32_2 = arith.constant 0 : i32
    return %c0_i32, %c0_i32_0, %c0_i32_1 : i32, i32, i32
  }
  func.func @transform_7(%arg0: i32) -> (i32, i32) {
    %c0_i32 = arith.constant 0 : i32
    %c0_i32_0 = arith.constant 0 : i32
    %c0_i32_1 = arith.constant 0 : i32
    return %c0_i32, %c0_i32_0 : i32, i32
  }
  func.func @transform_8(%arg0: i32) -> (i32, i32) {
    %c0_i32 = arith.constant 0 : i32
    %c0_i32_0 = arith.constant 0 : i32
    %c0_i32_1 = arith.constant 0 : i32
    return %c0_i32, %c0_i32_0 : i32, i32
  }
  func.func @transform_9(%arg0: i32) -> (i32, i32) {
    %c0_i32 = arith.constant 0 : i32
    %c0_i32_0 = arith.constant 0 : i32
    %c0_i32_1 = arith.constant 0 : i32
    return %c0_i32, %c0_i32_0 : i32, i32
  }
  func.func @transform_10(%arg0: i32) -> (i32, i32) {
    %c0_i32 = arith.constant 0 : i32
    %c0_i32_0 = arith.constant 0 : i32
    %c0_i32_1 = arith.constant 0 : i32
    return %c0_i32, %c0_i32_0 : i32, i32
  }
  func.func @transform_11(%arg0: i32) -> (i32, i32) {
    %c0_i32 = arith.constant 0 : i32
    %c0_i32_0 = arith.constant 0 : i32
    %c0_i32_1 = arith.constant 0 : i32
    return %c0_i32, %c0_i32_0 : i32, i32
  }
  func.func @transform_12(%arg0: i32) -> (i32, i32, i32, i32) {
    %c0_i32 = arith.constant 0 : i32
    %c0_i32_0 = arith.constant 0 : i32
    %c0_i32_1 = arith.constant 0 : i32
    %c0_i32_2 = arith.constant 0 : i32
    return %arg0, %c0_i32, %c0_i32_0, %c0_i32_1 : i32, i32, i32, i32
  }
}

</mosaic_0001>

<llo_original>
// kernel: tile.9
$region0: #{tile.9}
  %s0 = inlined_call_operand.vmem [shape: f32[4,32], index: 0, kind: input, shape index: {}]
  %s1 = inlined_call_operand.vmem [shape: f32[1,128], index: 1, kind: output, shape index: {}]
  $region1: #{tile.9} parent=0
    #allocation0 [shape = 'u8[4096]{0}', space=vmem, size = 0x1000, scoped, tag = 'scoped mem for output reshape']
    #allocation1 [shape = 'u8[4096]{0}', space=vmem, size = 0x1000, scoped, tag = 'scoped mem for input reshape']
    %s3 = ssub.s32 16, 1
    %v4 = vld [vmem:[%s0] sm:%s3]
    %5 = vst [vmem:[#allocation1] sm:%s3] %v4
    %v6 = vld [vmem:[#allocation1] sm:$0x1]
    %vm7 = vcmask 261120
    %8 = vst.msk [vmem:[#allocation0] sm:$0x1] %vm7, %v6
    %s9 = scalar_lea.vmem [#allocation1], 3
    %v10 = vld [vmem:[%s9] sm:$0x1]
    %11 = vrot.lane.b32.xlu0 %v10, 96
    %v12 = vpop.permute.xlu0 %11
    %vm13 = vcmask 1048320
    %14 = vst.msk [vmem:[#allocation0] sm:$0x1] %vm13, %v12
    %s15 = scalar_lea.vmem [#allocation1], 2
    %v16 = vld [vmem:[%s15] sm:$0x1]
    %17 = vrot.lane.b32.xlu0 %v16, 64
    %v18 = vpop.permute.xlu0 %17
    %vm19 = vcmask 785920
    %20 = vst.msk [vmem:[#allocation0] sm:$0x1] %vm19, %v18
    %s21 = scalar_lea.vmem [#allocation1], 1
    %v22 = vld [vmem:[%s21] sm:$0x1]
    %23 = vrot.lane.b32.xlu0 %v22, 32
    %v24 = vpop.permute.xlu0 %23
    %vm25 = vcmask 523520
    %26 = vst.msk [vmem:[#allocation0] sm:$0x1] %vm25, %v24
    %s28 = ssub.s32 2, 1
    %v29 = vld [vmem:[#allocation0] sm:%s28]
    %s31 = ssub.s32 2, 1
    %32 = vst [vmem:[%s1] sm:%s31] %v29

// kernel: tile.8
$region0: #{tile.8}
  #allocation2 [shape = 's32[1]{0}', space=sflag, size = 0x4, scoped, tag = 'scoped memory for tile.8']
  %s0 = inlined_call_operand.hbm [shape: f32[32], index: 0, kind: input, shape index: {}]
  %s1 = inlined_call_operand.vmem [shape: f32[4,32], index: 1, kind: output, shape index: {}]
  $region1: #{tile.8} parent=0
    #allocation0 [shape = 'u8[512]{0}', space=vmem, size = 0x400, scoped, tag = 'operand span for operand 0']
    #allocation1 [shape = 's32[1]{0}', space=sflag, size = 0x4, scoped, tag = 'scoped memory for tile.8']
    %2 = vsyncpa [#allocation1], 0
    // Predicated region
    $region2: #{tile.8} parent=1 // pred_check
      _
    $region3: #{tile.8} parent=1 // pred_check_branch
      %4 = sbr.rel (0) target = $region5
    $region4: #{tile.8} parent=1 // pred_region
      %6 = vsyncadd [#allocation1], 0
      %s8 = sshll.u32 %s0, 4
      %s9 = int_to_ptr.hbm [resolvable:$true] %s8
      %s10 = sshll.u32 [#allocation0], 4
      %s11 = int_to_ptr.vmem [resolvable:$true] %s10
      %13 = dma.hbm_to_vmem [thread:$0]  %s9, 16, %s11, [#allocation1]
    $region5: #{tile.8} parent=1 // pred_fallthru
      _
    // Predicated region
    $region6: #{tile.8} parent=1 // pred_check
      _
    $region7: #{tile.8} parent=1 // pred_check_branch
      %15 = sbr.rel (0) target = $region9
    $region8: #{tile.8} parent=1 // pred_region
      %17 = dma.done [#allocation1], 16
    $region9: #{tile.8} parent=1 // pred_fallthru
      _
    %v18 = vld [vmem:[#allocation0] ss:$0 sm:$0xff]
    %19 = vst [vmem:[%s1] sm:$0xf] %v18
    %20 = vsyncpa [#allocation1], 1

// kernel: decoder_block.1
$region0: #{decoder_block.1}
  #allocation0 [shape = 'u32[]', space=smem, size = 0x4, offset = 0x4, fixed_abs, tag = 'smem constant byte address 0x4 - core index']
  #allocation1 [shape = 'u32[72,128]{1,0:T(1,128)}', space=vmem, size = 0x9000, scoped, tag = 'internal scratch']
  #allocation2 [shape = 'bf16[18,18,64]{2,1,0:T(8,128)(2,1)}', space=vmem, size = 0x1b000, scoped, tag = 'scratch operand']
  #allocation3 [shape = 'bf16[18,18,64]{2,1,0:T(8,128)(2,1)}', space=vmem, size = 0x1b000, scoped, tag = 'scratch operand']
  %s0 = inlined_call_operand.vmem [shape: f32[2,16,16,64], index: 0, kind: input, shape index: {}]
  %s1 = inlined_call_operand.vmem [shape: f32[64,64], index: 1, kind: input, shape index: {}]
  %s2 = inlined_call_operand.vmem [shape: bf16[9,64,64], index: 2, kind: input, shape index: {}]
  %s3 = inlined_call_operand.vmem [shape: f32[1,64], index: 3, kind: input, shape index: {}]
  %s4 = inlined_call_operand.vmem [shape: f32[1,64], index: 4, kind: input, shape index: {}]
  %s5 = inlined_call_operand.vmem [shape: f32[1,64], index: 5, kind: input, shape index: {}]
  %s6 = inlined_call_operand.vmem [shape: bf16[9,64,64], index: 6, kind: input, shape index: {}]
  %s7 = inlined_call_operand.vmem [shape: f32[1,64], index: 7, kind: input, shape index: {}]
  %s8 = inlined_call_operand.vmem [shape: f32[1,64], index: 8, kind: input, shape index: {}]
  %s9 = inlined_call_operand.vmem [shape: f32[1,64], index: 9, kind: input, shape index: {}]
  %s10 = inlined_call_operand.vmem [shape: bf16[64,128], index: 10, kind: input, shape index: {}]
  %s11 = inlined_call_operand.vmem [shape: f32[1,128], index: 11, kind: input, shape index: {}]
  %s12 = inlined_call_operand.vmem [shape: f32[2,16,16,128], index: 12, kind: output, shape index: {}]
  %s13 = sld [smem:[#allocation0]]
  $region81: #{decoder_block.1} parent=0
    _
  %s15 = ssub.s32 1, %s13
  %s16 = scalar_select 0, %s15, %s13
  loop: start=0, step=1, limit=4
  $region2: #{decoder_block.1} parent=0 // loop_pre_header
    _
  $region3: #{decoder_block.1} parent=0 // loop_header
    %s18 = sphi 0, %s22
    %p19 = scmp.ge.s32.totalorder %s18, 4
    %s28 = sphi 0, %s30
    %s31 = sphi 0, %s28
    %s32 = sphi 0, %s31
    %s48 = sphi 0, %s32
    %s52 = sphi 0, %s52
    %s54 = sphi 0, %s52
    %s55 = sphi 0, %s54
    %s69 = sphi 0, %s55
    %s73 = sphi 0, %s73
    %s75 = sphi 0, %s73
    %s76 = sphi 0, %s75
    %s90 = sphi 0, %s76
    %s94 = sphi 0, %s94
    %s96 = sphi 0, %s94
    %s97 = sphi 0, %s96
    %s111 = sphi 0, %s97
    %s115 = sphi 0, %s115
    %s117 = sphi 0, %s115
    %s118 = sphi 0, %s117
    %s132 = sphi 0, %s118
    %s136 = sphi 0, %s136
    %s138 = sphi 0, %s136
    %s139 = sphi 0, %s138
    %s153 = sphi 0, %s139
    %s157 = sphi 0, %s157
    %s159 = sphi 0, %s157
    %s160 = sphi 0, %s159
    %s174 = sphi 0, %s160
    %s178 = sphi 0, %s178
    %s180 = sphi 0, %s178
    %s181 = sphi 0, %s180
    %s195 = sphi 0, %s181
    %s199 = sphi 0, %s199
    %s201 = sphi 0, %s199
    %s202 = sphi 0, %s201
    %s216 = sphi 0, %s202
    %s220 = sphi 0, %s220
    %s222 = sphi 0, %s220
    %s223 = sphi 0, %s222
    %s237 = sphi 0, %s223
    %s241 = sphi 0, %s241
    %s243 = sphi 0, %s241
    %s244 = sphi 0, %s243
    %s258 = sphi 0, %s244
    %s262 = sphi 0, %s262
    %s264 = sphi 0, %s262
    %s265 = sphi 0, %s264
    %s279 = sphi 0, %s265
    %s285 = sphi 0, %s287
    %s288 = sphi 0, %s285
    %s289 = sphi 0, %s288
    %s305 = sphi 0, %s289
  $region4: #{decoder_block.1} parent=0 // loop_header_branch
    %21 = sbr.rel (%p19) target = $region8
  $region5: #{decoder_block.1} parent=0 // loop_body
    %s23 = ssub.s32 %s18, 1
    %s24 = ssub.s32 %s18, 2
    %s25 = sadd.s32 %s18, 1
    %s26 = ssub.s32 %s18, %s25
    %p27 = scmp.eq.s32.totalorder %s26, 0
    %s29 = sadd.s32 %s28, 1
    %s30 = scalar_select %p27, %s28, %s29
    %p33 = pneg %p27
    %p34 = scmp.eq.s32.totalorder %s18, 1
    %p35 = por %p33, %p34
    %p36 = scmp.ne.s32.totalorder %s28, %s31
    %p37 = scmp.eq.s32.totalorder %s18, 0
    %p38 = por %p36, %p37
    %p39 = scmp.ne.s32.totalorder %s28, %s31
    %p40 = scmp.eq.s32.totalorder %s23, 1
    %p41 = por %p39, %p40
    %p42 = scmp.ne.s32.totalorder %s31, %s32
    %p43 = scmp.eq.s32.totalorder %s23, 0
    %p44 = por %p42, %p43
    %p45 = scmp.ne.s32.totalorder %s31, %s32
    %p46 = scmp.eq.s32.totalorder %s24, 1
    %p47 = por %p45, %p46
    %p49 = scmp.ne.s32.totalorder %s32, %s48
    %p50 = scmp.eq.s32.totalorder %s24, 0
    %p51 = por %p49, %p50
    %s53 = sadd.s32 %s52, 1
    %p56 = scmp.eq.s32.totalorder %s18, 1
    %p57 = scmp.ne.s32.totalorder %s52, %s54
    %p58 = scmp.eq.s32.totalorder %s18, 0
    %p59 = por %p57, %p58
    %p60 = scmp.ne.s32.totalorder %s52, %s54
    %p61 = scmp.eq.s32.totalorder %s23, 1
    %p62 = por %p60, %p61
    %p63 = scmp.ne.s32.totalorder %s54, %s55
    %p64 = scmp.eq.s32.totalorder %s23, 0
    %p65 = por %p63, %p64
    %p66 = scmp.ne.s32.totalorder %s54, %s55
    %p67 = scmp.eq.s32.totalorder %s24, 1
    %p68 = por %p66, %p67
    %p70 = scmp.ne.s32.totalorder %s55, %s69
    %p71 = scmp.eq.s32.totalorder %s24, 0
    %p72 = por %p70, %p71
    %s74 = sadd.s32 %s73, 1
    %p77 = scmp.eq.s32.totalorder %s18, 1
    %p78 = scmp.ne.s32.totalorder %s73, %s75
    %p79 = scmp.eq.s32.totalorder %s18, 0
    %p80 = por %p78, %p79
    %p81 = scmp.ne.s32.totalorder %s73, %s75
    %p82 = scmp.eq.s32.totalorder %s23, 1
    %p83 = por %p81, %p82
    %p84 = scmp.ne.s32.totalorder %s75, %s76
    %p85 = scmp.eq.s32.totalorder %s23, 0
    %p86 = por %p84, %p85
    %p87 = scmp.ne.s32.totalorder %s75, %s76
    %p88 = scmp.eq.s32.totalorder %s24, 1
    %p89 = por %p87, %p88
    %p91 = scmp.ne.s32.totalorder %s76, %s90
    %p92 = scmp.eq.s32.totalorder %s24, 0
    %p93 = por %p91, %p92
    %s95 = sadd.s32 %s94, 1
    %p98 = scmp.eq.s32.totalorder %s18, 1
    %p99 = scmp.ne.s32.totalorder %s94, %s96
    %p100 = scmp.eq.s32.totalorder %s18, 0
    %p101 = por %p99, %p100
    %p102 = scmp.ne.s32.totalorder %s94, %s96
    %p103 = scmp.eq.s32.totalorder %s23, 1
    %p104 = por %p102, %p103
    %p105 = scmp.ne.s32.totalorder %s96, %s97
    %p106 = scmp.eq.s32.totalorder %s23, 0
    %p107 = por %p105, %p106
    %p108 = scmp.ne.s32.totalorder %s96, %s97
    %p109 = scmp.eq.s32.totalorder %s24, 1
    %p110 = por %p108, %p109
    %p112 = scmp.ne.s32.totalorder %s97, %s111
    %p113 = scmp.eq.s32.totalorder %s24, 0
    %p114 = por %p112, %p113
    %s116 = sadd.s32 %s115, 1
    %p119 = scmp.eq.s32.totalorder %s18, 1
    %p120 = scmp.ne.s32.totalorder %s115, %s117
    %p121 = scmp.eq.s32.totalorder %s18, 0
    %p122 = por %p120, %p121
    %p123 = scmp.ne.s32.totalorder %s115, %s117
    %p124 = scmp.eq.s32.totalorder %s23, 1
    %p125 = por %p123, %p124
    %p126 = scmp.ne.s32.totalorder %s117, %s118
    %p127 = scmp.eq.s32.totalorder %s23, 0
    %p128 = por %p126, %p127
    %p129 = scmp.ne.s32.totalorder %s117, %s118
    %p130 = scmp.eq.s32.totalorder %s24, 1
    %p131 = por %p129, %p130
    %p133 = scmp.ne.s32.totalorder %s118, %s132
    %p134 = scmp.eq.s32.totalorder %s24, 0
    %p135 = por %p133, %p134
    %s137 = sadd.s32 %s136, 1
    %p140 = scmp.eq.s32.totalorder %s18, 1
    %p141 = scmp.ne.s32.totalorder %s136, %s138
    %p142 = scmp.eq.s32.totalorder %s18, 0
    %p143 = por %p141, %p142
    %p144 = scmp.ne.s32.totalorder %s136, %s138
    %p145 = scmp.eq.s32.totalorder %s23, 1
    %p146 = por %p144, %p145
    %p147 = scmp.ne.s32.totalorder %s138, %s139
    %p148 = scmp.eq.s32.totalorder %s23, 0
    %p149 = por %p147, %p148
    %p150 = scmp.ne.s32.totalorder %s138, %s139
    %p151 = scmp.eq.s32.totalorder %s24, 1
    %p152 = por %p150, %p151
    %p154 = scmp.ne.s32.totalorder %s139, %s153
    %p155 = scmp.eq.s32.totalorder %s24, 0
    %p156 = por %p154, %p155
    %s158 = sadd.s32 %s157, 1
    %p161 = scmp.eq.s32.totalorder %s18, 1
    %p162 = scmp.ne.s32.totalorder %s157, %s159
    %p163 = scmp.eq.s32.totalorder %s18, 0
    %p164 = por %p162, %p163
    %p165 = scmp.ne.s32.totalorder %s157, %s159
    %p166 = scmp.eq.s32.totalorder %s23, 1
    %p167 = por %p165, %p166
    %p168 = scmp.ne.s32.totalorder %s159, %s160
    %p169 = scmp.eq.s32.totalorder %s23, 0
    %p170 = por %p168, %p169
    %p171 = scmp.ne.s32.totalorder %s159, %s160
    %p172 = scmp.eq.s32.totalorder %s24, 1
    %p173 = por %p171, %p172
    %p175 = scmp.ne.s32.totalorder %s160, %s174
    %p176 = scmp.eq.s32.totalorder %s24, 0
    %p177 = por %p175, %p176
    %s179 = sadd.s32 %s178, 1
    %p182 = scmp.eq.s32.totalorder %s18, 1
    %p183 = scmp.ne.s32.totalorder %s178, %s180
    %p184 = scmp.eq.s32.totalorder %s18, 0
    %p185 = por %p183, %p184
    %p186 = scmp.ne.s32.totalorder %s178, %s180
    %p187 = scmp.eq.s32.totalorder %s23, 1
    %p188 = por %p186, %p187
    %p189 = scmp.ne.s32.totalorder %s180, %s181
    %p190 = scmp.eq.s32.totalorder %s23, 0
    %p191 = por %p189, %p190
    %p192 = scmp.ne.s32.totalorder %s180, %s181
    %p193 = scmp.eq.s32.totalorder %s24, 1
    %p194 = por %p192, %p193
    %p196 = scmp.ne.s32.totalorder %s181, %s195
    %p197 = scmp.eq.s32.totalorder %s24, 0
    %p198 = por %p196, %p197
    %s200 = sadd.s32 %s199, 1
    %p203 = scmp.eq.s32.totalorder %s18, 1
    %p204 = scmp.ne.s32.totalorder %s199, %s201
    %p205 = scmp.eq.s32.totalorder %s18, 0
    %p206 = por %p204, %p205
    %p207 = scmp.ne.s32.totalorder %s199, %s201
    %p208 = scmp.eq.s32.totalorder %s23, 1
    %p209 = por %p207, %p208
    %p210 = scmp.ne.s32.totalorder %s201, %s202
    %p211 = scmp.eq.s32.totalorder %s23, 0
    %p212 = por %p210, %p211
    %p213 = scmp.ne.s32.totalorder %s201, %s202
    %p214 = scmp.eq.s32.totalorder %s24, 1
    %p215 = por %p213, %p214
    %p217 = scmp.ne.s32.totalorder %s202, %s216
    %p218 = scmp.eq.s32.totalorder %s24, 0
    %p219 = por %p217, %p218
    %s221 = sadd.s32 %s220, 1
    %p224 = scmp.eq.s32.totalorder %s18, 1
    %p225 = scmp.ne.s32.totalorder %s220, %s222
    %p226 = scmp.eq.s32.totalorder %s18, 0
    %p227 = por %p225, %p226
    %p228 = scmp.ne.s32.totalorder %s220, %s222
    %p229 = scmp.eq.s32.totalorder %s23, 1
    %p230 = por %p228, %p229
    %p231 = scmp.ne.s32.totalorder %s222, %s223
    %p232 = scmp.eq.s32.totalorder %s23, 0
    %p233 = por %p231, %p232
    %p234 = scmp.ne.s32.totalorder %s222, %s223
    %p235 = scmp.eq.s32.totalorder %s24, 1
    %p236 = por %p234, %p235
    %p238 = scmp.ne.s32.totalorder %s223, %s237
    %p239 = scmp.eq.s32.totalorder %s24, 0
    %p240 = por %p238, %p239
    %s242 = sadd.s32 %s241, 1
    %p245 = scmp.eq.s32.totalorder %s18, 1
    %p246 = scmp.ne.s32.totalorder %s241, %s243
    %p247 = scmp.eq.s32.totalorder %s18, 0
    %p248 = por %p246, %p247
    %p249 = scmp.ne.s32.totalorder %s241, %s243
    %p250 = scmp.eq.s32.totalorder %s23, 1
    %p251 = por %p249, %p250
    %p252 = scmp.ne.s32.totalorder %s243, %s244
    %p253 = scmp.eq.s32.totalorder %s23, 0
    %p254 = por %p252, %p253
    %p255 = scmp.ne.s32.totalorder %s243, %s244
    %p256 = scmp.eq.s32.totalorder %s24, 1
    %p257 = por %p255, %p256
    %p259 = scmp.ne.s32.totalorder %s244, %s258
    %p260 = scmp.eq.s32.totalorder %s24, 0
    %p261 = por %p259, %p260
    %s263 = sadd.s32 %s262, 1
    %p266 = scmp.eq.s32.totalorder %s18, 1
    %p267 = scmp.ne.s32.totalorder %s262, %s264
    %p268 = scmp.eq.s32.totalorder %s18, 0
    %p269 = por %p267, %p268
    %p270 = scmp.ne.s32.totalorder %s262, %s264
    %p271 = scmp.eq.s32.totalorder %s23, 1
    %p272 = por %p270, %p271
    %p273 = scmp.ne.s32.totalorder %s264, %s265
    %p274 = scmp.eq.s32.totalorder %s23, 0
    %p275 = por %p273, %p274
    %p276 = scmp.ne.s32.totalorder %s264, %s265
    %p277 = scmp.eq.s32.totalorder %s24, 1
    %p278 = por %p276, %p277
    %p280 = scmp.ne.s32.totalorder %s265, %s279
    %p281 = scmp.eq.s32.totalorder %s24, 0
    %p282 = por %p280, %p281
    %s283 = ssub.s32 %s18, %s25
    %p284 = scmp.eq.s32.totalorder %s283, 0
    %s286 = sadd.s32 %s285, 1
    %s287 = scalar_select %p284, %s285, %s286
    %p290 = pneg %p284
    %p291 = scmp.eq.s32.totalorder %s18, 1
    %p292 = por %p290, %p291
    %p293 = scmp.ne.s32.totalorder %s285, %s288
    %p294 = scmp.eq.s32.totalorder %s18, 0
    %p295 = por %p293, %p294
    %p296 = scmp.ne.s32.totalorder %s285, %s288
    %p297 = scmp.eq.s32.totalorder %s23, 1
    %p298 = por %p296, %p297
    %p299 = scmp.ne.s32.totalorder %s288, %s289
    %p300 = scmp.eq.s32.totalorder %s23, 0
    %p301 = por %p299, %p300
    %p302 = scmp.ne.s32.totalorder %s288, %s289
    %p303 = scmp.eq.s32.totalorder %s24, 1
    %p304 = por %p302, %p303
    %p306 = scmp.ne.s32.totalorder %s289, %s305
    %p307 = scmp.eq.s32.totalorder %s24, 0
    %p308 = por %p306, %p307
    %p309 = scmp.le.s32.totalorder 1, %s18
    %p310 = scmp.lt.s32.totalorder %s18, 3
    %p311 = pnand %p309, %p310
    %p312 = pneg %p311
    // Predicated region
    $region9: #{decoder_block.1} parent=5 // pred_check
      _
    $region10: #{decoder_block.1} parent=5 // pred_check_branch
      %314 = sbr.rel (%p311) target = $region12
    $region11: #{decoder_block.1} parent=5 // pred_region
      %s315 = ssub.s32 %s18, 1
      // Predicated region
      $region13: #{decoder_block.1} parent=11 // pred_check
        %p316 = pneg %p65
      $region14: #{decoder_block.1} parent=11 // pred_check_branch
        %318 = sbr.rel (%p316) target = $region16
      $region15: #{decoder_block.1} parent=11 // pred_region
        _
      $region16: #{decoder_block.1} parent=11 // pred_fallthru
        _
      // Predicated region
      $region17: #{decoder_block.1} parent=11 // pred_check
        %p319 = pneg %p86
      $region18: #{decoder_block.1} parent=11 // pred_check_branch
        %321 = sbr.rel (%p319) target = $region20
      $region19: #{decoder_block.1} parent=11 // pred_region
        _
      $region20: #{decoder_block.1} parent=11 // pred_fallthru
        _
      // Predicated region
      $region21: #{decoder_block.1} parent=11 // pred_check
        %p322 = pneg %p107
      $region22: #{decoder_block.1} parent=11 // pred_check_branch
        %324 = sbr.rel (%p322) target = $region24
      $region23: #{decoder_block.1} parent=11 // pred_region
        _
      $region24: #{decoder_block.1} parent=11 // pred_fallthru
        _
      // Predicated region
      $region25: #{decoder_block.1} parent=11 // pred_check
        %p325 = pneg %p128
      $region26: #{decoder_block.1} parent=11 // pred_check_branch
        %327 = sbr.rel (%p325) target = $region28
      $region27: #{decoder_block.1} parent=11 // pred_region
        _
      $region28: #{decoder_block.1} parent=11 // pred_fallthru
        _
      // Predicated region
      $region29: #{decoder_block.1} parent=11 // pred_check
        %p328 = pneg %p149
      $region30: #{decoder_block.1} parent=11 // pred_check_branch
        %330 = sbr.rel (%p328) target = $region32
      $region31: #{decoder_block.1} parent=11 // pred_region
        _
      $region32: #{decoder_block.1} parent=11 // pred_fallthru
        _
      // Predicated region
      $region33: #{decoder_block.1} parent=11 // pred_check
        %p331 = pneg %p170
      $region34: #{decoder_block.1} parent=11 // pred_check_branch
        %333 = sbr.rel (%p331) target = $region36
      $region35: #{decoder_block.1} parent=11 // pred_region
        _
      $region36: #{decoder_block.1} parent=11 // pred_fallthru
        _
      // Predicated region
      $region37: #{decoder_block.1} parent=11 // pred_check
        %p334 = pneg %p191
      $region38: #{decoder_block.1} parent=11 // pred_check_branch
        %336 = sbr.rel (%p334) target = $region40
      $region39: #{decoder_block.1} parent=11 // pred_region
        _
      $region40: #{decoder_block.1} parent=11 // pred_fallthru
        _
      // Predicated region
      $region41: #{decoder_block.1} parent=11 // pred_check
        %p337 = pneg %p212
      $region42: #{decoder_block.1} parent=11 // pred_check_branch
        %339 = sbr.rel (%p337) target = $region44
      $region43: #{decoder_block.1} parent=11 // pred_region
        _
      $region44: #{decoder_block.1} parent=11 // pred_fallthru
        _
      // Predicated region
      $region45: #{decoder_block.1} parent=11 // pred_check
        %p340 = pneg %p233
      $region46: #{decoder_block.1} parent=11 // pred_check_branch
        %342 = sbr.rel (%p340) target = $region48
      $region47: #{decoder_block.1} parent=11 // pred_region
        _
      $region48: #{decoder_block.1} parent=11 // pred_fallthru
        _
      // Predicated region
      $region49: #{decoder_block.1} parent=11 // pred_check
        %p343 = pneg %p254
      $region50: #{decoder_block.1} parent=11 // pred_check_branch
        %345 = sbr.rel (%p343) target = $region52
      $region51: #{decoder_block.1} parent=11 // pred_region
        _
      $region52: #{decoder_block.1} parent=11 // pred_fallthru
        _
      // Predicated region
      $region53: #{decoder_block.1} parent=11 // pred_check
        %p346 = pneg %p275
      $region54: #{decoder_block.1} parent=11 // pred_check_branch
        %348 = sbr.rel (%p346) target = $region56
      $region55: #{decoder_block.1} parent=11 // pred_region
        _
      $region56: #{decoder_block.1} parent=11 // pred_fallthru
        _
    $region12: #{decoder_block.1} parent=5 // pred_fallthru
      _
    %p349 = scmp.lt.s32.totalorder %s18, 2
    // Predicated region
    $region57: #{decoder_block.1} parent=5 // pred_check
      %p350 = pneg %p349
    $region58: #{decoder_block.1} parent=5 // pred_check_branch
      %352 = sbr.rel (%p350) target = $region60
    $region59: #{decoder_block.1} parent=5 // pred_region
      // Predicated region
      $region61: #{decoder_block.1} parent=59 // pred_check
        %p353 = pneg %p38
      $region62: #{decoder_block.1} parent=59 // pred_check_branch
        %355 = sbr.rel (%p353) target = $region64
      $region63: #{decoder_block.1} parent=59 // pred_region
        %p356 = scmp.lt.s32.totalorder %s18, 1
        %s357 = scalar_select %p356, %s18, 1
        %s358 = smul.addr %s357, 32
        %s359 = smul.addr %s358, 8
        %s360 = scalar_lea.vmem %s0, %s359
      $region64: #{decoder_block.1} parent=59 // pred_fallthru
        _
    $region60: #{decoder_block.1} parent=5 // pred_fallthru
      _
    %p361 = scmp.le.s32.totalorder 1, %s18
    %p362 = scmp.lt.s32.totalorder %s18, 3
    %p363 = pnand %p361, %p362
    %p364 = pneg %p363
    // Predicated region
    $region65: #{decoder_block.1} parent=5 // pred_check
      _
    $region66: #{decoder_block.1} parent=5 // pred_check_branch
      %366 = sbr.rel (%p363) target = $region68
    $region67: #{decoder_block.1} parent=5 // pred_region
      %s367 = ssub.s32 %s18, 1
      %p368 = scmp.lt.s32.totalorder %s23, 1
      %s369 = scalar_select %p368, %s23, 1
      %s370 = smul.addr %s369, 32
      %s371 = smul.addr %s370, 8
      %s372 = scalar_lea.vmem %s0, %s371
      %p373 = pneg %p44
      %p374 = pneg %p41
      %p375 = pneg %p65
      %p376 = pneg %p62
      %p377 = pneg %p86
      %p378 = pneg %p83
      %p379 = pneg %p107
      %p380 = pneg %p104
      %p381 = pneg %p128
      %p382 = pneg %p125
      %p383 = pneg %p149
      %p384 = pneg %p146
      %p385 = pneg %p170
      %p386 = pneg %p167
      %p387 = pneg %p191
      %p388 = pneg %p188
      %p389 = pneg %p212
      %p390 = pneg %p209
      %p391 = pneg %p233
      %p392 = pneg %p230
      %p393 = pneg %p254
      %p394 = pneg %p251
      %p395 = pneg %p275
      %p396 = pneg %p272
      %p397 = pneg %p301
      %p398 = pneg %p298
      %p399 = scmp.lt.s32.totalorder %s23, 1
      %s400 = scalar_select %p399, %s23, 1
      %s401 = smul.addr %s400, 32
      %s402 = smul.addr %s401, 8
      %s403 = scalar_lea.vmem %s12, %s402
      %p404 = scmp.lt.s32.totalorder %s23, 1
      %s405 = scalar_select %p404, %s23, 1
      %s406 = smul.addr %s405, 32
      %s407 = smul.addr %s406, 8
      %s408 = scalar_lea.vmem %s0, %s407
      %p409 = scmp.lt.s32.totalorder %s23, 1
      %s410 = scalar_select %p409, %s23, 1
      %s411 = smul.addr %s410, 32
      %s412 = smul.addr %s411, 8
      %s413 = scalar_lea.vmem %s12, %s412
      %v415 = vld [vmem:[%s1] sm:$0xff]
      %v416 = vld [vmem:[%s1 + $0x8] sm:$0xff]
      %v417 = vld [vmem:[%s1 + $0x10] sm:$0xff]
      %v418 = vld [vmem:[%s1 + $0x18] sm:$0xff]
      %v419 = vld [vmem:[%s1 + $0x20] sm:$0xff]
      %v420 = vld [vmem:[%s1 + $0x28] sm:$0xff]
      %v421 = vld [vmem:[%s1 + $0x30] sm:$0xff]
      %v422 = vld [vmem:[%s1 + $0x38] sm:$0xff]
      %vm423 = vcmask 519168
      %424 = vst.msk [vmem:[#allocation2] sm:$0xf] %vm423, 0
      %425 = vst.msk [vmem:[#allocation2 + $0x4] sm:$0xf] %vm423, 0
      %vm426 = vcmask 516096
      %427 = vst.msk [vmem:[#allocation2 + $0x8] sm:$0x1] %vm426, 0
      %s428 = scalar_lea.vmem [#allocation2], 204
      %429 = vst.msk [vmem:[%s428] sm:$0xf] %vm423, 0
      %430 = vst.msk [vmem:[%s428 + $0x4] sm:$0xf] %vm423, 0
      %431 = vst.msk [vmem:[%s428 + $0x8] sm:$0x1] %vm426, 0
      %vm432 = vcmask 516096
      %vm433 = vsmask.f32 256
      %vm434 = vmand %vm432, %vm433
      %v435 = vld [vmem:[#allocation2] sm:$0x1]
      %v436 = vsel %vm434, 0, %v435
      %437 = vst [vmem:[#allocation2] sm:$0x1] %v436
      %v438 = vld [vmem:[#allocation2 + $0xc] sm:$0x1]
      %v439 = vsel %vm434, 0, %v438
      %440 = vst [vmem:[#allocation2 + $0xc] sm:$0x1] %v439
      %v441 = vld [vmem:[#allocation2 + $0x18] sm:$0x1]
      %v442 = vsel %vm434, 0, %v441
      %443 = vst [vmem:[#allocation2 + $0x18] sm:$0x1] %v442
      %v444 = vld [vmem:[#allocation2 + $0x24] sm:$0x1]
      %v445 = vsel %vm434, 0, %v444
      %446 = vst [vmem:[#allocation2 + $0x24] sm:$0x1] %v445
      %v447 = vld [vmem:[#allocation2 + $0x30] sm:$0x1]
      %v448 = vsel %vm434, 0, %v447
      %449 = vst [vmem:[#allocation2 + $0x30] sm:$0x1] %v448
      %v450 = vld [vmem:[#allocation2 + $0x3c] sm:$0x1]
      %v451 = vsel %vm434, 0, %v450
      %452 = vst [vmem:[#allocation2 + $0x3c] sm:$0x1] %v451
      %v453 = vld [vmem:[#allocation2 + $0x48] sm:$0x1]
      %v454 = vsel %vm434, 0, %v453
      %455 = vst [vmem:[#allocation2 + $0x48] sm:$0x1] %v454
      %v456 = vld [vmem:[#allocation2 + $0x54] sm:$0x1]
      %v457 = vsel %vm434, 0, %v456
      %458 = vst [vmem:[#allocation2 + $0x54] sm:$0x1] %v457
      %v459 = vld [vmem:[#allocation2 + $0x60] sm:$0x1]
      %v460 = vsel %vm434, 0, %v459
      %461 = vst [vmem:[#allocation2 + $0x60] sm:$0x1] %v460
      %v462 = vld [vmem:[#allocation2 + $0x6c] sm:$0x1]
      %v463 = vsel %vm434, 0, %v462
      %464 = vst [vmem:[#allocation2 + $0x6c] sm:$0x1] %v463
      %v465 = vld [vmem:[#allocation2 + $0x78] sm:$0x1]
      %v466 = vsel %vm434, 0, %v465
      %467 = vst [vmem:[#allocation2 + $0x78] sm:$0x1] %v466
      %v468 = vld [vmem:[#allocation2 + $0x84] sm:$0x1]
      %v469 = vsel %vm434, 0, %v468
      %470 = vst [vmem:[#allocation2 + $0x84] sm:$0x1] %v469
      %v471 = vld [vmem:[#allocation2 + $0x90] sm:$0x1]
      %v472 = vsel %vm434, 0, %v471
      %473 = vst [vmem:[#allocation2 + $0x90] sm:$0x1] %v472
      %v474 = vld [vmem:[#allocation2 + $0x9c] sm:$0x1]
      %v475 = vsel %vm434, 0, %v474
      %476 = vst [vmem:[#allocation2 + $0x9c] sm:$0x1] %v475
      %v477 = vld [vmem:[#allocation2 + $0xa8] sm:$0x1]
      %v478 = vsel %vm434, 0, %v477
      %479 = vst [vmem:[#allocation2 + $0xa8] sm:$0x1] %v478
      %v480 = vld [vmem:[#allocation2 + $0xb4] sm:$0x1]
      %v481 = vsel %vm434, 0, %v480
      %482 = vst [vmem:[#allocation2 + $0xb4] sm:$0x1] %v481
      %v483 = vld [vmem:[#allocation2 + $0xc0] sm:$0x1]
      %v484 = vsel %vm434, 0, %v483
      %485 = vst [vmem:[#allocation2 + $0xc0] sm:$0x1] %v484
      %v486 = vld [vmem:[#allocation2 + $0xcc] sm:$0x1]
      %v487 = vsel %vm434, 0, %v486
      %488 = vst [vmem:[#allocation2 + $0xcc] sm:$0x1] %v487
      %vm489 = vsmask.f32 7938
      %vm490 = vmand %vm432, %vm489
      %v491 = vld [vmem:[#allocation2 + $0x8] sm:$0x1]
      %v492 = vsel %vm490, 0, %v491
      %493 = vst [vmem:[#allocation2 + $0x8] sm:$0x1] %v492
      %v494 = vld [vmem:[#allocation2 + $0x14] sm:$0x1]
      %v495 = vsel %vm490, 0, %v494
      %496 = vst [vmem:[#allocation2 + $0x14] sm:$0x1] %v495
      %v497 = vld [vmem:[#allocation2 + $0x20] sm:$0x1]
      %v498 = vsel %vm490, 0, %v497
      %499 = vst [vmem:[#allocation2 + $0x20] sm:$0x1] %v498
      %v500 = vld [vmem:[#allocation2 + $0x2c] sm:$0x1]
      %v501 = vsel %vm490, 0, %v500
      %502 = vst [vmem:[#allocation2 + $0x2c] sm:$0x1] %v501
      %v503 = vld [vmem:[#allocation2 + $0x38] sm:$0x1]
      %v504 = vsel %vm490, 0, %v503
      %505 = vst [vmem:[#allocation2 + $0x38] sm:$0x1] %v504
      %v506 = vld [vmem:[#allocation2 + $0x44] sm:$0x1]
      %v507 = vsel %vm490, 0, %v506
      %508 = vst [vmem:[#allocation2 + $0x44] sm:$0x1] %v507
      %v509 = vld [vmem:[#allocation2 + $0x50] sm:$0x1]
      %v510 = vsel %vm490, 0, %v509
      %511 = vst [vmem:[#allocation2 + $0x50] sm:$0x1] %v510
      %v512 = vld [vmem:[#allocation2 + $0x5c] sm:$0x1]
      %v513 = vsel %vm490, 0, %v512
      %514 = vst [vmem:[#allocation2 + $0x5c] sm:$0x1] %v513
      %v515 = vld [vmem:[#allocation2 + $0x68] sm:$0x1]
      %v516 = vsel %vm490, 0, %v515
      %517 = vst [vmem:[#allocation2 + $0x68] sm:$0x1] %v516
      %v518 = vld [vmem:[#allocation2 + $0x74] sm:$0x1]
      %v519 = vsel %vm490, 0, %v518
      %520 = vst [vmem:[#allocation2 + $0x74] sm:$0x1] %v519
      %v521 = vld [vmem:[#allocation2 + $0x80] sm:$0x1]
      %v522 = vsel %vm490, 0, %v521
      %523 = vst [vmem:[#allocation2 + $0x80] sm:$0x1] %v522
      %v524 = vld [vmem:[#allocation2 + $0x8c] sm:$0x1]
      %v525 = vsel %vm490, 0, %v524
      %526 = vst [vmem:[#allocation2 + $0x8c] sm:$0x1] %v525
      %v527 = vld [vmem:[#allocation2 + $0x98] sm:$0x1]
      %v528 = vsel %vm490, 0, %v527
      %529 = vst [vmem:[#allocation2 + $0x98] sm:$0x1] %v528
      %v530 = vld [vmem:[#allocation2 + $0xa4] sm:$0x1]
      %v531 = vsel %vm490, 0, %v530
      %532 = vst [vmem:[#allocation2 + $0xa4] sm:$0x1] %v531
      %v533 = vld [vmem:[#allocation2 + $0xb0] sm:$0x1]
      %v534 = vsel %vm490, 0, %v533
      %535 = vst [vmem:[#allocation2 + $0xb0] sm:$0x1] %v534
      %v536 = vld [vmem:[#allocation2 + $0xbc] sm:$0x1]
      %v537 = vsel %vm490, 0, %v536
      %538 = vst [vmem:[#allocation2 + $0xbc] sm:$0x1] %v537
      %v539 = vld [vmem:[#allocation2 + $0xc8] sm:$0x1]
      %v540 = vsel %vm490, 0, %v539
      %541 = vst [vmem:[#allocation2 + $0xc8] sm:$0x1] %v540
      %v542 = vld [vmem:[#allocation2 + $0xd4] sm:$0x1]
      %v543 = vsel %vm490, 0, %v542
      %544 = vst [vmem:[#allocation2 + $0xd4] sm:$0x1] %v543
      %v545 = vld [vmem:[%s408] sm:$0xff]
      %v546 = vld [vmem:[%s408 + $0x8] sm:$0xff]
      %v547 = vld [vmem:[%s408 + $0x10] sm:$0xff]
      %v548 = vld [vmem:[%s408 + $0x18] sm:$0xff]
      %v549 = vld [vmem:[%s408 + $0x20] sm:$0xff]
      %v550 = vld [vmem:[%s408 + $0x28] sm:$0xff]
      %v551 = vld [vmem:[%s408 + $0x30] sm:$0xff]
      %v552 = vld [vmem:[%s408 + $0x38] sm:$0xff]
      %v553 = vld [vmem:[%s408 + $0x40] sm:$0xff]
      %v554 = vld [vmem:[%s408 + $0x48] sm:$0xff]
      %v555 = vld [vmem:[%s408 + $0x50] sm:$0xff]
      %v556 = vld [vmem:[%s408 + $0x58] sm:$0xff]
      %v557 = vld [vmem:[%s408 + $0x60] sm:$0xff]
      %v558 = vld [vmem:[%s408 + $0x68] sm:$0xff]
      %v559 = vld [vmem:[%s408 + $0x70] sm:$0xff]
      %v560 = vld [vmem:[%s408 + $0x78] sm:$0xff]
      %v561 = vld [vmem:[%s408 + $0x80] sm:$0xff]
      %v562 = vld [vmem:[%s408 + $0x88] sm:$0xff]
      %v563 = vld [vmem:[%s408 + $0x90] sm:$0xff]
      %v564 = vld [vmem:[%s408 + $0x98] sm:$0xff]
      %v565 = vld [vmem:[%s408 + $0xa0] sm:$0xff]
      %v566 = vld [vmem:[%s408 + $0xa8] sm:$0xff]
      %v567 = vld [vmem:[%s408 + $0xb0] sm:$0xff]
      %v568 = vld [vmem:[%s408 + $0xb8] sm:$0xff]
      %v569 = vld [vmem:[%s408 + $0xc0] sm:$0xff]
      %v570 = vld [vmem:[%s408 + $0xc8] sm:$0xff]
      %v571 = vld [vmem:[%s408 + $0xd0] sm:$0xff]
      %v572 = vld [vmem:[%s408 + $0xd8] sm:$0xff]
      %v573 = vld [vmem:[%s408 + $0xe0] sm:$0xff]
      %v574 = vld [vmem:[%s408 + $0xe8] sm:$0xff]
      %v575 = vld [vmem:[%s408 + $0xf0] sm:$0xff]
      %v576 = vld [vmem:[%s408 + $0xf8] sm:$0xff]
      %v577 = vpack.c.bf16 %v545, %v545
      %v578 = vpack.c.bf16 %v546, %v546
      %v579 = vpack.c.bf16 %v547, %v547
      %v580 = vpack.c.bf16 %v548, %v548
      %v581 = vpack.c.bf16 %v549, %v549
      %v582 = vpack.c.bf16 %v550, %v550
      %v583 = vpack.c.bf16 %v551, %v551
      %v584 = vpack.c.bf16 %v552, %v552
      %v585 = vpack.c.bf16 %v553, %v553
      %v586 = vpack.c.bf16 %v554, %v554
      %v587 = vpack.c.bf16 %v555, %v555
      %v588 = vpack.c.bf16 %v556, %v556
      %v589 = vpack.c.bf16 %v557, %v557
      %v590 = vpack.c.bf16 %v558, %v558
      %v591 = vpack.c.bf16 %v559, %v559
      %v592 = vpack.c.bf16 %v560, %v560
      %v593 = vpack.c.bf16 %v561, %v561
      %v594 = vpack.c.bf16 %v562, %v562
      %v595 = vpack.c.bf16 %v563, %v563
      %v596 = vpack.c.bf16 %v564, %v564
      %v597 = vpack.c.bf16 %v565, %v565
      %v598 = vpack.c.bf16 %v566, %v566
      %v599 = vpack.c.bf16 %v567, %v567
      %v600 = vpack.c.bf16 %v568, %v568
      %v601 = vpack.c.bf16 %v569, %v569
      %v602 = vpack.c.bf16 %v570, %v570
      %v603 = vpack.c.bf16 %v571, %v571
      %v604 = vpack.c.bf16 %v572, %v572
      %v605 = vpack.c.bf16 %v573, %v573
      %v606 = vpack.c.bf16 %v574, %v574
      %v607 = vpack.c.bf16 %v575, %v575
      %v608 = vpack.c.bf16 %v576, %v576
      %vm609 = vsmask.f32 4368
      %vm610 = vmor %vm433, %vm609
      %v612 = vshrl.u32 %v577, 16
      %v614 = vrot.slane %v612, 7
      %v615 = vshll.u32 %v577, 16
      %v617 = vor.u32 %v614, %v615
      %v618 = vrot.slane %v614, 4
      %v620 = vshrl.u32 %v578, 16
      %v622 = vrot.slane %v620, 7
      %v623 = vshll.u32 %v578, 16
      %v625 = vor.u32 %v622, %v623
      %v626 = vsel %vm610, %v618, %v625
      %v627 = vrot.slane %v622, 4
      %v629 = vshrl.u32 %v579, 16
      %v631 = vrot.slane %v629, 7
      %v632 = vshll.u32 %v579, 16
      %v634 = vor.u32 %v631, %v632
      %v635 = vrot.slane %v631, 4
      %v637 = vshrl.u32 %v580, 16
      %v639 = vrot.slane %v637, 7
      %v640 = vshll.u32 %v580, 16
      %v642 = vor.u32 %v639, %v640
      %v643 = vsel %vm610, %v635, %v642
      %v644 = vrot.slane %v639, 4
      %v646 = vshrl.u32 %v581, 16
      %v648 = vrot.slane %v646, 7
      %v649 = vshll.u32 %v581, 16
      %v651 = vor.u32 %v648, %v649
      %v652 = vrot.slane %v648, 4
      %v654 = vshrl.u32 %v582, 16
      %v656 = vrot.slane %v654, 7
      %v657 = vshll.u32 %v582, 16
      %v659 = vor.u32 %v656, %v657
      %v660 = vsel %vm610, %v652, %v659
      %v661 = vrot.slane %v656, 4
      %v663 = vshrl.u32 %v583, 16
      %v665 = vrot.slane %v663, 7
      %v666 = vshll.u32 %v583, 16
      %v668 = vor.u32 %v665, %v666
      %v669 = vrot.slane %v665, 4
      %v671 = vshrl.u32 %v584, 16
      %v673 = vrot.slane %v671, 7
      %v674 = vshll.u32 %v584, 16
      %v676 = vor.u32 %v673, %v674
      %v677 = vsel %vm610, %v669, %v676
      %v678 = vrot.slane %v673, 4
      %v680 = vshrl.u32 %v585, 16
      %v682 = vrot.slane %v680, 7
      %v683 = vshll.u32 %v585, 16
      %v685 = vor.u32 %v682, %v683
      %v686 = vrot.slane %v682, 4
      %v688 = vshrl.u32 %v586, 16
      %v690 = vrot.slane %v688, 7
      %v691 = vshll.u32 %v586, 16
      %v693 = vor.u32 %v690, %v691
      %v694 = vsel %vm610, %v686, %v693
      %v695 = vrot.slane %v690, 4
      %v697 = vshrl.u32 %v587, 16
      %v699 = vrot.slane %v697, 7
      %v700 = vshll.u32 %v587, 16
      %v702 = vor.u32 %v699, %v700
      %v703 = vrot.slane %v699, 4
      %v705 = vshrl.u32 %v588, 16
      %v707 = vrot.slane %v705, 7
      %v708 = vshll.u32 %v588, 16
      %v710 = vor.u32 %v707, %v708
      %v711 = vsel %vm610, %v703, %v710
      %v712 = vrot.slane %v707, 4
      %v714 = vshrl.u32 %v589, 16
      %v716 = vrot.slane %v714, 7
      %v717 = vshll.u32 %v589, 16
      %v719 = vor.u32 %v716, %v717
      %v720 = vrot.slane %v716, 4
      %v722 = vshrl.u32 %v590, 16
      %v724 = vrot.slane %v722, 7
      %v725 = vshll.u32 %v590, 16
      %v727 = vor.u32 %v724, %v725
      %v728 = vsel %vm610, %v720, %v727
      %v729 = vrot.slane %v724, 4
      %v731 = vshrl.u32 %v591, 16
      %v733 = vrot.slane %v731, 7
      %v734 = vshll.u32 %v591, 16
      %v736 = vor.u32 %v733, %v734
      %v737 = vrot.slane %v733, 4
      %v739 = vshrl.u32 %v592, 16
      %v741 = vrot.slane %v739, 7
      %v742 = vshll.u32 %v592, 16
      %v744 = vor.u32 %v741, %v742
      %v745 = vsel %vm610, %v737, %v744
      %v746 = vrot.slane %v741, 4
      %v748 = vshrl.u32 %v593, 16
      %v750 = vrot.slane %v748, 7
      %v751 = vshll.u32 %v593, 16
      %v753 = vor.u32 %v750, %v751
      %v754 = vrot.slane %v750, 4
      %v756 = vshrl.u32 %v594, 16
      %v758 = vrot.slane %v756, 7
      %v759 = vshll.u32 %v594, 16
      %v761 = vor.u32 %v758, %v759
      %v762 = vsel %vm610, %v754, %v761
      %v763 = vrot.slane %v758, 4
      %v765 = vshrl.u32 %v595, 16
      %v767 = vrot.slane %v765, 7
      %v768 = vshll.u32 %v595, 16
      %v770 = vor.u32 %v767, %v768
      %v771 = vrot.slane %v767, 4
      %v773 = vshrl.u32 %v596, 16
      %v775 = vrot.slane %v773, 7
      %v776 = vshll.u32 %v596, 16
      %v778 = vor.u32 %v775, %v776
      %v779 = vsel %vm610, %v771, %v778
      %v780 = vrot.slane %v775, 4
      %v782 = vshrl.u32 %v597, 16
      %v784 = vrot.slane %v782, 7
      %v785 = vshll.u32 %v597, 16
      %v787 = vor.u32 %v784, %v785
      %v788 = vrot.slane %v784, 4
      %v790 = vshrl.u32 %v598, 16
      %v792 = vrot.slane %v790, 7
      %v793 = vshll.u32 %v598, 16
      %v795 = vor.u32 %v792, %v793
      %v796 = vsel %vm610, %v788, %v795
      %v797 = vrot.slane %v792, 4
      %v799 = vshrl.u32 %v599, 16
      %v801 = vrot.slane %v799, 7
      %v802 = vshll.u32 %v599, 16
      %v804 = vor.u32 %v801, %v802
      %v805 = vrot.slane %v801, 4
      %v807 = vshrl.u32 %v600, 16
      %v809 = vrot.slane %v807, 7
      %v810 = vshll.u32 %v600, 16
      %v812 = vor.u32 %v809, %v810
      %v813 = vsel %vm610, %v805, %v812
      %v814 = vrot.slane %v809, 4
      %v816 = vshrl.u32 %v601, 16
      %v818 = vrot.slane %v816, 7
      %v819 = vshll.u32 %v601, 16
      %v821 = vor.u32 %v818, %v819
      %v822 = vrot.slane %v818, 4
      %v824 = vshrl.u32 %v602, 16
      %v826 = vrot.slane %v824, 7
      %v827 = vshll.u32 %v602, 16
      %v829 = vor.u32 %v826, %v827
      %v830 = vsel %vm610, %v822, %v829
      %v831 = vrot.slane %v826, 4
      %v833 = vshrl.u32 %v603, 16
      %v835 = vrot.slane %v833, 7
      %v836 = vshll.u32 %v603, 16
      %v838 = vor.u32 %v835, %v836
      %v839 = vrot.slane %v835, 4
      %v841 = vshrl.u32 %v604, 16
      %v843 = vrot.slane %v841, 7
      %v844 = vshll.u32 %v604, 16
      %v846 = vor.u32 %v843, %v844
      %v847 = vsel %vm610, %v839, %v846
      %v848 = vrot.slane %v843, 4
      %v850 = vshrl.u32 %v605, 16
      %v852 = vrot.slane %v850, 7
      %v853 = vshll.u32 %v605, 16
      %v855 = vor.u32 %v852, %v853
      %v856 = vrot.slane %v852, 4
      %v858 = vshrl.u32 %v606, 16
      %v860 = vrot.slane %v858, 7
      %v861 = vshll.u32 %v606, 16
      %v863 = vor.u32 %v860, %v861
      %v864 = vsel %vm610, %v856, %v863
      %v865 = vrot.slane %v860, 4
      %v867 = vshrl.u32 %v607, 16
      %v869 = vrot.slane %v867, 7
      %v870 = vshll.u32 %v607, 16
      %v872 = vor.u32 %v869, %v870
      %v873 = vrot.slane %v869, 4
      %v875 = vshrl.u32 %v608, 16
      %v877 = vrot.slane %v875, 7
      %v878 = vshll.u32 %v608, 16
      %v880 = vor.u32 %v877, %v878
      %v881 = vsel %vm610, %v873, %v880
      %v882 = vrot.slane %v877, 4
      %s931 = scalar_lea.vmem [#allocation2], 12
      %vm932 = vcmask 519168
      %vm933 = vmand %vm932, %vm489
      %v934 = vld [vmem:[%s931] sm:$0xf]
      %v935 = vsel %vm933, %v617, %v934
      %936 = vst [vmem:[%s931] sm:$0xf] %v935
      %937 = vst.msk [vmem:[%s931 + $0x4] sm:$0xf] %vm423, %v626
      %v938 = vld [vmem:[%s931 + $0x8] sm:$0x1]
      %v939 = vsel %vm434, %v627, %v938
      %940 = vst [vmem:[%s931 + $0x8] sm:$0x1] %v939
      %v941 = vld [vmem:[%s931 + $0xc] sm:$0xf]
      %v942 = vsel %vm933, %v634, %v941
      %943 = vst [vmem:[%s931 + $0xc] sm:$0xf] %v942
      %944 = vst.msk [vmem:[%s931 + $0x10] sm:$0xf] %vm423, %v643
      %v945 = vld [vmem:[%s931 + $0x14] sm:$0x1]
      %v946 = vsel %vm434, %v644, %v945
      %947 = vst [vmem:[%s931 + $0x14] sm:$0x1] %v946
      %v948 = vld [vmem:[%s931 + $0x18] sm:$0xf]
      %v949 = vsel %vm933, %v651, %v948
      %950 = vst [vmem:[%s931 + $0x18] sm:$0xf] %v949
      %951 = vst.msk [vmem:[%s931 + $0x1c] sm:$0xf] %vm423, %v660
      %v952 = vld [vmem:[%s931 + $0x20] sm:$0x1]
      %v953 = vsel %vm434, %v661, %v952
      %954 = vst [vmem:[%s931 + $0x20] sm:$0x1] %v953
      %v955 = vld [vmem:[%s931 + $0x24] sm:$0xf]
      %v956 = vsel %vm933, %v668, %v955
      %957 = vst [vmem:[%s931 + $0x24] sm:$0xf] %v956
      %958 = vst.msk [vmem:[%s931 + $0x28] sm:$0xf] %vm423, %v677
      %v959 = vld [vmem:[%s931 + $0x2c] sm:$0x1]
      %v960 = vsel %vm434, %v678, %v959
      %961 = vst [vmem:[%s931 + $0x2c] sm:$0x1] %v960
      %v962 = vld [vmem:[%s931 + $0x30] sm:$0xf]
      %v963 = vsel %vm933, %v685, %v962
      %964 = vst [vmem:[%s931 + $0x30] sm:$0xf] %v963
      %965 = vst.msk [vmem:[%s931 + $0x34] sm:$0xf] %vm423, %v694
      %v966 = vld [vmem:[%s931 + $0x38] sm:$0x1]
      %v967 = vsel %vm434, %v695, %v966
      %968 = vst [vmem:[%s931 + $0x38] sm:$0x1] %v967
      %v969 = vld [vmem:[%s931 + $0x3c] sm:$0xf]
      %v970 = vsel %vm933, %v702, %v969
      %971 = vst [vmem:[%s931 + $0x3c] sm:$0xf] %v970
      %972 = vst.msk [vmem:[%s931 + $0x40] sm:$0xf] %vm423, %v711
      %v973 = vld [vmem:[%s931 + $0x44] sm:$0x1]
      %v974 = vsel %vm434, %v712, %v973
      %975 = vst [vmem:[%s931 + $0x44] sm:$0x1] %v974
      %v976 = vld [vmem:[%s931 + $0x48] sm:$0xf]
      %v977 = vsel %vm933, %v719, %v976
      %978 = vst [vmem:[%s931 + $0x48] sm:$0xf] %v977
      %979 = vst.msk [vmem:[%s931 + $0x4c] sm:$0xf] %vm423, %v728
      %v980 = vld [vmem:[%s931 + $0x50] sm:$0x1]
      %v981 = vsel %vm434, %v729, %v980
      %982 = vst [vmem:[%s931 + $0x50] sm:$0x1] %v981
      %v983 = vld [vmem:[%s931 + $0x54] sm:$0xf]
      %v984 = vsel %vm933, %v736, %v983
      %985 = vst [vmem:[%s931 + $0x54] sm:$0xf] %v984
      %986 = vst.msk [vmem:[%s931 + $0x58] sm:$0xf] %vm423, %v745
      %v987 = vld [vmem:[%s931 + $0x5c] sm:$0x1]
      %v988 = vsel %vm434, %v746, %v987
      %989 = vst [vmem:[%s931 + $0x5c] sm:$0x1] %v988
      %v990 = vld [vmem:[%s931 + $0x60] sm:$0xf]
      %v991 = vsel %vm933, %v753, %v990
      %992 = vst [vmem:[%s931 + $0x60] sm:$0xf] %v991
      %993 = vst.msk [vmem:[%s931 + $0x64] sm:$0xf] %vm423, %v762
      %v994 = vld [vmem:[%s931 + $0x68] sm:$0x1]
      %v995 = vsel %vm434, %v763, %v994
      %996 = vst [vmem:[%s931 + $0x68] sm:$0x1] %v995
      %v997 = vld [vmem:[%s931 + $0x6c] sm:$0xf]
      %v998 = vsel %vm933, %v770, %v997
      %999 = vst [vmem:[%s931 + $0x6c] sm:$0xf] %v998
      %1000 = vst.msk [vmem:[%s931 + $0x70] sm:$0xf] %vm423, %v779
      %v1001 = vld [vmem:[%s931 + $0x74] sm:$0x1]
      %v1002 = vsel %vm434, %v780, %v1001
      %1003 = vst [vmem:[%s931 + $0x74] sm:$0x1] %v1002
      %v1004 = vld [vmem:[%s931 + $0x78] sm:$0xf]
      %v1005 = vsel %vm933, %v787, %v1004
      %1006 = vst [vmem:[%s931 + $0x78] sm:$0xf] %v1005
      %1007 = vst.msk [vmem:[%s931 + $0x7c] sm:$0xf] %vm423, %v796
      %v1008 = vld [vmem:[%s931 + $0x80] sm:$0x1]
      %v1009 = vsel %vm434, %v797, %v1008
      %1010 = vst [vmem:[%s931 + $0x80] sm:$0x1] %v1009
      %v1011 = vld [vmem:[%s931 + $0x84] sm:$0xf]
      %v1012 = vsel %vm933, %v804, %v1011
      %1013 = vst [vmem:[%s931 + $0x84] sm:$0xf] %v1012
      %1014 = vst.msk [vmem:[%s931 + $0x88] sm:$0xf] %vm423, %v813
      %v1015 = vld [vmem:[%s931 + $0x8c] sm:$0x1]
      %v1016 = vsel %vm434, %v814, %v1015
      %1017 = vst [vmem:[%s931 + $0x8c] sm:$0x1] %v1016
      %v1018 = vld [vmem:[%s931 + $0x90] sm:$0xf]
      %v1019 = vsel %vm933, %v821, %v1018
      %1020 = vst [vmem:[%s931 + $0x90] sm:$0xf] %v1019
      %1021 = vst.msk [vmem:[%s931 + $0x94] sm:$0xf] %vm423, %v830
      %v1022 = vld [vmem:[%s931 + $0x98] sm:$0x1]
      %v1023 = vsel %vm434, %v831, %v1022
      %1024 = vst [vmem:[%s931 + $0x98] sm:$0x1] %v1023
      %v1025 = vld [vmem:[%s931 + $0x9c] sm:$0xf]
      %v1026 = vsel %vm933, %v838, %v1025
      %1027 = vst [vmem:[%s931 + $0x9c] sm:$0xf] %v1026
      %1028 = vst.msk [vmem:[%s931 + $0xa0] sm:$0xf] %vm423, %v847
      %v1029 = vld [vmem:[%s931 + $0xa4] sm:$0x1]
      %v1030 = vsel %vm434, %v848, %v1029
      %1031 = vst [vmem:[%s931 + $0xa4] sm:$0x1] %v1030
      %v1032 = vld [vmem:[%s931 + $0xa8] sm:$0xf]
      %v1033 = vsel %vm933, %v855, %v1032
      %1034 = vst [vmem:[%s931 + $0xa8] sm:$0xf] %v1033
      %1035 = vst.msk [vmem:[%s931 + $0xac] sm:$0xf] %vm423, %v864
      %v1036 = vld [vmem:[%s931 + $0xb0] sm:$0x1]
      %v1037 = vsel %vm434, %v865, %v1036
      %1038 = vst [vmem:[%s931 + $0xb0] sm:$0x1] %v1037
      %v1039 = vld [vmem:[%s931 + $0xb4] sm:$0xf]
      %v1040 = vsel %vm933, %v872, %v1039
      %1041 = vst [vmem:[%s931 + $0xb4] sm:$0xf] %v1040
      %1042 = vst.msk [vmem:[%s931 + $0xb8] sm:$0xf] %vm423, %v881
      %v1043 = vld [vmem:[%s931 + $0xbc] sm:$0x1]
      %v1044 = vsel %vm434, %v882, %v1043
      %1045 = vst [vmem:[%s931 + $0xbc] sm:$0x1] %v1044
      %v1046 = vld [vmem:[%s3] sm:$0x1]
      %v1047 = vld [vmem:[%s4] sm:$0x1]
      %v1048 = vld [vmem:[%s5] sm:$0x1]
      %v1049 = vld [vmem:[#allocation2] sm:$0xf]
      %v1050 = vld [vmem:[#allocation2 + $0x4] sm:$0xf]
      %v1051 = vld [vmem:[#allocation2 + $0xc] sm:$0xf]
      %v1052 = vld [vmem:[#allocation2 + $0x10] sm:$0xf]
      %v1053 = vld [vmem:[#allocation2 + $0x18] sm:$0xf]
      %v1054 = vld [vmem:[#allocation2 + $0x1c] sm:$0xf]
      %v1055 = vld [vmem:[#allocation2 + $0x24] sm:$0xf]
      %v1056 = vld [vmem:[#allocation2 + $0x28] sm:$0xf]
      %v1057 = vld [vmem:[#allocation2 + $0x30] sm:$0xf]
      %v1058 = vld [vmem:[#allocation2 + $0x34] sm:$0xf]
      %v1059 = vld [vmem:[#allocation2 + $0x3c] sm:$0xf]
      %v1060 = vld [vmem:[#allocation2 + $0x40] sm:$0xf]
      %v1061 = vld [vmem:[#allocation2 + $0x48] sm:$0xf]
      %v1062 = vld [vmem:[#allocation2 + $0x4c] sm:$0xf]
      %v1063 = vld [vmem:[#allocation2 + $0x54] sm:$0xf]
      %v1064 = vld [vmem:[#allocation2 + $0x58] sm:$0xf]
      %v1065 = vld [vmem:[#allocation2 + $0x60] sm:$0xf]
      %v1066 = vld [vmem:[#allocation2 + $0x64] sm:$0xf]
      %v1067 = vld [vmem:[#allocation2 + $0x6c] sm:$0xf]
      %v1068 = vld [vmem:[#allocation2 + $0x70] sm:$0xf]
      %v1069 = vld [vmem:[#allocation2 + $0x78] sm:$0xf]
      %v1070 = vld [vmem:[#allocation2 + $0x7c] sm:$0xf]
      %v1071 = vld [vmem:[#allocation2 + $0x84] sm:$0xf]
      %v1072 = vld [vmem:[#allocation2 + $0x88] sm:$0xf]
      %v1073 = vld [vmem:[#allocation2 + $0x90] sm:$0xf]
      %v1074 = vld [vmem:[#allocation2 + $0x94] sm:$0xf]
      %v1075 = vld [vmem:[#allocation2 + $0x9c] sm:$0xf]
      %v1076 = vld [vmem:[#allocation2 + $0xa0] sm:$0xf]
      %v1077 = vld [vmem:[#allocation2 + $0xa8] sm:$0xf]
      %v1078 = vld [vmem:[#allocation2 + $0xac] sm:$0xf]
      %v1079 = vld [vmem:[#allocation2 + $0xb4] sm:$0xf]
      %v1080 = vld [vmem:[#allocation2 + $0xb8] sm:$0xf]
      %v1081 = vld [vmem:[%s2] sm:$0xf]
      %v1082 = vld [vmem:[%s2 + $0x4] sm:$0xf]
      %v1083 = vld [vmem:[%s2 + $0x8] sm:$0xf]
      %v1084 = vld [vmem:[%s2 + $0xc] sm:$0xf]
      %v1085 = vld [vmem:[%s2 + $0x10] sm:$0xf]
      %v1086 = vld [vmem:[%s2 + $0x14] sm:$0xf]
      %v1087 = vld [vmem:[%s2 + $0x18] sm:$0xf]
      %v1088 = vld [vmem:[%s2 + $0x1c] sm:$0xf]
      %v1089 = vld [vmem:[#allocation2 + $0x8] sm:$0x1]
      %v1090 = vld [vmem:[#allocation2 + $0x14] sm:$0x1]
      %v1091 = vld [vmem:[#allocation2 + $0x20] sm:$0x1]
      %v1092 = vld [vmem:[#allocation2 + $0x2c] sm:$0x1]
      %v1093 = vld [vmem:[#allocation2 + $0x38] sm:$0x1]
      %v1094 = vld [vmem:[#allocation2 + $0x44] sm:$0x1]
      %v1095 = vld [vmem:[#allocation2 + $0x50] sm:$0x1]
      %v1096 = vld [vmem:[#allocation2 + $0x5c] sm:$0x1]
      %v1097 = vld [vmem:[#allocation2 + $0x68] sm:$0x1]
      %v1098 = vld [vmem:[#allocation2 + $0x74] sm:$0x1]
      %v1099 = vld [vmem:[#allocation2 + $0x80] sm:$0x1]
      %v1100 = vld [vmem:[#allocation2 + $0x8c] sm:$0x1]
      %v1101 = vld [vmem:[#allocation2 + $0x98] sm:$0x1]
      %v1102 = vld [vmem:[#allocation2 + $0xa4] sm:$0x1]
      %v1103 = vld [vmem:[#allocation2 + $0xb0] sm:$0x1]
      %v1104 = vld [vmem:[#allocation2 + $0xbc] sm:$0x1]
      %vm1105 = vsmask.f32 3328
      %vm1106 = vsmask.f32 7440
      %vm1107 = vmor %vm1105, %vm1106
      %v1109 = vshrl.u32 %v1049, 16
      %v1111 = vrot.slane %v1109, 4
      %v1112 = vshll.u32 %v1049, 16
      %v1114 = vrot.slane %v1112, 5
      %v1115 = vor.u32 %v1111, %v1114
      %v1116 = vrot.slane %v1115, 4
      %v1118 = vshll.u32 %v1050, 16
      %v1120 = vrot.slane %v1118, 5
      %v1121 = vsel %vm1107, %v1116, %v1120
      %v1122 = vshrl.u32 %v1050, 16
      %v1124 = vrot.slane %v1122, 4
      %v1125 = vor.u32 %v1124, %v1120
      %v1126 = vrot.slane %v1125, 4
      %v1128 = vshll.u32 %v1089, 16
      %v1130 = vrot.slane %v1128, 5
      %v1131 = vsel %vm1107, %v1126, %v1130
      %v1133 = vshrl.u32 %v1051, 16
      %v1135 = vrot.slane %v1133, 4
      %v1136 = vshll.u32 %v1051, 16
      %v1138 = vrot.slane %v1136, 5
      %v1139 = vor.u32 %v1135, %v1138
      %v1140 = vrot.slane %v1139, 4
      %v1142 = vshll.u32 %v1052, 16
      %v1144 = vrot.slane %v1142, 5
      %v1145 = vsel %vm1107, %v1140, %v1144
      %v1146 = vshrl.u32 %v1052, 16
      %v1148 = vrot.slane %v1146, 4
      %v1149 = vor.u32 %v1148, %v1144
      %v1150 = vrot.slane %v1149, 4
      %v1152 = vshll.u32 %v1090, 16
      %v1154 = vrot.slane %v1152, 5
      %v1155 = vsel %vm1107, %v1150, %v1154
      %v1157 = vshrl.u32 %v1053, 16
      %v1159 = vrot.slane %v1157, 4
      %v1160 = vshll.u32 %v1053, 16
      %v1162 = vrot.slane %v1160, 5
      %v1163 = vor.u32 %v1159, %v1162
      %v1164 = vrot.slane %v1163, 4
      %v1166 = vshll.u32 %v1054, 16
      %v1168 = vrot.slane %v1166, 5
      %v1169 = vsel %vm1107, %v1164, %v1168
      %v1170 = vshrl.u32 %v1054, 16
      %v1172 = vrot.slane %v1170, 4
      %v1173 = vor.u32 %v1172, %v1168
      %v1174 = vrot.slane %v1173, 4
      %v1176 = vshll.u32 %v1091, 16
      %v1178 = vrot.slane %v1176, 5
      %v1179 = vsel %vm1107, %v1174, %v1178
      %v1181 = vshrl.u32 %v1055, 16
      %v1183 = vrot.slane %v1181, 4
      %v1184 = vshll.u32 %v1055, 16
      %v1186 = vrot.slane %v1184, 5
      %v1187 = vor.u32 %v1183, %v1186
      %v1188 = vrot.slane %v1187, 4
      %v1190 = vshll.u32 %v1056, 16
      %v1192 = vrot.slane %v1190, 5
      %v1193 = vsel %vm1107, %v1188, %v1192
      %v1194 = vshrl.u32 %v1056, 16
      %v1196 = vrot.slane %v1194, 4
      %v1197 = vor.u32 %v1196, %v1192
      %v1198 = vrot.slane %v1197, 4
      %v1200 = vshll.u32 %v1092, 16
      %v1202 = vrot.slane %v1200, 5
      %v1203 = vsel %vm1107, %v1198, %v1202
      %v1205 = vshrl.u32 %v1057, 16
      %v1207 = vrot.slane %v1205, 4
      %v1208 = vshll.u32 %v1057, 16
      %v1210 = vrot.slane %v1208, 5
      %v1211 = vor.u32 %v1207, %v1210
      %v1212 = vrot.slane %v1211, 4
      %v1214 = vshll.u32 %v1058, 16
      %v1216 = vrot.slane %v1214, 5
      %v1217 = vsel %vm1107, %v1212, %v1216
      %v1218 = vshrl.u32 %v1058, 16
      %v1220 = vrot.slane %v1218, 4
      %v1221 = vor.u32 %v1220, %v1216
      %v1222 = vrot.slane %v1221, 4
      %v1224 = vshll.u32 %v1093, 16
      %v1226 = vrot.slane %v1224, 5
      %v1227 = vsel %vm1107, %v1222, %v1226
      %v1229 = vshrl.u32 %v1059, 16
      %v1231 = vrot.slane %v1229, 4
      %v1232 = vshll.u32 %v1059, 16
      %v1234 = vrot.slane %v1232, 5
      %v1235 = vor.u32 %v1231, %v1234
      %v1236 = vrot.slane %v1235, 4
      %v1238 = vshll.u32 %v1060, 16
      %v1240 = vrot.slane %v1238, 5
      %v1241 = vsel %vm1107, %v1236, %v1240
      %v1242 = vshrl.u32 %v1060, 16
      %v1244 = vrot.slane %v1242, 4
      %v1245 = vor.u32 %v1244, %v1240
      %v1246 = vrot.slane %v1245, 4
      %v1248 = vshll.u32 %v1094, 16
      %v1250 = vrot.slane %v1248, 5
      %v1251 = vsel %vm1107, %v1246, %v1250
      %v1253 = vshrl.u32 %v1061, 16
      %v1255 = vrot.slane %v1253, 4
      %v1256 = vshll.u32 %v1061, 16
      %v1258 = vrot.slane %v1256, 5
      %v1259 = vor.u32 %v1255, %v1258
      %v1260 = vrot.slane %v1259, 4
      %v1262 = vshll.u32 %v1062, 16
      %v1264 = vrot.slane %v1262, 5
      %v1265 = vsel %vm1107, %v1260, %v1264
      %v1266 = vshrl.u32 %v1062, 16
      %v1268 = vrot.slane %v1266, 4
      %v1269 = vor.u32 %v1268, %v1264
      %v1270 = vrot.slane %v1269, 4
      %v1272 = vshll.u32 %v1095, 16
      %v1274 = vrot.slane %v1272, 5
      %v1275 = vsel %vm1107, %v1270, %v1274
      %v1277 = vshrl.u32 %v1063, 16
      %v1279 = vrot.slane %v1277, 4
      %v1280 = vshll.u32 %v1063, 16
      %v1282 = vrot.slane %v1280, 5
      %v1283 = vor.u32 %v1279, %v1282
      %v1284 = vrot.slane %v1283, 4
      %v1286 = vshll.u32 %v1064, 16
      %v1288 = vrot.slane %v1286, 5
      %v1289 = vsel %vm1107, %v1284, %v1288
      %v1290 = vshrl.u32 %v1064, 16
      %v1292 = vrot.slane %v1290, 4
      %v1293 = vor.u32 %v1292, %v1288
      %v1294 = vrot.slane %v1293, 4
      %v1296 = vshll.u32 %v1096, 16
      %v1298 = vrot.slane %v1296, 5
      %v1299 = vsel %vm1107, %v1294, %v1298
      %v1301 = vshrl.u32 %v1065, 16
      %v1303 = vrot.slane %v1301, 4
      %v1304 = vshll.u32 %v1065, 16
      %v1306 = vrot.slane %v1304, 5
      %v1307 = vor.u32 %v1303, %v1306
      %v1308 = vrot.slane %v1307, 4
      %v1310 = vshll.u32 %v1066, 16
      %v1312 = vrot.slane %v1310, 5
      %v1313 = vsel %vm1107, %v1308, %v1312
      %v1314 = vshrl.u32 %v1066, 16
      %v1316 = vrot.slane %v1314, 4
      %v1317 = vor.u32 %v1316, %v1312
      %v1318 = vrot.slane %v1317, 4
      %v1320 = vshll.u32 %v1097, 16
      %v1322 = vrot.slane %v1320, 5
      %v1323 = vsel %vm1107, %v1318, %v1322
      %v1325 = vshrl.u32 %v1067, 16
      %v1327 = vrot.slane %v1325, 4
      %v1328 = vshll.u32 %v1067, 16
      %v1330 = vrot.slane %v1328, 5
      %v1331 = vor.u32 %v1327, %v1330
      %v1332 = vrot.slane %v1331, 4
      %v1334 = vshll.u32 %v1068, 16
      %v1336 = vrot.slane %v1334, 5
      %v1337 = vsel %vm1107, %v1332, %v1336
      %v1338 = vshrl.u32 %v1068, 16
      %v1340 = vrot.slane %v1338, 4
      %v1341 = vor.u32 %v1340, %v1336
      %v1342 = vrot.slane %v1341, 4
      %v1344 = vshll.u32 %v1098, 16
      %v1346 = vrot.slane %v1344, 5
      %v1347 = vsel %vm1107, %v1342, %v1346
      %v1349 = vshrl.u32 %v1069, 16
      %v1351 = vrot.slane %v1349, 4
      %v1352 = vshll.u32 %v1069, 16
      %v1354 = vrot.slane %v1352, 5
      %v1355 = vor.u32 %v1351, %v1354
      %v1356 = vrot.slane %v1355, 4
      %v1358 = vshll.u32 %v1070, 16
      %v1360 = vrot.slane %v1358, 5
      %v1361 = vsel %vm1107, %v1356, %v1360
      %v1362 = vshrl.u32 %v1070, 16
      %v1364 = vrot.slane %v1362, 4
      %v1365 = vor.u32 %v1364, %v1360
      %v1366 = vrot.slane %v1365, 4
      %v1368 = vshll.u32 %v1099, 16
      %v1370 = vrot.slane %v1368, 5
      %v1371 = vsel %vm1107, %v1366, %v1370
      %v1373 = vshrl.u32 %v1071, 16
      %v1375 = vrot.slane %v1373, 4
      %v1376 = vshll.u32 %v1071, 16
      %v1378 = vrot.slane %v1376, 5
      %v1379 = vor.u32 %v1375, %v1378
      %v1380 = vrot.slane %v1379, 4
      %v1382 = vshll.u32 %v1072, 16
      %v1384 = vrot.slane %v1382, 5
      %v1385 = vsel %vm1107, %v1380, %v1384
      %v1386 = vshrl.u32 %v1072, 16
      %v1388 = vrot.slane %v1386, 4
      %v1389 = vor.u32 %v1388, %v1384
      %v1390 = vrot.slane %v1389, 4
      %v1392 = vshll.u32 %v1100, 16
      %v1394 = vrot.slane %v1392, 5
      %v1395 = vsel %vm1107, %v1390, %v1394
      %v1397 = vshrl.u32 %v1073, 16
      %v1399 = vrot.slane %v1397, 4
      %v1400 = vshll.u32 %v1073, 16
      %v1402 = vrot.slane %v1400, 5
      %v1403 = vor.u32 %v1399, %v1402
      %v1404 = vrot.slane %v1403, 4
      %v1406 = vshll.u32 %v1074, 16
      %v1408 = vrot.slane %v1406, 5
      %v1409 = vsel %vm1107, %v1404, %v1408
      %v1410 = vshrl.u32 %v1074, 16
      %v1412 = vrot.slane %v1410, 4
      %v1413 = vor.u32 %v1412, %v1408
      %v1414 = vrot.slane %v1413, 4
      %v1416 = vshll.u32 %v1101, 16
      %v1418 = vrot.slane %v1416, 5
      %v1419 = vsel %vm1107, %v1414, %v1418
      %v1421 = vshrl.u32 %v1075, 16
      %v1423 = vrot.slane %v1421, 4
      %v1424 = vshll.u32 %v1075, 16
      %v1426 = vrot.slane %v1424, 5
      %v1427 = vor.u32 %v1423, %v1426
      %v1428 = vrot.slane %v1427, 4
      %v1430 = vshll.u32 %v1076, 16
      %v1432 = vrot.slane %v1430, 5
      %v1433 = vsel %vm1107, %v1428, %v1432
      %v1434 = vshrl.u32 %v1076, 16
      %v1436 = vrot.slane %v1434, 4
      %v1437 = vor.u32 %v1436, %v1432
      %v1438 = vrot.slane %v1437, 4
      %v1440 = vshll.u32 %v1102, 16
      %v1442 = vrot.slane %v1440, 5
      %v1443 = vsel %vm1107, %v1438, %v1442
      %v1445 = vshrl.u32 %v1077, 16
      %v1447 = vrot.slane %v1445, 4
      %v1448 = vshll.u32 %v1077, 16
      %v1450 = vrot.slane %v1448, 5
      %v1451 = vor.u32 %v1447, %v1450
      %v1452 = vrot.slane %v1451, 4
      %v1454 = vshll.u32 %v1078, 16
      %v1456 = vrot.slane %v1454, 5
      %v1457 = vsel %vm1107, %v1452, %v1456
      %v1458 = vshrl.u32 %v1078, 16
      %v1460 = vrot.slane %v1458, 4
      %v1461 = vor.u32 %v1460, %v1456
      %v1462 = vrot.slane %v1461, 4
      %v1464 = vshll.u32 %v1103, 16
      %v1466 = vrot.slane %v1464, 5
      %v1467 = vsel %vm1107, %v1462, %v1466
      %v1469 = vshrl.u32 %v1079, 16
      %v1471 = vrot.slane %v1469, 4
      %v1472 = vshll.u32 %v1079, 16
      %v1474 = vrot.slane %v1472, 5
      %v1475 = vor.u32 %v1471, %v1474
      %v1476 = vrot.slane %v1475, 4
      %v1478 = vshll.u32 %v1080, 16
      %v1480 = vrot.slane %v1478, 5
      %v1481 = vsel %vm1107, %v1476, %v1480
      %v1482 = vshrl.u32 %v1080, 16
      %v1484 = vrot.slane %v1482, 4
      %v1485 = vor.u32 %v1484, %v1480
      %v1486 = vrot.slane %v1485, 4
      %v1488 = vshll.u32 %v1104, 16
      %v1490 = vrot.slane %v1488, 5
      %v1491 = vsel %vm1107, %v1486, %v1490
      %s1492 = scalar_lea.vmem %s2, 32
      %v1493 = vld [vmem:[%s1492] sm:$0xf]
      %v1494 = vld [vmem:[%s1492 + $0x4] sm:$0xf]
      %v1495 = vld [vmem:[%s1492 + $0x8] sm:$0xf]
      %v1496 = vld [vmem:[%s1492 + $0xc] sm:$0xf]
      %v1497 = vld [vmem:[%s1492 + $0x10] sm:$0xf]
      %v1498 = vld [vmem:[%s1492 + $0x14] sm:$0xf]
      %v1499 = vld [vmem:[%s1492 + $0x18] sm:$0xf]
      %v1500 = vld [vmem:[%s1492 + $0x1c] sm:$0xf]
      %v1501 = vunpack.c.l.b16 %v1121
      %v1502 = vunpack.c.l.b16 %v1131
      %v1503 = vunpack.c.l.b16 %v1145
      %v1504 = vunpack.c.l.b16 %v1155
      %v1505 = vunpack.c.l.b16 %v1169
      %v1506 = vunpack.c.l.b16 %v1179
      %v1507 = vunpack.c.l.b16 %v1193
      %v1508 = vunpack.c.l.b16 %v1203
      %v1509 = vunpack.c.l.b16 %v1217
      %v1510 = vunpack.c.l.b16 %v1227
      %v1511 = vunpack.c.l.b16 %v1241
      %v1512 = vunpack.c.l.b16 %v1251
      %v1513 = vunpack.c.l.b16 %v1265
      %v1514 = vunpack.c.l.b16 %v1275
      %v1515 = vunpack.c.l.b16 %v1289
      %v1516 = vunpack.c.l.b16 %v1299
      %v1517 = vunpack.c.l.b16 %v1313
      %v1518 = vunpack.c.l.b16 %v1323
      %v1519 = vunpack.c.l.b16 %v1337
      %v1520 = vunpack.c.l.b16 %v1347
      %v1521 = vunpack.c.l.b16 %v1361
      %v1522 = vunpack.c.l.b16 %v1371
      %v1523 = vunpack.c.l.b16 %v1385
      %v1524 = vunpack.c.l.b16 %v1395
      %v1525 = vunpack.c.l.b16 %v1409
      %v1526 = vunpack.c.l.b16 %v1419
      %v1527 = vunpack.c.l.b16 %v1433
      %v1528 = vunpack.c.l.b16 %v1443
      %v1529 = vunpack.c.l.b16 %v1457
      %v1530 = vunpack.c.l.b16 %v1467
      %v1531 = vunpack.c.l.b16 %v1481
      %v1532 = vunpack.c.l.b16 %v1491
      %v1533 = vpack.c.b16 %v1502, %v1501
      %v1534 = vpack.c.b16 %v1504, %v1503
      %v1535 = vpack.c.b16 %v1506, %v1505
      %v1536 = vpack.c.b16 %v1508, %v1507
      %v1537 = vpack.c.b16 %v1510, %v1509
      %v1538 = vpack.c.b16 %v1512, %v1511
      %v1539 = vpack.c.b16 %v1514, %v1513
      %v1540 = vpack.c.b16 %v1516, %v1515
      %v1541 = vpack.c.b16 %v1518, %v1517
      %v1542 = vpack.c.b16 %v1520, %v1519
      %v1543 = vpack.c.b16 %v1522, %v1521
      %v1544 = vpack.c.b16 %v1524, %v1523
      %v1545 = vpack.c.b16 %v1526, %v1525
      %v1546 = vpack.c.b16 %v1528, %v1527
      %v1547 = vpack.c.b16 %v1530, %v1529
      %v1548 = vpack.c.b16 %v1532, %v1531
      %v1557 = vunpack.c.l.b16 %v1493
      %v1558 = vunpack.c.l.b16 %v1494
      %v1559 = vunpack.c.l.b16 %v1495
      %v1560 = vunpack.c.l.b16 %v1496
      %v1561 = vunpack.c.l.b16 %v1497
      %v1562 = vunpack.c.l.b16 %v1498
      %v1563 = vunpack.c.l.b16 %v1499
      %v1564 = vunpack.c.l.b16 %v1500
      %v1565 = vpack.c.b16 %v1558, %v1557
      %v1566 = vpack.c.b16 %v1560, %v1559
      %v1567 = vpack.c.b16 %v1562, %v1561
      %v1568 = vpack.c.b16 %v1564, %v1563
      %vm1573 = vcmask 523264
      %v1575 = vsel %vm1573, %v1533, 0
      %v1578 = vsel %vm1573, %v1534, 0
      %v1581 = vsel %vm1573, %v1535, 0
      %v1584 = vsel %vm1573, %v1536, 0
      %v1587 = vsel %vm1573, %v1537, 0
      %v1590 = vsel %vm1573, %v1538, 0
      %v1593 = vsel %vm1573, %v1539, 0
      %v1596 = vsel %vm1573, %v1540, 0
      %v1599 = vsel %vm1573, %v1541, 0
      %v1602 = vsel %vm1573, %v1542, 0
      %v1605 = vsel %vm1573, %v1543, 0
      %v1608 = vsel %vm1573, %v1544, 0
      %v1611 = vsel %vm1573, %v1545, 0
      %v1614 = vsel %vm1573, %v1546, 0
      %v1617 = vsel %vm1573, %v1547, 0
      %v1620 = vsel %vm1573, %v1548, 0
      %1622 = vmatpush.bf16.msra.mxu0 0
      %1623 = vmatpush.bf16.msra.mxu0 0
      %1624 = vmatpush.bf16.msra.mxu0 0
      %1625 = vmatpush.bf16.msra.mxu0 0
      %1626 = vmatpush.bf16.msra.mxu0 %v1568
      %1627 = vmatpush.bf16.msra.mxu0 %v1567
      %1628 = vmatpush.bf16.msra.mxu0 %v1566
      %1629 = vmatpush.bf16.msra.mxu0 %v1565
      %1630 = vmatmul.bf16.gmra.mxu0 %v1575
      %v1631 = vpop.f32.mrf.mxu0
      %v1632 = vadd.f32 0.0, %v1631
      %v1633 = vpop.f32.mrf.mxu0
      %v1634 = vadd.f32 0.0, %v1633
      %1635 = vmatmul.bf16.gmra.mxu0 %v1578
      %v1636 = vpop.f32.mrf.mxu0
      %v1637 = vadd.f32 0.0, %v1636
      %v1638 = vpop.f32.mrf.mxu0
      %v1639 = vadd.f32 0.0, %v1638
      %1640 = vmatmul.bf16.gmra.mxu0 %v1581
      %v1641 = vpop.f32.mrf.mxu0
      %v1642 = vadd.f32 0.0, %v1641
      %v1643 = vpop.f32.mrf.mxu0
      %v1644 = vadd.f32 0.0, %v1643
      %1645 = vmatmul.bf16.gmra.mxu0 %v1584
      %v1646 = vpop.f32.mrf.mxu0
      %v1647 = vadd.f32 0.0, %v1646
      %v1648 = vpop.f32.mrf.mxu0
      %v1649 = vadd.f32 0.0, %v1648
      %1650 = vmatmul.bf16.gmra.mxu0 %v1587
      %v1651 = vpop.f32.mrf.mxu0
      %v1652 = vadd.f32 0.0, %v1651
      %v1653 = vpop.f32.mrf.mxu0
      %v1654 = vadd.f32 0.0, %v1653
      %1655 = vmatmul.bf16.gmra.mxu0 %v1590
      %v1656 = vpop.f32.mrf.mxu0
      %v1657 = vadd.f32 0.0, %v1656
      %v1658 = vpop.f32.mrf.mxu0
      %v1659 = vadd.f32 0.0, %v1658
      %1660 = vmatmul.bf16.gmra.mxu0 %v1593
      %v1661 = vpop.f32.mrf.mxu0
      %v1662 = vadd.f32 0.0, %v1661
      %v1663 = vpop.f32.mrf.mxu0
      %v1664 = vadd.f32 0.0, %v1663
      %1665 = vmatmul.bf16.gmra.mxu0 %v1596
      %v1666 = vpop.f32.mrf.mxu0
      %v1667 = vadd.f32 0.0, %v1666
      %v1668 = vpop.f32.mrf.mxu0
      %v1669 = vadd.f32 0.0, %v1668
      %1670 = vmatmul.bf16.gmra.mxu0 %v1599
      %v1671 = vpop.f32.mrf.mxu0
      %v1672 = vadd.f32 0.0, %v1671
      %v1673 = vpop.f32.mrf.mxu0
      %v1674 = vadd.f32 0.0, %v1673
      %1675 = vmatmul.bf16.gmra.mxu0 %v1602
      %v1676 = vpop.f32.mrf.mxu0
      %v1677 = vadd.f32 0.0, %v1676
      %v1678 = vpop.f32.mrf.mxu0
      %v1679 = vadd.f32 0.0, %v1678
      %1680 = vmatmul.bf16.gmra.mxu0 %v1605
      %v1681 = vpop.f32.mrf.mxu0
      %v1682 = vadd.f32 0.0, %v1681
      %v1683 = vpop.f32.mrf.mxu0
      %v1684 = vadd.f32 0.0, %v1683
      %1685 = vmatmul.bf16.gmra.mxu0 %v1608
      %v1686 = vpop.f32.mrf.mxu0
      %v1687 = vadd.f32 0.0, %v1686
      %v1688 = vpop.f32.mrf.mxu0
      %v1689 = vadd.f32 0.0, %v1688
      %1690 = vmatmul.bf16.gmra.mxu0 %v1611
      %v1691 = vpop.f32.mrf.mxu0
      %v1692 = vadd.f32 0.0, %v1691
      %v1693 = vpop.f32.mrf.mxu0
      %v1694 = vadd.f32 0.0, %v1693
      %1695 = vmatmul.bf16.gmra.mxu0 %v1614
      %v1696 = vpop.f32.mrf.mxu0
      %v1697 = vadd.f32 0.0, %v1696
      %v1698 = vpop.f32.mrf.mxu0
      %v1699 = vadd.f32 0.0, %v1698
      %1700 = vmatmul.bf16.gmra.mxu0 %v1617
      %v1701 = vpop.f32.mrf.mxu0
      %v1702 = vadd.f32 0.0, %v1701
      %v1703 = vpop.f32.mrf.mxu0
      %v1704 = vadd.f32 0.0, %v1703
      %1705 = vmatmul.bf16.gmra.mxu0 %v1620
      %v1706 = vpop.f32.mrf.mxu0
      %v1707 = vadd.f32 0.0, %v1706
      %v1708 = vpop.f32.mrf.mxu0
      %v1709 = vadd.f32 0.0, %v1708
      %1710 = vdwg.mxu0
      %v1743 = vunpack.c.l.b16 %v1049
      %v1744 = vunpack.c.l.b16 %v1050
      %v1745 = vunpack.c.l.b16 %v1051
      %v1746 = vunpack.c.l.b16 %v1052
      %v1747 = vunpack.c.l.b16 %v1053
      %v1748 = vunpack.c.l.b16 %v1054
      %v1749 = vunpack.c.l.b16 %v1055
      %v1750 = vunpack.c.l.b16 %v1056
      %v1751 = vunpack.c.l.b16 %v1057
      %v1752 = vunpack.c.l.b16 %v1058
      %v1753 = vunpack.c.l.b16 %v1059
      %v1754 = vunpack.c.l.b16 %v1060
      %v1755 = vunpack.c.l.b16 %v1061
      %v1756 = vunpack.c.l.b16 %v1062
      %v1757 = vunpack.c.l.b16 %v1063
      %v1758 = vunpack.c.l.b16 %v1064
      %v1759 = vunpack.c.l.b16 %v1065
      %v1760 = vunpack.c.l.b16 %v1066
      %v1761 = vunpack.c.l.b16 %v1067
      %v1762 = vunpack.c.l.b16 %v1068
      %v1763 = vunpack.c.l.b16 %v1069
      %v1764 = vunpack.c.l.b16 %v1070
      %v1765 = vunpack.c.l.b16 %v1071
      %v1766 = vunpack.c.l.b16 %v1072
      %v1767 = vunpack.c.l.b16 %v1073
      %v1768 = vunpack.c.l.b16 %v1074
      %v1769 = vunpack.c.l.b16 %v1075
      %v1770 = vunpack.c.l.b16 %v1076
      %v1771 = vunpack.c.l.b16 %v1077
      %v1772 = vunpack.c.l.b16 %v1078
      %v1773 = vunpack.c.l.b16 %v1079
      %v1774 = vunpack.c.l.b16 %v1080
      %v1775 = vpack.c.b16 %v1744, %v1743
      %v1776 = vpack.c.b16 %v1746, %v1745
      %v1777 = vpack.c.b16 %v1748, %v1747
      %v1778 = vpack.c.b16 %v1750, %v1749
      %v1779 = vpack.c.b16 %v1752, %v1751
      %v1780 = vpack.c.b16 %v1754, %v1753
      %v1781 = vpack.c.b16 %v1756, %v1755
      %v1782 = vpack.c.b16 %v1758, %v1757
      %v1783 = vpack.c.b16 %v1760, %v1759
      %v1784 = vpack.c.b16 %v1762, %v1761
      %v1785 = vpack.c.b16 %v1764, %v1763
      %v1786 = vpack.c.b16 %v1766, %v1765
      %v1787 = vpack.c.b16 %v1768, %v1767
      %v1788 = vpack.c.b16 %v1770, %v1769
      %v1789 = vpack.c.b16 %v1772, %v1771
      %v1790 = vpack.c.b16 %v1774, %v1773
      %v1799 = vunpack.c.l.b16 %v1081
      %v1800 = vunpack.c.l.b16 %v1082
      %v1801 = vunpack.c.l.b16 %v1083
      %v1802 = vunpack.c.l.b16 %v1084
      %v1803 = vunpack.c.l.b16 %v1085
      %v1804 = vunpack.c.l.b16 %v1086
      %v1805 = vunpack.c.l.b16 %v1087
      %v1806 = vunpack.c.l.b16 %v1088
      %v1807 = vpack.c.b16 %v1800, %v1799
      %v1808 = vpack.c.b16 %v1802, %v1801
      %v1809 = vpack.c.b16 %v1804, %v1803
      %v1810 = vpack.c.b16 %v1806, %v1805
      %v1816 = vsel %vm1573, %v1775, 0
      %v1819 = vsel %vm1573, %v1776, 0
      %v1822 = vsel %vm1573, %v1777, 0
      %v1825 = vsel %vm1573, %v1778, 0
      %v1828 = vsel %vm1573, %v1779, 0
      %v1831 = vsel %vm1573, %v1780, 0
      %v1834 = vsel %vm1573, %v1781, 0
      %v1837 = vsel %vm1573, %v1782, 0
      %v1840 = vsel %vm1573, %v1783, 0
      %v1843 = vsel %vm1573, %v1784, 0
      %v1846 = vsel %vm1573, %v1785, 0
      %v1849 = vsel %vm1573, %v1786, 0
      %v1852 = vsel %vm1573, %v1787, 0
      %v1855 = vsel %vm1573, %v1788, 0
      %v1858 = vsel %vm1573, %v1789, 0
      %v1861 = vsel %vm1573, %v1790, 0
      %1863 = vmatpush.bf16.msra.mxu0 0
      %1864 = vmatpush.bf16.msra.mxu0 0
      %1865 = vmatpush.bf16.msra.mxu0 0
      %1866 = vmatpush.bf16.msra.mxu0 0
      %1867 = vmatpush.bf16.msra.mxu0 %v1810
      %1868 = vmatpush.bf16.msra.mxu0 %v1809
      %1869 = vmatpush.bf16.msra.mxu0 %v1808
      %1870 = vmatpush.bf16.msra.mxu0 %v1807
      %1871 = vmatmul.bf16.gmra.mxu0 %v1816
      %v1872 = vpop.f32.mrf.mxu0
      %v1873 = vadd.f32 %v1632, %v1872
      %v1874 = vpop.f32.mrf.mxu0
      %v1875 = vadd.f32 %v1634, %v1874
      %1876 = vmatmul.bf16.gmra.mxu0 %v1819
      %v1877 = vpop.f32.mrf.mxu0
      %v1878 = vadd.f32 %v1637, %v1877
      %v1879 = vpop.f32.mrf.mxu0
      %v1880 = vadd.f32 %v1639, %v1879
      %1881 = vmatmul.bf16.gmra.mxu0 %v1822
      %v1882 = vpop.f32.mrf.mxu0
      %v1883 = vadd.f32 %v1642, %v1882
      %v1884 = vpop.f32.mrf.mxu0
      %v1885 = vadd.f32 %v1644, %v1884
      %1886 = vmatmul.bf16.gmra.mxu0 %v1825
      %v1887 = vpop.f32.mrf.mxu0
      %v1888 = vadd.f32 %v1647, %v1887
      %v1889 = vpop.f32.mrf.mxu0
      %v1890 = vadd.f32 %v1649, %v1889
      %1891 = vmatmul.bf16.gmra.mxu0 %v1828
      %v1892 = vpop.f32.mrf.mxu0
      %v1893 = vadd.f32 %v1652, %v1892
      %v1894 = vpop.f32.mrf.mxu0
      %v1895 = vadd.f32 %v1654, %v1894
      %1896 = vmatmul.bf16.gmra.mxu0 %v1831
      %v1897 = vpop.f32.mrf.mxu0
      %v1898 = vadd.f32 %v1657, %v1897
      %v1899 = vpop.f32.mrf.mxu0
      %v1900 = vadd.f32 %v1659, %v1899
      %1901 = vmatmul.bf16.gmra.mxu0 %v1834
      %v1902 = vpop.f32.mrf.mxu0
      %v1903 = vadd.f32 %v1662, %v1902
      %v1904 = vpop.f32.mrf.mxu0
      %v1905 = vadd.f32 %v1664, %v1904
      %1906 = vmatmul.bf16.gmra.mxu0 %v1837
      %v1907 = vpop.f32.mrf.mxu0
      %v1908 = vadd.f32 %v1667, %v1907
      %v1909 = vpop.f32.mrf.mxu0
      %v1910 = vadd.f32 %v1669, %v1909
      %1911 = vmatmul.bf16.gmra.mxu0 %v1840
      %v1912 = vpop.f32.mrf.mxu0
      %v1913 = vadd.f32 %v1672, %v1912
      %v1914 = vpop.f32.mrf.mxu0
      %v1915 = vadd.f32 %v1674, %v1914
      %1916 = vmatmul.bf16.gmra.mxu0 %v1843
      %v1917 = vpop.f32.mrf.mxu0
      %v1918 = vadd.f32 %v1677, %v1917
      %v1919 = vpop.f32.mrf.mxu0
      %v1920 = vadd.f32 %v1679, %v1919
      %1921 = vmatmul.bf16.gmra.mxu0 %v1846
      %v1922 = vpop.f32.mrf.mxu0
      %v1923 = vadd.f32 %v1682, %v1922
      %v1924 = vpop.f32.mrf.mxu0
      %v1925 = vadd.f32 %v1684, %v1924
      %1926 = vmatmul.bf16.gmra.mxu0 %v1849
      %v1927 = vpop.f32.mrf.mxu0
      %v1928 = vadd.f32 %v1687, %v1927
      %v1929 = vpop.f32.mrf.mxu0
      %v1930 = vadd.f32 %v1689, %v1929
      %1931 = vmatmul.bf16.gmra.mxu0 %v1852
      %v1932 = vpop.f32.mrf.mxu0
      %v1933 = vadd.f32 %v1692, %v1932
      %v1934 = vpop.f32.mrf.mxu0
      %v1935 = vadd.f32 %v1694, %v1934
      %1936 = vmatmul.bf16.gmra.mxu0 %v1855
      %v1937 = vpop.f32.mrf.mxu0
      %v1938 = vadd.f32 %v1697, %v1937
      %v1939 = vpop.f32.mrf.mxu0
      %v1940 = vadd.f32 %v1699, %v1939
      %1941 = vmatmul.bf16.gmra.mxu0 %v1858
      %v1942 = vpop.f32.mrf.mxu0
      %v1943 = vadd.f32 %v1702, %v1942
      %v1944 = vpop.f32.mrf.mxu0
      %v1945 = vadd.f32 %v1704, %v1944
      %1946 = vmatmul.bf16.gmra.mxu0 %v1861
      %v1947 = vpop.f32.mrf.mxu0
      %v1948 = vadd.f32 %v1707, %v1947
      %v1949 = vpop.f32.mrf.mxu0
      %v1950 = vadd.f32 %v1709, %v1949
      %1951 = vdwg.mxu0
      %v1952 = vld [vmem:[#allocation2] sm:$0xe]
      %v1953 = vld [vmem:[#allocation2 + $0xc] sm:$0xe]
      %v1954 = vld [vmem:[#allocation2 + $0x18] sm:$0xe]
      %v1955 = vld [vmem:[#allocation2 + $0x24] sm:$0xe]
      %v1956 = vld [vmem:[#allocation2 + $0x30] sm:$0xe]
      %v1957 = vld [vmem:[#allocation2 + $0x3c] sm:$0xe]
      %v1958 = vld [vmem:[#allocation2 + $0x48] sm:$0xe]
      %v1959 = vld [vmem:[#allocation2 + $0x54] sm:$0xe]
      %v1960 = vld [vmem:[#allocation2 + $0x60] sm:$0xe]
      %v1961 = vld [vmem:[#allocation2 + $0x6c] sm:$0xe]
      %v1962 = vld [vmem:[#allocation2 + $0x78] sm:$0xe]
      %v1963 = vld [vmem:[#allocation2 + $0x84] sm:$0xe]
      %v1964 = vld [vmem:[#allocation2 + $0x90] sm:$0xe]
      %v1965 = vld [vmem:[#allocation2 + $0x9c] sm:$0xe]
      %v1966 = vld [vmem:[#allocation2 + $0xa8] sm:$0xe]
      %v1967 = vld [vmem:[#allocation2 + $0xb4] sm:$0xe]
      %vm2000 = vcmask 1042432
      %vm2001 = vcmask 1046532
      %vm2002 = vmor %vm2000, %vm2001
      %v2003 = vrot.slane %v1952, 5
      %v2004 = vrot.slane %v2003, 4
      %v2005 = vrot.slane %v1050, 5
      %v2006 = vsel %vm2002, %v2004, %v2005
      %v2007 = vrot.slane %v2005, 4
      %v2008 = vrot.slane %v1089, 5
      %v2009 = vsel %vm2002, %v2007, %v2008
      %v2010 = vrot.slane %v1953, 5
      %v2011 = vrot.slane %v2010, 4
      %v2012 = vrot.slane %v1052, 5
      %v2013 = vsel %vm2002, %v2011, %v2012
      %v2014 = vrot.slane %v2012, 4
      %v2015 = vrot.slane %v1090, 5
      %v2016 = vsel %vm2002, %v2014, %v2015
      %v2017 = vrot.slane %v1954, 5
      %v2018 = vrot.slane %v2017, 4
      %v2019 = vrot.slane %v1054, 5
      %v2020 = vsel %vm2002, %v2018, %v2019
      %v2021 = vrot.slane %v2019, 4
      %v2022 = vrot.slane %v1091, 5
      %v2023 = vsel %vm2002, %v2021, %v2022
      %v2024 = vrot.slane %v1955, 5
      %v2025 = vrot.slane %v2024, 4
      %v2026 = vrot.slane %v1056, 5
      %v2027 = vsel %vm2002, %v2025, %v2026
      %v2028 = vrot.slane %v2026, 4
      %v2029 = vrot.slane %v1092, 5
      %v2030 = vsel %vm2002, %v2028, %v2029
      %v2031 = vrot.slane %v1956, 5
      %v2032 = vrot.slane %v2031, 4
      %v2033 = vrot.slane %v1058, 5
      %v2034 = vsel %vm2002, %v2032, %v2033
      %v2035 = vrot.slane %v2033, 4
      %v2036 = vrot.slane %v1093, 5
      %v2037 = vsel %vm2002, %v2035, %v2036
      %v2038 = vrot.slane %v1957, 5
      %v2039 = vrot.slane %v2038, 4
      %v2040 = vrot.slane %v1060, 5
      %v2041 = vsel %vm2002, %v2039, %v2040
      %v2042 = vrot.slane %v2040, 4
      %v2043 = vrot.slane %v1094, 5
      %v2044 = vsel %vm2002, %v2042, %v2043
      %v2045 = vrot.slane %v1958, 5
      %v2046 = vrot.slane %v2045, 4
      %v2047 = vrot.slane %v1062, 5
      %v2048 = vsel %vm2002, %v2046, %v2047
      %v2049 = vrot.slane %v2047, 4
      %v2050 = vrot.slane %v1095, 5
      %v2051 = vsel %vm2002, %v2049, %v2050
      %v2052 = vrot.slane %v1959, 5
      %v2053 = vrot.slane %v2052, 4
      %v2054 = vrot.slane %v1064, 5
      %v2055 = vsel %vm2002, %v2053, %v2054
      %v2056 = vrot.slane %v2054, 4
      %v2057 = vrot.slane %v1096, 5
      %v2058 = vsel %vm2002, %v2056, %v2057
      %v2059 = vrot.slane %v1960, 5
      %v2060 = vrot.slane %v2059, 4
      %v2061 = vrot.slane %v1066, 5
      %v2062 = vsel %vm2002, %v2060, %v2061
      %v2063 = vrot.slane %v2061, 4
      %v2064 = vrot.slane %v1097, 5
      %v2065 = vsel %vm2002, %v2063, %v2064
      %v2066 = vrot.slane %v1961, 5
      %v2067 = vrot.slane %v2066, 4
      %v2068 = vrot.slane %v1068, 5
      %v2069 = vsel %vm2002, %v2067, %v2068
      %v2070 = vrot.slane %v2068, 4
      %v2071 = vrot.slane %v1098, 5
      %v2072 = vsel %vm2002, %v2070, %v2071
      %v2073 = vrot.slane %v1962, 5
      %v2074 = vrot.slane %v2073, 4
      %v2075 = vrot.slane %v1070, 5
      %v2076 = vsel %vm2002, %v2074, %v2075
      %v2077 = vrot.slane %v2075, 4
      %v2078 = vrot.slane %v1099, 5
      %v2079 = vsel %vm2002, %v2077, %v2078
      %v2080 = vrot.slane %v1963, 5
      %v2081 = vrot.slane %v2080, 4
      %v2082 = vrot.slane %v1072, 5
      %v2083 = vsel %vm2002, %v2081, %v2082
      %v2084 = vrot.slane %v2082, 4
      %v2085 = vrot.slane %v1100, 5
      %v2086 = vsel %vm2002, %v2084, %v2085
      %v2087 = vrot.slane %v1964, 5
      %v2088 = vrot.slane %v2087, 4
      %v2089 = vrot.slane %v1074, 5
      %v2090 = vsel %vm2002, %v2088, %v2089
      %v2091 = vrot.slane %v2089, 4
      %v2092 = vrot.slane %v1101, 5
      %v2093 = vsel %vm2002, %v2091, %v2092
      %v2094 = vrot.slane %v1965, 5
      %v2095 = vrot.slane %v2094, 4
      %v2096 = vrot.slane %v1076, 5
      %v2097 = vsel %vm2002, %v2095, %v2096
      %v2098 = vrot.slane %v2096, 4
      %v2099 = vrot.slane %v1102, 5
      %v2100 = vsel %vm2002, %v2098, %v2099
      %v2101 = vrot.slane %v1966, 5
      %v2102 = vrot.slane %v2101, 4
      %v2103 = vrot.slane %v1078, 5
      %v2104 = vsel %vm2002, %v2102, %v2103
      %v2105 = vrot.slane %v2103, 4
      %v2106 = vrot.slane %v1103, 5
      %v2107 = vsel %vm2002, %v2105, %v2106
      %v2108 = vrot.slane %v1967, 5
      %v2109 = vrot.slane %v2108, 4
      %v2110 = vrot.slane %v1080, 5
      %v2111 = vsel %vm2002, %v2109, %v2110
      %v2112 = vrot.slane %v2110, 4
      %v2113 = vrot.slane %v1104, 5
      %v2114 = vsel %vm2002, %v2112, %v2113
      %s2115 = scalar_lea.vmem %s2, 64
      %v2116 = vld [vmem:[%s2115] sm:$0xf]
      %v2117 = vld [vmem:[%s2115 + $0x4] sm:$0xf]
      %v2118 = vld [vmem:[%s2115 + $0x8] sm:$0xf]
      %v2119 = vld [vmem:[%s2115 + $0xc] sm:$0xf]
      %v2120 = vld [vmem:[%s2115 + $0x10] sm:$0xf]
      %v2121 = vld [vmem:[%s2115 + $0x14] sm:$0xf]
      %v2122 = vld [vmem:[%s2115 + $0x18] sm:$0xf]
      %v2123 = vld [vmem:[%s2115 + $0x1c] sm:$0xf]
      %v2124 = vunpack.c.l.b16 %v2006
      %v2125 = vunpack.c.l.b16 %v2009
      %v2126 = vunpack.c.l.b16 %v2013
      %v2127 = vunpack.c.l.b16 %v2016
      %v2128 = vunpack.c.l.b16 %v2020
      %v2129 = vunpack.c.l.b16 %v2023
      %v2130 = vunpack.c.l.b16 %v2027
      %v2131 = vunpack.c.l.b16 %v2030
      %v2132 = vunpack.c.l.b16 %v2034
      %v2133 = vunpack.c.l.b16 %v2037
      %v2134 = vunpack.c.l.b16 %v2041
      %v2135 = vunpack.c.l.b16 %v2044
      %v2136 = vunpack.c.l.b16 %v2048
      %v2137 = vunpack.c.l.b16 %v2051
      %v2138 = vunpack.c.l.b16 %v2055
      %v2139 = vunpack.c.l.b16 %v2058
      %v2140 = vunpack.c.l.b16 %v2062
      %v2141 = vunpack.c.l.b16 %v2065
      %v2142 = vunpack.c.l.b16 %v2069
      %v2143 = vunpack.c.l.b16 %v2072
      %v2144 = vunpack.c.l.b16 %v2076
      %v2145 = vunpack.c.l.b16 %v2079
      %v2146 = vunpack.c.l.b16 %v2083
      %v2147 = vunpack.c.l.b16 %v2086
      %v2148 = vunpack.c.l.b16 %v2090
      %v2149 = vunpack.c.l.b16 %v2093
      %v2150 = vunpack.c.l.b16 %v2097
      %v2151 = vunpack.c.l.b16 %v2100
      %v2152 = vunpack.c.l.b16 %v2104
      %v2153 = vunpack.c.l.b16 %v2107
      %v2154 = vunpack.c.l.b16 %v2111
      %v2155 = vunpack.c.l.b16 %v2114
      %v2156 = vpack.c.b16 %v2125, %v2124
      %v2157 = vpack.c.b16 %v2127, %v2126
      %v2158 = vpack.c.b16 %v2129, %v2128
      %v2159 = vpack.c.b16 %v2131, %v2130
      %v2160 = vpack.c.b16 %v2133, %v2132
      %v2161 = vpack.c.b16 %v2135, %v2134
      %v2162 = vpack.c.b16 %v2137, %v2136
      %v2163 = vpack.c.b16 %v2139, %v2138
      %v2164 = vpack.c.b16 %v2141, %v2140
      %v2165 = vpack.c.b16 %v2143, %v2142
      %v2166 = vpack.c.b16 %v2145, %v2144
      %v2167 = vpack.c.b16 %v2147, %v2146
      %v2168 = vpack.c.b16 %v2149, %v2148
      %v2169 = vpack.c.b16 %v2151, %v2150
      %v2170 = vpack.c.b16 %v2153, %v2152
      %v2171 = vpack.c.b16 %v2155, %v2154
      %v2180 = vunpack.c.l.b16 %v2116
      %v2181 = vunpack.c.l.b16 %v2117
      %v2182 = vunpack.c.l.b16 %v2118
      %v2183 = vunpack.c.l.b16 %v2119
      %v2184 = vunpack.c.l.b16 %v2120
      %v2185 = vunpack.c.l.b16 %v2121
      %v2186 = vunpack.c.l.b16 %v2122
      %v2187 = vunpack.c.l.b16 %v2123
      %v2188 = vpack.c.b16 %v2181, %v2180
      %v2189 = vpack.c.b16 %v2183, %v2182
      %v2190 = vpack.c.b16 %v2185, %v2184
      %v2191 = vpack.c.b16 %v2187, %v2186
      %v2197 = vsel %vm1573, %v2156, 0
      %v2200 = vsel %vm1573, %v2157, 0
      %v2203 = vsel %vm1573, %v2158, 0
      %v2206 = vsel %vm1573, %v2159, 0
      %v2209 = vsel %vm1573, %v2160, 0
      %v2212 = vsel %vm1573, %v2161, 0
      %v2215 = vsel %vm1573, %v2162, 0
      %v2218 = vsel %vm1573, %v2163, 0
      %v2221 = vsel %vm1573, %v2164, 0
      %v2224 = vsel %vm1573, %v2165, 0
      %v2227 = vsel %vm1573, %v2166, 0
      %v2230 = vsel %vm1573, %v2167, 0
      %v2233 = vsel %vm1573, %v2168, 0
      %v2236 = vsel %vm1573, %v2169, 0
      %v2239 = vsel %vm1573, %v2170, 0
      %v2242 = vsel %vm1573, %v2171, 0
      %2244 = vmatpush.bf16.msra.mxu0 0
      %2245 = vmatpush.bf16.msra.mxu0 0
      %2246 = vmatpush.bf16.msra.mxu0 0
      %2247 = vmatpush.bf16.msra.mxu0 0
      %2248 = vmatpush.bf16.msra.mxu0 %v2191
      %2249 = vmatpush.bf16.msra.mxu0 %v2190
      %2250 = vmatpush.bf16.msra.mxu0 %v2189
      %2251 = vmatpush.bf16.msra.mxu0 %v2188
      %2252 = vmatmul.bf16.gmra.mxu0 %v2197
      %v2253 = vpop.f32.mrf.mxu0
      %v2254 = vadd.f32 0.0, %v2253
      %v2255 = vpop.f32.mrf.mxu0
      %v2256 = vadd.f32 0.0, %v2255
      %2257 = vmatmul.bf16.gmra.mxu0 %v2200
      %v2258 = vpop.f32.mrf.mxu0
      %v2259 = vadd.f32 0.0, %v2258
      %v2260 = vpop.f32.mrf.mxu0
      %v2261 = vadd.f32 0.0, %v2260
      %2262 = vmatmul.bf16.gmra.mxu0 %v2203
      %v2263 = vpop.f32.mrf.mxu0
      %v2264 = vadd.f32 0.0, %v2263
      %v2265 = vpop.f32.mrf.mxu0
      %v2266 = vadd.f32 0.0, %v2265
      %2267 = vmatmul.bf16.gmra.mxu0 %v2206
      %v2268 = vpop.f32.mrf.mxu0
      %v2269 = vadd.f32 0.0, %v2268
      %v2270 = vpop.f32.mrf.mxu0
      %v2271 = vadd.f32 0.0, %v2270
      %2272 = vmatmul.bf16.gmra.mxu0 %v2209
      %v2273 = vpop.f32.mrf.mxu0
      %v2274 = vadd.f32 0.0, %v2273
      %v2275 = vpop.f32.mrf.mxu0
      %v2276 = vadd.f32 0.0, %v2275
      %2277 = vmatmul.bf16.gmra.mxu0 %v2212
      %v2278 = vpop.f32.mrf.mxu0
      %v2279 = vadd.f32 0.0, %v2278
      %v2280 = vpop.f32.mrf.mxu0
      %v2281 = vadd.f32 0.0, %v2280
      %2282 = vmatmul.bf16.gmra.mxu0 %v2215
      %v2283 = vpop.f32.mrf.mxu0
      %v2284 = vadd.f32 0.0, %v2283
      %v2285 = vpop.f32.mrf.mxu0
      %v2286 = vadd.f32 0.0, %v2285
      %2287 = vmatmul.bf16.gmra.mxu0 %v2218
      %v2288 = vpop.f32.mrf.mxu0
      %v2289 = vadd.f32 0.0, %v2288
      %v2290 = vpop.f32.mrf.mxu0
      %v2291 = vadd.f32 0.0, %v2290
      %2292 = vmatmul.bf16.gmra.mxu0 %v2221
      %v2293 = vpop.f32.mrf.mxu0
      %v2294 = vadd.f32 0.0, %v2293
      %v2295 = vpop.f32.mrf.mxu0
      %v2296 = vadd.f32 0.0, %v2295
      %2297 = vmatmul.bf16.gmra.mxu0 %v2224
      %v2298 = vpop.f32.mrf.mxu0
      %v2299 = vadd.f32 0.0, %v2298
      %v2300 = vpop.f32.mrf.mxu0
      %v2301 = vadd.f32 0.0, %v2300
      %2302 = vmatmul.bf16.gmra.mxu0 %v2227
      %v2303 = vpop.f32.mrf.mxu0
      %v2304 = vadd.f32 0.0, %v2303
      %v2305 = vpop.f32.mrf.mxu0
      %v2306 = vadd.f32 0.0, %v2305
      %2307 = vmatmul.bf16.gmra.mxu0 %v2230
      %v2308 = vpop.f32.mrf.mxu0
      %v2309 = vadd.f32 0.0, %v2308
      %v2310 = vpop.f32.mrf.mxu0
      %v2311 = vadd.f32 0.0, %v2310
      %2312 = vmatmul.bf16.gmra.mxu0 %v2233
      %v2313 = vpop.f32.mrf.mxu0
      %v2314 = vadd.f32 0.0, %v2313
      %v2315 = vpop.f32.mrf.mxu0
      %v2316 = vadd.f32 0.0, %v2315
      %2317 = vmatmul.bf16.gmra.mxu0 %v2236
      %v2318 = vpop.f32.mrf.mxu0
      %v2319 = vadd.f32 0.0, %v2318
      %v2320 = vpop.f32.mrf.mxu0
      %v2321 = vadd.f32 0.0, %v2320
      %2322 = vmatmul.bf16.gmra.mxu0 %v2239
      %v2323 = vpop.f32.mrf.mxu0
      %v2324 = vadd.f32 0.0, %v2323
      %v2325 = vpop.f32.mrf.mxu0
      %v2326 = vadd.f32 0.0, %v2325
      %2327 = vmatmul.bf16.gmra.mxu0 %v2242
      %v2328 = vpop.f32.mrf.mxu0
      %v2329 = vadd.f32 0.0, %v2328
      %v2330 = vpop.f32.mrf.mxu0
      %v2331 = vadd.f32 0.0, %v2330
      %2332 = vdwg.mxu0
      %v2333 = vadd.f32 %v1873, %v2254
      %v2334 = vadd.f32 %v1875, %v2256
      %v2335 = vadd.f32 %v1878, %v2259
      %v2336 = vadd.f32 %v1880, %v2261
      %v2337 = vadd.f32 %v1883, %v2264
      %v2338 = vadd.f32 %v1885, %v2266
      %v2339 = vadd.f32 %v1888, %v2269
      %v2340 = vadd.f32 %v1890, %v2271
      %v2341 = vadd.f32 %v1893, %v2274
      %v2342 = vadd.f32 %v1895, %v2276
      %v2343 = vadd.f32 %v1898, %v2279
      %v2344 = vadd.f32 %v1900, %v2281
      %v2345 = vadd.f32 %v1903, %v2284
      %v2346 = vadd.f32 %v1905, %v2286
      %v2347 = vadd.f32 %v1908, %v2289
      %v2348 = vadd.f32 %v1910, %v2291
      %v2349 = vadd.f32 %v1913, %v2294
      %v2350 = vadd.f32 %v1915, %v2296
      %v2351 = vadd.f32 %v1918, %v2299
      %v2352 = vadd.f32 %v1920, %v2301
      %v2353 = vadd.f32 %v1923, %v2304
      %v2354 = vadd.f32 %v1925, %v2306
      %v2355 = vadd.f32 %v1928, %v2309
      %v2356 = vadd.f32 %v1930, %v2311
      %v2357 = vadd.f32 %v1933, %v2314
      %v2358 = vadd.f32 %v1935, %v2316
      %v2359 = vadd.f32 %v1938, %v2319
      %v2360 = vadd.f32 %v1940, %v2321
      %v2361 = vadd.f32 %v1943, %v2324
      %v2362 = vadd.f32 %v1945, %v2326
      %v2363 = vadd.f32 %v1948, %v2329
      %v2364 = vadd.f32 %v1950, %v2331
      %v2365 = vld [vmem:[%s931] sm:$0xf]
      %v2366 = vld [vmem:[%s931 + $0x4] sm:$0xf]
      %v2367 = vld [vmem:[%s931 + $0xc] sm:$0xf]
      %v2368 = vld [vmem:[%s931 + $0x10] sm:$0xf]
      %v2369 = vld [vmem:[%s931 + $0x18] sm:$0xf]
      %v2370 = vld [vmem:[%s931 + $0x1c] sm:$0xf]
      %v2371 = vld [vmem:[%s931 + $0x24] sm:$0xf]
      %v2372 = vld [vmem:[%s931 + $0x28] sm:$0xf]
      %v2373 = vld [vmem:[%s931 + $0x30] sm:$0xf]
      %v2374 = vld [vmem:[%s931 + $0x34] sm:$0xf]
      %v2375 = vld [vmem:[%s931 + $0x3c] sm:$0xf]
      %v2376 = vld [vmem:[%s931 + $0x40] sm:$0xf]
      %v2377 = vld [vmem:[%s931 + $0x48] sm:$0xf]
      %v2378 = vld [vmem:[%s931 + $0x4c] sm:$0xf]
      %v2379 = vld [vmem:[%s931 + $0x54] sm:$0xf]
      %v2380 = vld [vmem:[%s931 + $0x58] sm:$0xf]
      %v2381 = vld [vmem:[%s931 + $0x60] sm:$0xf]
      %v2382 = vld [vmem:[%s931 + $0x64] sm:$0xf]
      %v2383 = vld [vmem:[%s931 + $0x6c] sm:$0xf]
      %v2384 = vld [vmem:[%s931 + $0x70] sm:$0xf]
      %v2385 = vld [vmem:[%s931 + $0x78] sm:$0xf]
      %v2386 = vld [vmem:[%s931 + $0x7c] sm:$0xf]
      %v2387 = vld [vmem:[%s931 + $0x84] sm:$0xf]
      %v2388 = vld [vmem:[%s931 + $0x88] sm:$0xf]
      %v2389 = vld [vmem:[%s931 + $0x90] sm:$0xf]
      %v2390 = vld [vmem:[%s931 + $0x94] sm:$0xf]
      %v2391 = vld [vmem:[%s931 + $0x9c] sm:$0xf]
      %v2392 = vld [vmem:[%s931 + $0xa0] sm:$0xf]
      %v2393 = vld [vmem:[%s931 + $0xa8] sm:$0xf]
      %v2394 = vld [vmem:[%s931 + $0xac] sm:$0xf]
      %v2395 = vld [vmem:[%s931 + $0xb4] sm:$0xf]
      %v2396 = vld [vmem:[%s931 + $0xb8] sm:$0xf]
      %s2397 = scalar_lea.vmem %s2, 96
      %v2398 = vld [vmem:[%s2397] sm:$0xf]
      %v2399 = vld [vmem:[%s2397 + $0x4] sm:$0xf]
      %v2400 = vld [vmem:[%s2397 + $0x8] sm:$0xf]
      %v2401 = vld [vmem:[%s2397 + $0xc] sm:$0xf]
      %v2402 = vld [vmem:[%s2397 + $0x10] sm:$0xf]
      %v2403 = vld [vmem:[%s2397 + $0x14] sm:$0xf]
      %v2404 = vld [vmem:[%s2397 + $0x18] sm:$0xf]
      %v2405 = vld [vmem:[%s2397 + $0x1c] sm:$0xf]
      %v2438 = vunpack.c.l.b16 %v2365
      %v2439 = vunpack.c.l.b16 %v2366
      %v2440 = vunpack.c.l.b16 %v2367
      %v2441 = vunpack.c.l.b16 %v2368
      %v2442 = vunpack.c.l.b16 %v2369
      %v2443 = vunpack.c.l.b16 %v2370
      %v2444 = vunpack.c.l.b16 %v2371
      %v2445 = vunpack.c.l.b16 %v2372
      %v2446 = vunpack.c.l.b16 %v2373
      %v2447 = vunpack.c.l.b16 %v2374
      %v2448 = vunpack.c.l.b16 %v2375
      %v2449 = vunpack.c.l.b16 %v2376
      %v2450 = vunpack.c.l.b16 %v2377
      %v2451 = vunpack.c.l.b16 %v2378
      %v2452 = vunpack.c.l.b16 %v2379
      %v2453 = vunpack.c.l.b16 %v2380
      %v2454 = vunpack.c.l.b16 %v2381
      %v2455 = vunpack.c.l.b16 %v2382
      %v2456 = vunpack.c.l.b16 %v2383
      %v2457 = vunpack.c.l.b16 %v2384
      %v2458 = vunpack.c.l.b16 %v2385
      %v2459 = vunpack.c.l.b16 %v2386
      %v2460 = vunpack.c.l.b16 %v2387
      %v2461 = vunpack.c.l.b16 %v2388
      %v2462 = vunpack.c.l.b16 %v2389
      %v2463 = vunpack.c.l.b16 %v2390
      %v2464 = vunpack.c.l.b16 %v2391
      %v2465 = vunpack.c.l.b16 %v2392
      %v2466 = vunpack.c.l.b16 %v2393
      %v2467 = vunpack.c.l.b16 %v2394
      %v2468 = vunpack.c.l.b16 %v2395
      %v2469 = vunpack.c.l.b16 %v2396
      %v2470 = vpack.c.b16 %v2439, %v2438
      %v2471 = vpack.c.b16 %v2441, %v2440
      %v2472 = vpack.c.b16 %v2443, %v2442
      %v2473 = vpack.c.b16 %v2445, %v2444
      %v2474 = vpack.c.b16 %v2447, %v2446
      %v2475 = vpack.c.b16 %v2449, %v2448
      %v2476 = vpack.c.b16 %v2451, %v2450
      %v2477 = vpack.c.b16 %v2453, %v2452
      %v2478 = vpack.c.b16 %v2455, %v2454
      %v2479 = vpack.c.b16 %v2457, %v2456
      %v2480 = vpack.c.b16 %v2459, %v2458
      %v2481 = vpack.c.b16 %v2461, %v2460
      %v2482 = vpack.c.b16 %v2463, %v2462
      %v2483 = vpack.c.b16 %v2465, %v2464
      %v2484 = vpack.c.b16 %v2467, %v2466
      %v2485 = vpack.c.b16 %v2469, %v2468
      %v2494 = vunpack.c.l.b16 %v2398
      %v2495 = vunpack.c.l.b16 %v2399
      %v2496 = vunpack.c.l.b16 %v2400
      %v2497 = vunpack.c.l.b16 %v2401
      %v2498 = vunpack.c.l.b16 %v2402
      %v2499 = vunpack.c.l.b16 %v2403
      %v2500 = vunpack.c.l.b16 %v2404
      %v2501 = vunpack.c.l.b16 %v2405
      %v2502 = vpack.c.b16 %v2495, %v2494
      %v2503 = vpack.c.b16 %v2497, %v2496
      %v2504 = vpack.c.b16 %v2499, %v2498
      %v2505 = vpack.c.b16 %v2501, %v2500
      %v2511 = vsel %vm1573, %v2470, 0
      %v2514 = vsel %vm1573, %v2471, 0
      %v2517 = vsel %vm1573, %v2472, 0
      %v2520 = vsel %vm1573, %v2473, 0
      %v2523 = vsel %vm1573, %v2474, 0
      %v2526 = vsel %vm1573, %v2475, 0
      %v2529 = vsel %vm1573, %v2476, 0
      %v2532 = vsel %vm1573, %v2477, 0
      %v2535 = vsel %vm1573, %v2478, 0
      %v2538 = vsel %vm1573, %v2479, 0
      %v2541 = vsel %vm1573, %v2480, 0
      %v2544 = vsel %vm1573, %v2481, 0
      %v2547 = vsel %vm1573, %v2482, 0
      %v2550 = vsel %vm1573, %v2483, 0
      %v2553 = vsel %vm1573, %v2484, 0
      %v2556 = vsel %vm1573, %v2485, 0
      %2558 = vmatpush.bf16.msra.mxu0 0
      %2559 = vmatpush.bf16.msra.mxu0 0
      %2560 = vmatpush.bf16.msra.mxu0 0
      %2561 = vmatpush.bf16.msra.mxu0 0
      %2562 = vmatpush.bf16.msra.mxu0 %v2505
      %2563 = vmatpush.bf16.msra.mxu0 %v2504
      %2564 = vmatpush.bf16.msra.mxu0 %v2503
      %2565 = vmatpush.bf16.msra.mxu0 %v2502
      %2566 = vmatmul.bf16.gmra.mxu0 %v2511
      %v2567 = vpop.f32.mrf.mxu0
      %v2568 = vadd.f32 0.0, %v2567
      %v2569 = vpop.f32.mrf.mxu0
      %v2570 = vadd.f32 0.0, %v2569
      %2571 = vmatmul.bf16.gmra.mxu0 %v2514
      %v2572 = vpop.f32.mrf.mxu0
      %v2573 = vadd.f32 0.0, %v2572
      %v2574 = vpop.f32.mrf.mxu0
      %v2575 = vadd.f32 0.0, %v2574
      %2576 = vmatmul.bf16.gmra.mxu0 %v2517
      %v2577 = vpop.f32.mrf.mxu0
      %v2578 = vadd.f32 0.0, %v2577
      %v2579 = vpop.f32.mrf.mxu0
      %v2580 = vadd.f32 0.0, %v2579
      %2581 = vmatmul.bf16.gmra.mxu0 %v2520
      %v2582 = vpop.f32.mrf.mxu0
      %v2583 = vadd.f32 0.0, %v2582
      %v2584 = vpop.f32.mrf.mxu0
      %v2585 = vadd.f32 0.0, %v2584
      %2586 = vmatmul.bf16.gmra.mxu0 %v2523
      %v2587 = vpop.f32.mrf.mxu0
      %v2588 = vadd.f32 0.0, %v2587
      %v2589 = vpop.f32.mrf.mxu0
      %v2590 = vadd.f32 0.0, %v2589
      %2591 = vmatmul.bf16.gmra.mxu0 %v2526
      %v2592 = vpop.f32.mrf.mxu0
      %v2593 = vadd.f32 0.0, %v2592
      %v2594 = vpop.f32.mrf.mxu0
      %v2595 = vadd.f32 0.0, %v2594
      %2596 = vmatmul.bf16.gmra.mxu0 %v2529
      %v2597 = vpop.f32.mrf.mxu0
      %v2598 = vadd.f32 0.0, %v2597
      %v2599 = vpop.f32.mrf.mxu0
      %v2600 = vadd.f32 0.0, %v2599
      %2601 = vmatmul.bf16.gmra.mxu0 %v2532
      %v2602 = vpop.f32.mrf.mxu0
      %v2603 = vadd.f32 0.0, %v2602
      %v2604 = vpop.f32.mrf.mxu0
      %v2605 = vadd.f32 0.0, %v2604
      %2606 = vmatmul.bf16.gmra.mxu0 %v2535
      %v2607 = vpop.f32.mrf.mxu0
      %v2608 = vadd.f32 0.0, %v2607
      %v2609 = vpop.f32.mrf.mxu0
      %v2610 = vadd.f32 0.0, %v2609
      %2611 = vmatmul.bf16.gmra.mxu0 %v2538
      %v2612 = vpop.f32.mrf.mxu0
      %v2613 = vadd.f32 0.0, %v2612
      %v2614 = vpop.f32.mrf.mxu0
      %v2615 = vadd.f32 0.0, %v2614
      %2616 = vmatmul.bf16.gmra.mxu0 %v2541
      %v2617 = vpop.f32.mrf.mxu0
      %v2618 = vadd.f32 0.0, %v2617
      %v2619 = vpop.f32.mrf.mxu0
      %v2620 = vadd.f32 0.0, %v2619
      %2621 = vmatmul.bf16.gmra.mxu0 %v2544
      %v2622 = vpop.f32.mrf.mxu0
      %v2623 = vadd.f32 0.0, %v2622
      %v2624 = vpop.f32.mrf.mxu0
      %v2625 = vadd.f32 0.0, %v2624
      %2626 = vmatmul.bf16.gmra.mxu0 %v2547
      %v2627 = vpop.f32.mrf.mxu0
      %v2628 = vadd.f32 0.0, %v2627
      %v2629 = vpop.f32.mrf.mxu0
      %v2630 = vadd.f32 0.0, %v2629
      %2631 = vmatmul.bf16.gmra.mxu0 %v2550
      %v2632 = vpop.f32.mrf.mxu0
      %v2633 = vadd.f32 0.0, %v2632
      %v2634 = vpop.f32.mrf.mxu0
      %v2635 = vadd.f32 0.0, %v2634
      %2636 = vmatmul.bf16.gmra.mxu0 %v2553
      %v2637 = vpop.f32.mrf.mxu0
      %v2638 = vadd.f32 0.0, %v2637
      %v2639 = vpop.f32.mrf.mxu0
      %v2640 = vadd.f32 0.0, %v2639
      %2641 = vmatmul.bf16.gmra.mxu0 %v2556
      %v2642 = vpop.f32.mrf.mxu0
      %v2643 = vadd.f32 0.0, %v2642
      %v2644 = vpop.f32.mrf.mxu0
      %v2645 = vadd.f32 0.0, %v2644
      %2646 = vdwg.mxu0
      %v2647 = vadd.f32 %v2333, %v2568
      %v2648 = vadd.f32 %v2334, %v2570
      %v2649 = vadd.f32 %v2335, %v2573
      %v2650 = vadd.f32 %v2336, %v2575
      %v2651 = vadd.f32 %v2337, %v2578
      %v2652 = vadd.f32 %v2338, %v2580
      %v2653 = vadd.f32 %v2339, %v2583
      %v2654 = vadd.f32 %v2340, %v2585
      %v2655 = vadd.f32 %v2341, %v2588
      %v2656 = vadd.f32 %v2342, %v2590
      %v2657 = vadd.f32 %v2343, %v2593
      %v2658 = vadd.f32 %v2344, %v2595
      %v2659 = vadd.f32 %v2345, %v2598
      %v2660 = vadd.f32 %v2346, %v2600
      %v2661 = vadd.f32 %v2347, %v2603
      %v2662 = vadd.f32 %v2348, %v2605
      %v2663 = vadd.f32 %v2349, %v2608
      %v2664 = vadd.f32 %v2350, %v2610
      %v2665 = vadd.f32 %v2351, %v2613
      %v2666 = vadd.f32 %v2352, %v2615
      %v2667 = vadd.f32 %v2353, %v2618
      %v2668 = vadd.f32 %v2354, %v2620
      %v2669 = vadd.f32 %v2355, %v2623
      %v2670 = vadd.f32 %v2356, %v2625
      %v2671 = vadd.f32 %v2357, %v2628
      %v2672 = vadd.f32 %v2358, %v2630
      %v2673 = vadd.f32 %v2359, %v2633
      %v2674 = vadd.f32 %v2360, %v2635
      %v2675 = vadd.f32 %v2361, %v2638
      %v2676 = vadd.f32 %v2362, %v2640
      %v2677 = vadd.f32 %v2363, %v2643
      %v2678 = vadd.f32 %v2364, %v2645
      %v2679 = vld [vmem:[%s931] sm:$0xf]
      %v2680 = vld [vmem:[%s931 + $0x4] sm:$0xf]
      %v2681 = vld [vmem:[%s931 + $0x8] sm:$0x1]
      %v2682 = vld [vmem:[%s931 + $0xc] sm:$0xf]
      %v2683 = vld [vmem:[%s931 + $0x10] sm:$0xf]
      %v2684 = vld [vmem:[%s931 + $0x14] sm:$0x1]
      %v2685 = vld [vmem:[%s931 + $0x18] sm:$0xf]
      %v2686 = vld [vmem:[%s931 + $0x1c] sm:$0xf]
      %v2687 = vld [vmem:[%s931 + $0x20] sm:$0x1]
      %v2688 = vld [vmem:[%s931 + $0x24] sm:$0xf]
      %v2689 = vld [vmem:[%s931 + $0x28] sm:$0xf]
      %v2690 = vld [vmem:[%s931 + $0x2c] sm:$0x1]
      %v2691 = vld [vmem:[%s931 + $0x30] sm:$0xf]
      %v2692 = vld [vmem:[%s931 + $0x34] sm:$0xf]
      %v2693 = vld [vmem:[%s931 + $0x38] sm:$0x1]
      %v2694 = vld [vmem:[%s931 + $0x3c] sm:$0xf]
      %v2695 = vld [vmem:[%s931 + $0x40] sm:$0xf]
      %v2696 = vld [vmem:[%s931 + $0x44] sm:$0x1]
      %v2697 = vld [vmem:[%s931 + $0x48] sm:$0xf]
      %v2698 = vld [vmem:[%s931 + $0x4c] sm:$0xf]
      %v2699 = vld [vmem:[%s931 + $0x50] sm:$0x1]
      %v2700 = vld [vmem:[%s931 + $0x54] sm:$0xf]
      %v2701 = vld [vmem:[%s931 + $0x58] sm:$0xf]
      %v2702 = vld [vmem:[%s931 + $0x5c] sm:$0x1]
      %v2703 = vld [vmem:[%s931 + $0x60] sm:$0xf]
      %v2704 = vld [vmem:[%s931 + $0x64] sm:$0xf]
      %v2705 = vld [vmem:[%s931 + $0x68] sm:$0x1]
      %v2706 = vld [vmem:[%s931 + $0x6c] sm:$0xf]
      %v2707 = vld [vmem:[%s931 + $0x70] sm:$0xf]
      %v2708 = vld [vmem:[%s931 + $0x74] sm:$0x1]
      %v2709 = vld [vmem:[%s931 + $0x78] sm:$0xf]
      %v2710 = vld [vmem:[%s931 + $0x7c] sm:$0xf]
      %v2711 = vld [vmem:[%s931 + $0x80] sm:$0x1]
      %v2712 = vld [vmem:[%s931 + $0x84] sm:$0xf]
      %v2713 = vld [vmem:[%s931 + $0x88] sm:$0xf]
      %v2714 = vld [vmem:[%s931 + $0x8c] sm:$0x1]
      %v2715 = vld [vmem:[%s931 + $0x90] sm:$0xf]
      %v2716 = vld [vmem:[%s931 + $0x94] sm:$0xf]
      %v2717 = vld [vmem:[%s931 + $0x98] sm:$0x1]
      %v2718 = vld [vmem:[%s931 + $0x9c] sm:$0xf]
      %v2719 = vld [vmem:[%s931 + $0xa0] sm:$0xf]
      %v2720 = vld [vmem:[%s931 + $0xa4] sm:$0x1]
      %v2721 = vld [vmem:[%s931 + $0xa8] sm:$0xf]
      %v2722 = vld [vmem:[%s931 + $0xac] sm:$0xf]
      %v2723 = vld [vmem:[%s931 + $0xb0] sm:$0x1]
      %v2724 = vld [vmem:[%s931 + $0xb4] sm:$0xf]
      %v2725 = vld [vmem:[%s931 + $0xb8] sm:$0xf]
      %v2726 = vld [vmem:[%s931 + $0xbc] sm:$0x1]
      %v2728 = vshrl.u32 %v2679, 16
      %v2730 = vrot.slane %v2728, 4
      %v2731 = vshll.u32 %v2679, 16
      %v2733 = vrot.slane %v2731, 5
      %v2734 = vor.u32 %v2730, %v2733
      %v2735 = vrot.slane %v2734, 4
      %v2737 = vshll.u32 %v2680, 16
      %v2739 = vrot.slane %v2737, 5
      %v2740 = vsel %vm1107, %v2735, %v2739
      %v2741 = vshrl.u32 %v2680, 16
      %v2743 = vrot.slane %v2741, 4
      %v2744 = vor.u32 %v2743, %v2739
      %v2745 = vrot.slane %v2744, 4
      %v2747 = vshll.u32 %v2681, 16
      %v2749 = vrot.slane %v2747, 5
      %v2750 = vsel %vm1107, %v2745, %v2749
      %v2752 = vshrl.u32 %v2682, 16
      %v2754 = vrot.slane %v2752, 4
      %v2755 = vshll.u32 %v2682, 16
      %v2757 = vrot.slane %v2755, 5
      %v2758 = vor.u32 %v2754, %v2757
      %v2759 = vrot.slane %v2758, 4
      %v2761 = vshll.u32 %v2683, 16
      %v2763 = vrot.slane %v2761, 5
      %v2764 = vsel %vm1107, %v2759, %v2763
      %v2765 = vshrl.u32 %v2683, 16
      %v2767 = vrot.slane %v2765, 4
      %v2768 = vor.u32 %v2767, %v2763
      %v2769 = vrot.slane %v2768, 4
      %v2771 = vshll.u32 %v2684, 16
      %v2773 = vrot.slane %v2771, 5
      %v2774 = vsel %vm1107, %v2769, %v2773
      %v2776 = vshrl.u32 %v2685, 16
      %v2778 = vrot.slane %v2776, 4
      %v2779 = vshll.u32 %v2685, 16
      %v2781 = vrot.slane %v2779, 5
      %v2782 = vor.u32 %v2778, %v2781
      %v2783 = vrot.slane %v2782, 4
      %v2785 = vshll.u32 %v2686, 16
      %v2787 = vrot.slane %v2785, 5
      %v2788 = vsel %vm1107, %v2783, %v2787
      %v2789 = vshrl.u32 %v2686, 16
      %v2791 = vrot.slane %v2789, 4
      %v2792 = vor.u32 %v2791, %v2787
      %v2793 = vrot.slane %v2792, 4
      %v2795 = vshll.u32 %v2687, 16
      %v2797 = vrot.slane %v2795, 5
      %v2798 = vsel %vm1107, %v2793, %v2797
      %v2800 = vshrl.u32 %v2688, 16
      %v2802 = vrot.slane %v2800, 4
      %v2803 = vshll.u32 %v2688, 16
      %v2805 = vrot.slane %v2803, 5
      %v2806 = vor.u32 %v2802, %v2805
      %v2807 = vrot.slane %v2806, 4
      %v2809 = vshll.u32 %v2689, 16
      %v2811 = vrot.slane %v2809, 5
      %v2812 = vsel %vm1107, %v2807, %v2811
      %v2813 = vshrl.u32 %v2689, 16
      %v2815 = vrot.slane %v2813, 4
      %v2816 = vor.u32 %v2815, %v2811
      %v2817 = vrot.slane %v2816, 4
      %v2819 = vshll.u32 %v2690, 16
      %v2821 = vrot.slane %v2819, 5
      %v2822 = vsel %vm1107, %v2817, %v2821
      %v2824 = vshrl.u32 %v2691, 16
      %v2826 = vrot.slane %v2824, 4
      %v2827 = vshll.u32 %v2691, 16
      %v2829 = vrot.slane %v2827, 5
      %v2830 = vor.u32 %v2826, %v2829
      %v2831 = vrot.slane %v2830, 4
      %v2833 = vshll.u32 %v2692, 16
      %v2835 = vrot.slane %v2833, 5
      %v2836 = vsel %vm1107, %v2831, %v2835
      %v2837 = vshrl.u32 %v2692, 16
      %v2839 = vrot.slane %v2837, 4
      %v2840 = vor.u32 %v2839, %v2835
      %v2841 = vrot.slane %v2840, 4
      %v2843 = vshll.u32 %v2693, 16
      %v2845 = vrot.slane %v2843, 5
      %v2846 = vsel %vm1107, %v2841, %v2845
      %v2848 = vshrl.u32 %v2694, 16
      %v2850 = vrot.slane %v2848, 4
      %v2851 = vshll.u32 %v2694, 16
      %v2853 = vrot.slane %v2851, 5
      %v2854 = vor.u32 %v2850, %v2853
      %v2855 = vrot.slane %v2854, 4
      %v2857 = vshll.u32 %v2695, 16
      %v2859 = vrot.slane %v2857, 5
      %v2860 = vsel %vm1107, %v2855, %v2859
      %v2861 = vshrl.u32 %v2695, 16
      %v2863 = vrot.slane %v2861, 4
      %v2864 = vor.u32 %v2863, %v2859
      %v2865 = vrot.slane %v2864, 4
      %v2867 = vshll.u32 %v2696, 16
      %v2869 = vrot.slane %v2867, 5
      %v2870 = vsel %vm1107, %v2865, %v2869
      %v2872 = vshrl.u32 %v2697, 16
      %v2874 = vrot.slane %v2872, 4
      %v2875 = vshll.u32 %v2697, 16
      %v2877 = vrot.slane %v2875, 5
      %v2878 = vor.u32 %v2874, %v2877
      %v2879 = vrot.slane %v2878, 4
      %v2881 = vshll.u32 %v2698, 16
      %v2883 = vrot.slane %v2881, 5
      %v2884 = vsel %vm1107, %v2879, %v2883
      %v2885 = vshrl.u32 %v2698, 16
      %v2887 = vrot.slane %v2885, 4
      %v2888 = vor.u32 %v2887, %v2883
      %v2889 = vrot.slane %v2888, 4
      %v2891 = vshll.u32 %v2699, 16
      %v2893 = vrot.slane %v2891, 5
      %v2894 = vsel %vm1107, %v2889, %v2893
      %v2896 = vshrl.u32 %v2700, 16
      %v2898 = vrot.slane %v2896, 4
      %v2899 = vshll.u32 %v2700, 16
      %v2901 = vrot.slane %v2899, 5
      %v2902 = vor.u32 %v2898, %v2901
      %v2903 = vrot.slane %v2902, 4
      %v2905 = vshll.u32 %v2701, 16
      %v2907 = vrot.slane %v2905, 5
      %v2908 = vsel %vm1107, %v2903, %v2907
      %v2909 = vshrl.u32 %v2701, 16
      %v2911 = vrot.slane %v2909, 4
      %v2912 = vor.u32 %v2911, %v2907
      %v2913 = vrot.slane %v2912, 4
      %v2915 = vshll.u32 %v2702, 16
      %v2917 = vrot.slane %v2915, 5
      %v2918 = vsel %vm1107, %v2913, %v2917
      %v2920 = vshrl.u32 %v2703, 16
      %v2922 = vrot.slane %v2920, 4
      %v2923 = vshll.u32 %v2703, 16
      %v2925 = vrot.slane %v2923, 5
      %v2926 = vor.u32 %v2922, %v2925
      %v2927 = vrot.slane %v2926, 4
      %v2929 = vshll.u32 %v2704, 16
      %v2931 = vrot.slane %v2929, 5
      %v2932 = vsel %vm1107, %v2927, %v2931
      %v2933 = vshrl.u32 %v2704, 16
      %v2935 = vrot.slane %v2933, 4
      %v2936 = vor.u32 %v2935, %v2931
      %v2937 = vrot.slane %v2936, 4
      %v2939 = vshll.u32 %v2705, 16
      %v2941 = vrot.slane %v2939, 5
      %v2942 = vsel %vm1107, %v2937, %v2941
      %v2944 = vshrl.u32 %v2706, 16
      %v2946 = vrot.slane %v2944, 4
      %v2947 = vshll.u32 %v2706, 16
      %v2949 = vrot.slane %v2947, 5
      %v2950 = vor.u32 %v2946, %v2949
      %v2951 = vrot.slane %v2950, 4
      %v2953 = vshll.u32 %v2707, 16
      %v2955 = vrot.slane %v2953, 5
      %v2956 = vsel %vm1107, %v2951, %v2955
      %v2957 = vshrl.u32 %v2707, 16
      %v2959 = vrot.slane %v2957, 4
      %v2960 = vor.u32 %v2959, %v2955
      %v2961 = vrot.slane %v2960, 4
      %v2963 = vshll.u32 %v2708, 16
      %v2965 = vrot.slane %v2963, 5
      %v2966 = vsel %vm1107, %v2961, %v2965
      %v2968 = vshrl.u32 %v2709, 16
      %v2970 = vrot.slane %v2968, 4
      %v2971 = vshll.u32 %v2709, 16
      %v2973 = vrot.slane %v2971, 5
      %v2974 = vor.u32 %v2970, %v2973
      %v2975 = vrot.slane %v2974, 4
      %v2977 = vshll.u32 %v2710, 16
      %v2979 = vrot.slane %v2977, 5
      %v2980 = vsel %vm1107, %v2975, %v2979
      %v2981 = vshrl.u32 %v2710, 16
      %v2983 = vrot.slane %v2981, 4
      %v2984 = vor.u32 %v2983, %v2979
      %v2985 = vrot.slane %v2984, 4
      %v2987 = vshll.u32 %v2711, 16
      %v2989 = vrot.slane %v2987, 5
      %v2990 = vsel %vm1107, %v2985, %v2989
      %v2992 = vshrl.u32 %v2712, 16
      %v2994 = vrot.slane %v2992, 4
      %v2995 = vshll.u32 %v2712, 16
      %v2997 = vrot.slane %v2995, 5
      %v2998 = vor.u32 %v2994, %v2997
      %v2999 = vrot.slane %v2998, 4
      %v3001 = vshll.u32 %v2713, 16
      %v3003 = vrot.slane %v3001, 5
      %v3004 = vsel %vm1107, %v2999, %v3003
      %v3005 = vshrl.u32 %v2713, 16
      %v3007 = vrot.slane %v3005, 4
      %v3008 = vor.u32 %v3007, %v3003
      %v3009 = vrot.slane %v3008, 4
      %v3011 = vshll.u32 %v2714, 16
      %v3013 = vrot.slane %v3011, 5
      %v3014 = vsel %vm1107, %v3009, %v3013
      %v3016 = vshrl.u32 %v2715, 16
      %v3018 = vrot.slane %v3016, 4
      %v3019 = vshll.u32 %v2715, 16
      %v3021 = vrot.slane %v3019, 5
      %v3022 = vor.u32 %v3018, %v3021
      %v3023 = vrot.slane %v3022, 4
      %v3025 = vshll.u32 %v2716, 16
      %v3027 = vrot.slane %v3025, 5
      %v3028 = vsel %vm1107, %v3023, %v3027
      %v3029 = vshrl.u32 %v2716, 16
      %v3031 = vrot.slane %v3029, 4
      %v3032 = vor.u32 %v3031, %v3027
      %v3033 = vrot.slane %v3032, 4
      %v3035 = vshll.u32 %v2717, 16
      %v3037 = vrot.slane %v3035, 5
      %v3038 = vsel %vm1107, %v3033, %v3037
      %v3040 = vshrl.u32 %v2718, 16
      %v3042 = vrot.slane %v3040, 4
      %v3043 = vshll.u32 %v2718, 16
      %v3045 = vrot.slane %v3043, 5
      %v3046 = vor.u32 %v3042, %v3045
      %v3047 = vrot.slane %v3046, 4
      %v3049 = vshll.u32 %v2719, 16
      %v3051 = vrot.slane %v3049, 5
      %v3052 = vsel %vm1107, %v3047, %v3051
      %v3053 = vshrl.u32 %v2719, 16
      %v3055 = vrot.slane %v3053, 4
      %v3056 = vor.u32 %v3055, %v3051
      %v3057 = vrot.slane %v3056, 4
      %v3059 = vshll.u32 %v2720, 16
      %v3061 = vrot.slane %v3059, 5
      %v3062 = vsel %vm1107, %v3057, %v3061
      %v3064 = vshrl.u32 %v2721, 16
      %v3066 = vrot.slane %v3064, 4
      %v3067 = vshll.u32 %v2721, 16
      %v3069 = vrot.slane %v3067, 5
      %v3070 = vor.u32 %v3066, %v3069
      %v3071 = vrot.slane %v3070, 4
      %v3073 = vshll.u32 %v2722, 16
      %v3075 = vrot.slane %v3073, 5
      %v3076 = vsel %vm1107, %v3071, %v3075
      %v3077 = vshrl.u32 %v2722, 16
      %v3079 = vrot.slane %v3077, 4
      %v3080 = vor.u32 %v3079, %v3075
      %v3081 = vrot.slane %v3080, 4
      %v3083 = vshll.u32 %v2723, 16
      %v3085 = vrot.slane %v3083, 5
      %v3086 = vsel %vm1107, %v3081, %v3085
      %v3088 = vshrl.u32 %v2724, 16
      %v3090 = vrot.slane %v3088, 4
      %v3091 = vshll.u32 %v2724, 16
      %v3093 = vrot.slane %v3091, 5
      %v3094 = vor.u32 %v3090, %v3093
      %v3095 = vrot.slane %v3094, 4
      %v3097 = vshll.u32 %v2725, 16
      %v3099 = vrot.slane %v3097, 5
      %v3100 = vsel %vm1107, %v3095, %v3099
      %v3101 = vshrl.u32 %v2725, 16
      %v3103 = vrot.slane %v3101, 4
      %v3104 = vor.u32 %v3103, %v3099
      %v3105 = vrot.slane %v3104, 4
      %v3107 = vshll.u32 %v2726, 16
      %v3109 = vrot.slane %v3107, 5
      %v3110 = vsel %vm1107, %v3105, %v3109
      %s3111 = scalar_lea.vmem %s2, 128
      %v3112 = vld [vmem:[%s3111] sm:$0xf]
      %v3113 = vld [vmem:[%s3111 + $0x4] sm:$0xf]
      %v3114 = vld [vmem:[%s3111 + $0x8] sm:$0xf]
      %v3115 = vld [vmem:[%s3111 + $0xc] sm:$0xf]
      %v3116 = vld [vmem:[%s3111 + $0x10] sm:$0xf]
      %v3117 = vld [vmem:[%s3111 + $0x14] sm:$0xf]
      %v3118 = vld [vmem:[%s3111 + $0x18] sm:$0xf]
      %v3119 = vld [vmem:[%s3111 + $0x1c] sm:$0xf]
      %v3120 = vunpack.c.l.b16 %v2740
      %v3121 = vunpack.c.l.b16 %v2750
      %v3122 = vunpack.c.l.b16 %v2764
      %v3123 = vunpack.c.l.b16 %v2774
      %v3124 = vunpack.c.l.b16 %v2788
      %v3125 = vunpack.c.l.b16 %v2798
      %v3126 = vunpack.c.l.b16 %v2812
      %v3127 = vunpack.c.l.b16 %v2822
      %v3128 = vunpack.c.l.b16 %v2836
      %v3129 = vunpack.c.l.b16 %v2846
      %v3130 = vunpack.c.l.b16 %v2860
      %v3131 = vunpack.c.l.b16 %v2870
      %v3132 = vunpack.c.l.b16 %v2884
      %v3133 = vunpack.c.l.b16 %v2894
      %v3134 = vunpack.c.l.b16 %v2908
      %v3135 = vunpack.c.l.b16 %v2918
      %v3136 = vunpack.c.l.b16 %v2932
      %v3137 = vunpack.c.l.b16 %v2942
      %v3138 = vunpack.c.l.b16 %v2956
      %v3139 = vunpack.c.l.b16 %v2966
      %v3140 = vunpack.c.l.b16 %v2980
      %v3141 = vunpack.c.l.b16 %v2990
      %v3142 = vunpack.c.l.b16 %v3004
      %v3143 = vunpack.c.l.b16 %v3014
      %v3144 = vunpack.c.l.b16 %v3028
      %v3145 = vunpack.c.l.b16 %v3038
      %v3146 = vunpack.c.l.b16 %v3052
      %v3147 = vunpack.c.l.b16 %v3062
      %v3148 = vunpack.c.l.b16 %v3076
      %v3149 = vunpack.c.l.b16 %v3086
      %v3150 = vunpack.c.l.b16 %v3100
      %v3151 = vunpack.c.l.b16 %v3110
      %v3152 = vpack.c.b16 %v3121, %v3120
      %v3153 = vpack.c.b16 %v3123, %v3122
      %v3154 = vpack.c.b16 %v3125, %v3124
      %v3155 = vpack.c.b16 %v3127, %v3126
      %v3156 = vpack.c.b16 %v3129, %v3128
      %v3157 = vpack.c.b16 %v3131, %v3130
      %v3158 = vpack.c.b16 %v3133, %v3132
      %v3159 = vpack.c.b16 %v3135, %v3134
      %v3160 = vpack.c.b16 %v3137, %v3136
      %v3161 = vpack.c.b16 %v3139, %v3138
      %v3162 = vpack.c.b16 %v3141, %v3140
      %v3163 = vpack.c.b16 %v3143, %v3142
      %v3164 = vpack.c.b16 %v3145, %v3144
      %v3165 = vpack.c.b16 %v3147, %v3146
      %v3166 = vpack.c.b16 %v3149, %v3148
      %v3167 = vpack.c.b16 %v3151, %v3150
      %v3176 = vunpack.c.l.b16 %v3112
      %v3177 = vunpack.c.l.b16 %v3113
      %v3178 = vunpack.c.l.b16 %v3114
      %v3179 = vunpack.c.l.b16 %v3115
      %v3180 = vunpack.c.l.b16 %v3116
      %v3181 = vunpack.c.l.b16 %v3117
      %v3182 = vunpack.c.l.b16 %v3118
      %v3183 = vunpack.c.l.b16 %v3119
      %v3184 = vpack.c.b16 %v3177, %v3176
      %v3185 = vpack.c.b16 %v3179, %v3178
      %v3186 = vpack.c.b16 %v3181, %v3180
      %v3187 = vpack.c.b16 %v3183, %v3182
      %v3193 = vsel %vm1573, %v3152, 0
      %v3196 = vsel %vm1573, %v3153, 0
      %v3199 = vsel %vm1573, %v3154, 0
      %v3202 = vsel %vm1573, %v3155, 0
      %v3205 = vsel %vm1573, %v3156, 0
      %v3208 = vsel %vm1573, %v3157, 0
      %v3211 = vsel %vm1573, %v3158, 0
      %v3214 = vsel %vm1573, %v3159, 0
      %v3217 = vsel %vm1573, %v3160, 0
      %v3220 = vsel %vm1573, %v3161, 0
      %v3223 = vsel %vm1573, %v3162, 0
      %v3226 = vsel %vm1573, %v3163, 0
      %v3229 = vsel %vm1573, %v3164, 0
      %v3232 = vsel %vm1573, %v3165, 0
      %v3235 = vsel %vm1573, %v3166, 0
      %v3238 = vsel %vm1573, %v3167, 0
      %3240 = vmatpush.bf16.msra.mxu0 0
      %3241 = vmatpush.bf16.msra.mxu0 0
      %3242 = vmatpush.bf16.msra.mxu0 0
      %3243 = vmatpush.bf16.msra.mxu0 0
      %3244 = vmatpush.bf16.msra.mxu0 %v3187
      %3245 = vmatpush.bf16.msra.mxu0 %v3186
      %3246 = vmatpush.bf16.msra.mxu0 %v3185
      %3247 = vmatpush.bf16.msra.mxu0 %v3184
      %3248 = vmatmul.bf16.gmra.mxu0 %v3193
      %v3249 = vpop.f32.mrf.mxu0
      %v3250 = vadd.f32 0.0, %v3249
      %v3251 = vpop.f32.mrf.mxu0
      %v3252 = vadd.f32 0.0, %v3251
      %3253 = vmatmul.bf16.gmra.mxu0 %v3196
      %v3254 = vpop.f32.mrf.mxu0
      %v3255 = vadd.f32 0.0, %v3254
      %v3256 = vpop.f32.mrf.mxu0
      %v3257 = vadd.f32 0.0, %v3256
      %3258 = vmatmul.bf16.gmra.mxu0 %v3199
      %v3259 = vpop.f32.mrf.mxu0
      %v3260 = vadd.f32 0.0, %v3259
      %v3261 = vpop.f32.mrf.mxu0
      %v3262 = vadd.f32 0.0, %v3261
      %3263 = vmatmul.bf16.gmra.mxu0 %v3202
      %v3264 = vpop.f32.mrf.mxu0
      %v3265 = vadd.f32 0.0, %v3264
      %v3266 = vpop.f32.mrf.mxu0
      %v3267 = vadd.f32 0.0, %v3266
      %3268 = vmatmul.bf16.gmra.mxu0 %v3205
      %v3269 = vpop.f32.mrf.mxu0
      %v3270 = vadd.f32 0.0, %v3269
      %v3271 = vpop.f32.mrf.mxu0
      %v3272 = vadd.f32 0.0, %v3271
      %3273 = vmatmul.bf16.gmra.mxu0 %v3208
      %v3274 = vpop.f32.mrf.mxu0
      %v3275 = vadd.f32 0.0, %v3274
      %v3276 = vpop.f32.mrf.mxu0
      %v3277 = vadd.f32 0.0, %v3276
      %3278 = vmatmul.bf16.gmra.mxu0 %v3211
      %v3279 = vpop.f32.mrf.mxu0
      %v3280 = vadd.f32 0.0, %v3279
      %v3281 = vpop.f32.mrf.mxu0
      %v3282 = vadd.f32 0.0, %v3281
      %3283 = vmatmul.bf16.gmra.mxu0 %v3214
      %v3284 = vpop.f32.mrf.mxu0
      %v3285 = vadd.f32 0.0, %v3284
      %v3286 = vpop.f32.mrf.mxu0
      %v3287 = vadd.f32 0.0, %v3286
      %3288 = vmatmul.bf16.gmra.mxu0 %v3217
      %v3289 = vpop.f32.mrf.mxu0
      %v3290 = vadd.f32 0.0, %v3289
      %v3291 = vpop.f32.mrf.mxu0
      %v3292 = vadd.f32 0.0, %v3291
      %3293 = vmatmul.bf16.gmra.mxu0 %v3220
      %v3294 = vpop.f32.mrf.mxu0
      %v3295 = vadd.f32 0.0, %v3294
      %v3296 = vpop.f32.mrf.mxu0
      %v3297 = vadd.f32 0.0, %v3296
      %3298 = vmatmul.bf16.gmra.mxu0 %v3223
      %v3299 = vpop.f32.mrf.mxu0
      %v3300 = vadd.f32 0.0, %v3299
      %v3301 = vpop.f32.mrf.mxu0
      %v3302 = vadd.f32 0.0, %v3301
      %3303 = vmatmul.bf16.gmra.mxu0 %v3226
      %v3304 = vpop.f32.mrf.mxu0
      %v3305 = vadd.f32 0.0, %v3304
      %v3306 = vpop.f32.mrf.mxu0
      %v3307 = vadd.f32 0.0, %v3306
      %3308 = vmatmul.bf16.gmra.mxu0 %v3229
      %v3309 = vpop.f32.mrf.mxu0
      %v3310 = vadd.f32 0.0, %v3309
      %v3311 = vpop.f32.mrf.mxu0
      %v3312 = vadd.f32 0.0, %v3311
      %3313 = vmatmul.bf16.gmra.mxu0 %v3232
      %v3314 = vpop.f32.mrf.mxu0
      %v3315 = vadd.f32 0.0, %v3314
      %v3316 = vpop.f32.mrf.mxu0
      %v3317 = vadd.f32 0.0, %v3316
      %3318 = vmatmul.bf16.gmra.mxu0 %v3235
      %v3319 = vpop.f32.mrf.mxu0
      %v3320 = vadd.f32 0.0, %v3319
      %v3321 = vpop.f32.mrf.mxu0
      %v3322 = vadd.f32 0.0, %v3321
      %3323 = vmatmul.bf16.gmra.mxu0 %v3238
      %v3324 = vpop.f32.mrf.mxu0
      %v3325 = vadd.f32 0.0, %v3324
      %v3326 = vpop.f32.mrf.mxu0
      %v3327 = vadd.f32 0.0, %v3326
      %3328 = vdwg.mxu0
      %v3329 = vadd.f32 %v2647, %v3250
      %v3330 = vadd.f32 %v2648, %v3252
      %v3331 = vadd.f32 %v2649, %v3255
      %v3332 = vadd.f32 %v2650, %v3257
      %v3333 = vadd.f32 %v2651, %v3260
      %v3334 = vadd.f32 %v2652, %v3262
      %v3335 = vadd.f32 %v2653, %v3265
      %v3336 = vadd.f32 %v2654, %v3267
      %v3337 = vadd.f32 %v2655, %v3270
      %v3338 = vadd.f32 %v2656, %v3272
      %v3339 = vadd.f32 %v2657, %v3275
      %v3340 = vadd.f32 %v2658, %v3277
      %v3341 = vadd.f32 %v2659, %v3280
      %v3342 = vadd.f32 %v2660, %v3282
      %v3343 = vadd.f32 %v2661, %v3285
      %v3344 = vadd.f32 %v2662, %v3287
      %v3345 = vadd.f32 %v2663, %v3290
      %v3346 = vadd.f32 %v2664, %v3292
      %v3347 = vadd.f32 %v2665, %v3295
      %v3348 = vadd.f32 %v2666, %v3297
      %v3349 = vadd.f32 %v2667, %v3300
      %v3350 = vadd.f32 %v2668, %v3302
      %v3351 = vadd.f32 %v2669, %v3305
      %v3352 = vadd.f32 %v2670, %v3307
      %v3353 = vadd.f32 %v2671, %v3310
      %v3354 = vadd.f32 %v2672, %v3312
      %v3355 = vadd.f32 %v2673, %v3315
      %v3356 = vadd.f32 %v2674, %v3317
      %v3357 = vadd.f32 %v2675, %v3320
      %v3358 = vadd.f32 %v2676, %v3322
      %v3359 = vadd.f32 %v2677, %v3325
      %v3360 = vadd.f32 %v2678, %v3327
      %v3361 = vld [vmem:[%s931] sm:$0xe]
      %v3362 = vld [vmem:[%s931 + $0xc] sm:$0xe]
      %v3363 = vld [vmem:[%s931 + $0x18] sm:$0xe]
      %v3364 = vld [vmem:[%s931 + $0x24] sm:$0xe]
      %v3365 = vld [vmem:[%s931 + $0x30] sm:$0xe]
      %v3366 = vld [vmem:[%s931 + $0x3c] sm:$0xe]
      %v3367 = vld [vmem:[%s931 + $0x48] sm:$0xe]
      %v3368 = vld [vmem:[%s931 + $0x54] sm:$0xe]
      %v3369 = vld [vmem:[%s931 + $0x60] sm:$0xe]
      %v3370 = vld [vmem:[%s931 + $0x6c] sm:$0xe]
      %v3371 = vld [vmem:[%s931 + $0x78] sm:$0xe]
      %v3372 = vld [vmem:[%s931 + $0x84] sm:$0xe]
      %v3373 = vld [vmem:[%s931 + $0x90] sm:$0xe]
      %v3374 = vld [vmem:[%s931 + $0x9c] sm:$0xe]
      %v3375 = vld [vmem:[%s931 + $0xa8] sm:$0xe]
      %v3376 = vld [vmem:[%s931 + $0xb4] sm:$0xe]
      %v3425 = vrot.slane %v3361, 5
      %v3426 = vrot.slane %v3425, 4
      %v3427 = vrot.slane %v2680, 5
      %v3428 = vsel %vm2002, %v3426, %v3427
      %v3429 = vrot.slane %v3427, 4
      %v3430 = vrot.slane %v2681, 5
      %v3431 = vsel %vm2002, %v3429, %v3430
      %v3432 = vrot.slane %v3362, 5
      %v3433 = vrot.slane %v3432, 4
      %v3434 = vrot.slane %v2683, 5
      %v3435 = vsel %vm2002, %v3433, %v3434
      %v3436 = vrot.slane %v3434, 4
      %v3437 = vrot.slane %v2684, 5
      %v3438 = vsel %vm2002, %v3436, %v3437
      %v3439 = vrot.slane %v3363, 5
      %v3440 = vrot.slane %v3439, 4
      %v3441 = vrot.slane %v2686, 5
      %v3442 = vsel %vm2002, %v3440, %v3441
      %v3443 = vrot.slane %v3441, 4
      %v3444 = vrot.slane %v2687, 5
      %v3445 = vsel %vm2002, %v3443, %v3444
      %v3446 = vrot.slane %v3364, 5
      %v3447 = vrot.slane %v3446, 4
      %v3448 = vrot.slane %v2689, 5
      %v3449 = vsel %vm2002, %v3447, %v3448
      %v3450 = vrot.slane %v3448, 4
      %v3451 = vrot.slane %v2690, 5
      %v3452 = vsel %vm2002, %v3450, %v3451
      %v3453 = vrot.slane %v3365, 5
      %v3454 = vrot.slane %v3453, 4
      %v3455 = vrot.slane %v2692, 5
      %v3456 = vsel %vm2002, %v3454, %v3455
      %v3457 = vrot.slane %v3455, 4
      %v3458 = vrot.slane %v2693, 5
      %v3459 = vsel %vm2002, %v3457, %v3458
      %v3460 = vrot.slane %v3366, 5
      %v3461 = vrot.slane %v3460, 4
      %v3462 = vrot.slane %v2695, 5
      %v3463 = vsel %vm2002, %v3461, %v3462
      %v3464 = vrot.slane %v3462, 4
      %v3465 = vrot.slane %v2696, 5
      %v3466 = vsel %vm2002, %v3464, %v3465
      %v3467 = vrot.slane %v3367, 5
      %v3468 = vrot.slane %v3467, 4
      %v3469 = vrot.slane %v2698, 5
      %v3470 = vsel %vm2002, %v3468, %v3469
      %v3471 = vrot.slane %v3469, 4
      %v3472 = vrot.slane %v2699, 5
      %v3473 = vsel %vm2002, %v3471, %v3472
      %v3474 = vrot.slane %v3368, 5
      %v3475 = vrot.slane %v3474, 4
      %v3476 = vrot.slane %v2701, 5
      %v3477 = vsel %vm2002, %v3475, %v3476
      %v3478 = vrot.slane %v3476, 4
      %v3479 = vrot.slane %v2702, 5
      %v3480 = vsel %vm2002, %v3478, %v3479
      %v3481 = vrot.slane %v3369, 5
      %v3482 = vrot.slane %v3481, 4
      %v3483 = vrot.slane %v2704, 5
      %v3484 = vsel %vm2002, %v3482, %v3483
      %v3485 = vrot.slane %v3483, 4
      %v3486 = vrot.slane %v2705, 5
      %v3487 = vsel %vm2002, %v3485, %v3486
      %v3488 = vrot.slane %v3370, 5
      %v3489 = vrot.slane %v3488, 4
      %v3490 = vrot.slane %v2707, 5
      %v3491 = vsel %vm2002, %v3489, %v3490
      %v3492 = vrot.slane %v3490, 4
      %v3493 = vrot.slane %v2708, 5
      %v3494 = vsel %vm2002, %v3492, %v3493
      %v3495 = vrot.slane %v3371, 5
      %v3496 = vrot.slane %v3495, 4
      %v3497 = vrot.slane %v2710, 5
      %v3498 = vsel %vm2002, %v3496, %v3497
      %v3499 = vrot.slane %v3497, 4
      %v3500 = vrot.slane %v2711, 5
      %v3501 = vsel %vm2002, %v3499, %v3500
      %v3502 = vrot.slane %v3372, 5
      %v3503 = vrot.slane %v3502, 4
      %v3504 = vrot.slane %v2713, 5
      %v3505 = vsel %vm2002, %v3503, %v3504
      %v3506 = vrot.slane %v3504, 4
      %v3507 = vrot.slane %v2714, 5
      %v3508 = vsel %vm2002, %v3506, %v3507
      %v3509 = vrot.slane %v3373, 5
      %v3510 = vrot.slane %v3509, 4
      %v3511 = vrot.slane %v2716, 5
      %v3512 = vsel %vm2002, %v3510, %v3511
      %v3513 = vrot.slane %v3511, 4
      %v3514 = vrot.slane %v2717, 5
      %v3515 = vsel %vm2002, %v3513, %v3514
      %v3516 = vrot.slane %v3374, 5
      %v3517 = vrot.slane %v3516, 4
      %v3518 = vrot.slane %v2719, 5
      %v3519 = vsel %vm2002, %v3517, %v3518
      %v3520 = vrot.slane %v3518, 4
      %v3521 = vrot.slane %v2720, 5
      %v3522 = vsel %vm2002, %v3520, %v3521
      %v3523 = vrot.slane %v3375, 5
      %v3524 = vrot.slane %v3523, 4
      %v3525 = vrot.slane %v2722, 5
      %v3526 = vsel %vm2002, %v3524, %v3525
      %v3527 = vrot.slane %v3525, 4
      %v3528 = vrot.slane %v2723, 5
      %v3529 = vsel %vm2002, %v3527, %v3528
      %v3530 = vrot.slane %v3376, 5
      %v3531 = vrot.slane %v3530, 4
      %v3532 = vrot.slane %v2725, 5
      %v3533 = vsel %vm2002, %v3531, %v3532
      %v3534 = vrot.slane %v3532, 4
      %v3535 = vrot.slane %v2726, 5
      %v3536 = vsel %vm2002, %v3534, %v3535
      %s3537 = scalar_lea.vmem %s2, 160
      %v3538 = vld [vmem:[%s3537] sm:$0xf]
      %v3539 = vld [vmem:[%s3537 + $0x4] sm:$0xf]
      %v3540 = vld [vmem:[%s3537 + $0x8] sm:$0xf]
      %v3541 = vld [vmem:[%s3537 + $0xc] sm:$0xf]
      %v3542 = vld [vmem:[%s3537 + $0x10] sm:$0xf]
      %v3543 = vld [vmem:[%s3537 + $0x14] sm:$0xf]
      %v3544 = vld [vmem:[%s3537 + $0x18] sm:$0xf]
      %v3545 = vld [vmem:[%s3537 + $0x1c] sm:$0xf]
      %v3546 = vunpack.c.l.b16 %v3428
      %v3547 = vunpack.c.l.b16 %v3431
      %v3548 = vunpack.c.l.b16 %v3435
      %v3549 = vunpack.c.l.b16 %v3438
      %v3550 = vunpack.c.l.b16 %v3442
      %v3551 = vunpack.c.l.b16 %v3445
      %v3552 = vunpack.c.l.b16 %v3449
      %v3553 = vunpack.c.l.b16 %v3452
      %v3554 = vunpack.c.l.b16 %v3456
      %v3555 = vunpack.c.l.b16 %v3459
      %v3556 = vunpack.c.l.b16 %v3463
      %v3557 = vunpack.c.l.b16 %v3466
      %v3558 = vunpack.c.l.b16 %v3470
      %v3559 = vunpack.c.l.b16 %v3473
      %v3560 = vunpack.c.l.b16 %v3477
      %v3561 = vunpack.c.l.b16 %v3480
      %v3562 = vunpack.c.l.b16 %v3484
      %v3563 = vunpack.c.l.b16 %v3487
      %v3564 = vunpack.c.l.b16 %v3491
      %v3565 = vunpack.c.l.b16 %v3494
      %v3566 = vunpack.c.l.b16 %v3498
      %v3567 = vunpack.c.l.b16 %v3501
      %v3568 = vunpack.c.l.b16 %v3505
      %v3569 = vunpack.c.l.b16 %v3508
      %v3570 = vunpack.c.l.b16 %v3512
      %v3571 = vunpack.c.l.b16 %v3515
      %v3572 = vunpack.c.l.b16 %v3519
      %v3573 = vunpack.c.l.b16 %v3522
      %v3574 = vunpack.c.l.b16 %v3526
      %v3575 = vunpack.c.l.b16 %v3529
      %v3576 = vunpack.c.l.b16 %v3533
      %v3577 = vunpack.c.l.b16 %v3536
      %v3578 = vpack.c.b16 %v3547, %v3546
      %v3579 = vpack.c.b16 %v3549, %v3548
      %v3580 = vpack.c.b16 %v3551, %v3550
      %v3581 = vpack.c.b16 %v3553, %v3552
      %v3582 = vpack.c.b16 %v3555, %v3554
      %v3583 = vpack.c.b16 %v3557, %v3556
      %v3584 = vpack.c.b16 %v3559, %v3558
      %v3585 = vpack.c.b16 %v3561, %v3560
      %v3586 = vpack.c.b16 %v3563, %v3562
      %v3587 = vpack.c.b16 %v3565, %v3564
      %v3588 = vpack.c.b16 %v3567, %v3566
      %v3589 = vpack.c.b16 %v3569, %v3568
      %v3590 = vpack.c.b16 %v3571, %v3570
      %v3591 = vpack.c.b16 %v3573, %v3572
      %v3592 = vpack.c.b16 %v3575, %v3574
      %v3593 = vpack.c.b16 %v3577, %v3576
      %v3602 = vunpack.c.l.b16 %v3538
      %v3603 = vunpack.c.l.b16 %v3539
      %v3604 = vunpack.c.l.b16 %v3540
      %v3605 = vunpack.c.l.b16 %v3541
      %v3606 = vunpack.c.l.b16 %v3542
      %v3607 = vunpack.c.l.b16 %v3543
      %v3608 = vunpack.c.l.b16 %v3544
      %v3609 = vunpack.c.l.b16 %v3545
      %v3610 = vpack.c.b16 %v3603, %v3602
      %v3611 = vpack.c.b16 %v3605, %v3604
      %v3612 = vpack.c.b16 %v3607, %v3606
      %v3613 = vpack.c.b16 %v3609, %v3608
      %v3619 = vsel %vm1573, %v3578, 0
      %v3622 = vsel %vm1573, %v3579, 0
      %v3625 = vsel %vm1573, %v3580, 0
      %v3628 = vsel %vm1573, %v3581, 0
      %v3631 = vsel %vm1573, %v3582, 0
      %v3634 = vsel %vm1573, %v3583, 0
      %v3637 = vsel %vm1573, %v3584, 0
      %v3640 = vsel %vm1573, %v3585, 0
      %v3643 = vsel %vm1573, %v3586, 0
      %v3646 = vsel %vm1573, %v3587, 0
      %v3649 = vsel %vm1573, %v3588, 0
      %v3652 = vsel %vm1573, %v3589, 0
      %v3655 = vsel %vm1573, %v3590, 0
      %v3658 = vsel %vm1573, %v3591, 0
      %v3661 = vsel %vm1573, %v3592, 0
      %v3664 = vsel %vm1573, %v3593, 0
      %3666 = vmatpush.bf16.msra.mxu0 0
      %3667 = vmatpush.bf16.msra.mxu0 0
      %3668 = vmatpush.bf16.msra.mxu0 0
      %3669 = vmatpush.bf16.msra.mxu0 0
      %3670 = vmatpush.bf16.msra.mxu0 %v3613
      %3671 = vmatpush.bf16.msra.mxu0 %v3612
      %3672 = vmatpush.bf16.msra.mxu0 %v3611
      %3673 = vmatpush.bf16.msra.mxu0 %v3610
      %3674 = vmatmul.bf16.gmra.mxu0 %v3619
      %v3675 = vpop.f32.mrf.mxu0
      %v3676 = vadd.f32 0.0, %v3675
      %v3677 = vpop.f32.mrf.mxu0
      %v3678 = vadd.f32 0.0, %v3677
      %3679 = vmatmul.bf16.gmra.mxu0 %v3622
      %v3680 = vpop.f32.mrf.mxu0
      %v3681 = vadd.f32 0.0, %v3680
      %v3682 = vpop.f32.mrf.mxu0
      %v3683 = vadd.f32 0.0, %v3682
      %3684 = vmatmul.bf16.gmra.mxu0 %v3625
      %v3685 = vpop.f32.mrf.mxu0
      %v3686 = vadd.f32 0.0, %v3685
      %v3687 = vpop.f32.mrf.mxu0
      %v3688 = vadd.f32 0.0, %v3687
      %3689 = vmatmul.bf16.gmra.mxu0 %v3628
      %v3690 = vpop.f32.mrf.mxu0
      %v3691 = vadd.f32 0.0, %v3690
      %v3692 = vpop.f32.mrf.mxu0
      %v3693 = vadd.f32 0.0, %v3692
      %3694 = vmatmul.bf16.gmra.mxu0 %v3631
      %v3695 = vpop.f32.mrf.mxu0
      %v3696 = vadd.f32 0.0, %v3695
      %v3697 = vpop.f32.mrf.mxu0
      %v3698 = vadd.f32 0.0, %v3697
      %3699 = vmatmul.bf16.gmra.mxu0 %v3634
      %v3700 = vpop.f32.mrf.mxu0
      %v3701 = vadd.f32 0.0, %v3700
      %v3702 = vpop.f32.mrf.mxu0
      %v3703 = vadd.f32 0.0, %v3702
      %3704 = vmatmul.bf16.gmra.mxu0 %v3637
      %v3705 = vpop.f32.mrf.mxu0
      %v3706 = vadd.f32 0.0, %v3705
      %v3707 = vpop.f32.mrf.mxu0
      %v3708 = vadd.f32 0.0, %v3707
      %3709 = vmatmul.bf16.gmra.mxu0 %v3640
      %v3710 = vpop.f32.mrf.mxu0
      %v3711 = vadd.f32 0.0, %v3710
      %v3712 = vpop.f32.mrf.mxu0
      %v3713 = vadd.f32 0.0, %v3712
      %3714 = vmatmul.bf16.gmra.mxu0 %v3643
      %v3715 = vpop.f32.mrf.mxu0
      %v3716 = vadd.f32 0.0, %v3715
      %v3717 = vpop.f32.mrf.mxu0
      %v3718 = vadd.f32 0.0, %v3717
      %3719 = vmatmul.bf16.gmra.mxu0 %v3646
      %v3720 = vpop.f32.mrf.mxu0
      %v3721 = vadd.f32 0.0, %v3720
      %v3722 = vpop.f32.mrf.mxu0
      %v3723 = vadd.f32 0.0, %v3722
      %3724 = vmatmul.bf16.gmra.mxu0 %v3649
      %v3725 = vpop.f32.mrf.mxu0
      %v3726 = vadd.f32 0.0, %v3725
      %v3727 = vpop.f32.mrf.mxu0
      %v3728 = vadd.f32 0.0, %v3727
      %3729 = vmatmul.bf16.gmra.mxu0 %v3652
      %v3730 = vpop.f32.mrf.mxu0
      %v3731 = vadd.f32 0.0, %v3730
      %v3732 = vpop.f32.mrf.mxu0
      %v3733 = vadd.f32 0.0, %v3732
      %3734 = vmatmul.bf16.gmra.mxu0 %v3655
      %v3735 = vpop.f32.mrf.mxu0
      %v3736 = vadd.f32 0.0, %v3735
      %v3737 = vpop.f32.mrf.mxu0
      %v3738 = vadd.f32 0.0, %v3737
      %3739 = vmatmul.bf16.gmra.mxu0 %v3658
      %v3740 = vpop.f32.mrf.mxu0
      %v3741 = vadd.f32 0.0, %v3740
      %v3742 = vpop.f32.mrf.mxu0
      %v3743 = vadd.f32 0.0, %v3742
      %3744 = vmatmul.bf16.gmra.mxu0 %v3661
      %v3745 = vpop.f32.mrf.mxu0
      %v3746 = vadd.f32 0.0, %v3745
      %v3747 = vpop.f32.mrf.mxu0
      %v3748 = vadd.f32 0.0, %v3747
      %3749 = vmatmul.bf16.gmra.mxu0 %v3664
      %v3750 = vpop.f32.mrf.mxu0
      %v3751 = vadd.f32 0.0, %v3750
      %v3752 = vpop.f32.mrf.mxu0
      %v3753 = vadd.f32 0.0, %v3752
      %3754 = vdwg.mxu0
      %v3755 = vadd.f32 %v3329, %v3676
      %v3756 = vadd.f32 %v3330, %v3678
      %v3757 = vadd.f32 %v3331, %v3681
      %v3758 = vadd.f32 %v3332, %v3683
      %v3759 = vadd.f32 %v3333, %v3686
      %v3760 = vadd.f32 %v3334, %v3688
      %v3761 = vadd.f32 %v3335, %v3691
      %v3762 = vadd.f32 %v3336, %v3693
      %v3763 = vadd.f32 %v3337, %v3696
      %v3764 = vadd.f32 %v3338, %v3698
      %v3765 = vadd.f32 %v3339, %v3701
      %v3766 = vadd.f32 %v3340, %v3703
      %v3767 = vadd.f32 %v3341, %v3706
      %v3768 = vadd.f32 %v3342, %v3708
      %v3769 = vadd.f32 %v3343, %v3711
      %v3770 = vadd.f32 %v3344, %v3713
      %v3771 = vadd.f32 %v3345, %v3716
      %v3772 = vadd.f32 %v3346, %v3718
      %v3773 = vadd.f32 %v3347, %v3721
      %v3774 = vadd.f32 %v3348, %v3723
      %v3775 = vadd.f32 %v3349, %v3726
      %v3776 = vadd.f32 %v3350, %v3728
      %v3777 = vadd.f32 %v3351, %v3731
      %v3778 = vadd.f32 %v3352, %v3733
      %v3779 = vadd.f32 %v3353, %v3736
      %v3780 = vadd.f32 %v3354, %v3738
      %v3781 = vadd.f32 %v3355, %v3741
      %v3782 = vadd.f32 %v3356, %v3743
      %v3783 = vadd.f32 %v3357, %v3746
      %v3784 = vadd.f32 %v3358, %v3748
      %v3785 = vadd.f32 %v3359, %v3751
      %v3786 = vadd.f32 %v3360, %v3753
      %s3787 = scalar_lea.vmem [#allocation2], 24
      %v3788 = vld [vmem:[%s3787] sm:$0xf]
      %v3789 = vld [vmem:[%s3787 + $0x4] sm:$0xf]
      %v3790 = vld [vmem:[%s3787 + $0xc] sm:$0xf]
      %v3791 = vld [vmem:[%s3787 + $0x10] sm:$0xf]
      %v3792 = vld [vmem:[%s3787 + $0x18] sm:$0xf]
      %v3793 = vld [vmem:[%s3787 + $0x1c] sm:$0xf]
      %v3794 = vld [vmem:[%s3787 + $0x24] sm:$0xf]
      %v3795 = vld [vmem:[%s3787 + $0x28] sm:$0xf]
      %v3796 = vld [vmem:[%s3787 + $0x30] sm:$0xf]
      %v3797 = vld [vmem:[%s3787 + $0x34] sm:$0xf]
      %v3798 = vld [vmem:[%s3787 + $0x3c] sm:$0xf]
      %v3799 = vld [vmem:[%s3787 + $0x40] sm:$0xf]
      %v3800 = vld [vmem:[%s3787 + $0x48] sm:$0xf]
      %v3801 = vld [vmem:[%s3787 + $0x4c] sm:$0xf]
      %v3802 = vld [vmem:[%s3787 + $0x54] sm:$0xf]
      %v3803 = vld [vmem:[%s3787 + $0x58] sm:$0xf]
      %v3804 = vld [vmem:[%s3787 + $0x60] sm:$0xf]
      %v3805 = vld [vmem:[%s3787 + $0x64] sm:$0xf]
      %v3806 = vld [vmem:[%s3787 + $0x6c] sm:$0xf]
      %v3807 = vld [vmem:[%s3787 + $0x70] sm:$0xf]
      %v3808 = vld [vmem:[%s3787 + $0x78] sm:$0xf]
      %v3809 = vld [vmem:[%s3787 + $0x7c] sm:$0xf]
      %v3810 = vld [vmem:[%s3787 + $0x84] sm:$0xf]
      %v3811 = vld [vmem:[%s3787 + $0x88] sm:$0xf]
      %v3812 = vld [vmem:[%s3787 + $0x90] sm:$0xf]
      %v3813 = vld [vmem:[%s3787 + $0x94] sm:$0xf]
      %v3814 = vld [vmem:[%s3787 + $0x9c] sm:$0xf]
      %v3815 = vld [vmem:[%s3787 + $0xa0] sm:$0xf]
      %v3816 = vld [vmem:[%s3787 + $0xa8] sm:$0xf]
      %v3817 = vld [vmem:[%s3787 + $0xac] sm:$0xf]
      %v3818 = vld [vmem:[%s3787 + $0xb4] sm:$0xf]
      %v3819 = vld [vmem:[%s3787 + $0xb8] sm:$0xf]
      %s3820 = scalar_lea.vmem %s2, 192
      %v3821 = vld [vmem:[%s3820] sm:$0xf]
      %v3822 = vld [vmem:[%s3820 + $0x4] sm:$0xf]
      %v3823 = vld [vmem:[%s3820 + $0x8] sm:$0xf]
      %v3824 = vld [vmem:[%s3820 + $0xc] sm:$0xf]
      %v3825 = vld [vmem:[%s3820 + $0x10] sm:$0xf]
      %v3826 = vld [vmem:[%s3820 + $0x14] sm:$0xf]
      %v3827 = vld [vmem:[%s3820 + $0x18] sm:$0xf]
      %v3828 = vld [vmem:[%s3820 + $0x1c] sm:$0xf]
      %v3861 = vunpack.c.l.b16 %v3788
      %v3862 = vunpack.c.l.b16 %v3789
      %v3863 = vunpack.c.l.b16 %v3790
      %v3864 = vunpack.c.l.b16 %v3791
      %v3865 = vunpack.c.l.b16 %v3792
      %v3866 = vunpack.c.l.b16 %v3793
      %v3867 = vunpack.c.l.b16 %v3794
      %v3868 = vunpack.c.l.b16 %v3795
      %v3869 = vunpack.c.l.b16 %v3796
      %v3870 = vunpack.c.l.b16 %v3797
      %v3871 = vunpack.c.l.b16 %v3798
      %v3872 = vunpack.c.l.b16 %v3799
      %v3873 = vunpack.c.l.b16 %v3800
      %v3874 = vunpack.c.l.b16 %v3801
      %v3875 = vunpack.c.l.b16 %v3802
      %v3876 = vunpack.c.l.b16 %v3803
      %v3877 = vunpack.c.l.b16 %v3804
      %v3878 = vunpack.c.l.b16 %v3805
      %v3879 = vunpack.c.l.b16 %v3806
      %v3880 = vunpack.c.l.b16 %v3807
      %v3881 = vunpack.c.l.b16 %v3808
      %v3882 = vunpack.c.l.b16 %v3809
      %v3883 = vunpack.c.l.b16 %v3810
      %v3884 = vunpack.c.l.b16 %v3811
      %v3885 = vunpack.c.l.b16 %v3812
      %v3886 = vunpack.c.l.b16 %v3813
      %v3887 = vunpack.c.l.b16 %v3814
      %v3888 = vunpack.c.l.b16 %v3815
      %v3889 = vunpack.c.l.b16 %v3816
      %v3890 = vunpack.c.l.b16 %v3817
      %v3891 = vunpack.c.l.b16 %v3818
      %v3892 = vunpack.c.l.b16 %v3819
      %v3893 = vpack.c.b16 %v3862, %v3861
      %v3894 = vpack.c.b16 %v3864, %v3863
      %v3895 = vpack.c.b16 %v3866, %v3865
      %v3896 = vpack.c.b16 %v3868, %v3867
      %v3897 = vpack.c.b16 %v3870, %v3869
      %v3898 = vpack.c.b16 %v3872, %v3871
      %v3899 = vpack.c.b16 %v3874, %v3873
      %v3900 = vpack.c.b16 %v3876, %v3875
      %v3901 = vpack.c.b16 %v3878, %v3877
      %v3902 = vpack.c.b16 %v3880, %v3879
      %v3903 = vpack.c.b16 %v3882, %v3881
      %v3904 = vpack.c.b16 %v3884, %v3883
      %v3905 = vpack.c.b16 %v3886, %v3885
      %v3906 = vpack.c.b16 %v3888, %v3887
      %v3907 = vpack.c.b16 %v3890, %v3889
      %v3908 = vpack.c.b16 %v3892, %v3891
      %v3917 = vunpack.c.l.b16 %v3821
      %v3918 = vunpack.c.l.b16 %v3822
      %v3919 = vunpack.c.l.b16 %v3823
      %v3920 = vunpack.c.l.b16 %v3824
      %v3921 = vunpack.c.l.b16 %v3825
      %v3922 = vunpack.c.l.b16 %v3826
      %v3923 = vunpack.c.l.b16 %v3827
      %v3924 = vunpack.c.l.b16 %v3828
      %v3925 = vpack.c.b16 %v3918, %v3917
      %v3926 = vpack.c.b16 %v3920, %v3919
      %v3927 = vpack.c.b16 %v3922, %v3921
      %v3928 = vpack.c.b16 %v3924, %v3923
      %v3934 = vsel %vm1573, %v3893, 0
      %v3937 = vsel %vm1573, %v3894, 0
      %v3940 = vsel %vm1573, %v3895, 0
      %v3943 = vsel %vm1573, %v3896, 0
      %v3946 = vsel %vm1573, %v3897, 0
      %v3949 = vsel %vm1573, %v3898, 0
      %v3952 = vsel %vm1573, %v3899, 0
      %v3955 = vsel %vm1573, %v3900, 0
      %v3958 = vsel %vm1573, %v3901, 0
      %v3961 = vsel %vm1573, %v3902, 0
      %v3964 = vsel %vm1573, %v3903, 0
      %v3967 = vsel %vm1573, %v3904, 0
      %v3970 = vsel %vm1573, %v3905, 0
      %v3973 = vsel %vm1573, %v3906, 0
      %v3976 = vsel %vm1573, %v3907, 0
      %v3979 = vsel %vm1573, %v3908, 0
      %3981 = vmatpush.bf16.msra.mxu0 0
      %3982 = vmatpush.bf16.msra.mxu0 0
      %3983 = vmatpush.bf16.msra.mxu0 0
      %3984 = vmatpush.bf16.msra.mxu0 0
      %3985 = vmatpush.bf16.msra.mxu0 %v3928
      %3986 = vmatpush.bf16.msra.mxu0 %v3927
      %3987 = vmatpush.bf16.msra.mxu0 %v3926
      %3988 = vmatpush.bf16.msra.mxu0 %v3925
      %3989 = vmatmul.bf16.gmra.mxu0 %v3934
      %v3990 = vpop.f32.mrf.mxu0
      %v3991 = vadd.f32 0.0, %v3990
      %v3992 = vpop.f32.mrf.mxu0
      %v3993 = vadd.f32 0.0, %v3992
      %3994 = vmatmul.bf16.gmra.mxu0 %v3937
      %v3995 = vpop.f32.mrf.mxu0
      %v3996 = vadd.f32 0.0, %v3995
      %v3997 = vpop.f32.mrf.mxu0
      %v3998 = vadd.f32 0.0, %v3997
      %3999 = vmatmul.bf16.gmra.mxu0 %v3940
      %v4000 = vpop.f32.mrf.mxu0
      %v4001 = vadd.f32 0.0, %v4000
      %v4002 = vpop.f32.mrf.mxu0
      %v4003 = vadd.f32 0.0, %v4002
      %4004 = vmatmul.bf16.gmra.mxu0 %v3943
      %v4005 = vpop.f32.mrf.mxu0
      %v4006 = vadd.f32 0.0, %v4005
      %v4007 = vpop.f32.mrf.mxu0
      %v4008 = vadd.f32 0.0, %v4007
      %4009 = vmatmul.bf16.gmra.mxu0 %v3946
      %v4010 = vpop.f32.mrf.mxu0
      %v4011 = vadd.f32 0.0, %v4010
      %v4012 = vpop.f32.mrf.mxu0
      %v4013 = vadd.f32 0.0, %v4012
      %4014 = vmatmul.bf16.gmra.mxu0 %v3949
      %v4015 = vpop.f32.mrf.mxu0
      %v4016 = vadd.f32 0.0, %v4015
      %v4017 = vpop.f32.mrf.mxu0
      %v4018 = vadd.f32 0.0, %v4017
      %4019 = vmatmul.bf16.gmra.mxu0 %v3952
      %v4020 = vpop.f32.mrf.mxu0
      %v4021 = vadd.f32 0.0, %v4020
      %v4022 = vpop.f32.mrf.mxu0
      %v4023 = vadd.f32 0.0, %v4022
      %4024 = vmatmul.bf16.gmra.mxu0 %v3955
      %v4025 = vpop.f32.mrf.mxu0
      %v4026 = vadd.f32 0.0, %v4025
      %v4027 = vpop.f32.mrf.mxu0
      %v4028 = vadd.f32 0.0, %v4027
      %4029 = vmatmul.bf16.gmra.mxu0 %v3958
      %v4030 = vpop.f32.mrf.mxu0
      %v4031 = vadd.f32 0.0, %v4030
      %v4032 = vpop.f32.mrf.mxu0
      %v4033 = vadd.f32 0.0, %v4032
      %4034 = vmatmul.bf16.gmra.mxu0 %v3961
      %v4035 = vpop.f32.mrf.mxu0
      %v4036 = vadd.f32 0.0, %v4035
      %v4037 = vpop.f32.mrf.mxu0
      %v4038 = vadd.f32 0.0, %v4037
      %4039 = vmatmul.bf16.gmra.mxu0 %v3964
      %v4040 = vpop.f32.mrf.mxu0
      %v4041 = vadd.f32 0.0, %v4040
      %v4042 = vpop.f32.mrf.mxu0
      %v4043 = vadd.f32 0.0, %v4042
      %4044 = vmatmul.bf16.gmra.mxu0 %v3967
      %v4045 = vpop.f32.mrf.mxu0
      %v4046 = vadd.f32 0.0, %v4045
      %v4047 = vpop.f32.mrf.mxu0
      %v4048 = vadd.f32 0.0, %v4047
      %4049 = vmatmul.bf16.gmra.mxu0 %v3970
      %v4050 = vpop.f32.mrf.mxu0
      %v4051 = vadd.f32 0.0, %v4050
      %v4052 = vpop.f32.mrf.mxu0
      %v4053 = vadd.f32 0.0, %v4052
      %4054 = vmatmul.bf16.gmra.mxu0 %v3973
      %v4055 = vpop.f32.mrf.mxu0
      %v4056 = vadd.f32 0.0, %v4055
      %v4057 = vpop.f32.mrf.mxu0
      %v4058 = vadd.f32 0.0, %v4057
      %4059 = vmatmul.bf16.gmra.mxu0 %v3976
      %v4060 = vpop.f32.mrf.mxu0
      %v4061 = vadd.f32 0.0, %v4060
      %v4062 = vpop.f32.mrf.mxu0
      %v4063 = vadd.f32 0.0, %v4062
      %4064 = vmatmul.bf16.gmra.mxu0 %v3979
      %v4065 = vpop.f32.mrf.mxu0
      %v4066 = vadd.f32 0.0, %v4065
      %v4067 = vpop.f32.mrf.mxu0
      %v4068 = vadd.f32 0.0, %v4067
      %4069 = vdwg.mxu0
      %v4070 = vadd.f32 %v3755, %v3991
      %v4071 = vadd.f32 %v3756, %v3993
      %v4072 = vadd.f32 %v3757, %v3996
      %v4073 = vadd.f32 %v3758, %v3998
      %v4074 = vadd.f32 %v3759, %v4001
      %v4075 = vadd.f32 %v3760, %v4003
      %v4076 = vadd.f32 %v3761, %v4006
      %v4077 = vadd.f32 %v3762, %v4008
      %v4078 = vadd.f32 %v3763, %v4011
      %v4079 = vadd.f32 %v3764, %v4013
      %v4080 = vadd.f32 %v3765, %v4016
      %v4081 = vadd.f32 %v3766, %v4018
      %v4082 = vadd.f32 %v3767, %v4021
      %v4083 = vadd.f32 %v3768, %v4023
      %v4084 = vadd.f32 %v3769, %v4026
      %v4085 = vadd.f32 %v3770, %v4028
      %v4086 = vadd.f32 %v3771, %v4031
      %v4087 = vadd.f32 %v3772, %v4033
      %v4088 = vadd.f32 %v3773, %v4036
      %v4089 = vadd.f32 %v3774, %v4038
      %v4090 = vadd.f32 %v3775, %v4041
      %v4091 = vadd.f32 %v3776, %v4043
      %v4092 = vadd.f32 %v3777, %v4046
      %v4093 = vadd.f32 %v3778, %v4048
      %v4094 = vadd.f32 %v3779, %v4051
      %v4095 = vadd.f32 %v3780, %v4053
      %v4096 = vadd.f32 %v3781, %v4056
      %v4097 = vadd.f32 %v3782, %v4058
      %v4098 = vadd.f32 %v3783, %v4061
      %v4099 = vadd.f32 %v3784, %v4063
      %v4100 = vadd.f32 %v3785, %v4066
      %v4101 = vadd.f32 %v3786, %v4068
      %v4102 = vld [vmem:[%s3787] sm:$0xf]
      %v4103 = vld [vmem:[%s3787 + $0x4] sm:$0xf]
      %v4104 = vld [vmem:[%s3787 + $0x8] sm:$0x1]
      %v4105 = vld [vmem:[%s3787 + $0xc] sm:$0xf]
      %v4106 = vld [vmem:[%s3787 + $0x10] sm:$0xf]
      %v4107 = vld [vmem:[%s3787 + $0x14] sm:$0x1]
      %v4108 = vld [vmem:[%s3787 + $0x18] sm:$0xf]
      %v4109 = vld [vmem:[%s3787 + $0x1c] sm:$0xf]
      %v4110 = vld [vmem:[%s3787 + $0x20] sm:$0x1]
      %v4111 = vld [vmem:[%s3787 + $0x24] sm:$0xf]
      %v4112 = vld [vmem:[%s3787 + $0x28] sm:$0xf]
      %v4113 = vld [vmem:[%s3787 + $0x2c] sm:$0x1]
      %v4114 = vld [vmem:[%s3787 + $0x30] sm:$0xf]
      %v4115 = vld [vmem:[%s3787 + $0x34] sm:$0xf]
      %v4116 = vld [vmem:[%s3787 + $0x38] sm:$0x1]
      %v4117 = vld [vmem:[%s3787 + $0x3c] sm:$0xf]
      %v4118 = vld [vmem:[%s3787 + $0x40] sm:$0xf]
      %v4119 = vld [vmem:[%s3787 + $0x44] sm:$0x1]
      %v4120 = vld [vmem:[%s3787 + $0x48] sm:$0xf]
      %v4121 = vld [vmem:[%s3787 + $0x4c] sm:$0xf]
      %v4122 = vld [vmem:[%s3787 + $0x50] sm:$0x1]
      %v4123 = vld [vmem:[%s3787 + $0x54] sm:$0xf]
      %v4124 = vld [vmem:[%s3787 + $0x58] sm:$0xf]
      %v4125 = vld [vmem:[%s3787 + $0x5c] sm:$0x1]
      %v4126 = vld [vmem:[%s3787 + $0x60] sm:$0xf]
      %v4127 = vld [vmem:[%s3787 + $0x64] sm:$0xf]
      %v4128 = vld [vmem:[%s3787 + $0x68] sm:$0x1]
      %v4129 = vld [vmem:[%s3787 + $0x6c] sm:$0xf]
      %v4130 = vld [vmem:[%s3787 + $0x70] sm:$0xf]
      %v4131 = vld [vmem:[%s3787 + $0x74] sm:$0x1]
      %v4132 = vld [vmem:[%s3787 + $0x78] sm:$0xf]
      %v4133 = vld [vmem:[%s3787 + $0x7c] sm:$0xf]
      %v4134 = vld [vmem:[%s3787 + $0x80] sm:$0x1]
      %v4135 = vld [vmem:[%s3787 + $0x84] sm:$0xf]
      %v4136 = vld [vmem:[%s3787 + $0x88] sm:$0xf]
      %v4137 = vld [vmem:[%s3787 + $0x8c] sm:$0x1]
      %v4138 = vld [vmem:[%s3787 + $0x90] sm:$0xf]
      %v4139 = vld [vmem:[%s3787 + $0x94] sm:$0xf]
      %v4140 = vld [vmem:[%s3787 + $0x98] sm:$0x1]
      %v4141 = vld [vmem:[%s3787 + $0x9c] sm:$0xf]
      %v4142 = vld [vmem:[%s3787 + $0xa0] sm:$0xf]
      %v4143 = vld [vmem:[%s3787 + $0xa4] sm:$0x1]
      %v4144 = vld [vmem:[%s3787 + $0xa8] sm:$0xf]
      %v4145 = vld [vmem:[%s3787 + $0xac] sm:$0xf]
      %v4146 = vld [vmem:[%s3787 + $0xb0] sm:$0x1]
      %v4147 = vld [vmem:[%s3787 + $0xb4] sm:$0xf]
      %v4148 = vld [vmem:[%s3787 + $0xb8] sm:$0xf]
      %v4149 = vld [vmem:[%s3787 + $0xbc] sm:$0x1]
      %v4151 = vshrl.u32 %v4102, 16
      %v4153 = vrot.slane %v4151, 4
      %v4154 = vshll.u32 %v4102, 16
      %v4156 = vrot.slane %v4154, 5
      %v4157 = vor.u32 %v4153, %v4156
      %v4158 = vrot.slane %v4157, 4
      %v4160 = vshll.u32 %v4103, 16
      %v4162 = vrot.slane %v4160, 5
      %v4163 = vsel %vm1107, %v4158, %v4162
      %v4164 = vshrl.u32 %v4103, 16
      %v4166 = vrot.slane %v4164, 4
      %v4167 = vor.u32 %v4166, %v4162
      %v4168 = vrot.slane %v4167, 4
      %v4170 = vshll.u32 %v4104, 16
      %v4172 = vrot.slane %v4170, 5
      %v4173 = vsel %vm1107, %v4168, %v4172
      %v4175 = vshrl.u32 %v4105, 16
      %v4177 = vrot.slane %v4175, 4
      %v4178 = vshll.u32 %v4105, 16
      %v4180 = vrot.slane %v4178, 5
      %v4181 = vor.u32 %v4177, %v4180
      %v4182 = vrot.slane %v4181, 4
      %v4184 = vshll.u32 %v4106, 16
      %v4186 = vrot.slane %v4184, 5
      %v4187 = vsel %vm1107, %v4182, %v4186
      %v4188 = vshrl.u32 %v4106, 16
      %v4190 = vrot.slane %v4188, 4
      %v4191 = vor.u32 %v4190, %v4186
      %v4192 = vrot.slane %v4191, 4
      %v4194 = vshll.u32 %v4107, 16
      %v4196 = vrot.slane %v4194, 5
      %v4197 = vsel %vm1107, %v4192, %v4196
      %v4199 = vshrl.u32 %v4108, 16
      %v4201 = vrot.slane %v4199, 4
      %v4202 = vshll.u32 %v4108, 16
      %v4204 = vrot.slane %v4202, 5
      %v4205 = vor.u32 %v4201, %v4204
      %v4206 = vrot.slane %v4205, 4
      %v4208 = vshll.u32 %v4109, 16
      %v4210 = vrot.slane %v4208, 5
      %v4211 = vsel %vm1107, %v4206, %v4210
      %v4212 = vshrl.u32 %v4109, 16
      %v4214 = vrot.slane %v4212, 4
      %v4215 = vor.u32 %v4214, %v4210
      %v4216 = vrot.slane %v4215, 4
      %v4218 = vshll.u32 %v4110, 16
      %v4220 = vrot.slane %v4218, 5
      %v4221 = vsel %vm1107, %v4216, %v4220
      %v4223 = vshrl.u32 %v4111, 16
      %v4225 = vrot.slane %v4223, 4
      %v4226 = vshll.u32 %v4111, 16
      %v4228 = vrot.slane %v4226, 5
      %v4229 = vor.u32 %v4225, %v4228
      %v4230 = vrot.slane %v4229, 4
      %v4232 = vshll.u32 %v4112, 16
      %v4234 = vrot.slane %v4232, 5
      %v4235 = vsel %vm1107, %v4230, %v4234
      %v4236 = vshrl.u32 %v4112, 16
      %v4238 = vrot.slane %v4236, 4
      %v4239 = vor.u32 %v4238, %v4234
      %v4240 = vrot.slane %v4239, 4
      %v4242 = vshll.u32 %v4113, 16
      %v4244 = vrot.slane %v4242, 5
      %v4245 = vsel %vm1107, %v4240, %v4244
      %v4247 = vshrl.u32 %v4114, 16
      %v4249 = vrot.slane %v4247, 4
      %v4250 = vshll.u32 %v4114, 16
      %v4252 = vrot.slane %v4250, 5
      %v4253 = vor.u32 %v4249, %v4252
      %v4254 = vrot.slane %v4253, 4
      %v4256 = vshll.u32 %v4115, 16
      %v4258 = vrot.slane %v4256, 5
      %v4259 = vsel %vm1107, %v4254, %v4258
      %v4260 = vshrl.u32 %v4115, 16
      %v4262 = vrot.slane %v4260, 4
      %v4263 = vor.u32 %v4262, %v4258
      %v4264 = vrot.slane %v4263, 4
      %v4266 = vshll.u32 %v4116, 16
      %v4268 = vrot.slane %v4266, 5
      %v4269 = vsel %vm1107, %v4264, %v4268
      %v4271 = vshrl.u32 %v4117, 16
      %v4273 = vrot.slane %v4271, 4
      %v4274 = vshll.u32 %v4117, 16
      %v4276 = vrot.slane %v4274, 5
      %v4277 = vor.u32 %v4273, %v4276
      %v4278 = vrot.slane %v4277, 4
      %v4280 = vshll.u32 %v4118, 16
      %v4282 = vrot.slane %v4280, 5
      %v4283 = vsel %vm1107, %v4278, %v4282
      %v4284 = vshrl.u32 %v4118, 16
      %v4286 = vrot.slane %v4284, 4
      %v4287 = vor.u32 %v4286, %v4282
      %v4288 = vrot.slane %v4287, 4
      %v4290 = vshll.u32 %v4119, 16
      %v4292 = vrot.slane %v4290, 5
      %v4293 = vsel %vm1107, %v4288, %v4292
      %v4295 = vshrl.u32 %v4120, 16
      %v4297 = vrot.slane %v4295, 4
      %v4298 = vshll.u32 %v4120, 16
      %v4300 = vrot.slane %v4298, 5
      %v4301 = vor.u32 %v4297, %v4300
      %v4302 = vrot.slane %v4301, 4
      %v4304 = vshll.u32 %v4121, 16
      %v4306 = vrot.slane %v4304, 5
      %v4307 = vsel %vm1107, %v4302, %v4306
      %v4308 = vshrl.u32 %v4121, 16
      %v4310 = vrot.slane %v4308, 4
      %v4311 = vor.u32 %v4310, %v4306
      %v4312 = vrot.slane %v4311, 4
      %v4314 = vshll.u32 %v4122, 16
      %v4316 = vrot.slane %v4314, 5
      %v4317 = vsel %vm1107, %v4312, %v4316
      %v4319 = vshrl.u32 %v4123, 16
      %v4321 = vrot.slane %v4319, 4
      %v4322 = vshll.u32 %v4123, 16
      %v4324 = vrot.slane %v4322, 5
      %v4325 = vor.u32 %v4321, %v4324
      %v4326 = vrot.slane %v4325, 4
      %v4328 = vshll.u32 %v4124, 16
      %v4330 = vrot.slane %v4328, 5
      %v4331 = vsel %vm1107, %v4326, %v4330
      %v4332 = vshrl.u32 %v4124, 16
      %v4334 = vrot.slane %v4332, 4
      %v4335 = vor.u32 %v4334, %v4330
      %v4336 = vrot.slane %v4335, 4
      %v4338 = vshll.u32 %v4125, 16
      %v4340 = vrot.slane %v4338, 5
      %v4341 = vsel %vm1107, %v4336, %v4340
      %v4343 = vshrl.u32 %v4126, 16
      %v4345 = vrot.slane %v4343, 4
      %v4346 = vshll.u32 %v4126, 16
      %v4348 = vrot.slane %v4346, 5
      %v4349 = vor.u32 %v4345, %v4348
      %v4350 = vrot.slane %v4349, 4
      %v4352 = vshll.u32 %v4127, 16
      %v4354 = vrot.slane %v4352, 5
      %v4355 = vsel %vm1107, %v4350, %v4354
      %v4356 = vshrl.u32 %v4127, 16
      %v4358 = vrot.slane %v4356, 4
      %v4359 = vor.u32 %v4358, %v4354
      %v4360 = vrot.slane %v4359, 4
      %v4362 = vshll.u32 %v4128, 16
      %v4364 = vrot.slane %v4362, 5
      %v4365 = vsel %vm1107, %v4360, %v4364
      %v4367 = vshrl.u32 %v4129, 16
      %v4369 = vrot.slane %v4367, 4
      %v4370 = vshll.u32 %v4129, 16
      %v4372 = vrot.slane %v4370, 5
      %v4373 = vor.u32 %v4369, %v4372
      %v4374 = vrot.slane %v4373, 4
      %v4376 = vshll.u32 %v4130, 16
      %v4378 = vrot.slane %v4376, 5
      %v4379 = vsel %vm1107, %v4374, %v4378
      %v4380 = vshrl.u32 %v4130, 16
      %v4382 = vrot.slane %v4380, 4
      %v4383 = vor.u32 %v4382, %v4378
      %v4384 = vrot.slane %v4383, 4
      %v4386 = vshll.u32 %v4131, 16
      %v4388 = vrot.slane %v4386, 5
      %v4389 = vsel %vm1107, %v4384, %v4388
      %v4391 = vshrl.u32 %v4132, 16
      %v4393 = vrot.slane %v4391, 4
      %v4394 = vshll.u32 %v4132, 16
      %v4396 = vrot.slane %v4394, 5
      %v4397 = vor.u32 %v4393, %v4396
      %v4398 = vrot.slane %v4397, 4
      %v4400 = vshll.u32 %v4133, 16
      %v4402 = vrot.slane %v4400, 5
      %v4403 = vsel %vm1107, %v4398, %v4402
      %v4404 = vshrl.u32 %v4133, 16
      %v4406 = vrot.slane %v4404, 4
      %v4407 = vor.u32 %v4406, %v4402
      %v4408 = vrot.slane %v4407, 4
      %v4410 = vshll.u32 %v4134, 16
      %v4412 = vrot.slane %v4410, 5
      %v4413 = vsel %vm1107, %v4408, %v4412
      %v4415 = vshrl.u32 %v4135, 16
      %v4417 = vrot.slane %v4415, 4
      %v4418 = vshll.u32 %v4135, 16
      %v4420 = vrot.slane %v4418, 5
      %v4421 = vor.u32 %v4417, %v4420
      %v4422 = vrot.slane %v4421, 4
      %v4424 = vshll.u32 %v4136, 16
      %v4426 = vrot.slane %v4424, 5
      %v4427 = vsel %vm1107, %v4422, %v4426
      %v4428 = vshrl.u32 %v4136, 16
      %v4430 = vrot.slane %v4428, 4
      %v4431 = vor.u32 %v4430, %v4426
      %v4432 = vrot.slane %v4431, 4
      %v4434 = vshll.u32 %v4137, 16
      %v4436 = vrot.slane %v4434, 5
      %v4437 = vsel %vm1107, %v4432, %v4436
      %v4439 = vshrl.u32 %v4138, 16
      %v4441 = vrot.slane %v4439, 4
      %v4442 = vshll.u32 %v4138, 16
      %v4444 = vrot.slane %v4442, 5
      %v4445 = vor.u32 %v4441, %v4444
      %v4446 = vrot.slane %v4445, 4
      %v4448 = vshll.u32 %v4139, 16
      %v4450 = vrot.slane %v4448, 5
      %v4451 = vsel %vm1107, %v4446, %v4450
      %v4452 = vshrl.u32 %v4139, 16
      %v4454 = vrot.slane %v4452, 4
      %v4455 = vor.u32 %v4454, %v4450
      %v4456 = vrot.slane %v4455, 4
      %v4458 = vshll.u32 %v4140, 16
      %v4460 = vrot.slane %v4458, 5
      %v4461 = vsel %vm1107, %v4456, %v4460
      %v4463 = vshrl.u32 %v4141, 16
      %v4465 = vrot.slane %v4463, 4
      %v4466 = vshll.u32 %v4141, 16
      %v4468 = vrot.slane %v4466, 5
      %v4469 = vor.u32 %v4465, %v4468
      %v4470 = vrot.slane %v4469, 4
      %v4472 = vshll.u32 %v4142, 16
      %v4474 = vrot.slane %v4472, 5
      %v4475 = vsel %vm1107, %v4470, %v4474
      %v4476 = vshrl.u32 %v4142, 16
      %v4478 = vrot.slane %v4476, 4
      %v4479 = vor.u32 %v4478, %v4474
      %v4480 = vrot.slane %v4479, 4
      %v4482 = vshll.u32 %v4143, 16
      %v4484 = vrot.slane %v4482, 5
      %v4485 = vsel %vm1107, %v4480, %v4484
      %v4487 = vshrl.u32 %v4144, 16
      %v4489 = vrot.slane %v4487, 4
      %v4490 = vshll.u32 %v4144, 16
      %v4492 = vrot.slane %v4490, 5
      %v4493 = vor.u32 %v4489, %v4492
      %v4494 = vrot.slane %v4493, 4
      %v4496 = vshll.u32 %v4145, 16
      %v4498 = vrot.slane %v4496, 5
      %v4499 = vsel %vm1107, %v4494, %v4498
      %v4500 = vshrl.u32 %v4145, 16
      %v4502 = vrot.slane %v4500, 4
      %v4503 = vor.u32 %v4502, %v4498
      %v4504 = vrot.slane %v4503, 4
      %v4506 = vshll.u32 %v4146, 16
      %v4508 = vrot.slane %v4506, 5
      %v4509 = vsel %vm1107, %v4504, %v4508
      %v4511 = vshrl.u32 %v4147, 16
      %v4513 = vrot.slane %v4511, 4
      %v4514 = vshll.u32 %v4147, 16
      %v4516 = vrot.slane %v4514, 5
      %v4517 = vor.u32 %v4513, %v4516
      %v4518 = vrot.slane %v4517, 4
      %v4520 = vshll.u32 %v4148, 16
      %v4522 = vrot.slane %v4520, 5
      %v4523 = vsel %vm1107, %v4518, %v4522
      %v4524 = vshrl.u32 %v4148, 16
      %v4526 = vrot.slane %v4524, 4
      %v4527 = vor.u32 %v4526, %v4522
      %v4528 = vrot.slane %v4527, 4
      %v4530 = vshll.u32 %v4149, 16
      %v4532 = vrot.slane %v4530, 5
      %v4533 = vsel %vm1107, %v4528, %v4532
      %s4534 = scalar_lea.vmem %s2, 224
      %v4535 = vld [vmem:[%s4534] sm:$0xf]
      %v4536 = vld [vmem:[%s4534 + $0x4] sm:$0xf]
      %v4537 = vld [vmem:[%s4534 + $0x8] sm:$0xf]
      %v4538 = vld [vmem:[%s4534 + $0xc] sm:$0xf]
      %v4539 = vld [vmem:[%s4534 + $0x10] sm:$0xf]
      %v4540 = vld [vmem:[%s4534 + $0x14] sm:$0xf]
      %v4541 = vld [vmem:[%s4534 + $0x18] sm:$0xf]
      %v4542 = vld [vmem:[%s4534 + $0x1c] sm:$0xf]
      %v4543 = vunpack.c.l.b16 %v4163
      %v4544 = vunpack.c.l.b16 %v4173
      %v4545 = vunpack.c.l.b16 %v4187
      %v4546 = vunpack.c.l.b16 %v4197
      %v4547 = vunpack.c.l.b16 %v4211
      %v4548 = vunpack.c.l.b16 %v4221
      %v4549 = vunpack.c.l.b16 %v4235
      %v4550 = vunpack.c.l.b16 %v4245
      %v4551 = vunpack.c.l.b16 %v4259
      %v4552 = vunpack.c.l.b16 %v4269
      %v4553 = vunpack.c.l.b16 %v4283
      %v4554 = vunpack.c.l.b16 %v4293
      %v4555 = vunpack.c.l.b16 %v4307
      %v4556 = vunpack.c.l.b16 %v4317
      %v4557 = vunpack.c.l.b16 %v4331
      %v4558 = vunpack.c.l.b16 %v4341
      %v4559 = vunpack.c.l.b16 %v4355
      %v4560 = vunpack.c.l.b16 %v4365
      %v4561 = vunpack.c.l.b16 %v4379
      %v4562 = vunpack.c.l.b16 %v4389
      %v4563 = vunpack.c.l.b16 %v4403
      %v4564 = vunpack.c.l.b16 %v4413
      %v4565 = vunpack.c.l.b16 %v4427
      %v4566 = vunpack.c.l.b16 %v4437
      %v4567 = vunpack.c.l.b16 %v4451
      %v4568 = vunpack.c.l.b16 %v4461
      %v4569 = vunpack.c.l.b16 %v4475
      %v4570 = vunpack.c.l.b16 %v4485
      %v4571 = vunpack.c.l.b16 %v4499
      %v4572 = vunpack.c.l.b16 %v4509
      %v4573 = vunpack.c.l.b16 %v4523
      %v4574 = vunpack.c.l.b16 %v4533
      %v4575 = vpack.c.b16 %v4544, %v4543
      %v4576 = vpack.c.b16 %v4546, %v4545
      %v4577 = vpack.c.b16 %v4548, %v4547
      %v4578 = vpack.c.b16 %v4550, %v4549
      %v4579 = vpack.c.b16 %v4552, %v4551
      %v4580 = vpack.c.b16 %v4554, %v4553
      %v4581 = vpack.c.b16 %v4556, %v4555
      %v4582 = vpack.c.b16 %v4558, %v4557
      %v4583 = vpack.c.b16 %v4560, %v4559
      %v4584 = vpack.c.b16 %v4562, %v4561
      %v4585 = vpack.c.b16 %v4564, %v4563
      %v4586 = vpack.c.b16 %v4566, %v4565
      %v4587 = vpack.c.b16 %v4568, %v4567
      %v4588 = vpack.c.b16 %v4570, %v4569
      %v4589 = vpack.c.b16 %v4572, %v4571
      %v4590 = vpack.c.b16 %v4574, %v4573
      %v4599 = vunpack.c.l.b16 %v4535
      %v4600 = vunpack.c.l.b16 %v4536
      %v4601 = vunpack.c.l.b16 %v4537
      %v4602 = vunpack.c.l.b16 %v4538
      %v4603 = vunpack.c.l.b16 %v4539
      %v4604 = vunpack.c.l.b16 %v4540
      %v4605 = vunpack.c.l.b16 %v4541
      %v4606 = vunpack.c.l.b16 %v4542
      %v4607 = vpack.c.b16 %v4600, %v4599
      %v4608 = vpack.c.b16 %v4602, %v4601
      %v4609 = vpack.c.b16 %v4604, %v4603
      %v4610 = vpack.c.b16 %v4606, %v4605
      %v4616 = vsel %vm1573, %v4575, 0
      %v4619 = vsel %vm1573, %v4576, 0
      %v4622 = vsel %vm1573, %v4577, 0
      %v4625 = vsel %vm1573, %v4578, 0
      %v4628 = vsel %vm1573, %v4579, 0
      %v4631 = vsel %vm1573, %v4580, 0
      %v4634 = vsel %vm1573, %v4581, 0
      %v4637 = vsel %vm1573, %v4582, 0
      %v4640 = vsel %vm1573, %v4583, 0
      %v4643 = vsel %vm1573, %v4584, 0
      %v4646 = vsel %vm1573, %v4585, 0
      %v4649 = vsel %vm1573, %v4586, 0
      %v4652 = vsel %vm1573, %v4587, 0
      %v4655 = vsel %vm1573, %v4588, 0
      %v4658 = vsel %vm1573, %v4589, 0
      %v4661 = vsel %vm1573, %v4590, 0
      %4663 = vmatpush.bf16.msra.mxu0 0
      %4664 = vmatpush.bf16.msra.mxu0 0
      %4665 = vmatpush.bf16.msra.mxu0 0
      %4666 = vmatpush.bf16.msra.mxu0 0
      %4667 = vmatpush.bf16.msra.mxu0 %v4610
      %4668 = vmatpush.bf16.msra.mxu0 %v4609
      %4669 = vmatpush.bf16.msra.mxu0 %v4608
      %4670 = vmatpush.bf16.msra.mxu0 %v4607
      %4671 = vmatmul.bf16.gmra.mxu0 %v4616
      %v4672 = vpop.f32.mrf.mxu0
      %v4673 = vadd.f32 0.0, %v4672
      %v4674 = vpop.f32.mrf.mxu0
      %v4675 = vadd.f32 0.0, %v4674
      %4676 = vmatmul.bf16.gmra.mxu0 %v4619
      %v4677 = vpop.f32.mrf.mxu0
      %v4678 = vadd.f32 0.0, %v4677
      %v4679 = vpop.f32.mrf.mxu0
      %v4680 = vadd.f32 0.0, %v4679
      %4681 = vmatmul.bf16.gmra.mxu0 %v4622
      %v4682 = vpop.f32.mrf.mxu0
      %v4683 = vadd.f32 0.0, %v4682
      %v4684 = vpop.f32.mrf.mxu0
      %v4685 = vadd.f32 0.0, %v4684
      %4686 = vmatmul.bf16.gmra.mxu0 %v4625
      %v4687 = vpop.f32.mrf.mxu0
      %v4688 = vadd.f32 0.0, %v4687
      %v4689 = vpop.f32.mrf.mxu0
      %v4690 = vadd.f32 0.0, %v4689
      %4691 = vmatmul.bf16.gmra.mxu0 %v4628
      %v4692 = vpop.f32.mrf.mxu0
      %v4693 = vadd.f32 0.0, %v4692
      %v4694 = vpop.f32.mrf.mxu0
      %v4695 = vadd.f32 0.0, %v4694
      %4696 = vmatmul.bf16.gmra.mxu0 %v4631
      %v4697 = vpop.f32.mrf.mxu0
      %v4698 = vadd.f32 0.0, %v4697
      %v4699 = vpop.f32.mrf.mxu0
      %v4700 = vadd.f32 0.0, %v4699
      %4701 = vmatmul.bf16.gmra.mxu0 %v4634
      %v4702 = vpop.f32.mrf.mxu0
      %v4703 = vadd.f32 0.0, %v4702
      %v4704 = vpop.f32.mrf.mxu0
      %v4705 = vadd.f32 0.0, %v4704
      %4706 = vmatmul.bf16.gmra.mxu0 %v4637
      %v4707 = vpop.f32.mrf.mxu0
      %v4708 = vadd.f32 0.0, %v4707
      %v4709 = vpop.f32.mrf.mxu0
      %v4710 = vadd.f32 0.0, %v4709
      %4711 = vmatmul.bf16.gmra.mxu0 %v4640
      %v4712 = vpop.f32.mrf.mxu0
      %v4713 = vadd.f32 0.0, %v4712
      %v4714 = vpop.f32.mrf.mxu0
      %v4715 = vadd.f32 0.0, %v4714
      %4716 = vmatmul.bf16.gmra.mxu0 %v4643
      %v4717 = vpop.f32.mrf.mxu0
      %v4718 = vadd.f32 0.0, %v4717
      %v4719 = vpop.f32.mrf.mxu0
      %v4720 = vadd.f32 0.0, %v4719
      %4721 = vmatmul.bf16.gmra.mxu0 %v4646
      %v4722 = vpop.f32.mrf.mxu0
      %v4723 = vadd.f32 0.0, %v4722
      %v4724 = vpop.f32.mrf.mxu0
      %v4725 = vadd.f32 0.0, %v4724
      %4726 = vmatmul.bf16.gmra.mxu0 %v4649
      %v4727 = vpop.f32.mrf.mxu0
      %v4728 = vadd.f32 0.0, %v4727
      %v4729 = vpop.f32.mrf.mxu0
      %v4730 = vadd.f32 0.0, %v4729
      %4731 = vmatmul.bf16.gmra.mxu0 %v4652
      %v4732 = vpop.f32.mrf.mxu0
      %v4733 = vadd.f32 0.0, %v4732
      %v4734 = vpop.f32.mrf.mxu0
      %v4735 = vadd.f32 0.0, %v4734
      %4736 = vmatmul.bf16.gmra.mxu0 %v4655
      %v4737 = vpop.f32.mrf.mxu0
      %v4738 = vadd.f32 0.0, %v4737
      %v4739 = vpop.f32.mrf.mxu0
      %v4740 = vadd.f32 0.0, %v4739
      %4741 = vmatmul.bf16.gmra.mxu0 %v4658
      %v4742 = vpop.f32.mrf.mxu0
      %v4743 = vadd.f32 0.0, %v4742
      %v4744 = vpop.f32.mrf.mxu0
      %v4745 = vadd.f32 0.0, %v4744
      %4746 = vmatmul.bf16.gmra.mxu0 %v4661
      %v4747 = vpop.f32.mrf.mxu0
      %v4748 = vadd.f32 0.0, %v4747
      %v4749 = vpop.f32.mrf.mxu0
      %v4750 = vadd.f32 0.0, %v4749
      %4751 = vdwg.mxu0
      %v4752 = vadd.f32 %v4070, %v4673
      %v4753 = vadd.f32 %v4071, %v4675
      %v4754 = vadd.f32 %v4072, %v4678
      %v4755 = vadd.f32 %v4073, %v4680
      %v4756 = vadd.f32 %v4074, %v4683
      %v4757 = vadd.f32 %v4075, %v4685
      %v4758 = vadd.f32 %v4076, %v4688
      %v4759 = vadd.f32 %v4077, %v4690
      %v4760 = vadd.f32 %v4078, %v4693
      %v4761 = vadd.f32 %v4079, %v4695
      %v4762 = vadd.f32 %v4080, %v4698
      %v4763 = vadd.f32 %v4081, %v4700
      %v4764 = vadd.f32 %v4082, %v4703
      %v4765 = vadd.f32 %v4083, %v4705
      %v4766 = vadd.f32 %v4084, %v4708
      %v4767 = vadd.f32 %v4085, %v4710
      %v4768 = vadd.f32 %v4086, %v4713
      %v4769 = vadd.f32 %v4087, %v4715
      %v4770 = vadd.f32 %v4088, %v4718
      %v4771 = vadd.f32 %v4089, %v4720
      %v4772 = vadd.f32 %v4090, %v4723
      %v4773 = vadd.f32 %v4091, %v4725
      %v4774 = vadd.f32 %v4092, %v4728
      %v4775 = vadd.f32 %v4093, %v4730
      %v4776 = vadd.f32 %v4094, %v4733
      %v4777 = vadd.f32 %v4095, %v4735
      %v4778 = vadd.f32 %v4096, %v4738
      %v4779 = vadd.f32 %v4097, %v4740
      %v4780 = vadd.f32 %v4098, %v4743
      %v4781 = vadd.f32 %v4099, %v4745
      %v4782 = vadd.f32 %v4100, %v4748
      %v4783 = vadd.f32 %v4101, %v4750
      %v4784 = vld [vmem:[%s3787] sm:$0xe]
      %v4785 = vld [vmem:[%s3787 + $0xc] sm:$0xe]
      %v4786 = vld [vmem:[%s3787 + $0x18] sm:$0xe]
      %v4787 = vld [vmem:[%s3787 + $0x24] sm:$0xe]
      %v4788 = vld [vmem:[%s3787 + $0x30] sm:$0xe]
      %v4789 = vld [vmem:[%s3787 + $0x3c] sm:$0xe]
      %v4790 = vld [vmem:[%s3787 + $0x48] sm:$0xe]
      %v4791 = vld [vmem:[%s3787 + $0x54] sm:$0xe]
      %v4792 = vld [vmem:[%s3787 + $0x60] sm:$0xe]
      %v4793 = vld [vmem:[%s3787 + $0x6c] sm:$0xe]
      %v4794 = vld [vmem:[%s3787 + $0x78] sm:$0xe]
      %v4795 = vld [vmem:[%s3787 + $0x84] sm:$0xe]
      %v4796 = vld [vmem:[%s3787 + $0x90] sm:$0xe]
      %v4797 = vld [vmem:[%s3787 + $0x9c] sm:$0xe]
      %v4798 = vld [vmem:[%s3787 + $0xa8] sm:$0xe]
      %v4799 = vld [vmem:[%s3787 + $0xb4] sm:$0xe]
      %v4848 = vrot.slane %v4784, 5
      %v4849 = vrot.slane %v4848, 4
      %v4850 = vrot.slane %v4103, 5
      %v4851 = vsel %vm2002, %v4849, %v4850
      %v4852 = vrot.slane %v4850, 4
      %v4853 = vrot.slane %v4104, 5
      %v4854 = vsel %vm2002, %v4852, %v4853
      %v4855 = vrot.slane %v4785, 5
      %v4856 = vrot.slane %v4855, 4
      %v4857 = vrot.slane %v4106, 5
      %v4858 = vsel %vm2002, %v4856, %v4857
      %v4859 = vrot.slane %v4857, 4
      %v4860 = vrot.slane %v4107, 5
      %v4861 = vsel %vm2002, %v4859, %v4860
      %v4862 = vrot.slane %v4786, 5
      %v4863 = vrot.slane %v4862, 4
      %v4864 = vrot.slane %v4109, 5
      %v4865 = vsel %vm2002, %v4863, %v4864
      %v4866 = vrot.slane %v4864, 4
      %v4867 = vrot.slane %v4110, 5
      %v4868 = vsel %vm2002, %v4866, %v4867
      %v4869 = vrot.slane %v4787, 5
      %v4870 = vrot.slane %v4869, 4
      %v4871 = vrot.slane %v4112, 5
      %v4872 = vsel %vm2002, %v4870, %v4871
      %v4873 = vrot.slane %v4871, 4
      %v4874 = vrot.slane %v4113, 5
      %v4875 = vsel %vm2002, %v4873, %v4874
      %v4876 = vrot.slane %v4788, 5
      %v4877 = vrot.slane %v4876, 4
      %v4878 = vrot.slane %v4115, 5
      %v4879 = vsel %vm2002, %v4877, %v4878
      %v4880 = vrot.slane %v4878, 4
      %v4881 = vrot.slane %v4116, 5
      %v4882 = vsel %vm2002, %v4880, %v4881
      %v4883 = vrot.slane %v4789, 5
      %v4884 = vrot.slane %v4883, 4
      %v4885 = vrot.slane %v4118, 5
      %v4886 = vsel %vm2002, %v4884, %v4885
      %v4887 = vrot.slane %v4885, 4
      %v4888 = vrot.slane %v4119, 5
      %v4889 = vsel %vm2002, %v4887, %v4888
      %v4890 = vrot.slane %v4790, 5
      %v4891 = vrot.slane %v4890, 4
      %v4892 = vrot.slane %v4121, 5
      %v4893 = vsel %vm2002, %v4891, %v4892
      %v4894 = vrot.slane %v4892, 4
      %v4895 = vrot.slane %v4122, 5
      %v4896 = vsel %vm2002, %v4894, %v4895
      %v4897 = vrot.slane %v4791, 5
      %v4898 = vrot.slane %v4897, 4
      %v4899 = vrot.slane %v4124, 5
      %v4900 = vsel %vm2002, %v4898, %v4899
      %v4901 = vrot.slane %v4899, 4
      %v4902 = vrot.slane %v4125, 5
      %v4903 = vsel %vm2002, %v4901, %v4902
      %v4904 = vrot.slane %v4792, 5
      %v4905 = vrot.slane %v4904, 4
      %v4906 = vrot.slane %v4127, 5
      %v4907 = vsel %vm2002, %v4905, %v4906
      %v4908 = vrot.slane %v4906, 4
      %v4909 = vrot.slane %v4128, 5
      %v4910 = vsel %vm2002, %v4908, %v4909
      %v4911 = vrot.slane %v4793, 5
      %v4912 = vrot.slane %v4911, 4
      %v4913 = vrot.slane %v4130, 5
      %v4914 = vsel %vm2002, %v4912, %v4913
      %v4915 = vrot.slane %v4913, 4
      %v4916 = vrot.slane %v4131, 5
      %v4917 = vsel %vm2002, %v4915, %v4916
      %v4918 = vrot.slane %v4794, 5
      %v4919 = vrot.slane %v4918, 4
      %v4920 = vrot.slane %v4133, 5
      %v4921 = vsel %vm2002, %v4919, %v4920
      %v4922 = vrot.slane %v4920, 4
      %v4923 = vrot.slane %v4134, 5
      %v4924 = vsel %vm2002, %v4922, %v4923
      %v4925 = vrot.slane %v4795, 5
      %v4926 = vrot.slane %v4925, 4
      %v4927 = vrot.slane %v4136, 5
      %v4928 = vsel %vm2002, %v4926, %v4927
      %v4929 = vrot.slane %v4927, 4
      %v4930 = vrot.slane %v4137, 5
      %v4931 = vsel %vm2002, %v4929, %v4930
      %v4932 = vrot.slane %v4796, 5
      %v4933 = vrot.slane %v4932, 4
      %v4934 = vrot.slane %v4139, 5
      %v4935 = vsel %vm2002, %v4933, %v4934
      %v4936 = vrot.slane %v4934, 4
      %v4937 = vrot.slane %v4140, 5
      %v4938 = vsel %vm2002, %v4936, %v4937
      %v4939 = vrot.slane %v4797, 5
      %v4940 = vrot.slane %v4939, 4
      %v4941 = vrot.slane %v4142, 5
      %v4942 = vsel %vm2002, %v4940, %v4941
      %v4943 = vrot.slane %v4941, 4
      %v4944 = vrot.slane %v4143, 5
      %v4945 = vsel %vm2002, %v4943, %v4944
      %v4946 = vrot.slane %v4798, 5
      %v4947 = vrot.slane %v4946, 4
      %v4948 = vrot.slane %v4145, 5
      %v4949 = vsel %vm2002, %v4947, %v4948
      %v4950 = vrot.slane %v4948, 4
      %v4951 = vrot.slane %v4146, 5
      %v4952 = vsel %vm2002, %v4950, %v4951
      %v4953 = vrot.slane %v4799, 5
      %v4954 = vrot.slane %v4953, 4
      %v4955 = vrot.slane %v4148, 5
      %v4956 = vsel %vm2002, %v4954, %v4955
      %v4957 = vrot.slane %v4955, 4
      %v4958 = vrot.slane %v4149, 5
      %v4959 = vsel %vm2002, %v4957, %v4958
      %s4960 = scalar_lea.vmem %s2, 256
      %v4961 = vld [vmem:[%s4960] sm:$0xf]
      %v4962 = vld [vmem:[%s4960 + $0x4] sm:$0xf]
      %v4963 = vld [vmem:[%s4960 + $0x8] sm:$0xf]
      %v4964 = vld [vmem:[%s4960 + $0xc] sm:$0xf]
      %v4965 = vld [vmem:[%s4960 + $0x10] sm:$0xf]
      %v4966 = vld [vmem:[%s4960 + $0x14] sm:$0xf]
      %v4967 = vld [vmem:[%s4960 + $0x18] sm:$0xf]
      %v4968 = vld [vmem:[%s4960 + $0x1c] sm:$0xf]
      %v4969 = vunpack.c.l.b16 %v4851
      %v4970 = vunpack.c.l.b16 %v4854
      %v4971 = vunpack.c.l.b16 %v4858
      %v4972 = vunpack.c.l.b16 %v4861
      %v4973 = vunpack.c.l.b16 %v4865
      %v4974 = vunpack.c.l.b16 %v4868
      %v4975 = vunpack.c.l.b16 %v4872
      %v4976 = vunpack.c.l.b16 %v4875
      %v4977 = vunpack.c.l.b16 %v4879
      %v4978 = vunpack.c.l.b16 %v4882
      %v4979 = vunpack.c.l.b16 %v4886
      %v4980 = vunpack.c.l.b16 %v4889
      %v4981 = vunpack.c.l.b16 %v4893
      %v4982 = vunpack.c.l.b16 %v4896
      %v4983 = vunpack.c.l.b16 %v4900
      %v4984 = vunpack.c.l.b16 %v4903
      %v4985 = vunpack.c.l.b16 %v4907
      %v4986 = vunpack.c.l.b16 %v4910
      %v4987 = vunpack.c.l.b16 %v4914
      %v4988 = vunpack.c.l.b16 %v4917
      %v4989 = vunpack.c.l.b16 %v4921
      %v4990 = vunpack.c.l.b16 %v4924
      %v4991 = vunpack.c.l.b16 %v4928
      %v4992 = vunpack.c.l.b16 %v4931
      %v4993 = vunpack.c.l.b16 %v4935
      %v4994 = vunpack.c.l.b16 %v4938
      %v4995 = vunpack.c.l.b16 %v4942
      %v4996 = vunpack.c.l.b16 %v4945
      %v4997 = vunpack.c.l.b16 %v4949
      %v4998 = vunpack.c.l.b16 %v4952
      %v4999 = vunpack.c.l.b16 %v4956
      %v5000 = vunpack.c.l.b16 %v4959
      %v5001 = vpack.c.b16 %v4970, %v4969
      %v5002 = vpack.c.b16 %v4972, %v4971
      %v5003 = vpack.c.b16 %v4974, %v4973
      %v5004 = vpack.c.b16 %v4976, %v4975
      %v5005 = vpack.c.b16 %v4978, %v4977
      %v5006 = vpack.c.b16 %v4980, %v4979
      %v5007 = vpack.c.b16 %v4982, %v4981
      %v5008 = vpack.c.b16 %v4984, %v4983
      %v5009 = vpack.c.b16 %v4986, %v4985
      %v5010 = vpack.c.b16 %v4988, %v4987
      %v5011 = vpack.c.b16 %v4990, %v4989
      %v5012 = vpack.c.b16 %v4992, %v4991
      %v5013 = vpack.c.b16 %v4994, %v4993
      %v5014 = vpack.c.b16 %v4996, %v4995
      %v5015 = vpack.c.b16 %v4998, %v4997
      %v5016 = vpack.c.b16 %v5000, %v4999
      %v5025 = vunpack.c.l.b16 %v4961
      %v5026 = vunpack.c.l.b16 %v4962
      %v5027 = vunpack.c.l.b16 %v4963
      %v5028 = vunpack.c.l.b16 %v4964
      %v5029 = vunpack.c.l.b16 %v4965
      %v5030 = vunpack.c.l.b16 %v4966
      %v5031 = vunpack.c.l.b16 %v4967
      %v5032 = vunpack.c.l.b16 %v4968
      %v5033 = vpack.c.b16 %v5026, %v5025
      %v5034 = vpack.c.b16 %v5028, %v5027
      %v5035 = vpack.c.b16 %v5030, %v5029
      %v5036 = vpack.c.b16 %v5032, %v5031
      %v5042 = vsel %vm1573, %v5001, 0
      %v5045 = vsel %vm1573, %v5002, 0
      %v5048 = vsel %vm1573, %v5003, 0
      %v5051 = vsel %vm1573, %v5004, 0
      %v5054 = vsel %vm1573, %v5005, 0
      %v5057 = vsel %vm1573, %v5006, 0
      %v5060 = vsel %vm1573, %v5007, 0
      %v5063 = vsel %vm1573, %v5008, 0
      %v5066 = vsel %vm1573, %v5009, 0
      %v5069 = vsel %vm1573, %v5010, 0
      %v5072 = vsel %vm1573, %v5011, 0
      %v5075 = vsel %vm1573, %v5012, 0
      %v5078 = vsel %vm1573, %v5013, 0
      %v5081 = vsel %vm1573, %v5014, 0
      %v5084 = vsel %vm1573, %v5015, 0
      %v5087 = vsel %vm1573, %v5016, 0
      %5089 = vmatpush.bf16.msra.mxu0 0
      %5090 = vmatpush.bf16.msra.mxu0 0
      %5091 = vmatpush.bf16.msra.mxu0 0
      %5092 = vmatpush.bf16.msra.mxu0 0
      %5093 = vmatpush.bf16.msra.mxu0 %v5036
      %5094 = vmatpush.bf16.msra.mxu0 %v5035
      %5095 = vmatpush.bf16.msra.mxu0 %v5034
      %5096 = vmatpush.bf16.msra.mxu0 %v5033
      %5097 = vmatmul.bf16.gmra.mxu0 %v5042
      %v5098 = vpop.f32.mrf.mxu0
      %v5099 = vadd.f32 0.0, %v5098
      %v5100 = vpop.f32.mrf.mxu0
      %v5101 = vadd.f32 0.0, %v5100
      %5102 = vmatmul.bf16.gmra.mxu0 %v5045
      %v5103 = vpop.f32.mrf.mxu0
      %v5104 = vadd.f32 0.0, %v5103
      %v5105 = vpop.f32.mrf.mxu0
      %v5106 = vadd.f32 0.0, %v5105
      %5107 = vmatmul.bf16.gmra.mxu0 %v5048
      %v5108 = vpop.f32.mrf.mxu0
      %v5109 = vadd.f32 0.0, %v5108
      %v5110 = vpop.f32.mrf.mxu0
      %v5111 = vadd.f32 0.0, %v5110
      %5112 = vmatmul.bf16.gmra.mxu0 %v5051
      %v5113 = vpop.f32.mrf.mxu0
      %v5114 = vadd.f32 0.0, %v5113
      %v5115 = vpop.f32.mrf.mxu0
      %v5116 = vadd.f32 0.0, %v5115
      %5117 = vmatmul.bf16.gmra.mxu0 %v5054
      %v5118 = vpop.f32.mrf.mxu0
      %v5119 = vadd.f32 0.0, %v5118
      %v5120 = vpop.f32.mrf.mxu0
      %v5121 = vadd.f32 0.0, %v5120
      %5122 = vmatmul.bf16.gmra.mxu0 %v5057
      %v5123 = vpop.f32.mrf.mxu0
      %v5124 = vadd.f32 0.0, %v5123
      %v5125 = vpop.f32.mrf.mxu0
      %v5126 = vadd.f32 0.0, %v5125
      %5127 = vmatmul.bf16.gmra.mxu0 %v5060
      %v5128 = vpop.f32.mrf.mxu0
      %v5129 = vadd.f32 0.0, %v5128
      %v5130 = vpop.f32.mrf.mxu0
      %v5131 = vadd.f32 0.0, %v5130
      %5132 = vmatmul.bf16.gmra.mxu0 %v5063
      %v5133 = vpop.f32.mrf.mxu0
      %v5134 = vadd.f32 0.0, %v5133
      %v5135 = vpop.f32.mrf.mxu0
      %v5136 = vadd.f32 0.0, %v5135
      %5137 = vmatmul.bf16.gmra.mxu0 %v5066
      %v5138 = vpop.f32.mrf.mxu0
      %v5139 = vadd.f32 0.0, %v5138
      %v5140 = vpop.f32.mrf.mxu0
      %v5141 = vadd.f32 0.0, %v5140
      %5142 = vmatmul.bf16.gmra.mxu0 %v5069
      %v5143 = vpop.f32.mrf.mxu0
      %v5144 = vadd.f32 0.0, %v5143
      %v5145 = vpop.f32.mrf.mxu0
      %v5146 = vadd.f32 0.0, %v5145
      %5147 = vmatmul.bf16.gmra.mxu0 %v5072
      %v5148 = vpop.f32.mrf.mxu0
      %v5149 = vadd.f32 0.0, %v5148
      %v5150 = vpop.f32.mrf.mxu0
      %v5151 = vadd.f32 0.0, %v5150
      %5152 = vmatmul.bf16.gmra.mxu0 %v5075
      %v5153 = vpop.f32.mrf.mxu0
      %v5154 = vadd.f32 0.0, %v5153
      %v5155 = vpop.f32.mrf.mxu0
      %v5156 = vadd.f32 0.0, %v5155
      %5157 = vmatmul.bf16.gmra.mxu0 %v5078
      %v5158 = vpop.f32.mrf.mxu0
      %v5159 = vadd.f32 0.0, %v5158
      %v5160 = vpop.f32.mrf.mxu0
      %v5161 = vadd.f32 0.0, %v5160
      %5162 = vmatmul.bf16.gmra.mxu0 %v5081
      %v5163 = vpop.f32.mrf.mxu0
      %v5164 = vadd.f32 0.0, %v5163
      %v5165 = vpop.f32.mrf.mxu0
      %v5166 = vadd.f32 0.0, %v5165
      %5167 = vmatmul.bf16.gmra.mxu0 %v5084
      %v5168 = vpop.f32.mrf.mxu0
      %v5169 = vadd.f32 0.0, %v5168
      %v5170 = vpop.f32.mrf.mxu0
      %v5171 = vadd.f32 0.0, %v5170
      %5172 = vmatmul.bf16.gmra.mxu0 %v5087
      %v5173 = vpop.f32.mrf.mxu0
      %v5174 = vadd.f32 0.0, %v5173
      %v5175 = vpop.f32.mrf.mxu0
      %v5176 = vadd.f32 0.0, %v5175
      %5177 = vdwg.mxu0
      %v5178 = vadd.f32 %v4752, %v5099
      %v5179 = vadd.f32 %v4753, %v5101
      %v5180 = vadd.f32 %v4754, %v5104
      %v5181 = vadd.f32 %v4755, %v5106
      %v5182 = vadd.f32 %v4756, %v5109
      %v5183 = vadd.f32 %v4757, %v5111
      %v5184 = vadd.f32 %v4758, %v5114
      %v5185 = vadd.f32 %v4759, %v5116
      %v5186 = vadd.f32 %v4760, %v5119
      %v5187 = vadd.f32 %v4761, %v5121
      %v5188 = vadd.f32 %v4762, %v5124
      %v5189 = vadd.f32 %v4763, %v5126
      %v5190 = vadd.f32 %v4764, %v5129
      %v5191 = vadd.f32 %v4765, %v5131
      %v5192 = vadd.f32 %v4766, %v5134
      %v5193 = vadd.f32 %v4767, %v5136
      %v5194 = vadd.f32 %v4768, %v5139
      %v5195 = vadd.f32 %v4769, %v5141
      %v5196 = vadd.f32 %v4770, %v5144
      %v5197 = vadd.f32 %v4771, %v5146
      %v5198 = vadd.f32 %v4772, %v5149
      %v5199 = vadd.f32 %v4773, %v5151
      %v5200 = vadd.f32 %v4774, %v5154
      %v5201 = vadd.f32 %v4775, %v5156
      %v5202 = vadd.f32 %v4776, %v5159
      %v5203 = vadd.f32 %v4777, %v5161
      %v5204 = vadd.f32 %v4778, %v5164
      %v5205 = vadd.f32 %v4779, %v5166
      %v5206 = vadd.f32 %v4780, %v5169
      %v5207 = vadd.f32 %v4781, %v5171
      %v5208 = vadd.f32 %v4782, %v5174
      %v5209 = vadd.f32 %v4783, %v5176
      %v5210 = vsel %vm1573, %v5178, 0.0
      %v5211 = vsel %vm1573, %v5179, 0.0
      %v5212 = vadd.f32 %v5210, %v5211
      %v5213 = vsel %vm1573, %v5180, 0.0
      %v5214 = vadd.f32 %v5212, %v5213
      %v5215 = vsel %vm1573, %v5181, 0.0
      %v5216 = vadd.f32 %v5214, %v5215
      %v5217 = vsel %vm1573, %v5182, 0.0
      %v5218 = vadd.f32 %v5216, %v5217
      %v5219 = vsel %vm1573, %v5183, 0.0
      %v5220 = vadd.f32 %v5218, %v5219
      %v5221 = vsel %vm1573, %v5184, 0.0
      %v5222 = vadd.f32 %v5220, %v5221
      %v5223 = vsel %vm1573, %v5185, 0.0
      %v5224 = vadd.f32 %v5222, %v5223
      %v5225 = vsel %vm1573, %v5186, 0.0
      %v5226 = vadd.f32 %v5224, %v5225
      %v5227 = vsel %vm1573, %v5187, 0.0
      %v5228 = vadd.f32 %v5226, %v5227
      %v5229 = vsel %vm1573, %v5188, 0.0
      %v5230 = vadd.f32 %v5228, %v5229
      %v5231 = vsel %vm1573, %v5189, 0.0
      %v5232 = vadd.f32 %v5230, %v5231
      %v5233 = vsel %vm1573, %v5190, 0.0
      %v5234 = vadd.f32 %v5232, %v5233
      %v5235 = vsel %vm1573, %v5191, 0.0
      %v5236 = vadd.f32 %v5234, %v5235
      %v5237 = vsel %vm1573, %v5192, 0.0
      %v5238 = vadd.f32 %v5236, %v5237
      %v5239 = vsel %vm1573, %v5193, 0.0
      %v5240 = vadd.f32 %v5238, %v5239
      %v5241 = vsel %vm1573, %v5194, 0.0
      %v5242 = vadd.f32 %v5240, %v5241
      %v5243 = vsel %vm1573, %v5195, 0.0
      %v5244 = vadd.f32 %v5242, %v5243
      %v5245 = vsel %vm1573, %v5196, 0.0
      %v5246 = vadd.f32 %v5244, %v5245
      %v5247 = vsel %vm1573, %v5197, 0.0
      %v5248 = vadd.f32 %v5246, %v5247
      %v5249 = vsel %vm1573, %v5198, 0.0
      %v5250 = vadd.f32 %v5248, %v5249
      %v5251 = vsel %vm1573, %v5199, 0.0
      %v5252 = vadd.f32 %v5250, %v5251
      %v5253 = vsel %vm1573, %v5200, 0.0
      %v5254 = vadd.f32 %v5252, %v5253
      %v5255 = vsel %vm1573, %v5201, 0.0
      %v5256 = vadd.f32 %v5254, %v5255
      %v5257 = vsel %vm1573, %v5202, 0.0
      %v5258 = vadd.f32 %v5256, %v5257
      %v5259 = vsel %vm1573, %v5203, 0.0
      %v5260 = vadd.f32 %v5258, %v5259
      %v5261 = vsel %vm1573, %v5204, 0.0
      %v5262 = vadd.f32 %v5260, %v5261
      %v5263 = vsel %vm1573, %v5205, 0.0
      %v5264 = vadd.f32 %v5262, %v5263
      %v5265 = vsel %vm1573, %v5206, 0.0
      %v5266 = vadd.f32 %v5264, %v5265
      %v5267 = vsel %vm1573, %v5207, 0.0
      %v5268 = vadd.f32 %v5266, %v5267
      %v5269 = vsel %vm1573, %v5208, 0.0
      %v5270 = vadd.f32 %v5268, %v5269
      %v5271 = vsel %vm1573, %v5209, 0.0
      %v5272 = vadd.f32 %v5270, %v5271
      %v5273 = vrot.slane %v5272, 4
      %v5274 = vadd.f32 %v5272, %v5273
      %v5275 = vrot.slane %v5274, 2
      %v5276 = vadd.f32 %v5274, %v5275
      %v5277 = vrot.slane %v5276, 1
      %v5278 = vadd.f32 %v5276, %v5277
      %v5280 = vsel %vm1573, %v5278, 0
      %5282 = vmatpush.msra.mxu0 0.0
      %5283 = vmatpush.msra.mxu0 0.0
      %5284 = vmatpush.msra.mxu0 0.0
      %5285 = vmatpush.msra.mxu0 0.0
      %5286 = vmatpush.msra.mxu0 0.0
      %5287 = vmatpush.msra.mxu0 0.0
      %5288 = vmatpush.msra.mxu0 0.0
      %5289 = vmatpush.msra.mxu0 0.0
      %5290 = vmatpush.msra.mxu0 %v422
      %5291 = vmatpush.msra.mxu0 %v421
      %5292 = vmatpush.msra.mxu0 %v420
      %5293 = vmatpush.msra.mxu0 %v419
      %5294 = vmatpush.msra.mxu0 %v418
      %5295 = vmatpush.msra.mxu0 %v417
      %5296 = vmatpush.msra.mxu0 %v416
      %5297 = vmatpush.msra.mxu0 %v415
      %5298 = vmatmul.f32.gmra.mxu0 %v5280
      %v5299 = vpop.f32.mrf.mxu0
      %v5300 = vadd.f32 0.0, %v5299
      %5301 = vdwg.mxu0
      %v5302 = vmul.f32 %v5300, 0.001953125
      %v5303 = vsub.f32 %v5302, %v1046
      %v5304 = vperm.slane %v5303, 0
      %v5305 = vsub.f32 %v5178, %v5304
      %v5306 = vsub.f32 %v5179, %v5304
      %v5307 = vsub.f32 %v5180, %v5304
      %v5308 = vsub.f32 %v5181, %v5304
      %v5309 = vsub.f32 %v5182, %v5304
      %v5310 = vsub.f32 %v5183, %v5304
      %v5311 = vsub.f32 %v5184, %v5304
      %v5312 = vsub.f32 %v5185, %v5304
      %v5313 = vsub.f32 %v5186, %v5304
      %v5314 = vsub.f32 %v5187, %v5304
      %v5315 = vsub.f32 %v5188, %v5304
      %v5316 = vsub.f32 %v5189, %v5304
      %v5317 = vsub.f32 %v5190, %v5304
      %v5318 = vsub.f32 %v5191, %v5304
      %v5319 = vsub.f32 %v5192, %v5304
      %v5320 = vsub.f32 %v5193, %v5304
      %v5321 = vsub.f32 %v5194, %v5304
      %v5322 = vsub.f32 %v5195, %v5304
      %v5323 = vsub.f32 %v5196, %v5304
      %v5324 = vsub.f32 %v5197, %v5304
      %v5325 = vsub.f32 %v5198, %v5304
      %v5326 = vsub.f32 %v5199, %v5304
      %v5327 = vsub.f32 %v5200, %v5304
      %v5328 = vsub.f32 %v5201, %v5304
      %v5329 = vsub.f32 %v5202, %v5304
      %v5330 = vsub.f32 %v5203, %v5304
      %v5331 = vsub.f32 %v5204, %v5304
      %v5332 = vsub.f32 %v5205, %v5304
      %v5333 = vsub.f32 %v5206, %v5304
      %v5334 = vsub.f32 %v5207, %v5304
      %v5335 = vsub.f32 %v5208, %v5304
      %v5336 = vsub.f32 %v5209, %v5304
      %v5337 = vmul.f32 %v5305, %v5305
      %v5338 = vmul.f32 %v5306, %v5306
      %v5339 = vmul.f32 %v5307, %v5307
      %v5340 = vmul.f32 %v5308, %v5308
      %v5341 = vmul.f32 %v5309, %v5309
      %v5342 = vmul.f32 %v5310, %v5310
      %v5343 = vmul.f32 %v5311, %v5311
      %v5344 = vmul.f32 %v5312, %v5312
      %v5345 = vmul.f32 %v5313, %v5313
      %v5346 = vmul.f32 %v5314, %v5314
      %v5347 = vmul.f32 %v5315, %v5315
      %v5348 = vmul.f32 %v5316, %v5316
      %v5349 = vmul.f32 %v5317, %v5317
      %v5350 = vmul.f32 %v5318, %v5318
      %v5351 = vmul.f32 %v5319, %v5319
      %v5352 = vmul.f32 %v5320, %v5320
      %v5353 = vmul.f32 %v5321, %v5321
      %v5354 = vmul.f32 %v5322, %v5322
      %v5355 = vmul.f32 %v5323, %v5323
      %v5356 = vmul.f32 %v5324, %v5324
      %v5357 = vmul.f32 %v5325, %v5325
      %v5358 = vmul.f32 %v5326, %v5326
      %v5359 = vmul.f32 %v5327, %v5327
      %v5360 = vmul.f32 %v5328, %v5328
      %v5361 = vmul.f32 %v5329, %v5329
      %v5362 = vmul.f32 %v5330, %v5330
      %v5363 = vmul.f32 %v5331, %v5331
      %v5364 = vmul.f32 %v5332, %v5332
      %v5365 = vmul.f32 %v5333, %v5333
      %v5366 = vmul.f32 %v5334, %v5334
      %v5367 = vmul.f32 %v5335, %v5335
      %v5368 = vmul.f32 %v5336, %v5336
      %v5369 = vsel %vm1573, %v5337, 0.0
      %v5370 = vsel %vm1573, %v5338, 0.0
      %v5371 = vadd.f32 %v5369, %v5370
      %v5372 = vsel %vm1573, %v5339, 0.0
      %v5373 = vadd.f32 %v5371, %v5372
      %v5374 = vsel %vm1573, %v5340, 0.0
      %v5375 = vadd.f32 %v5373, %v5374
      %v5376 = vsel %vm1573, %v5341, 0.0
      %v5377 = vadd.f32 %v5375, %v5376
      %v5378 = vsel %vm1573, %v5342, 0.0
      %v5379 = vadd.f32 %v5377, %v5378
      %v5380 = vsel %vm1573, %v5343, 0.0
      %v5381 = vadd.f32 %v5379, %v5380
      %v5382 = vsel %vm1573, %v5344, 0.0
      %v5383 = vadd.f32 %v5381, %v5382
      %v5384 = vsel %vm1573, %v5345, 0.0
      %v5385 = vadd.f32 %v5383, %v5384
      %v5386 = vsel %vm1573, %v5346, 0.0
      %v5387 = vadd.f32 %v5385, %v5386
      %v5388 = vsel %vm1573, %v5347, 0.0
      %v5389 = vadd.f32 %v5387, %v5388
      %v5390 = vsel %vm1573, %v5348, 0.0
      %v5391 = vadd.f32 %v5389, %v5390
      %v5392 = vsel %vm1573, %v5349, 0.0
      %v5393 = vadd.f32 %v5391, %v5392
      %v5394 = vsel %vm1573, %v5350, 0.0
      %v5395 = vadd.f32 %v5393, %v5394
      %v5396 = vsel %vm1573, %v5351, 0.0
      %v5397 = vadd.f32 %v5395, %v5396
      %v5398 = vsel %vm1573, %v5352, 0.0
      %v5399 = vadd.f32 %v5397, %v5398
      %v5400 = vsel %vm1573, %v5353, 0.0
      %v5401 = vadd.f32 %v5399, %v5400
      %v5402 = vsel %vm1573, %v5354, 0.0
      %v5403 = vadd.f32 %v5401, %v5402
      %v5404 = vsel %vm1573, %v5355, 0.0
      %v5405 = vadd.f32 %v5403, %v5404
      %v5406 = vsel %vm1573, %v5356, 0.0
      %v5407 = vadd.f32 %v5405, %v5406
      %v5408 = vsel %vm1573, %v5357, 0.0
      %v5409 = vadd.f32 %v5407, %v5408
      %v5410 = vsel %vm1573, %v5358, 0.0
      %v5411 = vadd.f32 %v5409, %v5410
      %v5412 = vsel %vm1573, %v5359, 0.0
      %v5413 = vadd.f32 %v5411, %v5412
      %v5414 = vsel %vm1573, %v5360, 0.0
      %v5415 = vadd.f32 %v5413, %v5414
      %v5416 = vsel %vm1573, %v5361, 0.0
      %v5417 = vadd.f32 %v5415, %v5416
      %v5418 = vsel %vm1573, %v5362, 0.0
      %v5419 = vadd.f32 %v5417, %v5418
      %v5420 = vsel %vm1573, %v5363, 0.0
      %v5421 = vadd.f32 %v5419, %v5420
      %v5422 = vsel %vm1573, %v5364, 0.0
      %v5423 = vadd.f32 %v5421, %v5422
      %v5424 = vsel %vm1573, %v5365, 0.0
      %v5425 = vadd.f32 %v5423, %v5424
      %v5426 = vsel %vm1573, %v5366, 0.0
      %v5427 = vadd.f32 %v5425, %v5426
      %v5428 = vsel %vm1573, %v5367, 0.0
      %v5429 = vadd.f32 %v5427, %v5428
      %v5430 = vsel %vm1573, %v5368, 0.0
      %v5431 = vadd.f32 %v5429, %v5430
      %v5432 = vrot.slane %v5431, 4
      %v5433 = vadd.f32 %v5431, %v5432
      %v5434 = vrot.slane %v5433, 2
      %v5435 = vadd.f32 %v5433, %v5434
      %v5436 = vrot.slane %v5435, 1
      %v5437 = vadd.f32 %v5435, %v5436
      %v5439 = vsel %vm1573, %v5437, 0
      %5441 = vmatpush.msra.mxu0 0.0
      %5442 = vmatpush.msra.mxu0 0.0
      %5443 = vmatpush.msra.mxu0 0.0
      %5444 = vmatpush.msra.mxu0 0.0
      %5445 = vmatpush.msra.mxu0 0.0
      %5446 = vmatpush.msra.mxu0 0.0
      %5447 = vmatpush.msra.mxu0 0.0
      %5448 = vmatpush.msra.mxu0 0.0
      %5449 = vmatpush.msra.mxu0 %v422
      %5450 = vmatpush.msra.mxu0 %v421
      %5451 = vmatpush.msra.mxu0 %v420
      %5452 = vmatpush.msra.mxu0 %v419
      %5453 = vmatpush.msra.mxu0 %v418
      %5454 = vmatpush.msra.mxu0 %v417
      %5455 = vmatpush.msra.mxu0 %v416
      %5456 = vmatpush.msra.mxu0 %v415
      %5457 = vmatmul.f32.gmra.mxu0 %v5439
      %v5458 = vpop.f32.mrf.mxu0
      %v5459 = vadd.f32 0.0, %v5458
      %5460 = vdwg.mxu0
      %v5461 = vmul.f32 %v5459, 0.001953125
      %v5462 = vadd.f32 %v5461, 1e-05
      %v5463 = vrsqrt.pop %v5462
      %v5464 = vmul.f32 %v5463, %v5462
      %v5465 = vmul.f32 %v5464, %v5463
      %v5466 = vmul.f32 0.5, %v5465
      %v5467 = vsub.f32 1.5, %v5466
      %v5468 = vmul.f32 %v5463, %v5467
      %vm5469 = vweird.f32 %v5462
      %vm5470 = vweird.f32 %v5463
      %vm5471 = vmor %vm5469, %vm5470
      %v5472 = vsel %vm5471, %v5463, %v5468
      %v5473 = vmul.f32 %v5472, %v1047
      %v5474 = vperm.slane %v5473, 0
      %v5475 = vmul.f32 %v5305, %v5474
      %v5476 = vmul.f32 %v5306, %v5474
      %v5477 = vmul.f32 %v5307, %v5474
      %v5478 = vmul.f32 %v5308, %v5474
      %v5479 = vmul.f32 %v5309, %v5474
      %v5480 = vmul.f32 %v5310, %v5474
      %v5481 = vmul.f32 %v5311, %v5474
      %v5482 = vmul.f32 %v5312, %v5474
      %v5483 = vmul.f32 %v5313, %v5474
      %v5484 = vmul.f32 %v5314, %v5474
      %v5485 = vmul.f32 %v5315, %v5474
      %v5486 = vmul.f32 %v5316, %v5474
      %v5487 = vmul.f32 %v5317, %v5474
      %v5488 = vmul.f32 %v5318, %v5474
      %v5489 = vmul.f32 %v5319, %v5474
      %v5490 = vmul.f32 %v5320, %v5474
      %v5491 = vmul.f32 %v5321, %v5474
      %v5492 = vmul.f32 %v5322, %v5474
      %v5493 = vmul.f32 %v5323, %v5474
      %v5494 = vmul.f32 %v5324, %v5474
      %v5495 = vmul.f32 %v5325, %v5474
      %v5496 = vmul.f32 %v5326, %v5474
      %v5497 = vmul.f32 %v5327, %v5474
      %v5498 = vmul.f32 %v5328, %v5474
      %v5499 = vmul.f32 %v5329, %v5474
      %v5500 = vmul.f32 %v5330, %v5474
      %v5501 = vmul.f32 %v5331, %v5474
      %v5502 = vmul.f32 %v5332, %v5474
      %v5503 = vmul.f32 %v5333, %v5474
      %v5504 = vmul.f32 %v5334, %v5474
      %v5505 = vmul.f32 %v5335, %v5474
      %v5506 = vmul.f32 %v5336, %v5474
      %v5508 = vperm.slane %v1048, 0
      %v5510 = vadd.f32 %v5475, %v5508
      %v5511 = vadd.f32 %v5476, %v5508
      %v5512 = vadd.f32 %v5477, %v5508
      %v5513 = vadd.f32 %v5478, %v5508
      %v5514 = vadd.f32 %v5479, %v5508
      %v5515 = vadd.f32 %v5480, %v5508
      %v5516 = vadd.f32 %v5481, %v5508
      %v5517 = vadd.f32 %v5482, %v5508
      %v5518 = vadd.f32 %v5483, %v5508
      %v5519 = vadd.f32 %v5484, %v5508
      %v5520 = vadd.f32 %v5485, %v5508
      %v5521 = vadd.f32 %v5486, %v5508
      %v5522 = vadd.f32 %v5487, %v5508
      %v5523 = vadd.f32 %v5488, %v5508
      %v5524 = vadd.f32 %v5489, %v5508
      %v5525 = vadd.f32 %v5490, %v5508
      %v5526 = vadd.f32 %v5491, %v5508
      %v5527 = vadd.f32 %v5492, %v5508
      %v5528 = vadd.f32 %v5493, %v5508
      %v5529 = vadd.f32 %v5494, %v5508
      %v5530 = vadd.f32 %v5495, %v5508
      %v5531 = vadd.f32 %v5496, %v5508
      %v5532 = vadd.f32 %v5497, %v5508
      %v5533 = vadd.f32 %v5498, %v5508
      %v5534 = vadd.f32 %v5499, %v5508
      %v5535 = vadd.f32 %v5500, %v5508
      %v5536 = vadd.f32 %v5501, %v5508
      %v5537 = vadd.f32 %v5502, %v5508
      %v5538 = vadd.f32 %v5503, %v5508
      %v5539 = vadd.f32 %v5504, %v5508
      %v5540 = vadd.f32 %v5505, %v5508
      %v5541 = vadd.f32 %v5506, %v5508
      %v5542 = vmul.f32 %v5510, 0.70710677
      %v5543 = vmul.f32 %v5511, 0.70710677
      %v5544 = vmul.f32 %v5512, 0.70710677
      %v5545 = vmul.f32 %v5513, 0.70710677
      %v5546 = vmul.f32 %v5514, 0.70710677
      %v5547 = vmul.f32 %v5515, 0.70710677
      %v5548 = vmul.f32 %v5516, 0.70710677
      %v5549 = vmul.f32 %v5517, 0.70710677
      %v5550 = vmul.f32 %v5518, 0.70710677
      %v5551 = vmul.f32 %v5519, 0.70710677
      %v5552 = vmul.f32 %v5520, 0.70710677
      %v5553 = vmul.f32 %v5521, 0.70710677
      %v5554 = vmul.f32 %v5522, 0.70710677
      %v5555 = vmul.f32 %v5523, 0.70710677
      %v5556 = vmul.f32 %v5524, 0.70710677
      %v5557 = vmul.f32 %v5525, 0.70710677
      %v5558 = vmul.f32 %v5526, 0.70710677
      %v5559 = vmul.f32 %v5527, 0.70710677
      %v5560 = vmul.f32 %v5528, 0.70710677
      %v5561 = vmul.f32 %v5529, 0.70710677
      %v5562 = vmul.f32 %v5530, 0.70710677
      %v5563 = vmul.f32 %v5531, 0.70710677
      %v5564 = vmul.f32 %v5532, 0.70710677
      %v5565 = vmul.f32 %v5533, 0.70710677
      %v5566 = vmul.f32 %v5534, 0.70710677
      %v5567 = vmul.f32 %v5535, 0.70710677
      %v5568 = vmul.f32 %v5536, 0.70710677
      %v5569 = vmul.f32 %v5537, 0.70710677
      %v5570 = vmul.f32 %v5538, 0.70710677
      %v5571 = vmul.f32 %v5539, 0.70710677
      %v5572 = vmul.f32 %v5540, 0.70710677
      %v5573 = vmul.f32 %v5541, 0.70710677
      %v5574 = vand.u32 2147483647, %v5542
      %v5575 = vand.u32 2147483647, %v5543
      %v5576 = vand.u32 2147483647, %v5544
      %v5577 = vand.u32 2147483647, %v5545
      %v5578 = vand.u32 2147483647, %v5546
      %v5579 = vand.u32 2147483647, %v5547
      %v5580 = vand.u32 2147483647, %v5548
      %v5581 = vand.u32 2147483647, %v5549
      %v5582 = vand.u32 2147483647, %v5550
      %v5583 = vand.u32 2147483647, %v5551
      %v5584 = vand.u32 2147483647, %v5552
      %v5585 = vand.u32 2147483647, %v5553
      %v5586 = vand.u32 2147483647, %v5554
      %v5587 = vand.u32 2147483647, %v5555
      %v5588 = vand.u32 2147483647, %v5556
      %v5589 = vand.u32 2147483647, %v5557
      %v5590 = vand.u32 2147483647, %v5558
      %v5591 = vand.u32 2147483647, %v5559
      %v5592 = vand.u32 2147483647, %v5560
      %v5593 = vand.u32 2147483647, %v5561
      %v5594 = vand.u32 2147483647, %v5562
      %v5595 = vand.u32 2147483647, %v5563
      %v5596 = vand.u32 2147483647, %v5564
      %v5597 = vand.u32 2147483647, %v5565
      %v5598 = vand.u32 2147483647, %v5566
      %v5599 = vand.u32 2147483647, %v5567
      %v5600 = vand.u32 2147483647, %v5568
      %v5601 = vand.u32 2147483647, %v5569
      %v5602 = vand.u32 2147483647, %v5570
      %v5603 = vand.u32 2147483647, %v5571
      %v5604 = vand.u32 2147483647, %v5572
      %v5605 = vand.u32 2147483647, %v5573
      %v5606 = vmul.f32 %v5574, 0.3275911
      %v5607 = vmul.f32 %v5575, 0.3275911
      %v5608 = vmul.f32 %v5576, 0.3275911
      %v5609 = vmul.f32 %v5577, 0.3275911
      %v5610 = vmul.f32 %v5578, 0.3275911
      %v5611 = vmul.f32 %v5579, 0.3275911
      %v5612 = vmul.f32 %v5580, 0.3275911
      %v5613 = vmul.f32 %v5581, 0.3275911
      %v5614 = vmul.f32 %v5582, 0.3275911
      %v5615 = vmul.f32 %v5583, 0.3275911
      %v5616 = vmul.f32 %v5584, 0.3275911
      %v5617 = vmul.f32 %v5585, 0.3275911
      %v5618 = vmul.f32 %v5586, 0.3275911
      %v5619 = vmul.f32 %v5587, 0.3275911
      %v5620 = vmul.f32 %v5588, 0.3275911
      %v5621 = vmul.f32 %v5589, 0.3275911
      %v5622 = vmul.f32 %v5590, 0.3275911
      %v5623 = vmul.f32 %v5591, 0.3275911
      %v5624 = vmul.f32 %v5592, 0.3275911
      %v5625 = vmul.f32 %v5593, 0.3275911
      %v5626 = vmul.f32 %v5594, 0.3275911
      %v5627 = vmul.f32 %v5595, 0.3275911
      %v5628 = vmul.f32 %v5596, 0.3275911
      %v5629 = vmul.f32 %v5597, 0.3275911
      %v5630 = vmul.f32 %v5598, 0.3275911
      %v5631 = vmul.f32 %v5599, 0.3275911
      %v5632 = vmul.f32 %v5600, 0.3275911
      %v5633 = vmul.f32 %v5601, 0.3275911
      %v5634 = vmul.f32 %v5602, 0.3275911
      %v5635 = vmul.f32 %v5603, 0.3275911
      %v5636 = vmul.f32 %v5604, 0.3275911
      %v5637 = vmul.f32 %v5605, 0.3275911
      %v5638 = vadd.f32 %v5606, 1.0
      %v5639 = vadd.f32 %v5607, 1.0
      %v5640 = vadd.f32 %v5608, 1.0
      %v5641 = vadd.f32 %v5609, 1.0
      %v5642 = vadd.f32 %v5610, 1.0
      %v5643 = vadd.f32 %v5611, 1.0
      %v5644 = vadd.f32 %v5612, 1.0
      %v5645 = vadd.f32 %v5613, 1.0
      %v5646 = vadd.f32 %v5614, 1.0
      %v5647 = vadd.f32 %v5615, 1.0
      %v5648 = vadd.f32 %v5616, 1.0
      %v5649 = vadd.f32 %v5617, 1.0
      %v5650 = vadd.f32 %v5618, 1.0
      %v5651 = vadd.f32 %v5619, 1.0
      %v5652 = vadd.f32 %v5620, 1.0
      %v5653 = vadd.f32 %v5621, 1.0
      %v5654 = vadd.f32 %v5622, 1.0
      %v5655 = vadd.f32 %v5623, 1.0
      %v5656 = vadd.f32 %v5624, 1.0
      %v5657 = vadd.f32 %v5625, 1.0
      %v5658 = vadd.f32 %v5626, 1.0
      %v5659 = vadd.f32 %v5627, 1.0
      %v5660 = vadd.f32 %v5628, 1.0
      %v5661 = vadd.f32 %v5629, 1.0
      %v5662 = vadd.f32 %v5630, 1.0
      %v5663 = vadd.f32 %v5631, 1.0
      %v5664 = vadd.f32 %v5632, 1.0
      %v5665 = vadd.f32 %v5633, 1.0
      %v5666 = vadd.f32 %v5634, 1.0
      %v5667 = vadd.f32 %v5635, 1.0
      %v5668 = vadd.f32 %v5636, 1.0
      %v5669 = vadd.f32 %v5637, 1.0
      %v5670 = vrcp.pop %v5638
      %v5671 = vrcp.pop %v5639
      %v5672 = vrcp.pop %v5640
      %v5673 = vrcp.pop %v5641
      %v5674 = vrcp.pop %v5642
      %v5675 = vrcp.pop %v5643
      %v5676 = vrcp.pop %v5644
      %v5677 = vrcp.pop %v5645
      %v5678 = vrcp.pop %v5646
      %v5679 = vrcp.pop %v5647
      %v5680 = vrcp.pop %v5648
      %v5681 = vrcp.pop %v5649
      %v5682 = vrcp.pop %v5650
      %v5683 = vrcp.pop %v5651
      %v5684 = vrcp.pop %v5652
      %v5685 = vrcp.pop %v5653
      %v5686 = vrcp.pop %v5654
      %v5687 = vrcp.pop %v5655
      %v5688 = vrcp.pop %v5656
      %v5689 = vrcp.pop %v5657
      %v5690 = vrcp.pop %v5658
      %v5691 = vrcp.pop %v5659
      %v5692 = vrcp.pop %v5660
      %v5693 = vrcp.pop %v5661
      %v5694 = vrcp.pop %v5662
      %v5695 = vrcp.pop %v5663
      %v5696 = vrcp.pop %v5664
      %v5697 = vrcp.pop %v5665
      %v5698 = vrcp.pop %v5666
      %v5699 = vrcp.pop %v5667
      %v5700 = vrcp.pop %v5668
      %v5701 = vrcp.pop %v5669
      %v5702 = vmul.f32 %v5670, 1.0614054
      %v5703 = vmul.f32 %v5671, 1.0614054
      %v5704 = vmul.f32 %v5672, 1.0614054
      %v5705 = vmul.f32 %v5673, 1.0614054
      %v5706 = vmul.f32 %v5674, 1.0614054
      %v5707 = vmul.f32 %v5675, 1.0614054
      %v5708 = vmul.f32 %v5676, 1.0614054
      %v5709 = vmul.f32 %v5677, 1.0614054
      %v5710 = vmul.f32 %v5678, 1.0614054
      %v5711 = vmul.f32 %v5679, 1.0614054
      %v5712 = vmul.f32 %v5680, 1.0614054
      %v5713 = vmul.f32 %v5681, 1.0614054
      %v5714 = vmul.f32 %v5682, 1.0614054
      %v5715 = vmul.f32 %v5683, 1.0614054
      %v5716 = vmul.f32 %v5684, 1.0614054
      %v5717 = vmul.f32 %v5685, 1.0614054
      %v5718 = vmul.f32 %v5686, 1.0614054
      %v5719 = vmul.f32 %v5687, 1.0614054
      %v5720 = vmul.f32 %v5688, 1.0614054
      %v5721 = vmul.f32 %v5689, 1.0614054
      %v5722 = vmul.f32 %v5690, 1.0614054
      %v5723 = vmul.f32 %v5691, 1.0614054
      %v5724 = vmul.f32 %v5692, 1.0614054
      %v5725 = vmul.f32 %v5693, 1.0614054
      %v5726 = vmul.f32 %v5694, 1.0614054
      %v5727 = vmul.f32 %v5695, 1.0614054
      %v5728 = vmul.f32 %v5696, 1.0614054
      %v5729 = vmul.f32 %v5697, 1.0614054
      %v5730 = vmul.f32 %v5698, 1.0614054
      %v5731 = vmul.f32 %v5699, 1.0614054
      %v5732 = vmul.f32 %v5700, 1.0614054
      %v5733 = vmul.f32 %v5701, 1.0614054
      %v5734 = vsub.f32 %v5702, 1.4531521
      %v5735 = vsub.f32 %v5703, 1.4531521
      %v5736 = vsub.f32 %v5704, 1.4531521
      %v5737 = vsub.f32 %v5705, 1.4531521
      %v5738 = vsub.f32 %v5706, 1.4531521
      %v5739 = vsub.f32 %v5707, 1.4531521
      %v5740 = vsub.f32 %v5708, 1.4531521
      %v5741 = vsub.f32 %v5709, 1.4531521
      %v5742 = vsub.f32 %v5710, 1.4531521
      %v5743 = vsub.f32 %v5711, 1.4531521
      %v5744 = vsub.f32 %v5712, 1.4531521
      %v5745 = vsub.f32 %v5713, 1.4531521
      %v5746 = vsub.f32 %v5714, 1.4531521
      %v5747 = vsub.f32 %v5715, 1.4531521
      %v5748 = vsub.f32 %v5716, 1.4531521
      %v5749 = vsub.f32 %v5717, 1.4531521
      %v5750 = vsub.f32 %v5718, 1.4531521
      %v5751 = vsub.f32 %v5719, 1.4531521
      %v5752 = vsub.f32 %v5720, 1.4531521
      %v5753 = vsub.f32 %v5721, 1.4531521
      %v5754 = vsub.f32 %v5722, 1.4531521
      %v5755 = vsub.f32 %v5723, 1.4531521
      %v5756 = vsub.f32 %v5724, 1.4531521
      %v5757 = vsub.f32 %v5725, 1.4531521
      %v5758 = vsub.f32 %v5726, 1.4531521
      %v5759 = vsub.f32 %v5727, 1.4531521
      %v5760 = vsub.f32 %v5728, 1.4531521
      %v5761 = vsub.f32 %v5729, 1.4531521
      %v5762 = vsub.f32 %v5730, 1.4531521
      %v5763 = vsub.f32 %v5731, 1.4531521
      %v5764 = vsub.f32 %v5732, 1.4531521
      %v5765 = vsub.f32 %v5733, 1.4531521
      %v5766 = vmul.f32 %v5734, %v5670
      %v5767 = vmul.f32 %v5735, %v5671
      %v5768 = vmul.f32 %v5736, %v5672
      %v5769 = vmul.f32 %v5737, %v5673
      %v5770 = vmul.f32 %v5738, %v5674
      %v5771 = vmul.f32 %v5739, %v5675
      %v5772 = vmul.f32 %v5740, %v5676
      %v5773 = vmul.f32 %v5741, %v5677
      %v5774 = vmul.f32 %v5742, %v5678
      %v5775 = vmul.f32 %v5743, %v5679
      %v5776 = vmul.f32 %v5744, %v5680
      %v5777 = vmul.f32 %v5745, %v5681
      %v5778 = vmul.f32 %v5746, %v5682
      %v5779 = vmul.f32 %v5747, %v5683
      %v5780 = vmul.f32 %v5748, %v5684
      %v5781 = vmul.f32 %v5749, %v5685
      %v5782 = vmul.f32 %v5750, %v5686
      %v5783 = vmul.f32 %v5751, %v5687
      %v5784 = vmul.f32 %v5752, %v5688
      %v5785 = vmul.f32 %v5753, %v5689
      %v5786 = vmul.f32 %v5754, %v5690
      %v5787 = vmul.f32 %v5755, %v5691
      %v5788 = vmul.f32 %v5756, %v5692
      %v5789 = vmul.f32 %v5757, %v5693
      %v5790 = vmul.f32 %v5758, %v5694
      %v5791 = vmul.f32 %v5759, %v5695
      %v5792 = vmul.f32 %v5760, %v5696
      %v5793 = vmul.f32 %v5761, %v5697
      %v5794 = vmul.f32 %v5762, %v5698
      %v5795 = vmul.f32 %v5763, %v5699
      %v5796 = vmul.f32 %v5764, %v5700
      %v5797 = vmul.f32 %v5765, %v5701
      %v5798 = vadd.f32 %v5766, 1.4214138
      %v5799 = vadd.f32 %v5767, 1.4214138
      %v5800 = vadd.f32 %v5768, 1.4214138
      %v5801 = vadd.f32 %v5769, 1.4214138
      %v5802 = vadd.f32 %v5770, 1.4214138
      %v5803 = vadd.f32 %v5771, 1.4214138
      %v5804 = vadd.f32 %v5772, 1.4214138
      %v5805 = vadd.f32 %v5773, 1.4214138
      %v5806 = vadd.f32 %v5774, 1.4214138
      %v5807 = vadd.f32 %v5775, 1.4214138
      %v5808 = vadd.f32 %v5776, 1.4214138
      %v5809 = vadd.f32 %v5777, 1.4214138
      %v5810 = vadd.f32 %v5778, 1.4214138
      %v5811 = vadd.f32 %v5779, 1.4214138
      %v5812 = vadd.f32 %v5780, 1.4214138
      %v5813 = vadd.f32 %v5781, 1.4214138
      %v5814 = vadd.f32 %v5782, 1.4214138
      %v5815 = vadd.f32 %v5783, 1.4214138
      %v5816 = vadd.f32 %v5784, 1.4214138
      %v5817 = vadd.f32 %v5785, 1.4214138
      %v5818 = vadd.f32 %v5786, 1.4214138
      %v5819 = vadd.f32 %v5787, 1.4214138
      %v5820 = vadd.f32 %v5788, 1.4214138
      %v5821 = vadd.f32 %v5789, 1.4214138
      %v5822 = vadd.f32 %v5790, 1.4214138
      %v5823 = vadd.f32 %v5791, 1.4214138
      %v5824 = vadd.f32 %v5792, 1.4214138
      %v5825 = vadd.f32 %v5793, 1.4214138
      %v5826 = vadd.f32 %v5794, 1.4214138
      %v5827 = vadd.f32 %v5795, 1.4214138
      %v5828 = vadd.f32 %v5796, 1.4214138
      %v5829 = vadd.f32 %v5797, 1.4214138
      %v5830 = vmul.f32 %v5798, %v5670
      %v5831 = vmul.f32 %v5799, %v5671
      %v5832 = vmul.f32 %v5800, %v5672
      %v5833 = vmul.f32 %v5801, %v5673
      %v5834 = vmul.f32 %v5802, %v5674
      %v5835 = vmul.f32 %v5803, %v5675
      %v5836 = vmul.f32 %v5804, %v5676
      %v5837 = vmul.f32 %v5805, %v5677
      %v5838 = vmul.f32 %v5806, %v5678
      %v5839 = vmul.f32 %v5807, %v5679
      %v5840 = vmul.f32 %v5808, %v5680
      %v5841 = vmul.f32 %v5809, %v5681
      %v5842 = vmul.f32 %v5810, %v5682
      %v5843 = vmul.f32 %v5811, %v5683
      %v5844 = vmul.f32 %v5812, %v5684
      %v5845 = vmul.f32 %v5813, %v5685
      %v5846 = vmul.f32 %v5814, %v5686
      %v5847 = vmul.f32 %v5815, %v5687
      %v5848 = vmul.f32 %v5816, %v5688
      %v5849 = vmul.f32 %v5817, %v5689
      %v5850 = vmul.f32 %v5818, %v5690
      %v5851 = vmul.f32 %v5819, %v5691
      %v5852 = vmul.f32 %v5820, %v5692
      %v5853 = vmul.f32 %v5821, %v5693
      %v5854 = vmul.f32 %v5822, %v5694
      %v5855 = vmul.f32 %v5823, %v5695
      %v5856 = vmul.f32 %v5824, %v5696
      %v5857 = vmul.f32 %v5825, %v5697
      %v5858 = vmul.f32 %v5826, %v5698
      %v5859 = vmul.f32 %v5827, %v5699
      %v5860 = vmul.f32 %v5828, %v5700
      %v5861 = vmul.f32 %v5829, %v5701
      %v5862 = vsub.f32 %v5830, 0.28449672
      %v5863 = vsub.f32 %v5831, 0.28449672
      %v5864 = vsub.f32 %v5832, 0.28449672
      %v5865 = vsub.f32 %v5833, 0.28449672
      %v5866 = vsub.f32 %v5834, 0.28449672
      %v5867 = vsub.f32 %v5835, 0.28449672
      %v5868 = vsub.f32 %v5836, 0.28449672
      %v5869 = vsub.f32 %v5837, 0.28449672
      %v5870 = vsub.f32 %v5838, 0.28449672
      %v5871 = vsub.f32 %v5839, 0.28449672
      %v5872 = vsub.f32 %v5840, 0.28449672
      %v5873 = vsub.f32 %v5841, 0.28449672
      %v5874 = vsub.f32 %v5842, 0.28449672
      %v5875 = vsub.f32 %v5843, 0.28449672
      %v5876 = vsub.f32 %v5844, 0.28449672
      %v5877 = vsub.f32 %v5845, 0.28449672
      %v5878 = vsub.f32 %v5846, 0.28449672
      %v5879 = vsub.f32 %v5847, 0.28449672
      %v5880 = vsub.f32 %v5848, 0.28449672
      %v5881 = vsub.f32 %v5849, 0.28449672
      %v5882 = vsub.f32 %v5850, 0.28449672
      %v5883 = vsub.f32 %v5851, 0.28449672
      %v5884 = vsub.f32 %v5852, 0.28449672
      %v5885 = vsub.f32 %v5853, 0.28449672
      %v5886 = vsub.f32 %v5854, 0.28449672
      %v5887 = vsub.f32 %v5855, 0.28449672
      %v5888 = vsub.f32 %v5856, 0.28449672
      %v5889 = vsub.f32 %v5857, 0.28449672
      %v5890 = vsub.f32 %v5858, 0.28449672
      %v5891 = vsub.f32 %v5859, 0.28449672
      %v5892 = vsub.f32 %v5860, 0.28449672
      %v5893 = vsub.f32 %v5861, 0.28449672
      %v5894 = vmul.f32 %v5862, %v5670
      %v5895 = vmul.f32 %v5863, %v5671
      %v5896 = vmul.f32 %v5864, %v5672
      %v5897 = vmul.f32 %v5865, %v5673
      %v5898 = vmul.f32 %v5866, %v5674
      %v5899 = vmul.f32 %v5867, %v5675
      %v5900 = vmul.f32 %v5868, %v5676
      %v5901 = vmul.f32 %v5869, %v5677
      %v5902 = vmul.f32 %v5870, %v5678
      %v5903 = vmul.f32 %v5871, %v5679
      %v5904 = vmul.f32 %v5872, %v5680
      %v5905 = vmul.f32 %v5873, %v5681
      %v5906 = vmul.f32 %v5874, %v5682
      %v5907 = vmul.f32 %v5875, %v5683
      %v5908 = vmul.f32 %v5876, %v5684
      %v5909 = vmul.f32 %v5877, %v5685
      %v5910 = vmul.f32 %v5878, %v5686
      %v5911 = vmul.f32 %v5879, %v5687
      %v5912 = vmul.f32 %v5880, %v5688
      %v5913 = vmul.f32 %v5881, %v5689
      %v5914 = vmul.f32 %v5882, %v5690
      %v5915 = vmul.f32 %v5883, %v5691
      %v5916 = vmul.f32 %v5884, %v5692
      %v5917 = vmul.f32 %v5885, %v5693
      %v5918 = vmul.f32 %v5886, %v5694
      %v5919 = vmul.f32 %v5887, %v5695
      %v5920 = vmul.f32 %v5888, %v5696
      %v5921 = vmul.f32 %v5889, %v5697
      %v5922 = vmul.f32 %v5890, %v5698
      %v5923 = vmul.f32 %v5891, %v5699
      %v5924 = vmul.f32 %v5892, %v5700
      %v5925 = vmul.f32 %v5893, %v5701
      %v5926 = vadd.f32 %v5894, 0.2548296
      %v5927 = vadd.f32 %v5895, 0.2548296
      %v5928 = vadd.f32 %v5896, 0.2548296
      %v5929 = vadd.f32 %v5897, 0.2548296
      %v5930 = vadd.f32 %v5898, 0.2548296
      %v5931 = vadd.f32 %v5899, 0.2548296
      %v5932 = vadd.f32 %v5900, 0.2548296
      %v5933 = vadd.f32 %v5901, 0.2548296
      %v5934 = vadd.f32 %v5902, 0.2548296
      %v5935 = vadd.f32 %v5903, 0.2548296
      %v5936 = vadd.f32 %v5904, 0.2548296
      %v5937 = vadd.f32 %v5905, 0.2548296
      %v5938 = vadd.f32 %v5906, 0.2548296
      %v5939 = vadd.f32 %v5907, 0.2548296
      %v5940 = vadd.f32 %v5908, 0.2548296
      %v5941 = vadd.f32 %v5909, 0.2548296
      %v5942 = vadd.f32 %v5910, 0.2548296
      %v5943 = vadd.f32 %v5911, 0.2548296
      %v5944 = vadd.f32 %v5912, 0.2548296
      %v5945 = vadd.f32 %v5913, 0.2548296
      %v5946 = vadd.f32 %v5914, 0.2548296
      %v5947 = vadd.f32 %v5915, 0.2548296
      %v5948 = vadd.f32 %v5916, 0.2548296
      %v5949 = vadd.f32 %v5917, 0.2548296
      %v5950 = vadd.f32 %v5918, 0.2548296
      %v5951 = vadd.f32 %v5919, 0.2548296
      %v5952 = vadd.f32 %v5920, 0.2548296
      %v5953 = vadd.f32 %v5921, 0.2548296
      %v5954 = vadd.f32 %v5922, 0.2548296
      %v5955 = vadd.f32 %v5923, 0.2548296
      %v5956 = vadd.f32 %v5924, 0.2548296
      %v5957 = vadd.f32 %v5925, 0.2548296
      %v5958 = vmul.f32 %v5926, %v5670
      %v5959 = vmul.f32 %v5927, %v5671
      %v5960 = vmul.f32 %v5928, %v5672
      %v5961 = vmul.f32 %v5929, %v5673
      %v5962 = vmul.f32 %v5930, %v5674
      %v5963 = vmul.f32 %v5931, %v5675
      %v5964 = vmul.f32 %v5932, %v5676
      %v5965 = vmul.f32 %v5933, %v5677
      %v5966 = vmul.f32 %v5934, %v5678
      %v5967 = vmul.f32 %v5935, %v5679
      %v5968 = vmul.f32 %v5936, %v5680
      %v5969 = vmul.f32 %v5937, %v5681
      %v5970 = vmul.f32 %v5938, %v5682
      %v5971 = vmul.f32 %v5939, %v5683
      %v5972 = vmul.f32 %v5940, %v5684
      %v5973 = vmul.f32 %v5941, %v5685
      %v5974 = vmul.f32 %v5942, %v5686
      %v5975 = vmul.f32 %v5943, %v5687
      %v5976 = vmul.f32 %v5944, %v5688
      %v5977 = vmul.f32 %v5945, %v5689
      %v5978 = vmul.f32 %v5946, %v5690
      %v5979 = vmul.f32 %v5947, %v5691
      %v5980 = vmul.f32 %v5948, %v5692
      %v5981 = vmul.f32 %v5949, %v5693
      %v5982 = vmul.f32 %v5950, %v5694
      %v5983 = vmul.f32 %v5951, %v5695
      %v5984 = vmul.f32 %v5952, %v5696
      %v5985 = vmul.f32 %v5953, %v5697
      %v5986 = vmul.f32 %v5954, %v5698
      %v5987 = vmul.f32 %v5955, %v5699
      %v5988 = vmul.f32 %v5956, %v5700
      %v5989 = vmul.f32 %v5957, %v5701
      %v5990 = vsub.f32 0.0, %v5574
      %v5991 = vsub.f32 0.0, %v5575
      %v5992 = vsub.f32 0.0, %v5576
      %v5993 = vsub.f32 0.0, %v5577
      %v5994 = vsub.f32 0.0, %v5578
      %v5995 = vsub.f32 0.0, %v5579
      %v5996 = vsub.f32 0.0, %v5580
      %v5997 = vsub.f32 0.0, %v5581
      %v5998 = vsub.f32 0.0, %v5582
      %v5999 = vsub.f32 0.0, %v5583
      %v6000 = vsub.f32 0.0, %v5584
      %v6001 = vsub.f32 0.0, %v5585
      %v6002 = vsub.f32 0.0, %v5586
      %v6003 = vsub.f32 0.0, %v5587
      %v6004 = vsub.f32 0.0, %v5588
      %v6005 = vsub.f32 0.0, %v5589
      %v6006 = vsub.f32 0.0, %v5590
      %v6007 = vsub.f32 0.0, %v5591
      %v6008 = vsub.f32 0.0, %v5592
      %v6009 = vsub.f32 0.0, %v5593
      %v6010 = vsub.f32 0.0, %v5594
      %v6011 = vsub.f32 0.0, %v5595
      %v6012 = vsub.f32 0.0, %v5596
      %v6013 = vsub.f32 0.0, %v5597
      %v6014 = vsub.f32 0.0, %v5598
      %v6015 = vsub.f32 0.0, %v5599
      %v6016 = vsub.f32 0.0, %v5600
      %v6017 = vsub.f32 0.0, %v5601
      %v6018 = vsub.f32 0.0, %v5602
      %v6019 = vsub.f32 0.0, %v5603
      %v6020 = vsub.f32 0.0, %v5604
      %v6021 = vsub.f32 0.0, %v5605
      %v6022 = vmul.f32 %v5990, %v5574
      %v6023 = vmul.f32 %v5991, %v5575
      %v6024 = vmul.f32 %v5992, %v5576
      %v6025 = vmul.f32 %v5993, %v5577
      %v6026 = vmul.f32 %v5994, %v5578
      %v6027 = vmul.f32 %v5995, %v5579
      %v6028 = vmul.f32 %v5996, %v5580
      %v6029 = vmul.f32 %v5997, %v5581
      %v6030 = vmul.f32 %v5998, %v5582
      %v6031 = vmul.f32 %v5999, %v5583
      %v6032 = vmul.f32 %v6000, %v5584
      %v6033 = vmul.f32 %v6001, %v5585
      %v6034 = vmul.f32 %v6002, %v5586
      %v6035 = vmul.f32 %v6003, %v5587
      %v6036 = vmul.f32 %v6004, %v5588
      %v6037 = vmul.f32 %v6005, %v5589
      %v6038 = vmul.f32 %v6006, %v5590
      %v6039 = vmul.f32 %v6007, %v5591
      %v6040 = vmul.f32 %v6008, %v5592
      %v6041 = vmul.f32 %v6009, %v5593
      %v6042 = vmul.f32 %v6010, %v5594
      %v6043 = vmul.f32 %v6011, %v5595
      %v6044 = vmul.f32 %v6012, %v5596
      %v6045 = vmul.f32 %v6013, %v5597
      %v6046 = vmul.f32 %v6014, %v5598
      %v6047 = vmul.f32 %v6015, %v5599
      %v6048 = vmul.f32 %v6016, %v5600
      %v6049 = vmul.f32 %v6017, %v5601
      %v6050 = vmul.f32 %v6018, %v5602
      %v6051 = vmul.f32 %v6019, %v5603
      %v6052 = vmul.f32 %v6020, %v5604
      %v6053 = vmul.f32 %v6021, %v5605
      %v6054 = vmul.f32 %v6022, 1.442695
      %v6055 = vpow.pop %v6054
      %v6056 = vmul.f32 %v6023, 1.442695
      %v6057 = vpow.pop %v6056
      %v6058 = vmul.f32 %v6024, 1.442695
      %v6059 = vpow.pop %v6058
      %v6060 = vmul.f32 %v6025, 1.442695
      %v6061 = vpow.pop %v6060
      %v6062 = vmul.f32 %v6026, 1.442695
      %v6063 = vpow.pop %v6062
      %v6064 = vmul.f32 %v6027, 1.442695
      %v6065 = vpow.pop %v6064
      %v6066 = vmul.f32 %v6028, 1.442695
      %v6067 = vpow.pop %v6066
      %v6068 = vmul.f32 %v6029, 1.442695
      %v6069 = vpow.pop %v6068
      %v6070 = vmul.f32 %v6030, 1.442695
      %v6071 = vpow.pop %v6070
      %v6072 = vmul.f32 %v6031, 1.442695
      %v6073 = vpow.pop %v6072
      %v6074 = vmul.f32 %v6032, 1.442695
      %v6075 = vpow.pop %v6074
      %v6076 = vmul.f32 %v6033, 1.442695
      %v6077 = vpow.pop %v6076
      %v6078 = vmul.f32 %v6034, 1.442695
      %v6079 = vpow.pop %v6078
      %v6080 = vmul.f32 %v6035, 1.442695
      %v6081 = vpow.pop %v6080
      %v6082 = vmul.f32 %v6036, 1.442695
      %v6083 = vpow.pop %v6082
      %v6084 = vmul.f32 %v6037, 1.442695
      %v6085 = vpow.pop %v6084
      %v6086 = vmul.f32 %v6038, 1.442695
      %v6087 = vpow.pop %v6086
      %v6088 = vmul.f32 %v6039, 1.442695
      %v6089 = vpow.pop %v6088
      %v6090 = vmul.f32 %v6040, 1.442695
      %v6091 = vpow.pop %v6090
      %v6092 = vmul.f32 %v6041, 1.442695
      %v6093 = vpow.pop %v6092
      %v6094 = vmul.f32 %v6042, 1.442695
      %v6095 = vpow.pop %v6094
      %v6096 = vmul.f32 %v6043, 1.442695
      %v6097 = vpow.pop %v6096
      %v6098 = vmul.f32 %v6044, 1.442695
      %v6099 = vpow.pop %v6098
      %v6100 = vmul.f32 %v6045, 1.442695
      %v6101 = vpow.pop %v6100
      %v6102 = vmul.f32 %v6046, 1.442695
      %v6103 = vpow.pop %v6102
      %v6104 = vmul.f32 %v6047, 1.442695
      %v6105 = vpow.pop %v6104
      %v6106 = vmul.f32 %v6048, 1.442695
      %v6107 = vpow.pop %v6106
      %v6108 = vmul.f32 %v6049, 1.442695
      %v6109 = vpow.pop %v6108
      %v6110 = vmul.f32 %v6050, 1.442695
      %v6111 = vpow.pop %v6110
      %v6112 = vmul.f32 %v6051, 1.442695
      %v6113 = vpow.pop %v6112
      %v6114 = vmul.f32 %v6052, 1.442695
      %v6115 = vpow.pop %v6114
      %v6116 = vmul.f32 %v6053, 1.442695
      %v6117 = vpow.pop %v6116
      %v6118 = vmul.f32 %v5958, %v6055
      %v6119 = vmul.f32 %v5959, %v6057
      %v6120 = vmul.f32 %v5960, %v6059
      %v6121 = vmul.f32 %v5961, %v6061
      %v6122 = vmul.f32 %v5962, %v6063
      %v6123 = vmul.f32 %v5963, %v6065
      %v6124 = vmul.f32 %v5964, %v6067
      %v6125 = vmul.f32 %v5965, %v6069
      %v6126 = vmul.f32 %v5966, %v6071
      %v6127 = vmul.f32 %v5967, %v6073
      %v6128 = vmul.f32 %v5968, %v6075
      %v6129 = vmul.f32 %v5969, %v6077
      %v6130 = vmul.f32 %v5970, %v6079
      %v6131 = vmul.f32 %v5971, %v6081
      %v6132 = vmul.f32 %v5972, %v6083
      %v6133 = vmul.f32 %v5973, %v6085
      %v6134 = vmul.f32 %v5974, %v6087
      %v6135 = vmul.f32 %v5975, %v6089
      %v6136 = vmul.f32 %v5976, %v6091
      %v6137 = vmul.f32 %v5977, %v6093
      %v6138 = vmul.f32 %v5978, %v6095
      %v6139 = vmul.f32 %v5979, %v6097
      %v6140 = vmul.f32 %v5980, %v6099
      %v6141 = vmul.f32 %v5981, %v6101
      %v6142 = vmul.f32 %v5982, %v6103
      %v6143 = vmul.f32 %v5983, %v6105
      %v6144 = vmul.f32 %v5984, %v6107
      %v6145 = vmul.f32 %v5985, %v6109
      %v6146 = vmul.f32 %v5986, %v6111
      %v6147 = vmul.f32 %v5987, %v6113
      %v6148 = vmul.f32 %v5988, %v6115
      %v6149 = vmul.f32 %v5989, %v6117
      %v6150 = vsub.f32 1.0, %v6118
      %v6151 = vsub.f32 1.0, %v6119
      %v6152 = vsub.f32 1.0, %v6120
      %v6153 = vsub.f32 1.0, %v6121
      %v6154 = vsub.f32 1.0, %v6122
      %v6155 = vsub.f32 1.0, %v6123
      %v6156 = vsub.f32 1.0, %v6124
      %v6157 = vsub.f32 1.0, %v6125
      %v6158 = vsub.f32 1.0, %v6126
      %v6159 = vsub.f32 1.0, %v6127
      %v6160 = vsub.f32 1.0, %v6128
      %v6161 = vsub.f32 1.0, %v6129
      %v6162 = vsub.f32 1.0, %v6130
      %v6163 = vsub.f32 1.0, %v6131
      %v6164 = vsub.f32 1.0, %v6132
      %v6165 = vsub.f32 1.0, %v6133
      %v6166 = vsub.f32 1.0, %v6134
      %v6167 = vsub.f32 1.0, %v6135
      %v6168 = vsub.f32 1.0, %v6136
      %v6169 = vsub.f32 1.0, %v6137
      %v6170 = vsub.f32 1.0, %v6138
      %v6171 = vsub.f32 1.0, %v6139
      %v6172 = vsub.f32 1.0, %v6140
      %v6173 = vsub.f32 1.0, %v6141
      %v6174 = vsub.f32 1.0, %v6142
      %v6175 = vsub.f32 1.0, %v6143
      %v6176 = vsub.f32 1.0, %v6144
      %v6177 = vsub.f32 1.0, %v6145
      %v6178 = vsub.f32 1.0, %v6146
      %v6179 = vsub.f32 1.0, %v6147
      %v6180 = vsub.f32 1.0, %v6148
      %v6181 = vsub.f32 1.0, %v6149
      %vm6182 = vcmp.ge.f32.partialorder %v5542, 0.0
      %vm6183 = vcmp.ge.f32.partialorder %v5543, 0.0
      %vm6184 = vcmp.ge.f32.partialorder %v5544, 0.0
      %vm6185 = vcmp.ge.f32.partialorder %v5545, 0.0
      %vm6186 = vcmp.ge.f32.partialorder %v5546, 0.0
      %vm6187 = vcmp.ge.f32.partialorder %v5547, 0.0
      %vm6188 = vcmp.ge.f32.partialorder %v5548, 0.0
      %vm6189 = vcmp.ge.f32.partialorder %v5549, 0.0
      %vm6190 = vcmp.ge.f32.partialorder %v5550, 0.0
      %vm6191 = vcmp.ge.f32.partialorder %v5551, 0.0
      %vm6192 = vcmp.ge.f32.partialorder %v5552, 0.0
      %vm6193 = vcmp.ge.f32.partialorder %v5553, 0.0
      %vm6194 = vcmp.ge.f32.partialorder %v5554, 0.0
      %vm6195 = vcmp.ge.f32.partialorder %v5555, 0.0
      %vm6196 = vcmp.ge.f32.partialorder %v5556, 0.0
      %vm6197 = vcmp.ge.f32.partialorder %v5557, 0.0
      %vm6198 = vcmp.ge.f32.partialorder %v5558, 0.0
      %vm6199 = vcmp.ge.f32.partialorder %v5559, 0.0
      %vm6200 = vcmp.ge.f32.partialorder %v5560, 0.0
      %vm6201 = vcmp.ge.f32.partialorder %v5561, 0.0
      %vm6202 = vcmp.ge.f32.partialorder %v5562, 0.0
      %vm6203 = vcmp.ge.f32.partialorder %v5563, 0.0
      %vm6204 = vcmp.ge.f32.partialorder %v5564, 0.0
      %vm6205 = vcmp.ge.f32.partialorder %v5565, 0.0
      %vm6206 = vcmp.ge.f32.partialorder %v5566, 0.0
      %vm6207 = vcmp.ge.f32.partialorder %v5567, 0.0
      %vm6208 = vcmp.ge.f32.partialorder %v5568, 0.0
      %vm6209 = vcmp.ge.f32.partialorder %v5569, 0.0
      %vm6210 = vcmp.ge.f32.partialorder %v5570, 0.0
      %vm6211 = vcmp.ge.f32.partialorder %v5571, 0.0
      %vm6212 = vcmp.ge.f32.partialorder %v5572, 0.0
      %vm6213 = vcmp.ge.f32.partialorder %v5573, 0.0
      %v6214 = vsub.f32 0.0, %v6150
      %v6215 = vsub.f32 0.0, %v6151
      %v6216 = vsub.f32 0.0, %v6152
      %v6217 = vsub.f32 0.0, %v6153
      %v6218 = vsub.f32 0.0, %v6154
      %v6219 = vsub.f32 0.0, %v6155
      %v6220 = vsub.f32 0.0, %v6156
      %v6221 = vsub.f32 0.0, %v6157
      %v6222 = vsub.f32 0.0, %v6158
      %v6223 = vsub.f32 0.0, %v6159
      %v6224 = vsub.f32 0.0, %v6160
      %v6225 = vsub.f32 0.0, %v6161
      %v6226 = vsub.f32 0.0, %v6162
      %v6227 = vsub.f32 0.0, %v6163
      %v6228 = vsub.f32 0.0, %v6164
      %v6229 = vsub.f32 0.0, %v6165
      %v6230 = vsub.f32 0.0, %v6166
      %v6231 = vsub.f32 0.0, %v6167
      %v6232 = vsub.f32 0.0, %v6168
      %v6233 = vsub.f32 0.0, %v6169
      %v6234 = vsub.f32 0.0, %v6170
      %v6235 = vsub.f32 0.0, %v6171
      %v6236 = vsub.f32 0.0, %v6172
      %v6237 = vsub.f32 0.0, %v6173
      %v6238 = vsub.f32 0.0, %v6174
      %v6239 = vsub.f32 0.0, %v6175
      %v6240 = vsub.f32 0.0, %v6176
      %v6241 = vsub.f32 0.0, %v6177
      %v6242 = vsub.f32 0.0, %v6178
      %v6243 = vsub.f32 0.0, %v6179
      %v6244 = vsub.f32 0.0, %v6180
      %v6245 = vsub.f32 0.0, %v6181
      %v6246 = vsel %vm6182, %v6150, %v6214
      %v6247 = vsel %vm6183, %v6151, %v6215
      %v6248 = vsel %vm6184, %v6152, %v6216
      %v6249 = vsel %vm6185, %v6153, %v6217
      %v6250 = vsel %vm6186, %v6154, %v6218
      %v6251 = vsel %vm6187, %v6155, %v6219
      %v6252 = vsel %vm6188, %v6156, %v6220
      %v6253 = vsel %vm6189, %v6157, %v6221
      %v6254 = vsel %vm6190, %v6158, %v6222
      %v6255 = vsel %vm6191, %v6159, %v6223
      %v6256 = vsel %vm6192, %v6160, %v6224
      %v6257 = vsel %vm6193, %v6161, %v6225
      %v6258 = vsel %vm6194, %v6162, %v6226
      %v6259 = vsel %vm6195, %v6163, %v6227
      %v6260 = vsel %vm6196, %v6164, %v6228
      %v6261 = vsel %vm6197, %v6165, %v6229
      %v6262 = vsel %vm6198, %v6166, %v6230
      %v6263 = vsel %vm6199, %v6167, %v6231
      %v6264 = vsel %vm6200, %v6168, %v6232
      %v6265 = vsel %vm6201, %v6169, %v6233
      %v6266 = vsel %vm6202, %v6170, %v6234
      %v6267 = vsel %vm6203, %v6171, %v6235
      %v6268 = vsel %vm6204, %v6172, %v6236
      %v6269 = vsel %vm6205, %v6173, %v6237
      %v6270 = vsel %vm6206, %v6174, %v6238
      %v6271 = vsel %vm6207, %v6175, %v6239
      %v6272 = vsel %vm6208, %v6176, %v6240
      %v6273 = vsel %vm6209, %v6177, %v6241
      %v6274 = vsel %vm6210, %v6178, %v6242
      %v6275 = vsel %vm6211, %v6179, %v6243
      %v6276 = vsel %vm6212, %v6180, %v6244
      %v6277 = vsel %vm6213, %v6181, %v6245
      %v6278 = vmul.f32 %v5510, 0.5
      %v6279 = vmul.f32 %v5511, 0.5
      %v6280 = vmul.f32 %v5512, 0.5
      %v6281 = vmul.f32 %v5513, 0.5
      %v6282 = vmul.f32 %v5514, 0.5
      %v6283 = vmul.f32 %v5515, 0.5
      %v6284 = vmul.f32 %v5516, 0.5
      %v6285 = vmul.f32 %v5517, 0.5
      %v6286 = vmul.f32 %v5518, 0.5
      %v6287 = vmul.f32 %v5519, 0.5
      %v6288 = vmul.f32 %v5520, 0.5
      %v6289 = vmul.f32 %v5521, 0.5
      %v6290 = vmul.f32 %v5522, 0.5
      %v6291 = vmul.f32 %v5523, 0.5
      %v6292 = vmul.f32 %v5524, 0.5
      %v6293 = vmul.f32 %v5525, 0.5
      %v6294 = vmul.f32 %v5526, 0.5
      %v6295 = vmul.f32 %v5527, 0.5
      %v6296 = vmul.f32 %v5528, 0.5
      %v6297 = vmul.f32 %v5529, 0.5
      %v6298 = vmul.f32 %v5530, 0.5
      %v6299 = vmul.f32 %v5531, 0.5
      %v6300 = vmul.f32 %v5532, 0.5
      %v6301 = vmul.f32 %v5533, 0.5
      %v6302 = vmul.f32 %v5534, 0.5
      %v6303 = vmul.f32 %v5535, 0.5
      %v6304 = vmul.f32 %v5536, 0.5
      %v6305 = vmul.f32 %v5537, 0.5
      %v6306 = vmul.f32 %v5538, 0.5
      %v6307 = vmul.f32 %v5539, 0.5
      %v6308 = vmul.f32 %v5540, 0.5
      %v6309 = vmul.f32 %v5541, 0.5
      %v6310 = vadd.f32 %v6246, 1.0
      %v6311 = vadd.f32 %v6247, 1.0
      %v6312 = vadd.f32 %v6248, 1.0
      %v6313 = vadd.f32 %v6249, 1.0
      %v6314 = vadd.f32 %v6250, 1.0
      %v6315 = vadd.f32 %v6251, 1.0
      %v6316 = vadd.f32 %v6252, 1.0
      %v6317 = vadd.f32 %v6253, 1.0
      %v6318 = vadd.f32 %v6254, 1.0
      %v6319 = vadd.f32 %v6255, 1.0
      %v6320 = vadd.f32 %v6256, 1.0
      %v6321 = vadd.f32 %v6257, 1.0
      %v6322 = vadd.f32 %v6258, 1.0
      %v6323 = vadd.f32 %v6259, 1.0
      %v6324 = vadd.f32 %v6260, 1.0
      %v6325 = vadd.f32 %v6261, 1.0
      %v6326 = vadd.f32 %v6262, 1.0
      %v6327 = vadd.f32 %v6263, 1.0
      %v6328 = vadd.f32 %v6264, 1.0
      %v6329 = vadd.f32 %v6265, 1.0
      %v6330 = vadd.f32 %v6266, 1.0
      %v6331 = vadd.f32 %v6267, 1.0
      %v6332 = vadd.f32 %v6268, 1.0
      %v6333 = vadd.f32 %v6269, 1.0
      %v6334 = vadd.f32 %v6270, 1.0
      %v6335 = vadd.f32 %v6271, 1.0
      %v6336 = vadd.f32 %v6272, 1.0
      %v6337 = vadd.f32 %v6273, 1.0
      %v6338 = vadd.f32 %v6274, 1.0
      %v6339 = vadd.f32 %v6275, 1.0
      %v6340 = vadd.f32 %v6276, 1.0
      %v6341 = vadd.f32 %v6277, 1.0
      %v6342 = vmul.f32 %v6278, %v6310
      %v6343 = vmul.f32 %v6279, %v6311
      %v6344 = vmul.f32 %v6280, %v6312
      %v6345 = vmul.f32 %v6281, %v6313
      %v6346 = vmul.f32 %v6282, %v6314
      %v6347 = vmul.f32 %v6283, %v6315
      %v6348 = vmul.f32 %v6284, %v6316
      %v6349 = vmul.f32 %v6285, %v6317
      %v6350 = vmul.f32 %v6286, %v6318
      %v6351 = vmul.f32 %v6287, %v6319
      %v6352 = vmul.f32 %v6288, %v6320
      %v6353 = vmul.f32 %v6289, %v6321
      %v6354 = vmul.f32 %v6290, %v6322
      %v6355 = vmul.f32 %v6291, %v6323
      %v6356 = vmul.f32 %v6292, %v6324
      %v6357 = vmul.f32 %v6293, %v6325
      %v6358 = vmul.f32 %v6294, %v6326
      %v6359 = vmul.f32 %v6295, %v6327
      %v6360 = vmul.f32 %v6296, %v6328
      %v6361 = vmul.f32 %v6297, %v6329
      %v6362 = vmul.f32 %v6298, %v6330
      %v6363 = vmul.f32 %v6299, %v6331
      %v6364 = vmul.f32 %v6300, %v6332
      %v6365 = vmul.f32 %v6301, %v6333
      %v6366 = vmul.f32 %v6302, %v6334
      %v6367 = vmul.f32 %v6303, %v6335
      %v6368 = vmul.f32 %v6304, %v6336
      %v6369 = vmul.f32 %v6305, %v6337
      %v6370 = vmul.f32 %v6306, %v6338
      %v6371 = vmul.f32 %v6307, %v6339
      %v6372 = vmul.f32 %v6308, %v6340
      %v6373 = vmul.f32 %v6309, %v6341
      %6374 = vst.msk [vmem:[#allocation3] sm:$0xf] %vm423, 0
      %6375 = vst.msk [vmem:[#allocation3 + $0x4] sm:$0xf] %vm423, 0
      %6376 = vst.msk [vmem:[#allocation3 + $0x8] sm:$0x1] %vm426, 0
      %s6377 = scalar_lea.vmem [#allocation3], 204
      %6378 = vst.msk [vmem:[%s6377] sm:$0xf] %vm423, 0
      %6379 = vst.msk [vmem:[%s6377 + $0x4] sm:$0xf] %vm423, 0
      %6380 = vst.msk [vmem:[%s6377 + $0x8] sm:$0x1] %vm426, 0
      %v6381 = vld [vmem:[#allocation3] sm:$0x1]
      %v6382 = vsel %vm434, 0, %v6381
      %6383 = vst [vmem:[#allocation3] sm:$0x1] %v6382
      %v6384 = vld [vmem:[#allocation3 + $0xc] sm:$0x1]
      %v6385 = vsel %vm434, 0, %v6384
      %6386 = vst [vmem:[#allocation3 + $0xc] sm:$0x1] %v6385
      %v6387 = vld [vmem:[#allocation3 + $0x18] sm:$0x1]
      %v6388 = vsel %vm434, 0, %v6387
      %6389 = vst [vmem:[#allocation3 + $0x18] sm:$0x1] %v6388
      %v6390 = vld [vmem:[#allocation3 + $0x24] sm:$0x1]
      %v6391 = vsel %vm434, 0, %v6390
      %6392 = vst [vmem:[#allocation3 + $0x24] sm:$0x1] %v6391
      %v6393 = vld [vmem:[#allocation3 + $0x30] sm:$0x1]
      %v6394 = vsel %vm434, 0, %v6393
      %6395 = vst [vmem:[#allocation3 + $0x30] sm:$0x1] %v6394
      %v6396 = vld [vmem:[#allocation3 + $0x3c] sm:$0x1]
      %v6397 = vsel %vm434, 0, %v6396
      %6398 = vst [vmem:[#allocation3 + $0x3c] sm:$0x1] %v6397
      %v6399 = vld [vmem:[#allocation3 + $0x48] sm:$0x1]
      %v6400 = vsel %vm434, 0, %v6399
      %6401 = vst [vmem:[#allocation3 + $0x48] sm:$0x1] %v6400
      %v6402 = vld [vmem:[#allocation3 + $0x54] sm:$0x1]
      %v6403 = vsel %vm434, 0, %v6402
      %6404 = vst [vmem:[#allocation3 + $0x54] sm:$0x1] %v6403
      %v6405 = vld [vmem:[#allocation3 + $0x60] sm:$0x1]
      %v6406 = vsel %vm434, 0, %v6405
      %6407 = vst [vmem:[#allocation3 + $0x60] sm:$0x1] %v6406
      %v6408 = vld [vmem:[#allocation3 + $0x6c] sm:$0x1]
      %v6409 = vsel %vm434, 0, %v6408
      %6410 = vst [vmem:[#allocation3 + $0x6c] sm:$0x1] %v6409
      %v6411 = vld [vmem:[#allocation3 + $0x78] sm:$0x1]
      %v6412 = vsel %vm434, 0, %v6411
      %6413 = vst [vmem:[#allocation3 + $0x78] sm:$0x1] %v6412
      %v6414 = vld [vmem:[#allocation3 + $0x84] sm:$0x1]
      %v6415 = vsel %vm434, 0, %v6414
      %6416 = vst [vmem:[#allocation3 + $0x84] sm:$0x1] %v6415
      %v6417 = vld [vmem:[#allocation3 + $0x90] sm:$0x1]
      %v6418 = vsel %vm434, 0, %v6417
      %6419 = vst [vmem:[#allocation3 + $0x90] sm:$0x1] %v6418
      %v6420 = vld [vmem:[#allocation3 + $0x9c] sm:$0x1]
      %v6421 = vsel %vm434, 0, %v6420
      %6422 = vst [vmem:[#allocation3 + $0x9c] sm:$0x1] %v6421
      %v6423 = vld [vmem:[#allocation3 + $0xa8] sm:$0x1]
      %v6424 = vsel %vm434, 0, %v6423
      %6425 = vst [vmem:[#allocation3 + $0xa8] sm:$0x1] %v6424
      %v6426 = vld [vmem:[#allocation3 + $0xb4] sm:$0x1]
      %v6427 = vsel %vm434, 0, %v6426
      %6428 = vst [vmem:[#allocation3 + $0xb4] sm:$0x1] %v6427
      %v6429 = vld [vmem:[#allocation3 + $0xc0] sm:$0x1]
      %v6430 = vsel %vm434, 0, %v6429
      %6431 = vst [vmem:[#allocation3 + $0xc0] sm:$0x1] %v6430
      %v6432 = vld [vmem:[#allocation3 + $0xcc] sm:$0x1]
      %v6433 = vsel %vm434, 0, %v6432
      %6434 = vst [vmem:[#allocation3 + $0xcc] sm:$0x1] %v6433
      %v6435 = vld [vmem:[#allocation3 + $0x8] sm:$0x1]
      %v6436 = vsel %vm490, 0, %v6435
      %6437 = vst [vmem:[#allocation3 + $0x8] sm:$0x1] %v6436
      %v6438 = vld [vmem:[#allocation3 + $0x14] sm:$0x1]
      %v6439 = vsel %vm490, 0, %v6438
      %6440 = vst [vmem:[#allocation3 + $0x14] sm:$0x1] %v6439
      %v6441 = vld [vmem:[#allocation3 + $0x20] sm:$0x1]
      %v6442 = vsel %vm490, 0, %v6441
      %6443 = vst [vmem:[#allocation3 + $0x20] sm:$0x1] %v6442
      %v6444 = vld [vmem:[#allocation3 + $0x2c] sm:$0x1]
      %v6445 = vsel %vm490, 0, %v6444
      %6446 = vst [vmem:[#allocation3 + $0x2c] sm:$0x1] %v6445
      %v6447 = vld [vmem:[#allocation3 + $0x38] sm:$0x1]
      %v6448 = vsel %vm490, 0, %v6447
      %6449 = vst [vmem:[#allocation3 + $0x38] sm:$0x1] %v6448
      %v6450 = vld [vmem:[#allocation3 + $0x44] sm:$0x1]
      %v6451 = vsel %vm490, 0, %v6450
      %6452 = vst [vmem:[#allocation3 + $0x44] sm:$0x1] %v6451
      %v6453 = vld [vmem:[#allocation3 + $0x50] sm:$0x1]
      %v6454 = vsel %vm490, 0, %v6453
      %6455 = vst [vmem:[#allocation3 + $0x50] sm:$0x1] %v6454
      %v6456 = vld [vmem:[#allocation3 + $0x5c] sm:$0x1]
      %v6457 = vsel %vm490, 0, %v6456
      %6458 = vst [vmem:[#allocation3 + $0x5c] sm:$0x1] %v6457
      %v6459 = vld [vmem:[#allocation3 + $0x68] sm:$0x1]
      %v6460 = vsel %vm490, 0, %v6459
      %6461 = vst [vmem:[#allocation3 + $0x68] sm:$0x1] %v6460
      %v6462 = vld [vmem:[#allocation3 + $0x74] sm:$0x1]
      %v6463 = vsel %vm490, 0, %v6462
      %6464 = vst [vmem:[#allocation3 + $0x74] sm:$0x1] %v6463
      %v6465 = vld [vmem:[#allocation3 + $0x80] sm:$0x1]
      %v6466 = vsel %vm490, 0, %v6465
      %6467 = vst [vmem:[#allocation3 + $0x80] sm:$0x1] %v6466
      %v6468 = vld [vmem:[#allocation3 + $0x8c] sm:$0x1]
      %v6469 = vsel %vm490, 0, %v6468
      %6470 = vst [vmem:[#allocation3 + $0x8c] sm:$0x1] %v6469
      %v6471 = vld [vmem:[#allocation3 + $0x98] sm:$0x1]
      %v6472 = vsel %vm490, 0, %v6471
      %6473 = vst [vmem:[#allocation3 + $0x98] sm:$0x1] %v6472
      %v6474 = vld [vmem:[#allocation3 + $0xa4] sm:$0x1]
      %v6475 = vsel %vm490, 0, %v6474
      %6476 = vst [vmem:[#allocation3 + $0xa4] sm:$0x1] %v6475
      %v6477 = vld [vmem:[#allocation3 + $0xb0] sm:$0x1]
      %v6478 = vsel %vm490, 0, %v6477
      %6479 = vst [vmem:[#allocation3 + $0xb0] sm:$0x1] %v6478
      %v6480 = vld [vmem:[#allocation3 + $0xbc] sm:$0x1]
      %v6481 = vsel %vm490, 0, %v6480
      %6482 = vst [vmem:[#allocation3 + $0xbc] sm:$0x1] %v6481
      %v6483 = vld [vmem:[#allocation3 + $0xc8] sm:$0x1]
      %v6484 = vsel %vm490, 0, %v6483
      %6485 = vst [vmem:[#allocation3 + $0xc8] sm:$0x1] %v6484
      %v6486 = vld [vmem:[#allocation3 + $0xd4] sm:$0x1]
      %v6487 = vsel %vm490, 0, %v6486
      %6488 = vst [vmem:[#allocation3 + $0xd4] sm:$0x1] %v6487
      %v6489 = vpack.c.bf16 %v6342, %v6342
      %v6490 = vpack.c.bf16 %v6343, %v6343
      %v6491 = vpack.c.bf16 %v6344, %v6344
      %v6492 = vpack.c.bf16 %v6345, %v6345
      %v6493 = vpack.c.bf16 %v6346, %v6346
      %v6494 = vpack.c.bf16 %v6347, %v6347
      %v6495 = vpack.c.bf16 %v6348, %v6348
      %v6496 = vpack.c.bf16 %v6349, %v6349
      %v6497 = vpack.c.bf16 %v6350, %v6350
      %v6498 = vpack.c.bf16 %v6351, %v6351
      %v6499 = vpack.c.bf16 %v6352, %v6352
      %v6500 = vpack.c.bf16 %v6353, %v6353
      %v6501 = vpack.c.bf16 %v6354, %v6354
      %v6502 = vpack.c.bf16 %v6355, %v6355
      %v6503 = vpack.c.bf16 %v6356, %v6356
      %v6504 = vpack.c.bf16 %v6357, %v6357
      %v6505 = vpack.c.bf16 %v6358, %v6358
      %v6506 = vpack.c.bf16 %v6359, %v6359
      %v6507 = vpack.c.bf16 %v6360, %v6360
      %v6508 = vpack.c.bf16 %v6361, %v6361
      %v6509 = vpack.c.bf16 %v6362, %v6362
      %v6510 = vpack.c.bf16 %v6363, %v6363
      %v6511 = vpack.c.bf16 %v6364, %v6364
      %v6512 = vpack.c.bf16 %v6365, %v6365
      %v6513 = vpack.c.bf16 %v6366, %v6366
      %v6514 = vpack.c.bf16 %v6367, %v6367
      %v6515 = vpack.c.bf16 %v6368, %v6368
      %v6516 = vpack.c.bf16 %v6369, %v6369
      %v6517 = vpack.c.bf16 %v6370, %v6370
      %v6518 = vpack.c.bf16 %v6371, %v6371
      %v6519 = vpack.c.bf16 %v6372, %v6372
      %v6520 = vpack.c.bf16 %v6373, %v6373
      %v6522 = vshrl.u32 %v6489, 16
      %v6524 = vrot.slane %v6522, 7
      %v6525 = vshll.u32 %v6489, 16
      %v6527 = vor.u32 %v6524, %v6525
      %v6528 = vrot.slane %v6524, 4
      %v6530 = vshrl.u32 %v6490, 16
      %v6532 = vrot.slane %v6530, 7
      %v6533 = vshll.u32 %v6490, 16
      %v6535 = vor.u32 %v6532, %v6533
      %v6536 = vsel %vm610, %v6528, %v6535
      %v6537 = vrot.slane %v6532, 4
      %v6539 = vshrl.u32 %v6491, 16
      %v6541 = vrot.slane %v6539, 7
      %v6542 = vshll.u32 %v6491, 16
      %v6544 = vor.u32 %v6541, %v6542
      %v6545 = vrot.slane %v6541, 4
      %v6547 = vshrl.u32 %v6492, 16
      %v6549 = vrot.slane %v6547, 7
      %v6550 = vshll.u32 %v6492, 16
      %v6552 = vor.u32 %v6549, %v6550
      %v6553 = vsel %vm610, %v6545, %v6552
      %v6554 = vrot.slane %v6549, 4
      %v6556 = vshrl.u32 %v6493, 16
      %v6558 = vrot.slane %v6556, 7
      %v6559 = vshll.u32 %v6493, 16
      %v6561 = vor.u32 %v6558, %v6559
      %v6562 = vrot.slane %v6558, 4
      %v6564 = vshrl.u32 %v6494, 16
      %v6566 = vrot.slane %v6564, 7
      %v6567 = vshll.u32 %v6494, 16
      %v6569 = vor.u32 %v6566, %v6567
      %v6570 = vsel %vm610, %v6562, %v6569
      %v6571 = vrot.slane %v6566, 4
      %v6573 = vshrl.u32 %v6495, 16
      %v6575 = vrot.slane %v6573, 7
      %v6576 = vshll.u32 %v6495, 16
      %v6578 = vor.u32 %v6575, %v6576
      %v6579 = vrot.slane %v6575, 4
      %v6581 = vshrl.u32 %v6496, 16
      %v6583 = vrot.slane %v6581, 7
      %v6584 = vshll.u32 %v6496, 16
      %v6586 = vor.u32 %v6583, %v6584
      %v6587 = vsel %vm610, %v6579, %v6586
      %v6588 = vrot.slane %v6583, 4
      %v6590 = vshrl.u32 %v6497, 16
      %v6592 = vrot.slane %v6590, 7
      %v6593 = vshll.u32 %v6497, 16
      %v6595 = vor.u32 %v6592, %v6593
      %v6596 = vrot.slane %v6592, 4
      %v6598 = vshrl.u32 %v6498, 16
      %v6600 = vrot.slane %v6598, 7
      %v6601 = vshll.u32 %v6498, 16
      %v6603 = vor.u32 %v6600, %v6601
      %v6604 = vsel %vm610, %v6596, %v6603
      %v6605 = vrot.slane %v6600, 4
      %v6607 = vshrl.u32 %v6499, 16
      %v6609 = vrot.slane %v6607, 7
      %v6610 = vshll.u32 %v6499, 16
      %v6612 = vor.u32 %v6609, %v6610
      %v6613 = vrot.slane %v6609, 4
      %v6615 = vshrl.u32 %v6500, 16
      %v6617 = vrot.slane %v6615, 7
      %v6618 = vshll.u32 %v6500, 16
      %v6620 = vor.u32 %v6617, %v6618
      %v6621 = vsel %vm610, %v6613, %v6620
      %v6622 = vrot.slane %v6617, 4
      %v6624 = vshrl.u32 %v6501, 16
      %v6626 = vrot.slane %v6624, 7
      %v6627 = vshll.u32 %v6501, 16
      %v6629 = vor.u32 %v6626, %v6627
      %v6630 = vrot.slane %v6626, 4
      %v6632 = vshrl.u32 %v6502, 16
      %v6634 = vrot.slane %v6632, 7
      %v6635 = vshll.u32 %v6502, 16
      %v6637 = vor.u32 %v6634, %v6635
      %v6638 = vsel %vm610, %v6630, %v6637
      %v6639 = vrot.slane %v6634, 4
      %v6641 = vshrl.u32 %v6503, 16
      %v6643 = vrot.slane %v6641, 7
      %v6644 = vshll.u32 %v6503, 16
      %v6646 = vor.u32 %v6643, %v6644
      %v6647 = vrot.slane %v6643, 4
      %v6649 = vshrl.u32 %v6504, 16
      %v6651 = vrot.slane %v6649, 7
      %v6652 = vshll.u32 %v6504, 16
      %v6654 = vor.u32 %v6651, %v6652
      %v6655 = vsel %vm610, %v6647, %v6654
      %v6656 = vrot.slane %v6651, 4
      %v6658 = vshrl.u32 %v6505, 16
      %v6660 = vrot.slane %v6658, 7
      %v6661 = vshll.u32 %v6505, 16
      %v6663 = vor.u32 %v6660, %v6661
      %v6664 = vrot.slane %v6660, 4
      %v6666 = vshrl.u32 %v6506, 16
      %v6668 = vrot.slane %v6666, 7
      %v6669 = vshll.u32 %v6506, 16
      %v6671 = vor.u32 %v6668, %v6669
      %v6672 = vsel %vm610, %v6664, %v6671
      %v6673 = vrot.slane %v6668, 4
      %v6675 = vshrl.u32 %v6507, 16
      %v6677 = vrot.slane %v6675, 7
      %v6678 = vshll.u32 %v6507, 16
      %v6680 = vor.u32 %v6677, %v6678
      %v6681 = vrot.slane %v6677, 4
      %v6683 = vshrl.u32 %v6508, 16
      %v6685 = vrot.slane %v6683, 7
      %v6686 = vshll.u32 %v6508, 16
      %v6688 = vor.u32 %v6685, %v6686
      %v6689 = vsel %vm610, %v6681, %v6688
      %v6690 = vrot.slane %v6685, 4
      %v6692 = vshrl.u32 %v6509, 16
      %v6694 = vrot.slane %v6692, 7
      %v6695 = vshll.u32 %v6509, 16
      %v6697 = vor.u32 %v6694, %v6695
      %v6698 = vrot.slane %v6694, 4
      %v6700 = vshrl.u32 %v6510, 16
      %v6702 = vrot.slane %v6700, 7
      %v6703 = vshll.u32 %v6510, 16
      %v6705 = vor.u32 %v6702, %v6703
      %v6706 = vsel %vm610, %v6698, %v6705
      %v6707 = vrot.slane %v6702, 4
      %v6709 = vshrl.u32 %v6511, 16
      %v6711 = vrot.slane %v6709, 7
      %v6712 = vshll.u32 %v6511, 16
      %v6714 = vor.u32 %v6711, %v6712
      %v6715 = vrot.slane %v6711, 4
      %v6717 = vshrl.u32 %v6512, 16
      %v6719 = vrot.slane %v6717, 7
      %v6720 = vshll.u32 %v6512, 16
      %v6722 = vor.u32 %v6719, %v6720
      %v6723 = vsel %vm610, %v6715, %v6722
      %v6724 = vrot.slane %v6719, 4
      %v6726 = vshrl.u32 %v6513, 16
      %v6728 = vrot.slane %v6726, 7
      %v6729 = vshll.u32 %v6513, 16
      %v6731 = vor.u32 %v6728, %v6729
      %v6732 = vrot.slane %v6728, 4
      %v6734 = vshrl.u32 %v6514, 16
      %v6736 = vrot.slane %v6734, 7
      %v6737 = vshll.u32 %v6514, 16
      %v6739 = vor.u32 %v6736, %v6737
      %v6740 = vsel %vm610, %v6732, %v6739
      %v6741 = vrot.slane %v6736, 4
      %v6743 = vshrl.u32 %v6515, 16
      %v6745 = vrot.slane %v6743, 7
      %v6746 = vshll.u32 %v6515, 16
      %v6748 = vor.u32 %v6745, %v6746
      %v6749 = vrot.slane %v6745, 4
      %v6751 = vshrl.u32 %v6516, 16
      %v6753 = vrot.slane %v6751, 7
      %v6754 = vshll.u32 %v6516, 16
      %v6756 = vor.u32 %v6753, %v6754
      %v6757 = vsel %vm610, %v6749, %v6756
      %v6758 = vrot.slane %v6753, 4
      %v6760 = vshrl.u32 %v6517, 16
      %v6762 = vrot.slane %v6760, 7
      %v6763 = vshll.u32 %v6517, 16
      %v6765 = vor.u32 %v6762, %v6763
      %v6766 = vrot.slane %v6762, 4
      %v6768 = vshrl.u32 %v6518, 16
      %v6770 = vrot.slane %v6768, 7
      %v6771 = vshll.u32 %v6518, 16
      %v6773 = vor.u32 %v6770, %v6771
      %v6774 = vsel %vm610, %v6766, %v6773
      %v6775 = vrot.slane %v6770, 4
      %v6777 = vshrl.u32 %v6519, 16
      %v6779 = vrot.slane %v6777, 7
      %v6780 = vshll.u32 %v6519, 16
      %v6782 = vor.u32 %v6779, %v6780
      %v6783 = vrot.slane %v6779, 4
      %v6785 = vshrl.u32 %v6520, 16
      %v6787 = vrot.slane %v6785, 7
      %v6788 = vshll.u32 %v6520, 16
      %v6790 = vor.u32 %v6787, %v6788
      %v6791 = vsel %vm610, %v6783, %v6790
      %v6792 = vrot.slane %v6787, 4
      %s6841 = scalar_lea.vmem [#allocation3], 12
      %v6842 = vld [vmem:[%s6841] sm:$0xf]
      %v6843 = vsel %vm933, %v6527, %v6842
      %6844 = vst [vmem:[%s6841] sm:$0xf] %v6843
      %6845 = vst.msk [vmem:[%s6841 + $0x4] sm:$0xf] %vm423, %v6536
      %v6846 = vld [vmem:[%s6841 + $0x8] sm:$0x1]
      %v6847 = vsel %vm434, %v6537, %v6846
      %6848 = vst [vmem:[%s6841 + $0x8] sm:$0x1] %v6847
      %v6849 = vld [vmem:[%s6841 + $0xc] sm:$0xf]
      %v6850 = vsel %vm933, %v6544, %v6849
      %6851 = vst [vmem:[%s6841 + $0xc] sm:$0xf] %v6850
      %6852 = vst.msk [vmem:[%s6841 + $0x10] sm:$0xf] %vm423, %v6553
      %v6853 = vld [vmem:[%s6841 + $0x14] sm:$0x1]
      %v6854 = vsel %vm434, %v6554, %v6853
      %6855 = vst [vmem:[%s6841 + $0x14] sm:$0x1] %v6854
      %v6856 = vld [vmem:[%s6841 + $0x18] sm:$0xf]
      %v6857 = vsel %vm933, %v6561, %v6856
      %6858 = vst [vmem:[%s6841 + $0x18] sm:$0xf] %v6857
      %6859 = vst.msk [vmem:[%s6841 + $0x1c] sm:$0xf] %vm423, %v6570
      %v6860 = vld [vmem:[%s6841 + $0x20] sm:$0x1]
      %v6861 = vsel %vm434, %v6571, %v6860
      %6862 = vst [vmem:[%s6841 + $0x20] sm:$0x1] %v6861
      %v6863 = vld [vmem:[%s6841 + $0x24] sm:$0xf]
      %v6864 = vsel %vm933, %v6578, %v6863
      %6865 = vst [vmem:[%s6841 + $0x24] sm:$0xf] %v6864
      %6866 = vst.msk [vmem:[%s6841 + $0x28] sm:$0xf] %vm423, %v6587
      %v6867 = vld [vmem:[%s6841 + $0x2c] sm:$0x1]
      %v6868 = vsel %vm434, %v6588, %v6867
      %6869 = vst [vmem:[%s6841 + $0x2c] sm:$0x1] %v6868
      %v6870 = vld [vmem:[%s6841 + $0x30] sm:$0xf]
      %v6871 = vsel %vm933, %v6595, %v6870
      %6872 = vst [vmem:[%s6841 + $0x30] sm:$0xf] %v6871
      %6873 = vst.msk [vmem:[%s6841 + $0x34] sm:$0xf] %vm423, %v6604
      %v6874 = vld [vmem:[%s6841 + $0x38] sm:$0x1]
      %v6875 = vsel %vm434, %v6605, %v6874
      %6876 = vst [vmem:[%s6841 + $0x38] sm:$0x1] %v6875
      %v6877 = vld [vmem:[%s6841 + $0x3c] sm:$0xf]
      %v6878 = vsel %vm933, %v6612, %v6877
      %6879 = vst [vmem:[%s6841 + $0x3c] sm:$0xf] %v6878
      %6880 = vst.msk [vmem:[%s6841 + $0x40] sm:$0xf] %vm423, %v6621
      %v6881 = vld [vmem:[%s6841 + $0x44] sm:$0x1]
      %v6882 = vsel %vm434, %v6622, %v6881
      %6883 = vst [vmem:[%s6841 + $0x44] sm:$0x1] %v6882
      %v6884 = vld [vmem:[%s6841 + $0x48] sm:$0xf]
      %v6885 = vsel %vm933, %v6629, %v6884
      %6886 = vst [vmem:[%s6841 + $0x48] sm:$0xf] %v6885
      %6887 = vst.msk [vmem:[%s6841 + $0x4c] sm:$0xf] %vm423, %v6638
      %v6888 = vld [vmem:[%s6841 + $0x50] sm:$0x1]
      %v6889 = vsel %vm434, %v6639, %v6888
      %6890 = vst [vmem:[%s6841 + $0x50] sm:$0x1] %v6889
      %v6891 = vld [vmem:[%s6841 + $0x54] sm:$0xf]
      %v6892 = vsel %vm933, %v6646, %v6891
      %6893 = vst [vmem:[%s6841 + $0x54] sm:$0xf] %v6892
      %6894 = vst.msk [vmem:[%s6841 + $0x58] sm:$0xf] %vm423, %v6655
      %v6895 = vld [vmem:[%s6841 + $0x5c] sm:$0x1]
      %v6896 = vsel %vm434, %v6656, %v6895
      %6897 = vst [vmem:[%s6841 + $0x5c] sm:$0x1] %v6896
      %v6898 = vld [vmem:[%s6841 + $0x60] sm:$0xf]
      %v6899 = vsel %vm933, %v6663, %v6898
      %6900 = vst [vmem:[%s6841 + $0x60] sm:$0xf] %v6899
      %6901 = vst.msk [vmem:[%s6841 + $0x64] sm:$0xf] %vm423, %v6672
      %v6902 = vld [vmem:[%s6841 + $0x68] sm:$0x1]
      %v6903 = vsel %vm434, %v6673, %v6902
      %6904 = vst [vmem:[%s6841 + $0x68] sm:$0x1] %v6903
      %v6905 = vld [vmem:[%s6841 + $0x6c] sm:$0xf]
      %v6906 = vsel %vm933, %v6680, %v6905
      %6907 = vst [vmem:[%s6841 + $0x6c] sm:$0xf] %v6906
      %6908 = vst.msk [vmem:[%s6841 + $0x70] sm:$0xf] %vm423, %v6689
      %v6909 = vld [vmem:[%s6841 + $0x74] sm:$0x1]
      %v6910 = vsel %vm434, %v6690, %v6909
      %6911 = vst [vmem:[%s6841 + $0x74] sm:$0x1] %v6910
      %v6912 = vld [vmem:[%s6841 + $0x78] sm:$0xf]
      %v6913 = vsel %vm933, %v6697, %v6912
      %6914 = vst [vmem:[%s6841 + $0x78] sm:$0xf] %v6913
      %6915 = vst.msk [vmem:[%s6841 + $0x7c] sm:$0xf] %vm423, %v6706
      %v6916 = vld [vmem:[%s6841 + $0x80] sm:$0x1]
      %v6917 = vsel %vm434, %v6707, %v6916
      %6918 = vst [vmem:[%s6841 + $0x80] sm:$0x1] %v6917
      %v6919 = vld [vmem:[%s6841 + $0x84] sm:$0xf]
      %v6920 = vsel %vm933, %v6714, %v6919
      %6921 = vst [vmem:[%s6841 + $0x84] sm:$0xf] %v6920
      %6922 = vst.msk [vmem:[%s6841 + $0x88] sm:$0xf] %vm423, %v6723
      %v6923 = vld [vmem:[%s6841 + $0x8c] sm:$0x1]
      %v6924 = vsel %vm434, %v6724, %v6923
      %6925 = vst [vmem:[%s6841 + $0x8c] sm:$0x1] %v6924
      %v6926 = vld [vmem:[%s6841 + $0x90] sm:$0xf]
      %v6927 = vsel %vm933, %v6731, %v6926
      %6928 = vst [vmem:[%s6841 + $0x90] sm:$0xf] %v6927
      %6929 = vst.msk [vmem:[%s6841 + $0x94] sm:$0xf] %vm423, %v6740
      %v6930 = vld [vmem:[%s6841 + $0x98] sm:$0x1]
      %v6931 = vsel %vm434, %v6741, %v6930
      %6932 = vst [vmem:[%s6841 + $0x98] sm:$0x1] %v6931
      %v6933 = vld [vmem:[%s6841 + $0x9c] sm:$0xf]
      %v6934 = vsel %vm933, %v6748, %v6933
      %6935 = vst [vmem:[%s6841 + $0x9c] sm:$0xf] %v6934
      %6936 = vst.msk [vmem:[%s6841 + $0xa0] sm:$0xf] %vm423, %v6757
      %v6937 = vld [vmem:[%s6841 + $0xa4] sm:$0x1]
      %v6938 = vsel %vm434, %v6758, %v6937
      %6939 = vst [vmem:[%s6841 + $0xa4] sm:$0x1] %v6938
      %v6940 = vld [vmem:[%s6841 + $0xa8] sm:$0xf]
      %v6941 = vsel %vm933, %v6765, %v6940
      %6942 = vst [vmem:[%s6841 + $0xa8] sm:$0xf] %v6941
      %6943 = vst.msk [vmem:[%s6841 + $0xac] sm:$0xf] %vm423, %v6774
      %v6944 = vld [vmem:[%s6841 + $0xb0] sm:$0x1]
      %v6945 = vsel %vm434, %v6775, %v6944
      %6946 = vst [vmem:[%s6841 + $0xb0] sm:$0x1] %v6945
      %v6947 = vld [vmem:[%s6841 + $0xb4] sm:$0xf]
      %v6948 = vsel %vm933, %v6782, %v6947
      %6949 = vst [vmem:[%s6841 + $0xb4] sm:$0xf] %v6948
      %6950 = vst.msk [vmem:[%s6841 + $0xb8] sm:$0xf] %vm423, %v6791
      %v6951 = vld [vmem:[%s6841 + $0xbc] sm:$0x1]
      %v6952 = vsel %vm434, %v6792, %v6951
      %6953 = vst [vmem:[%s6841 + $0xbc] sm:$0x1] %v6952
      %v6954 = vld [vmem:[%s7] sm:$0x1]
      %v6955 = vld [vmem:[%s8] sm:$0x1]
      %v6956 = vld [vmem:[%s9] sm:$0x1]
      %v6957 = vld [vmem:[#allocation3] sm:$0xf]
      %v6958 = vld [vmem:[#allocation3 + $0x4] sm:$0xf]
      %v6959 = vld [vmem:[#allocation3 + $0xc] sm:$0xf]
      %v6960 = vld [vmem:[#allocation3 + $0x10] sm:$0xf]
      %v6961 = vld [vmem:[#allocation3 + $0x18] sm:$0xf]
      %v6962 = vld [vmem:[#allocation3 + $0x1c] sm:$0xf]
      %v6963 = vld [vmem:[#allocation3 + $0x24] sm:$0xf]
      %v6964 = vld [vmem:[#allocation3 + $0x28] sm:$0xf]
      %v6965 = vld [vmem:[#allocation3 + $0x30] sm:$0xf]
      %v6966 = vld [vmem:[#allocation3 + $0x34] sm:$0xf]
      %v6967 = vld [vmem:[#allocation3 + $0x3c] sm:$0xf]
      %v6968 = vld [vmem:[#allocation3 + $0x40] sm:$0xf]
      %v6969 = vld [vmem:[#allocation3 + $0x48] sm:$0xf]
      %v6970 = vld [vmem:[#allocation3 + $0x4c] sm:$0xf]
      %v6971 = vld [vmem:[#allocation3 + $0x54] sm:$0xf]
      %v6972 = vld [vmem:[#allocation3 + $0x58] sm:$0xf]
      %v6973 = vld [vmem:[#allocation3 + $0x60] sm:$0xf]
      %v6974 = vld [vmem:[#allocation3 + $0x64] sm:$0xf]
      %v6975 = vld [vmem:[#allocation3 + $0x6c] sm:$0xf]
      %v6976 = vld [vmem:[#allocation3 + $0x70] sm:$0xf]
      %v6977 = vld [vmem:[#allocation3 + $0x78] sm:$0xf]
      %v6978 = vld [vmem:[#allocation3 + $0x7c] sm:$0xf]
      %v6979 = vld [vmem:[#allocation3 + $0x84] sm:$0xf]
      %v6980 = vld [vmem:[#allocation3 + $0x88] sm:$0xf]
      %v6981 = vld [vmem:[#allocation3 + $0x90] sm:$0xf]
      %v6982 = vld [vmem:[#allocation3 + $0x94] sm:$0xf]
      %v6983 = vld [vmem:[#allocation3 + $0x9c] sm:$0xf]
      %v6984 = vld [vmem:[#allocation3 + $0xa0] sm:$0xf]
      %v6985 = vld [vmem:[#allocation3 + $0xa8] sm:$0xf]
      %v6986 = vld [vmem:[#allocation3 + $0xac] sm:$0xf]
      %v6987 = vld [vmem:[#allocation3 + $0xb4] sm:$0xf]
      %v6988 = vld [vmem:[#allocation3 + $0xb8] sm:$0xf]
      %v6989 = vld [vmem:[%s6] sm:$0xf]
      %v6990 = vld [vmem:[%s6 + $0x4] sm:$0xf]
      %v6991 = vld [vmem:[%s6 + $0x8] sm:$0xf]
      %v6992 = vld [vmem:[%s6 + $0xc] sm:$0xf]
      %v6993 = vld [vmem:[%s6 + $0x10] sm:$0xf]
      %v6994 = vld [vmem:[%s6 + $0x14] sm:$0xf]
      %v6995 = vld [vmem:[%s6 + $0x18] sm:$0xf]
      %v6996 = vld [vmem:[%s6 + $0x1c] sm:$0xf]
      %v6997 = vld [vmem:[#allocation3 + $0x8] sm:$0x1]
      %v6998 = vld [vmem:[#allocation3 + $0x14] sm:$0x1]
      %v6999 = vld [vmem:[#allocation3 + $0x20] sm:$0x1]
      %v7000 = vld [vmem:[#allocation3 + $0x2c] sm:$0x1]
      %v7001 = vld [vmem:[#allocation3 + $0x38] sm:$0x1]
      %v7002 = vld [vmem:[#allocation3 + $0x44] sm:$0x1]
      %v7003 = vld [vmem:[#allocation3 + $0x50] sm:$0x1]
      %v7004 = vld [vmem:[#allocation3 + $0x5c] sm:$0x1]
      %v7005 = vld [vmem:[#allocation3 + $0x68] sm:$0x1]
      %v7006 = vld [vmem:[#allocation3 + $0x74] sm:$0x1]
      %v7007 = vld [vmem:[#allocation3 + $0x80] sm:$0x1]
      %v7008 = vld [vmem:[#allocation3 + $0x8c] sm:$0x1]
      %v7009 = vld [vmem:[#allocation3 + $0x98] sm:$0x1]
      %v7010 = vld [vmem:[#allocation3 + $0xa4] sm:$0x1]
      %v7011 = vld [vmem:[#allocation3 + $0xb0] sm:$0x1]
      %v7012 = vld [vmem:[#allocation3 + $0xbc] sm:$0x1]
      %v7014 = vshrl.u32 %v6957, 16
      %v7016 = vrot.slane %v7014, 4
      %v7017 = vshll.u32 %v6957, 16
      %v7019 = vrot.slane %v7017, 5
      %v7020 = vor.u32 %v7016, %v7019
      %v7021 = vrot.slane %v7020, 4
      %v7023 = vshll.u32 %v6958, 16
      %v7025 = vrot.slane %v7023, 5
      %v7026 = vsel %vm1107, %v7021, %v7025
      %v7027 = vshrl.u32 %v6958, 16
      %v7029 = vrot.slane %v7027, 4
      %v7030 = vor.u32 %v7029, %v7025
      %v7031 = vrot.slane %v7030, 4
      %v7033 = vshll.u32 %v6997, 16
      %v7035 = vrot.slane %v7033, 5
      %v7036 = vsel %vm1107, %v7031, %v7035
      %v7038 = vshrl.u32 %v6959, 16
      %v7040 = vrot.slane %v7038, 4
      %v7041 = vshll.u32 %v6959, 16
      %v7043 = vrot.slane %v7041, 5
      %v7044 = vor.u32 %v7040, %v7043
      %v7045 = vrot.slane %v7044, 4
      %v7047 = vshll.u32 %v6960, 16
      %v7049 = vrot.slane %v7047, 5
      %v7050 = vsel %vm1107, %v7045, %v7049
      %v7051 = vshrl.u32 %v6960, 16
      %v7053 = vrot.slane %v7051, 4
      %v7054 = vor.u32 %v7053, %v7049
      %v7055 = vrot.slane %v7054, 4
      %v7057 = vshll.u32 %v6998, 16
      %v7059 = vrot.slane %v7057, 5
      %v7060 = vsel %vm1107, %v7055, %v7059
      %v7062 = vshrl.u32 %v6961, 16
      %v7064 = vrot.slane %v7062, 4
      %v7065 = vshll.u32 %v6961, 16
      %v7067 = vrot.slane %v7065, 5
      %v7068 = vor.u32 %v7064, %v7067
      %v7069 = vrot.slane %v7068, 4
      %v7071 = vshll.u32 %v6962, 16
      %v7073 = vrot.slane %v7071, 5
      %v7074 = vsel %vm1107, %v7069, %v7073
      %v7075 = vshrl.u32 %v6962, 16
      %v7077 = vrot.slane %v7075, 4
      %v7078 = vor.u32 %v7077, %v7073
      %v7079 = vrot.slane %v7078, 4
      %v7081 = vshll.u32 %v6999, 16
      %v7083 = vrot.slane %v7081, 5
      %v7084 = vsel %vm1107, %v7079, %v7083
      %v7086 = vshrl.u32 %v6963, 16
      %v7088 = vrot.slane %v7086, 4
      %v7089 = vshll.u32 %v6963, 16
      %v7091 = vrot.slane %v7089, 5
      %v7092 = vor.u32 %v7088, %v7091
      %v7093 = vrot.slane %v7092, 4
      %v7095 = vshll.u32 %v6964, 16
      %v7097 = vrot.slane %v7095, 5
      %v7098 = vsel %vm1107, %v7093, %v7097
      %v7099 = vshrl.u32 %v6964, 16
      %v7101 = vrot.slane %v7099, 4
      %v7102 = vor.u32 %v7101, %v7097
      %v7103 = vrot.slane %v7102, 4
      %v7105 = vshll.u32 %v7000, 16
      %v7107 = vrot.slane %v7105, 5
      %v7108 = vsel %vm1107, %v7103, %v7107
      %v7110 = vshrl.u32 %v6965, 16
      %v7112 = vrot.slane %v7110, 4
      %v7113 = vshll.u32 %v6965, 16
      %v7115 = vrot.slane %v7113, 5
      %v7116 = vor.u32 %v7112, %v7115
      %v7117 = vrot.slane %v7116, 4
      %v7119 = vshll.u32 %v6966, 16
      %v7121 = vrot.slane %v7119, 5
      %v7122 = vsel %vm1107, %v7117, %v7121
      %v7123 = vshrl.u32 %v6966, 16
      %v7125 = vrot.slane %v7123, 4
      %v7126 = vor.u32 %v7125, %v7121
      %v7127 = vrot.slane %v7126, 4
      %v7129 = vshll.u32 %v7001, 16
      %v7131 = vrot.slane %v7129, 5
      %v7132 = vsel %vm1107, %v7127, %v7131
      %v7134 = vshrl.u32 %v6967, 16
      %v7136 = vrot.slane %v7134, 4
      %v7137 = vshll.u32 %v6967, 16
      %v7139 = vrot.slane %v7137, 5
      %v7140 = vor.u32 %v7136, %v7139
      %v7141 = vrot.slane %v7140, 4
      %v7143 = vshll.u32 %v6968, 16
      %v7145 = vrot.slane %v7143, 5
      %v7146 = vsel %vm1107, %v7141, %v7145
      %v7147 = vshrl.u32 %v6968, 16
      %v7149 = vrot.slane %v7147, 4
      %v7150 = vor.u32 %v7149, %v7145
      %v7151 = vrot.slane %v7150, 4
      %v7153 = vshll.u32 %v7002, 16
      %v7155 = vrot.slane %v7153, 5
      %v7156 = vsel %vm1107, %v7151, %v7155
      %v7158 = vshrl.u32 %v6969, 16
      %v7160 = vrot.slane %v7158, 4
      %v7161 = vshll.u32 %v6969, 16
      %v7163 = vrot.slane %v7161, 5
      %v7164 = vor.u32 %v7160, %v7163
      %v7165 = vrot.slane %v7164, 4
      %v7167 = vshll.u32 %v6970, 16
      %v7169 = vrot.slane %v7167, 5
      %v7170 = vsel %vm1107, %v7165, %v7169
      %v7171 = vshrl.u32 %v6970, 16
      %v7173 = vrot.slane %v7171, 4
      %v7174 = vor.u32 %v7173, %v7169
      %v7175 = vrot.slane %v7174, 4
      %v7177 = vshll.u32 %v7003, 16
      %v7179 = vrot.slane %v7177, 5
      %v7180 = vsel %vm1107, %v7175, %v7179
      %v7182 = vshrl.u32 %v6971, 16
      %v7184 = vrot.slane %v7182, 4
      %v7185 = vshll.u32 %v6971, 16
      %v7187 = vrot.slane %v7185, 5
      %v7188 = vor.u32 %v7184, %v7187
      %v7189 = vrot.slane %v7188, 4
      %v7191 = vshll.u32 %v6972, 16
      %v7193 = vrot.slane %v7191, 5
      %v7194 = vsel %vm1107, %v7189, %v7193
      %v7195 = vshrl.u32 %v6972, 16
      %v7197 = vrot.slane %v7195, 4
      %v7198 = vor.u32 %v7197, %v7193
      %v7199 = vrot.slane %v7198, 4
      %v7201 = vshll.u32 %v7004, 16
      %v7203 = vrot.slane %v7201, 5
      %v7204 = vsel %vm1107, %v7199, %v7203
      %v7206 = vshrl.u32 %v6973, 16
      %v7208 = vrot.slane %v7206, 4
      %v7209 = vshll.u32 %v6973, 16
      %v7211 = vrot.slane %v7209, 5
      %v7212 = vor.u32 %v7208, %v7211
      %v7213 = vrot.slane %v7212, 4
      %v7215 = vshll.u32 %v6974, 16
      %v7217 = vrot.slane %v7215, 5
      %v7218 = vsel %vm1107, %v7213, %v7217
      %v7219 = vshrl.u32 %v6974, 16
      %v7221 = vrot.slane %v7219, 4
      %v7222 = vor.u32 %v7221, %v7217
      %v7223 = vrot.slane %v7222, 4
      %v7225 = vshll.u32 %v7005, 16
      %v7227 = vrot.slane %v7225, 5
      %v7228 = vsel %vm1107, %v7223, %v7227
      %v7230 = vshrl.u32 %v6975, 16
      %v7232 = vrot.slane %v7230, 4
      %v7233 = vshll.u32 %v6975, 16
      %v7235 = vrot.slane %v7233, 5
      %v7236 = vor.u32 %v7232, %v7235
      %v7237 = vrot.slane %v7236, 4
      %v7239 = vshll.u32 %v6976, 16
      %v7241 = vrot.slane %v7239, 5
      %v7242 = vsel %vm1107, %v7237, %v7241
      %v7243 = vshrl.u32 %v6976, 16
      %v7245 = vrot.slane %v7243, 4
      %v7246 = vor.u32 %v7245, %v7241
      %v7247 = vrot.slane %v7246, 4
      %v7249 = vshll.u32 %v7006, 16
      %v7251 = vrot.slane %v7249, 5
      %v7252 = vsel %vm1107, %v7247, %v7251
      %v7254 = vshrl.u32 %v6977, 16
      %v7256 = vrot.slane %v7254, 4
      %v7257 = vshll.u32 %v6977, 16
      %v7259 = vrot.slane %v7257, 5
      %v7260 = vor.u32 %v7256, %v7259
      %v7261 = vrot.slane %v7260, 4
      %v7263 = vshll.u32 %v6978, 16
      %v7265 = vrot.slane %v7263, 5
      %v7266 = vsel %vm1107, %v7261, %v7265
      %v7267 = vshrl.u32 %v6978, 16
      %v7269 = vrot.slane %v7267, 4
      %v7270 = vor.u32 %v7269, %v7265
      %v7271 = vrot.slane %v7270, 4
      %v7273 = vshll.u32 %v7007, 16
      %v7275 = vrot.slane %v7273, 5
      %v7276 = vsel %vm1107, %v7271, %v7275
      %v7278 = vshrl.u32 %v6979, 16
      %v7280 = vrot.slane %v7278, 4
      %v7281 = vshll.u32 %v6979, 16
      %v7283 = vrot.slane %v7281, 5
      %v7284 = vor.u32 %v7280, %v7283
      %v7285 = vrot.slane %v7284, 4
      %v7287 = vshll.u32 %v6980, 16
      %v7289 = vrot.slane %v7287, 5
      %v7290 = vsel %vm1107, %v7285, %v7289
      %v7291 = vshrl.u32 %v6980, 16
      %v7293 = vrot.slane %v7291, 4
      %v7294 = vor.u32 %v7293, %v7289
      %v7295 = vrot.slane %v7294, 4
      %v7297 = vshll.u32 %v7008, 16
      %v7299 = vrot.slane %v7297, 5
      %v7300 = vsel %vm1107, %v7295, %v7299
      %v7302 = vshrl.u32 %v6981, 16
      %v7304 = vrot.slane %v7302, 4
      %v7305 = vshll.u32 %v6981, 16
      %v7307 = vrot.slane %v7305, 5
      %v7308 = vor.u32 %v7304, %v7307
      %v7309 = vrot.slane %v7308, 4
      %v7311 = vshll.u32 %v6982, 16
      %v7313 = vrot.slane %v7311, 5
      %v7314 = vsel %vm1107, %v7309, %v7313
      %v7315 = vshrl.u32 %v6982, 16
      %v7317 = vrot.slane %v7315, 4
      %v7318 = vor.u32 %v7317, %v7313
      %v7319 = vrot.slane %v7318, 4
      %v7321 = vshll.u32 %v7009, 16
      %v7323 = vrot.slane %v7321, 5
      %v7324 = vsel %vm1107, %v7319, %v7323
      %v7326 = vshrl.u32 %v6983, 16
      %v7328 = vrot.slane %v7326, 4
      %v7329 = vshll.u32 %v6983, 16
      %v7331 = vrot.slane %v7329, 5
      %v7332 = vor.u32 %v7328, %v7331
      %v7333 = vrot.slane %v7332, 4
      %v7335 = vshll.u32 %v6984, 16
      %v7337 = vrot.slane %v7335, 5
      %v7338 = vsel %vm1107, %v7333, %v7337
      %v7339 = vshrl.u32 %v6984, 16
      %v7341 = vrot.slane %v7339, 4
      %v7342 = vor.u32 %v7341, %v7337
      %v7343 = vrot.slane %v7342, 4
      %v7345 = vshll.u32 %v7010, 16
      %v7347 = vrot.slane %v7345, 5
      %v7348 = vsel %vm1107, %v7343, %v7347
      %v7350 = vshrl.u32 %v6985, 16
      %v7352 = vrot.slane %v7350, 4
      %v7353 = vshll.u32 %v6985, 16
      %v7355 = vrot.slane %v7353, 5
      %v7356 = vor.u32 %v7352, %v7355
      %v7357 = vrot.slane %v7356, 4
      %v7359 = vshll.u32 %v6986, 16
      %v7361 = vrot.slane %v7359, 5
      %v7362 = vsel %vm1107, %v7357, %v7361
      %v7363 = vshrl.u32 %v6986, 16
      %v7365 = vrot.slane %v7363, 4
      %v7366 = vor.u32 %v7365, %v7361
      %v7367 = vrot.slane %v7366, 4
      %v7369 = vshll.u32 %v7011, 16
      %v7371 = vrot.slane %v7369, 5
      %v7372 = vsel %vm1107, %v7367, %v7371
      %v7374 = vshrl.u32 %v6987, 16
      %v7376 = vrot.slane %v7374, 4
      %v7377 = vshll.u32 %v6987, 16
      %v7379 = vrot.slane %v7377, 5
      %v7380 = vor.u32 %v7376, %v7379
      %v7381 = vrot.slane %v7380, 4
      %v7383 = vshll.u32 %v6988, 16
      %v7385 = vrot.slane %v7383, 5
      %v7386 = vsel %vm1107, %v7381, %v7385
      %v7387 = vshrl.u32 %v6988, 16
      %v7389 = vrot.slane %v7387, 4
      %v7390 = vor.u32 %v7389, %v7385
      %v7391 = vrot.slane %v7390, 4
      %v7393 = vshll.u32 %v7012, 16
      %v7395 = vrot.slane %v7393, 5
      %v7396 = vsel %vm1107, %v7391, %v7395
      %s7397 = scalar_lea.vmem %s6, 32
      %v7398 = vld [vmem:[%s7397] sm:$0xf]
      %v7399 = vld [vmem:[%s7397 + $0x4] sm:$0xf]
      %v7400 = vld [vmem:[%s7397 + $0x8] sm:$0xf]
      %v7401 = vld [vmem:[%s7397 + $0xc] sm:$0xf]
      %v7402 = vld [vmem:[%s7397 + $0x10] sm:$0xf]
      %v7403 = vld [vmem:[%s7397 + $0x14] sm:$0xf]
      %v7404 = vld [vmem:[%s7397 + $0x18] sm:$0xf]
      %v7405 = vld [vmem:[%s7397 + $0x1c] sm:$0xf]
      %v7406 = vunpack.c.l.b16 %v7026
      %v7407 = vunpack.c.l.b16 %v7036
      %v7408 = vunpack.c.l.b16 %v7050
      %v7409 = vunpack.c.l.b16 %v7060
      %v7410 = vunpack.c.l.b16 %v7074
      %v7411 = vunpack.c.l.b16 %v7084
      %v7412 = vunpack.c.l.b16 %v7098
      %v7413 = vunpack.c.l.b16 %v7108
      %v7414 = vunpack.c.l.b16 %v7122
      %v7415 = vunpack.c.l.b16 %v7132
      %v7416 = vunpack.c.l.b16 %v7146
      %v7417 = vunpack.c.l.b16 %v7156
      %v7418 = vunpack.c.l.b16 %v7170
      %v7419 = vunpack.c.l.b16 %v7180
      %v7420 = vunpack.c.l.b16 %v7194
      %v7421 = vunpack.c.l.b16 %v7204
      %v7422 = vunpack.c.l.b16 %v7218
      %v7423 = vunpack.c.l.b16 %v7228
      %v7424 = vunpack.c.l.b16 %v7242
      %v7425 = vunpack.c.l.b16 %v7252
      %v7426 = vunpack.c.l.b16 %v7266
      %v7427 = vunpack.c.l.b16 %v7276
      %v7428 = vunpack.c.l.b16 %v7290
      %v7429 = vunpack.c.l.b16 %v7300
      %v7430 = vunpack.c.l.b16 %v7314
      %v7431 = vunpack.c.l.b16 %v7324
      %v7432 = vunpack.c.l.b16 %v7338
      %v7433 = vunpack.c.l.b16 %v7348
      %v7434 = vunpack.c.l.b16 %v7362
      %v7435 = vunpack.c.l.b16 %v7372
      %v7436 = vunpack.c.l.b16 %v7386
      %v7437 = vunpack.c.l.b16 %v7396
      %v7438 = vpack.c.b16 %v7407, %v7406
      %v7439 = vpack.c.b16 %v7409, %v7408
      %v7440 = vpack.c.b16 %v7411, %v7410
      %v7441 = vpack.c.b16 %v7413, %v7412
      %v7442 = vpack.c.b16 %v7415, %v7414
      %v7443 = vpack.c.b16 %v7417, %v7416
      %v7444 = vpack.c.b16 %v7419, %v7418
      %v7445 = vpack.c.b16 %v7421, %v7420
      %v7446 = vpack.c.b16 %v7423, %v7422
      %v7447 = vpack.c.b16 %v7425, %v7424
      %v7448 = vpack.c.b16 %v7427, %v7426
      %v7449 = vpack.c.b16 %v7429, %v7428
      %v7450 = vpack.c.b16 %v7431, %v7430
      %v7451 = vpack.c.b16 %v7433, %v7432
      %v7452 = vpack.c.b16 %v7435, %v7434
      %v7453 = vpack.c.b16 %v7437, %v7436
      %v7462 = vunpack.c.l.b16 %v7398
      %v7463 = vunpack.c.l.b16 %v7399
      %v7464 = vunpack.c.l.b16 %v7400
      %v7465 = vunpack.c.l.b16 %v7401
      %v7466 = vunpack.c.l.b16 %v7402
      %v7467 = vunpack.c.l.b16 %v7403
      %v7468 = vunpack.c.l.b16 %v7404
      %v7469 = vunpack.c.l.b16 %v7405
      %v7470 = vpack.c.b16 %v7463, %v7462
      %v7471 = vpack.c.b16 %v7465, %v7464
      %v7472 = vpack.c.b16 %v7467, %v7466
      %v7473 = vpack.c.b16 %v7469, %v7468
      %v7479 = vsel %vm1573, %v7438, 0
      %v7482 = vsel %vm1573, %v7439, 0
      %v7485 = vsel %vm1573, %v7440, 0
      %v7488 = vsel %vm1573, %v7441, 0
      %v7491 = vsel %vm1573, %v7442, 0
      %v7494 = vsel %vm1573, %v7443, 0
      %v7497 = vsel %vm1573, %v7444, 0
      %v7500 = vsel %vm1573, %v7445, 0
      %v7503 = vsel %vm1573, %v7446, 0
      %v7506 = vsel %vm1573, %v7447, 0
      %v7509 = vsel %vm1573, %v7448, 0
      %v7512 = vsel %vm1573, %v7449, 0
      %v7515 = vsel %vm1573, %v7450, 0
      %v7518 = vsel %vm1573, %v7451, 0
      %v7521 = vsel %vm1573, %v7452, 0
      %v7524 = vsel %vm1573, %v7453, 0
      %7526 = vmatpush.bf16.msra.mxu0 0
      %7527 = vmatpush.bf16.msra.mxu0 0
      %7528 = vmatpush.bf16.msra.mxu0 0
      %7529 = vmatpush.bf16.msra.mxu0 0
      %7530 = vmatpush.bf16.msra.mxu0 %v7473
      %7531 = vmatpush.bf16.msra.mxu0 %v7472
      %7532 = vmatpush.bf16.msra.mxu0 %v7471
      %7533 = vmatpush.bf16.msra.mxu0 %v7470
      %7534 = vmatmul.bf16.gmra.mxu0 %v7479
      %v7535 = vpop.f32.mrf.mxu0
      %v7536 = vadd.f32 0.0, %v7535
      %v7537 = vpop.f32.mrf.mxu0
      %v7538 = vadd.f32 0.0, %v7537
      %7539 = vmatmul.bf16.gmra.mxu0 %v7482
      %v7540 = vpop.f32.mrf.mxu0
      %v7541 = vadd.f32 0.0, %v7540
      %v7542 = vpop.f32.mrf.mxu0
      %v7543 = vadd.f32 0.0, %v7542
      %7544 = vmatmul.bf16.gmra.mxu0 %v7485
      %v7545 = vpop.f32.mrf.mxu0
      %v7546 = vadd.f32 0.0, %v7545
      %v7547 = vpop.f32.mrf.mxu0
      %v7548 = vadd.f32 0.0, %v7547
      %7549 = vmatmul.bf16.gmra.mxu0 %v7488
      %v7550 = vpop.f32.mrf.mxu0
      %v7551 = vadd.f32 0.0, %v7550
      %v7552 = vpop.f32.mrf.mxu0
      %v7553 = vadd.f32 0.0, %v7552
      %7554 = vmatmul.bf16.gmra.mxu0 %v7491
      %v7555 = vpop.f32.mrf.mxu0
      %v7556 = vadd.f32 0.0, %v7555
      %v7557 = vpop.f32.mrf.mxu0
      %v7558 = vadd.f32 0.0, %v7557
      %7559 = vmatmul.bf16.gmra.mxu0 %v7494
      %v7560 = vpop.f32.mrf.mxu0
      %v7561 = vadd.f32 0.0, %v7560
      %v7562 = vpop.f32.mrf.mxu0
      %v7563 = vadd.f32 0.0, %v7562
      %7564 = vmatmul.bf16.gmra.mxu0 %v7497
      %v7565 = vpop.f32.mrf.mxu0
      %v7566 = vadd.f32 0.0, %v7565
      %v7567 = vpop.f32.mrf.mxu0
      %v7568 = vadd.f32 0.0, %v7567
      %7569 = vmatmul.bf16.gmra.mxu0 %v7500
      %v7570 = vpop.f32.mrf.mxu0
      %v7571 = vadd.f32 0.0, %v7570
      %v7572 = vpop.f32.mrf.mxu0
      %v7573 = vadd.f32 0.0, %v7572
      %7574 = vmatmul.bf16.gmra.mxu0 %v7503
      %v7575 = vpop.f32.mrf.mxu0
      %v7576 = vadd.f32 0.0, %v7575
      %v7577 = vpop.f32.mrf.mxu0
      %v7578 = vadd.f32 0.0, %v7577
      %7579 = vmatmul.bf16.gmra.mxu0 %v7506
      %v7580 = vpop.f32.mrf.mxu0
      %v7581 = vadd.f32 0.0, %v7580
      %v7582 = vpop.f32.mrf.mxu0
      %v7583 = vadd.f32 0.0, %v7582
      %7584 = vmatmul.bf16.gmra.mxu0 %v7509
      %v7585 = vpop.f32.mrf.mxu0
      %v7586 = vadd.f32 0.0, %v7585
      %v7587 = vpop.f32.mrf.mxu0
      %v7588 = vadd.f32 0.0, %v7587
      %7589 = vmatmul.bf16.gmra.mxu0 %v7512
      %v7590 = vpop.f32.mrf.mxu0
      %v7591 = vadd.f32 0.0, %v7590
      %v7592 = vpop.f32.mrf.mxu0
      %v7593 = vadd.f32 0.0, %v7592
      %7594 = vmatmul.bf16.gmra.mxu0 %v7515
      %v7595 = vpop.f32.mrf.mxu0
      %v7596 = vadd.f32 0.0, %v7595
      %v7597 = vpop.f32.mrf.mxu0
      %v7598 = vadd.f32 0.0, %v7597
      %7599 = vmatmul.bf16.gmra.mxu0 %v7518
      %v7600 = vpop.f32.mrf.mxu0
      %v7601 = vadd.f32 0.0, %v7600
      %v7602 = vpop.f32.mrf.mxu0
      %v7603 = vadd.f32 0.0, %v7602
      %7604 = vmatmul.bf16.gmra.mxu0 %v7521
      %v7605 = vpop.f32.mrf.mxu0
      %v7606 = vadd.f32 0.0, %v7605
      %v7607 = vpop.f32.mrf.mxu0
      %v7608 = vadd.f32 0.0, %v7607
      %7609 = vmatmul.bf16.gmra.mxu0 %v7524
      %v7610 = vpop.f32.mrf.mxu0
      %v7611 = vadd.f32 0.0, %v7610
      %v7612 = vpop.f32.mrf.mxu0
      %v7613 = vadd.f32 0.0, %v7612
      %7614 = vdwg.mxu0
      %v7647 = vunpack.c.l.b16 %v6957
      %v7648 = vunpack.c.l.b16 %v6958
      %v7649 = vunpack.c.l.b16 %v6959
      %v7650 = vunpack.c.l.b16 %v6960
      %v7651 = vunpack.c.l.b16 %v6961
      %v7652 = vunpack.c.l.b16 %v6962
      %v7653 = vunpack.c.l.b16 %v6963
      %v7654 = vunpack.c.l.b16 %v6964
      %v7655 = vunpack.c.l.b16 %v6965
      %v7656 = vunpack.c.l.b16 %v6966
      %v7657 = vunpack.c.l.b16 %v6967
      %v7658 = vunpack.c.l.b16 %v6968
      %v7659 = vunpack.c.l.b16 %v6969
      %v7660 = vunpack.c.l.b16 %v6970
      %v7661 = vunpack.c.l.b16 %v6971
      %v7662 = vunpack.c.l.b16 %v6972
      %v7663 = vunpack.c.l.b16 %v6973
      %v7664 = vunpack.c.l.b16 %v6974
      %v7665 = vunpack.c.l.b16 %v6975
      %v7666 = vunpack.c.l.b16 %v6976
      %v7667 = vunpack.c.l.b16 %v6977
      %v7668 = vunpack.c.l.b16 %v6978
      %v7669 = vunpack.c.l.b16 %v6979
      %v7670 = vunpack.c.l.b16 %v6980
      %v7671 = vunpack.c.l.b16 %v6981
      %v7672 = vunpack.c.l.b16 %v6982
      %v7673 = vunpack.c.l.b16 %v6983
      %v7674 = vunpack.c.l.b16 %v6984
      %v7675 = vunpack.c.l.b16 %v6985
      %v7676 = vunpack.c.l.b16 %v6986
      %v7677 = vunpack.c.l.b16 %v6987
      %v7678 = vunpack.c.l.b16 %v6988
      %v7679 = vpack.c.b16 %v7648, %v7647
      %v7680 = vpack.c.b16 %v7650, %v7649
      %v7681 = vpack.c.b16 %v7652, %v7651
      %v7682 = vpack.c.b16 %v7654, %v7653
      %v7683 = vpack.c.b16 %v7656, %v7655
      %v7684 = vpack.c.b16 %v7658, %v7657
      %v7685 = vpack.c.b16 %v7660, %v7659
      %v7686 = vpack.c.b16 %v7662, %v7661
      %v7687 = vpack.c.b16 %v7664, %v7663
      %v7688 = vpack.c.b16 %v7666, %v7665
      %v7689 = vpack.c.b16 %v7668, %v7667
      %v7690 = vpack.c.b16 %v7670, %v7669
      %v7691 = vpack.c.b16 %v7672, %v7671
      %v7692 = vpack.c.b16 %v7674, %v7673
      %v7693 = vpack.c.b16 %v7676, %v7675
      %v7694 = vpack.c.b16 %v7678, %v7677
      %v7703 = vunpack.c.l.b16 %v6989
      %v7704 = vunpack.c.l.b16 %v6990
      %v7705 = vunpack.c.l.b16 %v6991
      %v7706 = vunpack.c.l.b16 %v6992
      %v7707 = vunpack.c.l.b16 %v6993
      %v7708 = vunpack.c.l.b16 %v6994
      %v7709 = vunpack.c.l.b16 %v6995
      %v7710 = vunpack.c.l.b16 %v6996
      %v7711 = vpack.c.b16 %v7704, %v7703
      %v7712 = vpack.c.b16 %v7706, %v7705
      %v7713 = vpack.c.b16 %v7708, %v7707
      %v7714 = vpack.c.b16 %v7710, %v7709
      %v7720 = vsel %vm1573, %v7679, 0
      %v7723 = vsel %vm1573, %v7680, 0
      %v7726 = vsel %vm1573, %v7681, 0
      %v7729 = vsel %vm1573, %v7682, 0
      %v7732 = vsel %vm1573, %v7683, 0
      %v7735 = vsel %vm1573, %v7684, 0
      %v7738 = vsel %vm1573, %v7685, 0
      %v7741 = vsel %vm1573, %v7686, 0
      %v7744 = vsel %vm1573, %v7687, 0
      %v7747 = vsel %vm1573, %v7688, 0
      %v7750 = vsel %vm1573, %v7689, 0
      %v7753 = vsel %vm1573, %v7690, 0
      %v7756 = vsel %vm1573, %v7691, 0
      %v7759 = vsel %vm1573, %v7692, 0
      %v7762 = vsel %vm1573, %v7693, 0
      %v7765 = vsel %vm1573, %v7694, 0
      %7767 = vmatpush.bf16.msra.mxu0 0
      %7768 = vmatpush.bf16.msra.mxu0 0
      %7769 = vmatpush.bf16.msra.mxu0 0
      %7770 = vmatpush.bf16.msra.mxu0 0
      %7771 = vmatpush.bf16.msra.mxu0 %v7714
      %7772 = vmatpush.bf16.msra.mxu0 %v7713
      %7773 = vmatpush.bf16.msra.mxu0 %v7712
      %7774 = vmatpush.bf16.msra.mxu0 %v7711
      %7775 = vmatmul.bf16.gmra.mxu0 %v7720
      %v7776 = vpop.f32.mrf.mxu0
      %v7777 = vadd.f32 %v7536, %v7776
      %v7778 = vpop.f32.mrf.mxu0
      %v7779 = vadd.f32 %v7538, %v7778
      %7780 = vmatmul.bf16.gmra.mxu0 %v7723
      %v7781 = vpop.f32.mrf.mxu0
      %v7782 = vadd.f32 %v7541, %v7781
      %v7783 = vpop.f32.mrf.mxu0
      %v7784 = vadd.f32 %v7543, %v7783
      %7785 = vmatmul.bf16.gmra.mxu0 %v7726
      %v7786 = vpop.f32.mrf.mxu0
      %v7787 = vadd.f32 %v7546, %v7786
      %v7788 = vpop.f32.mrf.mxu0
      %v7789 = vadd.f32 %v7548, %v7788
      %7790 = vmatmul.bf16.gmra.mxu0 %v7729
      %v7791 = vpop.f32.mrf.mxu0
      %v7792 = vadd.f32 %v7551, %v7791
      %v7793 = vpop.f32.mrf.mxu0
      %v7794 = vadd.f32 %v7553, %v7793
      %7795 = vmatmul.bf16.gmra.mxu0 %v7732
      %v7796 = vpop.f32.mrf.mxu0
      %v7797 = vadd.f32 %v7556, %v7796
      %v7798 = vpop.f32.mrf.mxu0
      %v7799 = vadd.f32 %v7558, %v7798
      %7800 = vmatmul.bf16.gmra.mxu0 %v7735
      %v7801 = vpop.f32.mrf.mxu0
      %v7802 = vadd.f32 %v7561, %v7801
      %v7803 = vpop.f32.mrf.mxu0
      %v7804 = vadd.f32 %v7563, %v7803
      %7805 = vmatmul.bf16.gmra.mxu0 %v7738
      %v7806 = vpop.f32.mrf.mxu0
      %v7807 = vadd.f32 %v7566, %v7806
      %v7808 = vpop.f32.mrf.mxu0
      %v7809 = vadd.f32 %v7568, %v7808
      %7810 = vmatmul.bf16.gmra.mxu0 %v7741
      %v7811 = vpop.f32.mrf.mxu0
      %v7812 = vadd.f32 %v7571, %v7811
      %v7813 = vpop.f32.mrf.mxu0
      %v7814 = vadd.f32 %v7573, %v7813
      %7815 = vmatmul.bf16.gmra.mxu0 %v7744
      %v7816 = vpop.f32.mrf.mxu0
      %v7817 = vadd.f32 %v7576, %v7816
      %v7818 = vpop.f32.mrf.mxu0
      %v7819 = vadd.f32 %v7578, %v7818
      %7820 = vmatmul.bf16.gmra.mxu0 %v7747
      %v7821 = vpop.f32.mrf.mxu0
      %v7822 = vadd.f32 %v7581, %v7821
      %v7823 = vpop.f32.mrf.mxu0
      %v7824 = vadd.f32 %v7583, %v7823
      %7825 = vmatmul.bf16.gmra.mxu0 %v7750
      %v7826 = vpop.f32.mrf.mxu0
      %v7827 = vadd.f32 %v7586, %v7826
      %v7828 = vpop.f32.mrf.mxu0
      %v7829 = vadd.f32 %v7588, %v7828
      %7830 = vmatmul.bf16.gmra.mxu0 %v7753
      %v7831 = vpop.f32.mrf.mxu0
      %v7832 = vadd.f32 %v7591, %v7831
      %v7833 = vpop.f32.mrf.mxu0
      %v7834 = vadd.f32 %v7593, %v7833
      %7835 = vmatmul.bf16.gmra.mxu0 %v7756
      %v7836 = vpop.f32.mrf.mxu0
      %v7837 = vadd.f32 %v7596, %v7836
      %v7838 = vpop.f32.mrf.mxu0
      %v7839 = vadd.f32 %v7598, %v7838
      %7840 = vmatmul.bf16.gmra.mxu0 %v7759
      %v7841 = vpop.f32.mrf.mxu0
      %v7842 = vadd.f32 %v7601, %v7841
      %v7843 = vpop.f32.mrf.mxu0
      %v7844 = vadd.f32 %v7603, %v7843
      %7845 = vmatmul.bf16.gmra.mxu0 %v7762
      %v7846 = vpop.f32.mrf.mxu0
      %v7847 = vadd.f32 %v7606, %v7846
      %v7848 = vpop.f32.mrf.mxu0
      %v7849 = vadd.f32 %v7608, %v7848
      %7850 = vmatmul.bf16.gmra.mxu0 %v7765
      %v7851 = vpop.f32.mrf.mxu0
      %v7852 = vadd.f32 %v7611, %v7851
      %v7853 = vpop.f32.mrf.mxu0
      %v7854 = vadd.f32 %v7613, %v7853
      %7855 = vdwg.mxu0
      %v7856 = vld [vmem:[#allocation3] sm:$0xe]
      %v7857 = vld [vmem:[#allocation3 + $0xc] sm:$0xe]
      %v7858 = vld [vmem:[#allocation3 + $0x18] sm:$0xe]
      %v7859 = vld [vmem:[#allocation3 + $0x24] sm:$0xe]
      %v7860 = vld [vmem:[#allocation3 + $0x30] sm:$0xe]
      %v7861 = vld [vmem:[#allocation3 + $0x3c] sm:$0xe]
      %v7862 = vld [vmem:[#allocation3 + $0x48] sm:$0xe]
      %v7863 = vld [vmem:[#allocation3 + $0x54] sm:$0xe]
      %v7864 = vld [vmem:[#allocation3 + $0x60] sm:$0xe]
      %v7865 = vld [vmem:[#allocation3 + $0x6c] sm:$0xe]
      %v7866 = vld [vmem:[#allocation3 + $0x78] sm:$0xe]
      %v7867 = vld [vmem:[#allocation3 + $0x84] sm:$0xe]
      %v7868 = vld [vmem:[#allocation3 + $0x90] sm:$0xe]
      %v7869 = vld [vmem:[#allocation3 + $0x9c] sm:$0xe]
      %v7870 = vld [vmem:[#allocation3 + $0xa8] sm:$0xe]
      %v7871 = vld [vmem:[#allocation3 + $0xb4] sm:$0xe]
      %v7904 = vrot.slane %v7856, 5
      %v7905 = vrot.slane %v7904, 4
      %v7906 = vrot.slane %v6958, 5
      %v7907 = vsel %vm2002, %v7905, %v7906
      %v7908 = vrot.slane %v7906, 4
      %v7909 = vrot.slane %v6997, 5
      %v7910 = vsel %vm2002, %v7908, %v7909
      %v7911 = vrot.slane %v7857, 5
      %v7912 = vrot.slane %v7911, 4
      %v7913 = vrot.slane %v6960, 5
      %v7914 = vsel %vm2002, %v7912, %v7913
      %v7915 = vrot.slane %v7913, 4
      %v7916 = vrot.slane %v6998, 5
      %v7917 = vsel %vm2002, %v7915, %v7916
      %v7918 = vrot.slane %v7858, 5
      %v7919 = vrot.slane %v7918, 4
      %v7920 = vrot.slane %v6962, 5
      %v7921 = vsel %vm2002, %v7919, %v7920
      %v7922 = vrot.slane %v7920, 4
      %v7923 = vrot.slane %v6999, 5
      %v7924 = vsel %vm2002, %v7922, %v7923
      %v7925 = vrot.slane %v7859, 5
      %v7926 = vrot.slane %v7925, 4
      %v7927 = vrot.slane %v6964, 5
      %v7928 = vsel %vm2002, %v7926, %v7927
      %v7929 = vrot.slane %v7927, 4
      %v7930 = vrot.slane %v7000, 5
      %v7931 = vsel %vm2002, %v7929, %v7930
      %v7932 = vrot.slane %v7860, 5
      %v7933 = vrot.slane %v7932, 4
      %v7934 = vrot.slane %v6966, 5
      %v7935 = vsel %vm2002, %v7933, %v7934
      %v7936 = vrot.slane %v7934, 4
      %v7937 = vrot.slane %v7001, 5
      %v7938 = vsel %vm2002, %v7936, %v7937
      %v7939 = vrot.slane %v7861, 5
      %v7940 = vrot.slane %v7939, 4
      %v7941 = vrot.slane %v6968, 5
      %v7942 = vsel %vm2002, %v7940, %v7941
      %v7943 = vrot.slane %v7941, 4
      %v7944 = vrot.slane %v7002, 5
      %v7945 = vsel %vm2002, %v7943, %v7944
      %v7946 = vrot.slane %v7862, 5
      %v7947 = vrot.slane %v7946, 4
      %v7948 = vrot.slane %v6970, 5
      %v7949 = vsel %vm2002, %v7947, %v7948
      %v7950 = vrot.slane %v7948, 4
      %v7951 = vrot.slane %v7003, 5
      %v7952 = vsel %vm2002, %v7950, %v7951
      %v7953 = vrot.slane %v7863, 5
      %v7954 = vrot.slane %v7953, 4
      %v7955 = vrot.slane %v6972, 5
      %v7956 = vsel %vm2002, %v7954, %v7955
      %v7957 = vrot.slane %v7955, 4
      %v7958 = vrot.slane %v7004, 5
      %v7959 = vsel %vm2002, %v7957, %v7958
      %v7960 = vrot.slane %v7864, 5
      %v7961 = vrot.slane %v7960, 4
      %v7962 = vrot.slane %v6974, 5
      %v7963 = vsel %vm2002, %v7961, %v7962
      %v7964 = vrot.slane %v7962, 4
      %v7965 = vrot.slane %v7005, 5
      %v7966 = vsel %vm2002, %v7964, %v7965
      %v7967 = vrot.slane %v7865, 5
      %v7968 = vrot.slane %v7967, 4
      %v7969 = vrot.slane %v6976, 5
      %v7970 = vsel %vm2002, %v7968, %v7969
      %v7971 = vrot.slane %v7969, 4
      %v7972 = vrot.slane %v7006, 5
      %v7973 = vsel %vm2002, %v7971, %v7972
      %v7974 = vrot.slane %v7866, 5
      %v7975 = vrot.slane %v7974, 4
      %v7976 = vrot.slane %v6978, 5
      %v7977 = vsel %vm2002, %v7975, %v7976
      %v7978 = vrot.slane %v7976, 4
      %v7979 = vrot.slane %v7007, 5
      %v7980 = vsel %vm2002, %v7978, %v7979
      %v7981 = vrot.slane %v7867, 5
      %v7982 = vrot.slane %v7981, 4
      %v7983 = vrot.slane %v6980, 5
      %v7984 = vsel %vm2002, %v7982, %v7983
      %v7985 = vrot.slane %v7983, 4
      %v7986 = vrot.slane %v7008, 5
      %v7987 = vsel %vm2002, %v7985, %v7986
      %v7988 = vrot.slane %v7868, 5
      %v7989 = vrot.slane %v7988, 4
      %v7990 = vrot.slane %v6982, 5
      %v7991 = vsel %vm2002, %v7989, %v7990
      %v7992 = vrot.slane %v7990, 4
      %v7993 = vrot.slane %v7009, 5
      %v7994 = vsel %vm2002, %v7992, %v7993
      %v7995 = vrot.slane %v7869, 5
      %v7996 = vrot.slane %v7995, 4
      %v7997 = vrot.slane %v6984, 5
      %v7998 = vsel %vm2002, %v7996, %v7997
      %v7999 = vrot.slane %v7997, 4
      %v8000 = vrot.slane %v7010, 5
      %v8001 = vsel %vm2002, %v7999, %v8000
      %v8002 = vrot.slane %v7870, 5
      %v8003 = vrot.slane %v8002, 4
      %v8004 = vrot.slane %v6986, 5
      %v8005 = vsel %vm2002, %v8003, %v8004
      %v8006 = vrot.slane %v8004, 4
      %v8007 = vrot.slane %v7011, 5
      %v8008 = vsel %vm2002, %v8006, %v8007
      %v8009 = vrot.slane %v7871, 5
      %v8010 = vrot.slane %v8009, 4
      %v8011 = vrot.slane %v6988, 5
      %v8012 = vsel %vm2002, %v8010, %v8011
      %v8013 = vrot.slane %v8011, 4
      %v8014 = vrot.slane %v7012, 5
      %v8015 = vsel %vm2002, %v8013, %v8014
      %s8016 = scalar_lea.vmem %s6, 64
      %v8017 = vld [vmem:[%s8016] sm:$0xf]
      %v8018 = vld [vmem:[%s8016 + $0x4] sm:$0xf]
      %v8019 = vld [vmem:[%s8016 + $0x8] sm:$0xf]
      %v8020 = vld [vmem:[%s8016 + $0xc] sm:$0xf]
      %v8021 = vld [vmem:[%s8016 + $0x10] sm:$0xf]
      %v8022 = vld [vmem:[%s8016 + $0x14] sm:$0xf]
      %v8023 = vld [vmem:[%s8016 + $0x18] sm:$0xf]
      %v8024 = vld [vmem:[%s8016 + $0x1c] sm:$0xf]
      %v8025 = vunpack.c.l.b16 %v7907
      %v8026 = vunpack.c.l.b16 %v7910
      %v8027 = vunpack.c.l.b16 %v7914
      %v8028 = vunpack.c.l.b16 %v7917
      %v8029 = vunpack.c.l.b16 %v7921
      %v8030 = vunpack.c.l.b16 %v7924
      %v8031 = vunpack.c.l.b16 %v7928
      %v8032 = vunpack.c.l.b16 %v7931
      %v8033 = vunpack.c.l.b16 %v7935
      %v8034 = vunpack.c.l.b16 %v7938
      %v8035 = vunpack.c.l.b16 %v7942
      %v8036 = vunpack.c.l.b16 %v7945
      %v8037 = vunpack.c.l.b16 %v7949
      %v8038 = vunpack.c.l.b16 %v7952
      %v8039 = vunpack.c.l.b16 %v7956
      %v8040 = vunpack.c.l.b16 %v7959
      %v8041 = vunpack.c.l.b16 %v7963
      %v8042 = vunpack.c.l.b16 %v7966
      %v8043 = vunpack.c.l.b16 %v7970
      %v8044 = vunpack.c.l.b16 %v7973
      %v8045 = vunpack.c.l.b16 %v7977
      %v8046 = vunpack.c.l.b16 %v7980
      %v8047 = vunpack.c.l.b16 %v7984
      %v8048 = vunpack.c.l.b16 %v7987
      %v8049 = vunpack.c.l.b16 %v7991
      %v8050 = vunpack.c.l.b16 %v7994
      %v8051 = vunpack.c.l.b16 %v7998
      %v8052 = vunpack.c.l.b16 %v8001
      %v8053 = vunpack.c.l.b16 %v8005
      %v8054 = vunpack.c.l.b16 %v8008
      %v8055 = vunpack.c.l.b16 %v8012
      %v8056 = vunpack.c.l.b16 %v8015
      %v8057 = vpack.c.b16 %v8026, %v8025
      %v8058 = vpack.c.b16 %v8028, %v8027
      %v8059 = vpack.c.b16 %v8030, %v8029
      %v8060 = vpack.c.b16 %v8032, %v8031
      %v8061 = vpack.c.b16 %v8034, %v8033
      %v8062 = vpack.c.b16 %v8036, %v8035
      %v8063 = vpack.c.b16 %v8038, %v8037
      %v8064 = vpack.c.b16 %v8040, %v8039
      %v8065 = vpack.c.b16 %v8042, %v8041
      %v8066 = vpack.c.b16 %v8044, %v8043
      %v8067 = vpack.c.b16 %v8046, %v8045
      %v8068 = vpack.c.b16 %v8048, %v8047
      %v8069 = vpack.c.b16 %v8050, %v8049
      %v8070 = vpack.c.b16 %v8052, %v8051
      %v8071 = vpack.c.b16 %v8054, %v8053
      %v8072 = vpack.c.b16 %v8056, %v8055
      %v8081 = vunpack.c.l.b16 %v8017
      %v8082 = vunpack.c.l.b16 %v8018
      %v8083 = vunpack.c.l.b16 %v8019
      %v8084 = vunpack.c.l.b16 %v8020
      %v8085 = vunpack.c.l.b16 %v8021
      %v8086 = vunpack.c.l.b16 %v8022
      %v8087 = vunpack.c.l.b16 %v8023
      %v8088 = vunpack.c.l.b16 %v8024
      %v8089 = vpack.c.b16 %v8082, %v8081
      %v8090 = vpack.c.b16 %v8084, %v8083
      %v8091 = vpack.c.b16 %v8086, %v8085
      %v8092 = vpack.c.b16 %v8088, %v8087
      %v8098 = vsel %vm1573, %v8057, 0
      %v8101 = vsel %vm1573, %v8058, 0
      %v8104 = vsel %vm1573, %v8059, 0
      %v8107 = vsel %vm1573, %v8060, 0
      %v8110 = vsel %vm1573, %v8061, 0
      %v8113 = vsel %vm1573, %v8062, 0
      %v8116 = vsel %vm1573, %v8063, 0
      %v8119 = vsel %vm1573, %v8064, 0
      %v8122 = vsel %vm1573, %v8065, 0
      %v8125 = vsel %vm1573, %v8066, 0
      %v8128 = vsel %vm1573, %v8067, 0
      %v8131 = vsel %vm1573, %v8068, 0
      %v8134 = vsel %vm1573, %v8069, 0
      %v8137 = vsel %vm1573, %v8070, 0
      %v8140 = vsel %vm1573, %v8071, 0
      %v8143 = vsel %vm1573, %v8072, 0
      %8145 = vmatpush.bf16.msra.mxu0 0
      %8146 = vmatpush.bf16.msra.mxu0 0
      %8147 = vmatpush.bf16.msra.mxu0 0
      %8148 = vmatpush.bf16.msra.mxu0 0
      %8149 = vmatpush.bf16.msra.mxu0 %v8092
      %8150 = vmatpush.bf16.msra.mxu0 %v8091
      %8151 = vmatpush.bf16.msra.mxu0 %v8090
      %8152 = vmatpush.bf16.msra.mxu0 %v8089
      %8153 = vmatmul.bf16.gmra.mxu0 %v8098
      %v8154 = vpop.f32.mrf.mxu0
      %v8155 = vadd.f32 0.0, %v8154
      %v8156 = vpop.f32.mrf.mxu0
      %v8157 = vadd.f32 0.0, %v8156
      %8158 = vmatmul.bf16.gmra.mxu0 %v8101
      %v8159 = vpop.f32.mrf.mxu0
      %v8160 = vadd.f32 0.0, %v8159
      %v8161 = vpop.f32.mrf.mxu0
      %v8162 = vadd.f32 0.0, %v8161
      %8163 = vmatmul.bf16.gmra.mxu0 %v8104
      %v8164 = vpop.f32.mrf.mxu0
      %v8165 = vadd.f32 0.0, %v8164
      %v8166 = vpop.f32.mrf.mxu0
      %v8167 = vadd.f32 0.0, %v8166
      %8168 = vmatmul.bf16.gmra.mxu0 %v8107
      %v8169 = vpop.f32.mrf.mxu0
      %v8170 = vadd.f32 0.0, %v8169
      %v8171 = vpop.f32.mrf.mxu0
      %v8172 = vadd.f32 0.0, %v8171
      %8173 = vmatmul.bf16.gmra.mxu0 %v8110
      %v8174 = vpop.f32.mrf.mxu0
      %v8175 = vadd.f32 0.0, %v8174
      %v8176 = vpop.f32.mrf.mxu0
      %v8177 = vadd.f32 0.0, %v8176
      %8178 = vmatmul.bf16.gmra.mxu0 %v8113
      %v8179 = vpop.f32.mrf.mxu0
      %v8180 = vadd.f32 0.0, %v8179
      %v8181 = vpop.f32.mrf.mxu0
      %v8182 = vadd.f32 0.0, %v8181
      %8183 = vmatmul.bf16.gmra.mxu0 %v8116
      %v8184 = vpop.f32.mrf.mxu0
      %v8185 = vadd.f32 0.0, %v8184
      %v8186 = vpop.f32.mrf.mxu0
      %v8187 = vadd.f32 0.0, %v8186
      %8188 = vmatmul.bf16.gmra.mxu0 %v8119
      %v8189 = vpop.f32.mrf.mxu0
      %v8190 = vadd.f32 0.0, %v8189
      %v8191 = vpop.f32.mrf.mxu0
      %v8192 = vadd.f32 0.0, %v8191
      %8193 = vmatmul.bf16.gmra.mxu0 %v8122
      %v8194 = vpop.f32.mrf.mxu0
      %v8195 = vadd.f32 0.0, %v8194
      %v8196 = vpop.f32.mrf.mxu0
      %v8197 = vadd.f32 0.0, %v8196
      %8198 = vmatmul.bf16.gmra.mxu0 %v8125
      %v8199 = vpop.f32.mrf.mxu0
      %v8200 = vadd.f32 0.0, %v8199
      %v8201 = vpop.f32.mrf.mxu0
      %v8202 = vadd.f32 0.0, %v8201
      %8203 = vmatmul.bf16.gmra.mxu0 %v8128
      %v8204 = vpop.f32.mrf.mxu0
      %v8205 = vadd.f32 0.0, %v8204
      %v8206 = vpop.f32.mrf.mxu0
      %v8207 = vadd.f32 0.0, %v8206
      %8208 = vmatmul.bf16.gmra.mxu0 %v8131
      %v8209 = vpop.f32.mrf.mxu0
      %v8210 = vadd.f32 0.0, %v8209
      %v8211 = vpop.f32.mrf.mxu0
      %v8212 = vadd.f32 0.0, %v8211
      %8213 = vmatmul.bf16.gmra.mxu0 %v8134
      %v8214 = vpop.f32.mrf.mxu0
      %v8215 = vadd.f32 0.0, %v8214
      %v8216 = vpop.f32.mrf.mxu0
      %v8217 = vadd.f32 0.0, %v8216
      %8218 = vmatmul.bf16.gmra.mxu0 %v8137
      %v8219 = vpop.f32.mrf.mxu0
      %v8220 = vadd.f32 0.0, %v8219
      %v8221 = vpop.f32.mrf.mxu0
      %v8222 = vadd.f32 0.0, %v8221
      %8223 = vmatmul.bf16.gmra.mxu0 %v8140
      %v8224 = vpop.f32.mrf.mxu0
      %v8225 = vadd.f32 0.0, %v8224
      %v8226 = vpop.f32.mrf.mxu0
      %v8227 = vadd.f32 0.0, %v8226
      %8228 = vmatmul.bf16.gmra.mxu0 %v8143
      %v8229 = vpop.f32.mrf.mxu0
      %v8230 = vadd.f32 0.0, %v8229
      %v8231 = vpop.f32.mrf.mxu0
      %v8232 = vadd.f32 0.0, %v8231
      %8233 = vdwg.mxu0
      %v8234 = vadd.f32 %v7777, %v8155
      %v8235 = vadd.f32 %v7779, %v8157
      %v8236 = vadd.f32 %v7782, %v8160
      %v8237 = vadd.f32 %v7784, %v8162
      %v8238 = vadd.f32 %v7787, %v8165
      %v8239 = vadd.f32 %v7789, %v8167
      %v8240 = vadd.f32 %v7792, %v8170
      %v8241 = vadd.f32 %v7794, %v8172
      %v8242 = vadd.f32 %v7797, %v8175
      %v8243 = vadd.f32 %v7799, %v8177
      %v8244 = vadd.f32 %v7802, %v8180
      %v8245 = vadd.f32 %v7804, %v8182
      %v8246 = vadd.f32 %v7807, %v8185
      %v8247 = vadd.f32 %v7809, %v8187
      %v8248 = vadd.f32 %v7812, %v8190
      %v8249 = vadd.f32 %v7814, %v8192
      %v8250 = vadd.f32 %v7817, %v8195
      %v8251 = vadd.f32 %v7819, %v8197
      %v8252 = vadd.f32 %v7822, %v8200
      %v8253 = vadd.f32 %v7824, %v8202
      %v8254 = vadd.f32 %v7827, %v8205
      %v8255 = vadd.f32 %v7829, %v8207
      %v8256 = vadd.f32 %v7832, %v8210
      %v8257 = vadd.f32 %v7834, %v8212
      %v8258 = vadd.f32 %v7837, %v8215
      %v8259 = vadd.f32 %v7839, %v8217
      %v8260 = vadd.f32 %v7842, %v8220
      %v8261 = vadd.f32 %v7844, %v8222
      %v8262 = vadd.f32 %v7847, %v8225
      %v8263 = vadd.f32 %v7849, %v8227
      %v8264 = vadd.f32 %v7852, %v8230
      %v8265 = vadd.f32 %v7854, %v8232
      %v8266 = vld [vmem:[%s6841] sm:$0xf]
      %v8267 = vld [vmem:[%s6841 + $0x4] sm:$0xf]
      %v8268 = vld [vmem:[%s6841 + $0xc] sm:$0xf]
      %v8269 = vld [vmem:[%s6841 + $0x10] sm:$0xf]
      %v8270 = vld [vmem:[%s6841 + $0x18] sm:$0xf]
      %v8271 = vld [vmem:[%s6841 + $0x1c] sm:$0xf]
      %v8272 = vld [vmem:[%s6841 + $0x24] sm:$0xf]
      %v8273 = vld [vmem:[%s6841 + $0x28] sm:$0xf]
      %v8274 = vld [vmem:[%s6841 + $0x30] sm:$0xf]
      %v8275 = vld [vmem:[%s6841 + $0x34] sm:$0xf]
      %v8276 = vld [vmem:[%s6841 + $0x3c] sm:$0xf]
      %v8277 = vld [vmem:[%s6841 + $0x40] sm:$0xf]
      %v8278 = vld [vmem:[%s6841 + $0x48] sm:$0xf]
      %v8279 = vld [vmem:[%s6841 + $0x4c] sm:$0xf]
      %v8280 = vld [vmem:[%s6841 + $0x54] sm:$0xf]
      %v8281 = vld [vmem:[%s6841 + $0x58] sm:$0xf]
      %v8282 = vld [vmem:[%s6841 + $0x60] sm:$0xf]
      %v8283 = vld [vmem:[%s6841 + $0x64] sm:$0xf]
      %v8284 = vld [vmem:[%s6841 + $0x6c] sm:$0xf]
      %v8285 = vld [vmem:[%s6841 + $0x70] sm:$0xf]
      %v8286 = vld [vmem:[%s6841 + $0x78] sm:$0xf]
      %v8287 = vld [vmem:[%s6841 + $0x7c] sm:$0xf]
      %v8288 = vld [vmem:[%s6841 + $0x84] sm:$0xf]
      %v8289 = vld [vmem:[%s6841 + $0x88] sm:$0xf]
      %v8290 = vld [vmem:[%s6841 + $0x90] sm:$0xf]
      %v8291 = vld [vmem:[%s6841 + $0x94] sm:$0xf]
      %v8292 = vld [vmem:[%s6841 + $0x9c] sm:$0xf]
      %v8293 = vld [vmem:[%s6841 + $0xa0] sm:$0xf]
      %v8294 = vld [vmem:[%s6841 + $0xa8] sm:$0xf]
      %v8295 = vld [vmem:[%s6841 + $0xac] sm:$0xf]
      %v8296 = vld [vmem:[%s6841 + $0xb4] sm:$0xf]
      %v8297 = vld [vmem:[%s6841 + $0xb8] sm:$0xf]
      %s8298 = scalar_lea.vmem %s6, 96
      %v8299 = vld [vmem:[%s8298] sm:$0xf]
      %v8300 = vld [vmem:[%s8298 + $0x4] sm:$0xf]
      %v8301 = vld [vmem:[%s8298 + $0x8] sm:$0xf]
      %v8302 = vld [vmem:[%s8298 + $0xc] sm:$0xf]
      %v8303 = vld [vmem:[%s8298 + $0x10] sm:$0xf]
      %v8304 = vld [vmem:[%s8298 + $0x14] sm:$0xf]
      %v8305 = vld [vmem:[%s8298 + $0x18] sm:$0xf]
      %v8306 = vld [vmem:[%s8298 + $0x1c] sm:$0xf]
      %v8339 = vunpack.c.l.b16 %v8266
      %v8340 = vunpack.c.l.b16 %v8267
      %v8341 = vunpack.c.l.b16 %v8268
      %v8342 = vunpack.c.l.b16 %v8269
      %v8343 = vunpack.c.l.b16 %v8270
      %v8344 = vunpack.c.l.b16 %v8271
      %v8345 = vunpack.c.l.b16 %v8272
      %v8346 = vunpack.c.l.b16 %v8273
      %v8347 = vunpack.c.l.b16 %v8274
      %v8348 = vunpack.c.l.b16 %v8275
      %v8349 = vunpack.c.l.b16 %v8276
      %v8350 = vunpack.c.l.b16 %v8277
      %v8351 = vunpack.c.l.b16 %v8278
      %v8352 = vunpack.c.l.b16 %v8279
      %v8353 = vunpack.c.l.b16 %v8280
      %v8354 = vunpack.c.l.b16 %v8281
      %v8355 = vunpack.c.l.b16 %v8282
      %v8356 = vunpack.c.l.b16 %v8283
      %v8357 = vunpack.c.l.b16 %v8284
      %v8358 = vunpack.c.l.b16 %v8285
      %v8359 = vunpack.c.l.b16 %v8286
      %v8360 = vunpack.c.l.b16 %v8287
      %v8361 = vunpack.c.l.b16 %v8288
      %v8362 = vunpack.c.l.b16 %v8289
      %v8363 = vunpack.c.l.b16 %v8290
      %v8364 = vunpack.c.l.b16 %v8291
      %v8365 = vunpack.c.l.b16 %v8292
      %v8366 = vunpack.c.l.b16 %v8293
      %v8367 = vunpack.c.l.b16 %v8294
      %v8368 = vunpack.c.l.b16 %v8295
      %v8369 = vunpack.c.l.b16 %v8296
      %v8370 = vunpack.c.l.b16 %v8297
      %v8371 = vpack.c.b16 %v8340, %v8339
      %v8372 = vpack.c.b16 %v8342, %v8341
      %v8373 = vpack.c.b16 %v8344, %v8343
      %v8374 = vpack.c.b16 %v8346, %v8345
      %v8375 = vpack.c.b16 %v8348, %v8347
      %v8376 = vpack.c.b16 %v8350, %v8349
      %v8377 = vpack.c.b16 %v8352, %v8351
      %v8378 = vpack.c.b16 %v8354, %v8353
      %v8379 = vpack.c.b16 %v8356, %v8355
      %v8380 = vpack.c.b16 %v8358, %v8357
      %v8381 = vpack.c.b16 %v8360, %v8359
      %v8382 = vpack.c.b16 %v8362, %v8361
      %v8383 = vpack.c.b16 %v8364, %v8363
      %v8384 = vpack.c.b16 %v8366, %v8365
      %v8385 = vpack.c.b16 %v8368, %v8367
      %v8386 = vpack.c.b16 %v8370, %v8369
      %v8395 = vunpack.c.l.b16 %v8299
      %v8396 = vunpack.c.l.b16 %v8300
      %v8397 = vunpack.c.l.b16 %v8301
      %v8398 = vunpack.c.l.b16 %v8302
      %v8399 = vunpack.c.l.b16 %v8303
      %v8400 = vunpack.c.l.b16 %v8304
      %v8401 = vunpack.c.l.b16 %v8305
      %v8402 = vunpack.c.l.b16 %v8306
      %v8403 = vpack.c.b16 %v8396, %v8395
      %v8404 = vpack.c.b16 %v8398, %v8397
      %v8405 = vpack.c.b16 %v8400, %v8399
      %v8406 = vpack.c.b16 %v8402, %v8401
      %v8412 = vsel %vm1573, %v8371, 0
      %v8415 = vsel %vm1573, %v8372, 0
      %v8418 = vsel %vm1573, %v8373, 0
      %v8421 = vsel %vm1573, %v8374, 0
      %v8424 = vsel %vm1573, %v8375, 0
      %v8427 = vsel %vm1573, %v8376, 0
      %v8430 = vsel %vm1573, %v8377, 0
      %v8433 = vsel %vm1573, %v8378, 0
      %v8436 = vsel %vm1573, %v8379, 0
      %v8439 = vsel %vm1573, %v8380, 0
      %v8442 = vsel %vm1573, %v8381, 0
      %v8445 = vsel %vm1573, %v8382, 0
      %v8448 = vsel %vm1573, %v8383, 0
      %v8451 = vsel %vm1573, %v8384, 0
      %v8454 = vsel %vm1573, %v8385, 0
      %v8457 = vsel %vm1573, %v8386, 0
      %8459 = vmatpush.bf16.msra.mxu0 0
      %8460 = vmatpush.bf16.msra.mxu0 0
      %8461 = vmatpush.bf16.msra.mxu0 0
      %8462 = vmatpush.bf16.msra.mxu0 0
      %8463 = vmatpush.bf16.msra.mxu0 %v8406
      %8464 = vmatpush.bf16.msra.mxu0 %v8405
      %8465 = vmatpush.bf16.msra.mxu0 %v8404
      %8466 = vmatpush.bf16.msra.mxu0 %v8403
      %8467 = vmatmul.bf16.gmra.mxu0 %v8412
      %v8468 = vpop.f32.mrf.mxu0
      %v8469 = vadd.f32 0.0, %v8468
      %v8470 = vpop.f32.mrf.mxu0
      %v8471 = vadd.f32 0.0, %v8470
      %8472 = vmatmul.bf16.gmra.mxu0 %v8415
      %v8473 = vpop.f32.mrf.mxu0
      %v8474 = vadd.f32 0.0, %v8473
      %v8475 = vpop.f32.mrf.mxu0
      %v8476 = vadd.f32 0.0, %v8475
      %8477 = vmatmul.bf16.gmra.mxu0 %v8418
      %v8478 = vpop.f32.mrf.mxu0
      %v8479 = vadd.f32 0.0, %v8478
      %v8480 = vpop.f32.mrf.mxu0
      %v8481 = vadd.f32 0.0, %v8480
      %8482 = vmatmul.bf16.gmra.mxu0 %v8421
      %v8483 = vpop.f32.mrf.mxu0
      %v8484 = vadd.f32 0.0, %v8483
      %v8485 = vpop.f32.mrf.mxu0
      %v8486 = vadd.f32 0.0, %v8485
      %8487 = vmatmul.bf16.gmra.mxu0 %v8424
      %v8488 = vpop.f32.mrf.mxu0
      %v8489 = vadd.f32 0.0, %v8488
      %v8490 = vpop.f32.mrf.mxu0
      %v8491 = vadd.f32 0.0, %v8490
      %8492 = vmatmul.bf16.gmra.mxu0 %v8427
      %v8493 = vpop.f32.mrf.mxu0
      %v8494 = vadd.f32 0.0, %v8493
      %v8495 = vpop.f32.mrf.mxu0
      %v8496 = vadd.f32 0.0, %v8495
      %8497 = vmatmul.bf16.gmra.mxu0 %v8430
      %v8498 = vpop.f32.mrf.mxu0
      %v8499 = vadd.f32 0.0, %v8498
      %v8500 = vpop.f32.mrf.mxu0
      %v8501 = vadd.f32 0.0, %v8500
      %8502 = vmatmul.bf16.gmra.mxu0 %v8433
      %v8503 = vpop.f32.mrf.mxu0
      %v8504 = vadd.f32 0.0, %v8503
      %v8505 = vpop.f32.mrf.mxu0
      %v8506 = vadd.f32 0.0, %v8505
      %8507 = vmatmul.bf16.gmra.mxu0 %v8436
      %v8508 = vpop.f32.mrf.mxu0
      %v8509 = vadd.f32 0.0, %v8508
      %v8510 = vpop.f32.mrf.mxu0
      %v8511 = vadd.f32 0.0, %v8510
      %8512 = vmatmul.bf16.gmra.mxu0 %v8439
      %v8513 = vpop.f32.mrf.mxu0
      %v8514 = vadd.f32 0.0, %v8513
      %v8515 = vpop.f32.mrf.mxu0
      %v8516 = vadd.f32 0.0, %v8515
      %8517 = vmatmul.bf16.gmra.mxu0 %v8442
      %v8518 = vpop.f32.mrf.mxu0
      %v8519 = vadd.f32 0.0, %v8518
      %v8520 = vpop.f32.mrf.mxu0
      %v8521 = vadd.f32 0.0, %v8520
      %8522 = vmatmul.bf16.gmra.mxu0 %v8445
      %v8523 = vpop.f32.mrf.mxu0
      %v8524 = vadd.f32 0.0, %v8523
      %v8525 = vpop.f32.mrf.mxu0
      %v8526 = vadd.f32 0.0, %v8525
      %8527 = vmatmul.bf16.gmra.mxu0 %v8448
      %v8528 = vpop.f32.mrf.mxu0
      %v8529 = vadd.f32 0.0, %v8528
      %v8530 = vpop.f32.mrf.mxu0
      %v8531 = vadd.f32 0.0, %v8530
      %8532 = vmatmul.bf16.gmra.mxu0 %v8451
      %v8533 = vpop.f32.mrf.mxu0
      %v8534 = vadd.f32 0.0, %v8533
      %v8535 = vpop.f32.mrf.mxu0
      %v8536 = vadd.f32 0.0, %v8535
      %8537 = vmatmul.bf16.gmra.mxu0 %v8454
      %v8538 = vpop.f32.mrf.mxu0
      %v8539 = vadd.f32 0.0, %v8538
      %v8540 = vpop.f32.mrf.mxu0
      %v8541 = vadd.f32 0.0, %v8540
      %8542 = vmatmul.bf16.gmra.mxu0 %v8457
      %v8543 = vpop.f32.mrf.mxu0
      %v8544 = vadd.f32 0.0, %v8543
      %v8545 = vpop.f32.mrf.mxu0
      %v8546 = vadd.f32 0.0, %v8545
      %8547 = vdwg.mxu0
      %v8548 = vadd.f32 %v8234, %v8469
      %v8549 = vadd.f32 %v8235, %v8471
      %v8550 = vadd.f32 %v8236, %v8474
      %v8551 = vadd.f32 %v8237, %v8476
      %v8552 = vadd.f32 %v8238, %v8479
      %v8553 = vadd.f32 %v8239, %v8481
      %v8554 = vadd.f32 %v8240, %v8484
      %v8555 = vadd.f32 %v8241, %v8486
      %v8556 = vadd.f32 %v8242, %v8489
      %v8557 = vadd.f32 %v8243, %v8491
      %v8558 = vadd.f32 %v8244, %v8494
      %v8559 = vadd.f32 %v8245, %v8496
      %v8560 = vadd.f32 %v8246, %v8499
      %v8561 = vadd.f32 %v8247, %v8501
      %v8562 = vadd.f32 %v8248, %v8504
      %v8563 = vadd.f32 %v8249, %v8506
      %v8564 = vadd.f32 %v8250, %v8509
      %v8565 = vadd.f32 %v8251, %v8511
      %v8566 = vadd.f32 %v8252, %v8514
      %v8567 = vadd.f32 %v8253, %v8516
      %v8568 = vadd.f32 %v8254, %v8519
      %v8569 = vadd.f32 %v8255, %v8521
      %v8570 = vadd.f32 %v8256, %v8524
      %v8571 = vadd.f32 %v8257, %v8526
      %v8572 = vadd.f32 %v8258, %v8529
      %v8573 = vadd.f32 %v8259, %v8531
      %v8574 = vadd.f32 %v8260, %v8534
      %v8575 = vadd.f32 %v8261, %v8536
      %v8576 = vadd.f32 %v8262, %v8539
      %v8577 = vadd.f32 %v8263, %v8541
      %v8578 = vadd.f32 %v8264, %v8544
      %v8579 = vadd.f32 %v8265, %v8546
      %v8580 = vld [vmem:[%s6841] sm:$0xf]
      %v8581 = vld [vmem:[%s6841 + $0x4] sm:$0xf]
      %v8582 = vld [vmem:[%s6841 + $0x8] sm:$0x1]
      %v8583 = vld [vmem:[%s6841 + $0xc] sm:$0xf]
      %v8584 = vld [vmem:[%s6841 + $0x10] sm:$0xf]
      %v8585 = vld [vmem:[%s6841 + $0x14] sm:$0x1]
      %v8586 = vld [vmem:[%s6841 + $0x18] sm:$0xf]
      %v8587 = vld [vmem:[%s6841 + $0x1c] sm:$0xf]
      %v8588 = vld [vmem:[%s6841 + $0x20] sm:$0x1]
      %v8589 = vld [vmem:[%s6841 + $0x24] sm:$0xf]
      %v8590 = vld [vmem:[%s6841 + $0x28] sm:$0xf]
      %v8591 = vld [vmem:[%s6841 + $0x2c] sm:$0x1]
      %v8592 = vld [vmem:[%s6841 + $0x30] sm:$0xf]
      %v8593 = vld [vmem:[%s6841 + $0x34] sm:$0xf]
      %v8594 = vld [vmem:[%s6841 + $0x38] sm:$0x1]
      %v8595 = vld [vmem:[%s6841 + $0x3c] sm:$0xf]
      %v8596 = vld [vmem:[%s6841 + $0x40] sm:$0xf]
      %v8597 = vld [vmem:[%s6841 + $0x44] sm:$0x1]
      %v8598 = vld [vmem:[%s6841 + $0x48] sm:$0xf]
      %v8599 = vld [vmem:[%s6841 + $0x4c] sm:$0xf]
      %v8600 = vld [vmem:[%s6841 + $0x50] sm:$0x1]
      %v8601 = vld [vmem:[%s6841 + $0x54] sm:$0xf]
      %v8602 = vld [vmem:[%s6841 + $0x58] sm:$0xf]
      %v8603 = vld [vmem:[%s6841 + $0x5c] sm:$0x1]
      %v8604 = vld [vmem:[%s6841 + $0x60] sm:$0xf]
      %v8605 = vld [vmem:[%s6841 + $0x64] sm:$0xf]
      %v8606 = vld [vmem:[%s6841 + $0x68] sm:$0x1]
      %v8607 = vld [vmem:[%s6841 + $0x6c] sm:$0xf]
      %v8608 = vld [vmem:[%s6841 + $0x70] sm:$0xf]
      %v8609 = vld [vmem:[%s6841 + $0x74] sm:$0x1]
      %v8610 = vld [vmem:[%s6841 + $0x78] sm:$0xf]
      %v8611 = vld [vmem:[%s6841 + $0x7c] sm:$0xf]
      %v8612 = vld [vmem:[%s6841 + $0x80] sm:$0x1]
      %v8613 = vld [vmem:[%s6841 + $0x84] sm:$0xf]
      %v8614 = vld [vmem:[%s6841 + $0x88] sm:$0xf]
      %v8615 = vld [vmem:[%s6841 + $0x8c] sm:$0x1]
      %v8616 = vld [vmem:[%s6841 + $0x90] sm:$0xf]
      %v8617 = vld [vmem:[%s6841 + $0x94] sm:$0xf]
      %v8618 = vld [vmem:[%s6841 + $0x98] sm:$0x1]
      %v8619 = vld [vmem:[%s6841 + $0x9c] sm:$0xf]
      %v8620 = vld [vmem:[%s6841 + $0xa0] sm:$0xf]
      %v8621 = vld [vmem:[%s6841 + $0xa4] sm:$0x1]
      %v8622 = vld [vmem:[%s6841 + $0xa8] sm:$0xf]
      %v8623 = vld [vmem:[%s6841 + $0xac] sm:$0xf]
      %v8624 = vld [vmem:[%s6841 + $0xb0] sm:$0x1]
      %v8625 = vld [vmem:[%s6841 + $0xb4] sm:$0xf]
      %v8626 = vld [vmem:[%s6841 + $0xb8] sm:$0xf]
      %v8627 = vld [vmem:[%s6841 + $0xbc] sm:$0x1]
      %v8629 = vshrl.u32 %v8580, 16
      %v8631 = vrot.slane %v8629, 4
      %v8632 = vshll.u32 %v8580, 16
      %v8634 = vrot.slane %v8632, 5
      %v8635 = vor.u32 %v8631, %v8634
      %v8636 = vrot.slane %v8635, 4
      %v8638 = vshll.u32 %v8581, 16
      %v8640 = vrot.slane %v8638, 5
      %v8641 = vsel %vm1107, %v8636, %v8640
      %v8642 = vshrl.u32 %v8581, 16
      %v8644 = vrot.slane %v8642, 4
      %v8645 = vor.u32 %v8644, %v8640
      %v8646 = vrot.slane %v8645, 4
      %v8648 = vshll.u32 %v8582, 16
      %v8650 = vrot.slane %v8648, 5
      %v8651 = vsel %vm1107, %v8646, %v8650
      %v8653 = vshrl.u32 %v8583, 16
      %v8655 = vrot.slane %v8653, 4
      %v8656 = vshll.u32 %v8583, 16
      %v8658 = vrot.slane %v8656, 5
      %v8659 = vor.u32 %v8655, %v8658
      %v8660 = vrot.slane %v8659, 4
      %v8662 = vshll.u32 %v8584, 16
      %v8664 = vrot.slane %v8662, 5
      %v8665 = vsel %vm1107, %v8660, %v8664
      %v8666 = vshrl.u32 %v8584, 16
      %v8668 = vrot.slane %v8666, 4
      %v8669 = vor.u32 %v8668, %v8664
      %v8670 = vrot.slane %v8669, 4
      %v8672 = vshll.u32 %v8585, 16
      %v8674 = vrot.slane %v8672, 5
      %v8675 = vsel %vm1107, %v8670, %v8674
      %v8677 = vshrl.u32 %v8586, 16
      %v8679 = vrot.slane %v8677, 4
      %v8680 = vshll.u32 %v8586, 16
      %v8682 = vrot.slane %v8680, 5
      %v8683 = vor.u32 %v8679, %v8682
      %v8684 = vrot.slane %v8683, 4
      %v8686 = vshll.u32 %v8587, 16
      %v8688 = vrot.slane %v8686, 5
      %v8689 = vsel %vm1107, %v8684, %v8688
      %v8690 = vshrl.u32 %v8587, 16
      %v8692 = vrot.slane %v8690, 4
      %v8693 = vor.u32 %v8692, %v8688
      %v8694 = vrot.slane %v8693, 4
      %v8696 = vshll.u32 %v8588, 16
      %v8698 = vrot.slane %v8696, 5
      %v8699 = vsel %vm1107, %v8694, %v8698
      %v8701 = vshrl.u32 %v8589, 16
      %v8703 = vrot.slane %v8701, 4
      %v8704 = vshll.u32 %v8589, 16
      %v8706 = vrot.slane %v8704, 5
      %v8707 = vor.u32 %v8703, %v8706
      %v8708 = vrot.slane %v8707, 4
      %v8710 = vshll.u32 %v8590, 16
      %v8712 = vrot.slane %v8710, 5
      %v8713 = vsel %vm1107, %v8708, %v8712
      %v8714 = vshrl.u32 %v8590, 16
      %v8716 = vrot.slane %v8714, 4
      %v8717 = vor.u32 %v8716, %v8712
      %v8718 = vrot.slane %v8717, 4
      %v8720 = vshll.u32 %v8591, 16
      %v8722 = vrot.slane %v8720, 5
      %v8723 = vsel %vm1107, %v8718, %v8722
      %v8725 = vshrl.u32 %v8592, 16
      %v8727 = vrot.slane %v8725, 4
      %v8728 = vshll.u32 %v8592, 16
      %v8730 = vrot.slane %v8728, 5
      %v8731 = vor.u32 %v8727, %v8730
      %v8732 = vrot.slane %v8731, 4
      %v8734 = vshll.u32 %v8593, 16
      %v8736 = vrot.slane %v8734, 5
      %v8737 = vsel %vm1107, %v8732, %v8736
      %v8738 = vshrl.u32 %v8593, 16
      %v8740 = vrot.slane %v8738, 4
      %v8741 = vor.u32 %v8740, %v8736
      %v8742 = vrot.slane %v8741, 4
      %v8744 = vshll.u32 %v8594, 16
      %v8746 = vrot.slane %v8744, 5
      %v8747 = vsel %vm1107, %v8742, %v8746
      %v8749 = vshrl.u32 %v8595, 16
      %v8751 = vrot.slane %v8749, 4
      %v8752 = vshll.u32 %v8595, 16
      %v8754 = vrot.slane %v8752, 5
      %v8755 = vor.u32 %v8751, %v8754
      %v8756 = vrot.slane %v8755, 4
      %v8758 = vshll.u32 %v8596, 16
      %v8760 = vrot.slane %v8758, 5
      %v8761 = vsel %vm1107, %v8756, %v8760
      %v8762 = vshrl.u32 %v8596, 16
      %v8764 = vrot.slane %v8762, 4
      %v8765 = vor.u32 %v8764, %v8760
      %v8766 = vrot.slane %v8765, 4
      %v8768 = vshll.u32 %v8597, 16
      %v8770 = vrot.slane %v8768, 5
      %v8771 = vsel %vm1107, %v8766, %v8770
      %v8773 = vshrl.u32 %v8598, 16
      %v8775 = vrot.slane %v8773, 4
      %v8776 = vshll.u32 %v8598, 16
      %v8778 = vrot.slane %v8776, 5
      %v8779 = vor.u32 %v8775, %v8778
      %v8780 = vrot.slane %v8779, 4
      %v8782 = vshll.u32 %v8599, 16
      %v8784 = vrot.slane %v8782, 5
      %v8785 = vsel %vm1107, %v8780, %v8784
      %v8786 = vshrl.u32 %v8599, 16
      %v8788 = vrot.slane %v8786, 4
      %v8789 = vor.u32 %v8788, %v8784
      %v8790 = vrot.slane %v8789, 4
      %v8792 = vshll.u32 %v8600, 16
      %v8794 = vrot.slane %v8792, 5
      %v8795 = vsel %vm1107, %v8790, %v8794
      %v8797 = vshrl.u32 %v8601, 16
      %v8799 = vrot.slane %v8797, 4
      %v8800 = vshll.u32 %v8601, 16
      %v8802 = vrot.slane %v8800, 5
      %v8803 = vor.u32 %v8799, %v8802
      %v8804 = vrot.slane %v8803, 4
      %v8806 = vshll.u32 %v8602, 16
      %v8808 = vrot.slane %v8806, 5
      %v8809 = vsel %vm1107, %v8804, %v8808
      %v8810 = vshrl.u32 %v8602, 16
      %v8812 = vrot.slane %v8810, 4
      %v8813 = vor.u32 %v8812, %v8808
      %v8814 = vrot.slane %v8813, 4
      %v8816 = vshll.u32 %v8603, 16
      %v8818 = vrot.slane %v8816, 5
      %v8819 = vsel %vm1107, %v8814, %v8818
      %v8821 = vshrl.u32 %v8604, 16
      %v8823 = vrot.slane %v8821, 4
      %v8824 = vshll.u32 %v8604, 16
      %v8826 = vrot.slane %v8824, 5
      %v8827 = vor.u32 %v8823, %v8826
      %v8828 = vrot.slane %v8827, 4
      %v8830 = vshll.u32 %v8605, 16
      %v8832 = vrot.slane %v8830, 5
      %v8833 = vsel %vm1107, %v8828, %v8832
      %v8834 = vshrl.u32 %v8605, 16
      %v8836 = vrot.slane %v8834, 4
      %v8837 = vor.u32 %v8836, %v8832
      %v8838 = vrot.slane %v8837, 4
      %v8840 = vshll.u32 %v8606, 16
      %v8842 = vrot.slane %v8840, 5
      %v8843 = vsel %vm1107, %v8838, %v8842
      %v8845 = vshrl.u32 %v8607, 16
      %v8847 = vrot.slane %v8845, 4
      %v8848 = vshll.u32 %v8607, 16
      %v8850 = vrot.slane %v8848, 5
      %v8851 = vor.u32 %v8847, %v8850
      %v8852 = vrot.slane %v8851, 4
      %v8854 = vshll.u32 %v8608, 16
      %v8856 = vrot.slane %v8854, 5
      %v8857 = vsel %vm1107, %v8852, %v8856
      %v8858 = vshrl.u32 %v8608, 16
      %v8860 = vrot.slane %v8858, 4
      %v8861 = vor.u32 %v8860, %v8856
      %v8862 = vrot.slane %v8861, 4
      %v8864 = vshll.u32 %v8609, 16
      %v8866 = vrot.slane %v8864, 5
      %v8867 = vsel %vm1107, %v8862, %v8866
      %v8869 = vshrl.u32 %v8610, 16
      %v8871 = vrot.slane %v8869, 4
      %v8872 = vshll.u32 %v8610, 16
      %v8874 = vrot.slane %v8872, 5
      %v8875 = vor.u32 %v8871, %v8874
      %v8876 = vrot.slane %v8875, 4
      %v8878 = vshll.u32 %v8611, 16
      %v8880 = vrot.slane %v8878, 5
      %v8881 = vsel %vm1107, %v8876, %v8880
      %v8882 = vshrl.u32 %v8611, 16
      %v8884 = vrot.slane %v8882, 4
      %v8885 = vor.u32 %v8884, %v8880
      %v8886 = vrot.slane %v8885, 4
      %v8888 = vshll.u32 %v8612, 16
      %v8890 = vrot.slane %v8888, 5
      %v8891 = vsel %vm1107, %v8886, %v8890
      %v8893 = vshrl.u32 %v8613, 16
      %v8895 = vrot.slane %v8893, 4
      %v8896 = vshll.u32 %v8613, 16
      %v8898 = vrot.slane %v8896, 5
      %v8899 = vor.u32 %v8895, %v8898
      %v8900 = vrot.slane %v8899, 4
      %v8902 = vshll.u32 %v8614, 16
      %v8904 = vrot.slane %v8902, 5
      %v8905 = vsel %vm1107, %v8900, %v8904
      %v8906 = vshrl.u32 %v8614, 16
      %v8908 = vrot.slane %v8906, 4
      %v8909 = vor.u32 %v8908, %v8904
      %v8910 = vrot.slane %v8909, 4
      %v8912 = vshll.u32 %v8615, 16
      %v8914 = vrot.slane %v8912, 5
      %v8915 = vsel %vm1107, %v8910, %v8914
      %v8917 = vshrl.u32 %v8616, 16
      %v8919 = vrot.slane %v8917, 4
      %v8920 = vshll.u32 %v8616, 16
      %v8922 = vrot.slane %v8920, 5
      %v8923 = vor.u32 %v8919, %v8922
      %v8924 = vrot.slane %v8923, 4
      %v8926 = vshll.u32 %v8617, 16
      %v8928 = vrot.slane %v8926, 5
      %v8929 = vsel %vm1107, %v8924, %v8928
      %v8930 = vshrl.u32 %v8617, 16
      %v8932 = vrot.slane %v8930, 4
      %v8933 = vor.u32 %v8932, %v8928
      %v8934 = vrot.slane %v8933, 4
      %v8936 = vshll.u32 %v8618, 16
      %v8938 = vrot.slane %v8936, 5
      %v8939 = vsel %vm1107, %v8934, %v8938
      %v8941 = vshrl.u32 %v8619, 16
      %v8943 = vrot.slane %v8941, 4
      %v8944 = vshll.u32 %v8619, 16
      %v8946 = vrot.slane %v8944, 5
      %v8947 = vor.u32 %v8943, %v8946
      %v8948 = vrot.slane %v8947, 4
      %v8950 = vshll.u32 %v8620, 16
      %v8952 = vrot.slane %v8950, 5
      %v8953 = vsel %vm1107, %v8948, %v8952
      %v8954 = vshrl.u32 %v8620, 16
      %v8956 = vrot.slane %v8954, 4
      %v8957 = vor.u32 %v8956, %v8952
      %v8958 = vrot.slane %v8957, 4
      %v8960 = vshll.u32 %v8621, 16
      %v8962 = vrot.slane %v8960, 5
      %v8963 = vsel %vm1107, %v8958, %v8962
      %v8965 = vshrl.u32 %v8622, 16
      %v8967 = vrot.slane %v8965, 4
      %v8968 = vshll.u32 %v8622, 16
      %v8970 = vrot.slane %v8968, 5
      %v8971 = vor.u32 %v8967, %v8970
      %v8972 = vrot.slane %v8971, 4
      %v8974 = vshll.u32 %v8623, 16
      %v8976 = vrot.slane %v8974, 5
      %v8977 = vsel %vm1107, %v8972, %v8976
      %v8978 = vshrl.u32 %v8623, 16
      %v8980 = vrot.slane %v8978, 4
      %v8981 = vor.u32 %v8980, %v8976
      %v8982 = vrot.slane %v8981, 4
      %v8984 = vshll.u32 %v8624, 16
      %v8986 = vrot.slane %v8984, 5
      %v8987 = vsel %vm1107, %v8982, %v8986
      %v8989 = vshrl.u32 %v8625, 16
      %v8991 = vrot.slane %v8989, 4
      %v8992 = vshll.u32 %v8625, 16
      %v8994 = vrot.slane %v8992, 5
      %v8995 = vor.u32 %v8991, %v8994
      %v8996 = vrot.slane %v8995, 4
      %v8998 = vshll.u32 %v8626, 16
      %v9000 = vrot.slane %v8998, 5
      %v9001 = vsel %vm1107, %v8996, %v9000
      %v9002 = vshrl.u32 %v8626, 16
      %v9004 = vrot.slane %v9002, 4
      %v9005 = vor.u32 %v9004, %v9000
      %v9006 = vrot.slane %v9005, 4
      %v9008 = vshll.u32 %v8627, 16
      %v9010 = vrot.slane %v9008, 5
      %v9011 = vsel %vm1107, %v9006, %v9010
      %s9012 = scalar_lea.vmem %s6, 128
      %v9013 = vld [vmem:[%s9012] sm:$0xf]
      %v9014 = vld [vmem:[%s9012 + $0x4] sm:$0xf]
      %v9015 = vld [vmem:[%s9012 + $0x8] sm:$0xf]
      %v9016 = vld [vmem:[%s9012 + $0xc] sm:$0xf]
      %v9017 = vld [vmem:[%s9012 + $0x10] sm:$0xf]
      %v9018 = vld [vmem:[%s9012 + $0x14] sm:$0xf]
      %v9019 = vld [vmem:[%s9012 + $0x18] sm:$0xf]
      %v9020 = vld [vmem:[%s9012 + $0x1c] sm:$0xf]
      %v9021 = vunpack.c.l.b16 %v8641
      %v9022 = vunpack.c.l.b16 %v8651
      %v9023 = vunpack.c.l.b16 %v8665
      %v9024 = vunpack.c.l.b16 %v8675
      %v9025 = vunpack.c.l.b16 %v8689
      %v9026 = vunpack.c.l.b16 %v8699
      %v9027 = vunpack.c.l.b16 %v8713
      %v9028 = vunpack.c.l.b16 %v8723
      %v9029 = vunpack.c.l.b16 %v8737
      %v9030 = vunpack.c.l.b16 %v8747
      %v9031 = vunpack.c.l.b16 %v8761
      %v9032 = vunpack.c.l.b16 %v8771
      %v9033 = vunpack.c.l.b16 %v8785
      %v9034 = vunpack.c.l.b16 %v8795
      %v9035 = vunpack.c.l.b16 %v8809
      %v9036 = vunpack.c.l.b16 %v8819
      %v9037 = vunpack.c.l.b16 %v8833
      %v9038 = vunpack.c.l.b16 %v8843
      %v9039 = vunpack.c.l.b16 %v8857
      %v9040 = vunpack.c.l.b16 %v8867
      %v9041 = vunpack.c.l.b16 %v8881
      %v9042 = vunpack.c.l.b16 %v8891
      %v9043 = vunpack.c.l.b16 %v8905
      %v9044 = vunpack.c.l.b16 %v8915
      %v9045 = vunpack.c.l.b16 %v8929
      %v9046 = vunpack.c.l.b16 %v8939
      %v9047 = vunpack.c.l.b16 %v8953
      %v9048 = vunpack.c.l.b16 %v8963
      %v9049 = vunpack.c.l.b16 %v8977
      %v9050 = vunpack.c.l.b16 %v8987
      %v9051 = vunpack.c.l.b16 %v9001
      %v9052 = vunpack.c.l.b16 %v9011
      %v9053 = vpack.c.b16 %v9022, %v9021
      %v9054 = vpack.c.b16 %v9024, %v9023
      %v9055 = vpack.c.b16 %v9026, %v9025
      %v9056 = vpack.c.b16 %v9028, %v9027
      %v9057 = vpack.c.b16 %v9030, %v9029
      %v9058 = vpack.c.b16 %v9032, %v9031
      %v9059 = vpack.c.b16 %v9034, %v9033
      %v9060 = vpack.c.b16 %v9036, %v9035
      %v9061 = vpack.c.b16 %v9038, %v9037
      %v9062 = vpack.c.b16 %v9040, %v9039
      %v9063 = vpack.c.b16 %v9042, %v9041
      %v9064 = vpack.c.b16 %v9044, %v9043
      %v9065 = vpack.c.b16 %v9046, %v9045
      %v9066 = vpack.c.b16 %v9048, %v9047
      %v9067 = vpack.c.b16 %v9050, %v9049
      %v9068 = vpack.c.b16 %v9052, %v9051
      %v9077 = vunpack.c.l.b16 %v9013
      %v9078 = vunpack.c.l.b16 %v9014
      %v9079 = vunpack.c.l.b16 %v9015
      %v9080 = vunpack.c.l.b16 %v9016
      %v9081 = vunpack.c.l.b16 %v9017
      %v9082 = vunpack.c.l.b16 %v9018
      %v9083 = vunpack.c.l.b16 %v9019
      %v9084 = vunpack.c.l.b16 %v9020
      %v9085 = vpack.c.b16 %v9078, %v9077
      %v9086 = vpack.c.b16 %v9080, %v9079
      %v9087 = vpack.c.b16 %v9082, %v9081
      %v9088 = vpack.c.b16 %v9084, %v9083
      %v9094 = vsel %vm1573, %v9053, 0
      %v9097 = vsel %vm1573, %v9054, 0
      %v9100 = vsel %vm1573, %v9055, 0
      %v9103 = vsel %vm1573, %v9056, 0
      %v9106 = vsel %vm1573, %v9057, 0
      %v9109 = vsel %vm1573, %v9058, 0
      %v9112 = vsel %vm1573, %v9059, 0
      %v9115 = vsel %vm1573, %v9060, 0
      %v9118 = vsel %vm1573, %v9061, 0
      %v9121 = vsel %vm1573, %v9062, 0
      %v9124 = vsel %vm1573, %v9063, 0
      %v9127 = vsel %vm1573, %v9064, 0
      %v9130 = vsel %vm1573, %v9065, 0
      %v9133 = vsel %vm1573, %v9066, 0
      %v9136 = vsel %vm1573, %v9067, 0
      %v9139 = vsel %vm1573, %v9068, 0
      %9141 = vmatpush.bf16.msra.mxu0 0
      %9142 = vmatpush.bf16.msra.mxu0 0
      %9143 = vmatpush.bf16.msra.mxu0 0
      %9144 = vmatpush.bf16.msra.mxu0 0
      %9145 = vmatpush.bf16.msra.mxu0 %v9088
      %9146 = vmatpush.bf16.msra.mxu0 %v9087
      %9147 = vmatpush.bf16.msra.mxu0 %v9086
      %9148 = vmatpush.bf16.msra.mxu0 %v9085
      %9149 = vmatmul.bf16.gmra.mxu0 %v9094
      %v9150 = vpop.f32.mrf.mxu0
      %v9151 = vadd.f32 0.0, %v9150
      %v9152 = vpop.f32.mrf.mxu0
      %v9153 = vadd.f32 0.0, %v9152
      %9154 = vmatmul.bf16.gmra.mxu0 %v9097
      %v9155 = vpop.f32.mrf.mxu0
      %v9156 = vadd.f32 0.0, %v9155
      %v9157 = vpop.f32.mrf.mxu0
      %v9158 = vadd.f32 0.0, %v9157
      %9159 = vmatmul.bf16.gmra.mxu0 %v9100
      %v9160 = vpop.f32.mrf.mxu0
      %v9161 = vadd.f32 0.0, %v9160
      %v9162 = vpop.f32.mrf.mxu0
      %v9163 = vadd.f32 0.0, %v9162
      %9164 = vmatmul.bf16.gmra.mxu0 %v9103
      %v9165 = vpop.f32.mrf.mxu0
      %v9166 = vadd.f32 0.0, %v9165
      %v9167 = vpop.f32.mrf.mxu0
      %v9168 = vadd.f32 0.0, %v9167
      %9169 = vmatmul.bf16.gmra.mxu0 %v9106
      %v9170 = vpop.f32.mrf.mxu0
      %v9171 = vadd.f32 0.0, %v9170
      %v9172 = vpop.f32.mrf.mxu0
      %v9173 = vadd.f32 0.0, %v9172
      %9174 = vmatmul.bf16.gmra.mxu0 %v9109
      %v9175 = vpop.f32.mrf.mxu0
      %v9176 = vadd.f32 0.0, %v9175
      %v9177 = vpop.f32.mrf.mxu0
      %v9178 = vadd.f32 0.0, %v9177
      %9179 = vmatmul.bf16.gmra.mxu0 %v9112
      %v9180 = vpop.f32.mrf.mxu0
      %v9181 = vadd.f32 0.0, %v9180
      %v9182 = vpop.f32.mrf.mxu0
      %v9183 = vadd.f32 0.0, %v9182
      %9184 = vmatmul.bf16.gmra.mxu0 %v9115
      %v9185 = vpop.f32.mrf.mxu0
      %v9186 = vadd.f32 0.0, %v9185
      %v9187 = vpop.f32.mrf.mxu0
      %v9188 = vadd.f32 0.0, %v9187
      %9189 = vmatmul.bf16.gmra.mxu0 %v9118
      %v9190 = vpop.f32.mrf.mxu0
      %v9191 = vadd.f32 0.0, %v9190
      %v9192 = vpop.f32.mrf.mxu0
      %v9193 = vadd.f32 0.0, %v9192
      %9194 = vmatmul.bf16.gmra.mxu0 %v9121
      %v9195 = vpop.f32.mrf.mxu0
      %v9196 = vadd.f32 0.0, %v9195
      %v9197 = vpop.f32.mrf.mxu0
      %v9198 = vadd.f32 0.0, %v9197
      %9199 = vmatmul.bf16.gmra.mxu0 %v9124
      %v9200 = vpop.f32.mrf.mxu0
      %v9201 = vadd.f32 0.0, %v9200
      %v9202 = vpop.f32.mrf.mxu0
      %v9203 = vadd.f32 0.0, %v9202
      %9204 = vmatmul.bf16.gmra.mxu0 %v9127
      %v9205 = vpop.f32.mrf.mxu0
      %v9206 = vadd.f32 0.0, %v9205
      %v9207 = vpop.f32.mrf.mxu0
      %v9208 = vadd.f32 0.0, %v9207
      %9209 = vmatmul.bf16.gmra.mxu0 %v9130
      %v9210 = vpop.f32.mrf.mxu0
      %v9211 = vadd.f32 0.0, %v9210
      %v9212 = vpop.f32.mrf.mxu0
      %v9213 = vadd.f32 0.0, %v9212
      %9214 = vmatmul.bf16.gmra.mxu0 %v9133
      %v9215 = vpop.f32.mrf.mxu0
      %v9216 = vadd.f32 0.0, %v9215
      %v9217 = vpop.f32.mrf.mxu0
      %v9218 = vadd.f32 0.0, %v9217
      %9219 = vmatmul.bf16.gmra.mxu0 %v9136
      %v9220 = vpop.f32.mrf.mxu0
      %v9221 = vadd.f32 0.0, %v9220
      %v9222 = vpop.f32.mrf.mxu0
      %v9223 = vadd.f32 0.0, %v9222
      %9224 = vmatmul.bf16.gmra.mxu0 %v9139
      %v9225 = vpop.f32.mrf.mxu0
      %v9226 = vadd.f32 0.0, %v9225
      %v9227 = vpop.f32.mrf.mxu0
      %v9228 = vadd.f32 0.0, %v9227
      %9229 = vdwg.mxu0
      %v9230 = vadd.f32 %v8548, %v9151
      %v9231 = vadd.f32 %v8549, %v9153
      %v9232 = vadd.f32 %v8550, %v9156
      %v9233 = vadd.f32 %v8551, %v9158
      %v9234 = vadd.f32 %v8552, %v9161
      %v9235 = vadd.f32 %v8553, %v9163
      %v9236 = vadd.f32 %v8554, %v9166
      %v9237 = vadd.f32 %v8555, %v9168
      %v9238 = vadd.f32 %v8556, %v9171
      %v9239 = vadd.f32 %v8557, %v9173
      %v9240 = vadd.f32 %v8558, %v9176
      %v9241 = vadd.f32 %v8559, %v9178
      %v9242 = vadd.f32 %v8560, %v9181
      %v9243 = vadd.f32 %v8561, %v9183
      %v9244 = vadd.f32 %v8562, %v9186
      %v9245 = vadd.f32 %v8563, %v9188
      %v9246 = vadd.f32 %v8564, %v9191
      %v9247 = vadd.f32 %v8565, %v9193
      %v9248 = vadd.f32 %v8566, %v9196
      %v9249 = vadd.f32 %v8567, %v9198
      %v9250 = vadd.f32 %v8568, %v9201
      %v9251 = vadd.f32 %v8569, %v9203
      %v9252 = vadd.f32 %v8570, %v9206
      %v9253 = vadd.f32 %v8571, %v9208
      %v9254 = vadd.f32 %v8572, %v9211
      %v9255 = vadd.f32 %v8573, %v9213
      %v9256 = vadd.f32 %v8574, %v9216
      %v9257 = vadd.f32 %v8575, %v9218
      %v9258 = vadd.f32 %v8576, %v9221
      %v9259 = vadd.f32 %v8577, %v9223
      %v9260 = vadd.f32 %v8578, %v9226
      %v9261 = vadd.f32 %v8579, %v9228
      %v9262 = vld [vmem:[%s6841] sm:$0xe]
      %v9263 = vld [vmem:[%s6841 + $0xc] sm:$0xe]
      %v9264 = vld [vmem:[%s6841 + $0x18] sm:$0xe]
      %v9265 = vld [vmem:[%s6841 + $0x24] sm:$0xe]
      %v9266 = vld [vmem:[%s6841 + $0x30] sm:$0xe]
      %v9267 = vld [vmem:[%s6841 + $0x3c] sm:$0xe]
      %v9268 = vld [vmem:[%s6841 + $0x48] sm:$0xe]
      %v9269 = vld [vmem:[%s6841 + $0x54] sm:$0xe]
      %v9270 = vld [vmem:[%s6841 + $0x60] sm:$0xe]
      %v9271 = vld [vmem:[%s6841 + $0x6c] sm:$0xe]
      %v9272 = vld [vmem:[%s6841 + $0x78] sm:$0xe]
      %v9273 = vld [vmem:[%s6841 + $0x84] sm:$0xe]
      %v9274 = vld [vmem:[%s6841 + $0x90] sm:$0xe]
      %v9275 = vld [vmem:[%s6841 + $0x9c] sm:$0xe]
      %v9276 = vld [vmem:[%s6841 + $0xa8] sm:$0xe]
      %v9277 = vld [vmem:[%s6841 + $0xb4] sm:$0xe]
      %v9326 = vrot.slane %v9262, 5
      %v9327 = vrot.slane %v9326, 4
      %v9328 = vrot.slane %v8581, 5
      %v9329 = vsel %vm2002, %v9327, %v9328
      %v9330 = vrot.slane %v9328, 4
      %v9331 = vrot.slane %v8582, 5
      %v9332 = vsel %vm2002, %v9330, %v9331
      %v9333 = vrot.slane %v9263, 5
      %v9334 = vrot.slane %v9333, 4
      %v9335 = vrot.slane %v8584, 5
      %v9336 = vsel %vm2002, %v9334, %v9335
      %v9337 = vrot.slane %v9335, 4
      %v9338 = vrot.slane %v8585, 5
      %v9339 = vsel %vm2002, %v9337, %v9338
      %v9340 = vrot.slane %v9264, 5
      %v9341 = vrot.slane %v9340, 4
      %v9342 = vrot.slane %v8587, 5
      %v9343 = vsel %vm2002, %v9341, %v9342
      %v9344 = vrot.slane %v9342, 4
      %v9345 = vrot.slane %v8588, 5
      %v9346 = vsel %vm2002, %v9344, %v9345
      %v9347 = vrot.slane %v9265, 5
      %v9348 = vrot.slane %v9347, 4
      %v9349 = vrot.slane %v8590, 5
      %v9350 = vsel %vm2002, %v9348, %v9349
      %v9351 = vrot.slane %v9349, 4
      %v9352 = vrot.slane %v8591, 5
      %v9353 = vsel %vm2002, %v9351, %v9352
      %v9354 = vrot.slane %v9266, 5
      %v9355 = vrot.slane %v9354, 4
      %v9356 = vrot.slane %v8593, 5
      %v9357 = vsel %vm2002, %v9355, %v9356
      %v9358 = vrot.slane %v9356, 4
      %v9359 = vrot.slane %v8594, 5
      %v9360 = vsel %vm2002, %v9358, %v9359
      %v9361 = vrot.slane %v9267, 5
      %v9362 = vrot.slane %v9361, 4
      %v9363 = vrot.slane %v8596, 5
      %v9364 = vsel %vm2002, %v9362, %v9363
      %v9365 = vrot.slane %v9363, 4
      %v9366 = vrot.slane %v8597, 5
      %v9367 = vsel %vm2002, %v9365, %v9366
      %v9368 = vrot.slane %v9268, 5
      %v9369 = vrot.slane %v9368, 4
      %v9370 = vrot.slane %v8599, 5
      %v9371 = vsel %vm2002, %v9369, %v9370
      %v9372 = vrot.slane %v9370, 4
      %v9373 = vrot.slane %v8600, 5
      %v9374 = vsel %vm2002, %v9372, %v9373
      %v9375 = vrot.slane %v9269, 5
      %v9376 = vrot.slane %v9375, 4
      %v9377 = vrot.slane %v8602, 5
      %v9378 = vsel %vm2002, %v9376, %v9377
      %v9379 = vrot.slane %v9377, 4
      %v9380 = vrot.slane %v8603, 5
      %v9381 = vsel %vm2002, %v9379, %v9380
      %v9382 = vrot.slane %v9270, 5
      %v9383 = vrot.slane %v9382, 4
      %v9384 = vrot.slane %v8605, 5
      %v9385 = vsel %vm2002, %v9383, %v9384
      %v9386 = vrot.slane %v9384, 4
      %v9387 = vrot.slane %v8606, 5
      %v9388 = vsel %vm2002, %v9386, %v9387
      %v9389 = vrot.slane %v9271, 5
      %v9390 = vrot.slane %v9389, 4
      %v9391 = vrot.slane %v8608, 5
      %v9392 = vsel %vm2002, %v9390, %v9391
      %v9393 = vrot.slane %v9391, 4
      %v9394 = vrot.slane %v8609, 5
      %v9395 = vsel %vm2002, %v9393, %v9394
      %v9396 = vrot.slane %v9272, 5
      %v9397 = vrot.slane %v9396, 4
      %v9398 = vrot.slane %v8611, 5
      %v9399 = vsel %vm2002, %v9397, %v9398
      %v9400 = vrot.slane %v9398, 4
      %v9401 = vrot.slane %v8612, 5
      %v9402 = vsel %vm2002, %v9400, %v9401
      %v9403 = vrot.slane %v9273, 5
      %v9404 = vrot.slane %v9403, 4
      %v9405 = vrot.slane %v8614, 5
      %v9406 = vsel %vm2002, %v9404, %v9405
      %v9407 = vrot.slane %v9405, 4
      %v9408 = vrot.slane %v8615, 5
      %v9409 = vsel %vm2002, %v9407, %v9408
      %v9410 = vrot.slane %v9274, 5
      %v9411 = vrot.slane %v9410, 4
      %v9412 = vrot.slane %v8617, 5
      %v9413 = vsel %vm2002, %v9411, %v9412
      %v9414 = vrot.slane %v9412, 4
      %v9415 = vrot.slane %v8618, 5
      %v9416 = vsel %vm2002, %v9414, %v9415
      %v9417 = vrot.slane %v9275, 5
      %v9418 = vrot.slane %v9417, 4
      %v9419 = vrot.slane %v8620, 5
      %v9420 = vsel %vm2002, %v9418, %v9419
      %v9421 = vrot.slane %v9419, 4
      %v9422 = vrot.slane %v8621, 5
      %v9423 = vsel %vm2002, %v9421, %v9422
      %v9424 = vrot.slane %v9276, 5
      %v9425 = vrot.slane %v9424, 4
      %v9426 = vrot.slane %v8623, 5
      %v9427 = vsel %vm2002, %v9425, %v9426
      %v9428 = vrot.slane %v9426, 4
      %v9429 = vrot.slane %v8624, 5
      %v9430 = vsel %vm2002, %v9428, %v9429
      %v9431 = vrot.slane %v9277, 5
      %v9432 = vrot.slane %v9431, 4
      %v9433 = vrot.slane %v8626, 5
      %v9434 = vsel %vm2002, %v9432, %v9433
      %v9435 = vrot.slane %v9433, 4
      %v9436 = vrot.slane %v8627, 5
      %v9437 = vsel %vm2002, %v9435, %v9436
      %s9438 = scalar_lea.vmem %s6, 160
      %v9439 = vld [vmem:[%s9438] sm:$0xf]
      %v9440 = vld [vmem:[%s9438 + $0x4] sm:$0xf]
      %v9441 = vld [vmem:[%s9438 + $0x8] sm:$0xf]
      %v9442 = vld [vmem:[%s9438 + $0xc] sm:$0xf]
      %v9443 = vld [vmem:[%s9438 + $0x10] sm:$0xf]
      %v9444 = vld [vmem:[%s9438 + $0x14] sm:$0xf]
      %v9445 = vld [vmem:[%s9438 + $0x18] sm:$0xf]
      %v9446 = vld [vmem:[%s9438 + $0x1c] sm:$0xf]
      %v9447 = vunpack.c.l.b16 %v9329
      %v9448 = vunpack.c.l.b16 %v9332
      %v9449 = vunpack.c.l.b16 %v9336
      %v9450 = vunpack.c.l.b16 %v9339
      %v9451 = vunpack.c.l.b16 %v9343
      %v9452 = vunpack.c.l.b16 %v9346
      %v9453 = vunpack.c.l.b16 %v9350
      %v9454 = vunpack.c.l.b16 %v9353
      %v9455 = vunpack.c.l.b16 %v9357
      %v9456 = vunpack.c.l.b16 %v9360
      %v9457 = vunpack.c.l.b16 %v9364
      %v9458 = vunpack.c.l.b16 %v9367
      %v9459 = vunpack.c.l.b16 %v9371
      %v9460 = vunpack.c.l.b16 %v9374
      %v9461 = vunpack.c.l.b16 %v9378
      %v9462 = vunpack.c.l.b16 %v9381
      %v9463 = vunpack.c.l.b16 %v9385
      %v9464 = vunpack.c.l.b16 %v9388
      %v9465 = vunpack.c.l.b16 %v9392
      %v9466 = vunpack.c.l.b16 %v9395
      %v9467 = vunpack.c.l.b16 %v9399
      %v9468 = vunpack.c.l.b16 %v9402
      %v9469 = vunpack.c.l.b16 %v9406
      %v9470 = vunpack.c.l.b16 %v9409
      %v9471 = vunpack.c.l.b16 %v9413
      %v9472 = vunpack.c.l.b16 %v9416
      %v9473 = vunpack.c.l.b16 %v9420
      %v9474 = vunpack.c.l.b16 %v9423
      %v9475 = vunpack.c.l.b16 %v9427
      %v9476 = vunpack.c.l.b16 %v9430
      %v9477 = vunpack.c.l.b16 %v9434
      %v9478 = vunpack.c.l.b16 %v9437
      %v9479 = vpack.c.b16 %v9448, %v9447
      %v9480 = vpack.c.b16 %v9450, %v9449
      %v9481 = vpack.c.b16 %v9452, %v9451
      %v9482 = vpack.c.b16 %v9454, %v9453
      %v9483 = vpack.c.b16 %v9456, %v9455
      %v9484 = vpack.c.b16 %v9458, %v9457
      %v9485 = vpack.c.b16 %v9460, %v9459
      %v9486 = vpack.c.b16 %v9462, %v9461
      %v9487 = vpack.c.b16 %v9464, %v9463
      %v9488 = vpack.c.b16 %v9466, %v9465
      %v9489 = vpack.c.b16 %v9468, %v9467
      %v9490 = vpack.c.b16 %v9470, %v9469
      %v9491 = vpack.c.b16 %v9472, %v9471
      %v9492 = vpack.c.b16 %v9474, %v9473
      %v9493 = vpack.c.b16 %v9476, %v9475
      %v9494 = vpack.c.b16 %v9478, %v9477
      %v9503 = vunpack.c.l.b16 %v9439
      %v9504 = vunpack.c.l.b16 %v9440
      %v9505 = vunpack.c.l.b16 %v9441
      %v9506 = vunpack.c.l.b16 %v9442
      %v9507 = vunpack.c.l.b16 %v9443
      %v9508 = vunpack.c.l.b16 %v9444
      %v9509 = vunpack.c.l.b16 %v9445
      %v9510 = vunpack.c.l.b16 %v9446
      %v9511 = vpack.c.b16 %v9504, %v9503
      %v9512 = vpack.c.b16 %v9506, %v9505
      %v9513 = vpack.c.b16 %v9508, %v9507
      %v9514 = vpack.c.b16 %v9510, %v9509
      %v9520 = vsel %vm1573, %v9479, 0
      %v9523 = vsel %vm1573, %v9480, 0
      %v9526 = vsel %vm1573, %v9481, 0
      %v9529 = vsel %vm1573, %v9482, 0
      %v9532 = vsel %vm1573, %v9483, 0
      %v9535 = vsel %vm1573, %v9484, 0
      %v9538 = vsel %vm1573, %v9485, 0
      %v9541 = vsel %vm1573, %v9486, 0
      %v9544 = vsel %vm1573, %v9487, 0
      %v9547 = vsel %vm1573, %v9488, 0
      %v9550 = vsel %vm1573, %v9489, 0
      %v9553 = vsel %vm1573, %v9490, 0
      %v9556 = vsel %vm1573, %v9491, 0
      %v9559 = vsel %vm1573, %v9492, 0
      %v9562 = vsel %vm1573, %v9493, 0
      %v9565 = vsel %vm1573, %v9494, 0
      %9567 = vmatpush.bf16.msra.mxu0 0
      %9568 = vmatpush.bf16.msra.mxu0 0
      %9569 = vmatpush.bf16.msra.mxu0 0
      %9570 = vmatpush.bf16.msra.mxu0 0
      %9571 = vmatpush.bf16.msra.mxu0 %v9514
      %9572 = vmatpush.bf16.msra.mxu0 %v9513
      %9573 = vmatpush.bf16.msra.mxu0 %v9512
      %9574 = vmatpush.bf16.msra.mxu0 %v9511
      %9575 = vmatmul.bf16.gmra.mxu0 %v9520
      %v9576 = vpop.f32.mrf.mxu0
      %v9577 = vadd.f32 0.0, %v9576
      %v9578 = vpop.f32.mrf.mxu0
      %v9579 = vadd.f32 0.0, %v9578
      %9580 = vmatmul.bf16.gmra.mxu0 %v9523
      %v9581 = vpop.f32.mrf.mxu0
      %v9582 = vadd.f32 0.0, %v9581
      %v9583 = vpop.f32.mrf.mxu0
      %v9584 = vadd.f32 0.0, %v9583
      %9585 = vmatmul.bf16.gmra.mxu0 %v9526
      %v9586 = vpop.f32.mrf.mxu0
      %v9587 = vadd.f32 0.0, %v9586
      %v9588 = vpop.f32.mrf.mxu0
      %v9589 = vadd.f32 0.0, %v9588
      %9590 = vmatmul.bf16.gmra.mxu0 %v9529
      %v9591 = vpop.f32.mrf.mxu0
      %v9592 = vadd.f32 0.0, %v9591
      %v9593 = vpop.f32.mrf.mxu0
      %v9594 = vadd.f32 0.0, %v9593
      %9595 = vmatmul.bf16.gmra.mxu0 %v9532
      %v9596 = vpop.f32.mrf.mxu0
      %v9597 = vadd.f32 0.0, %v9596
      %v9598 = vpop.f32.mrf.mxu0
      %v9599 = vadd.f32 0.0, %v9598
      %9600 = vmatmul.bf16.gmra.mxu0 %v9535
      %v9601 = vpop.f32.mrf.mxu0
      %v9602 = vadd.f32 0.0, %v9601
      %v9603 = vpop.f32.mrf.mxu0
      %v9604 = vadd.f32 0.0, %v9603
      %9605 = vmatmul.bf16.gmra.mxu0 %v9538
      %v9606 = vpop.f32.mrf.mxu0
      %v9607 = vadd.f32 0.0, %v9606
      %v9608 = vpop.f32.mrf.mxu0
      %v9609 = vadd.f32 0.0, %v9608
      %9610 = vmatmul.bf16.gmra.mxu0 %v9541
      %v9611 = vpop.f32.mrf.mxu0
      %v9612 = vadd.f32 0.0, %v9611
      %v9613 = vpop.f32.mrf.mxu0
      %v9614 = vadd.f32 0.0, %v9613
      %9615 = vmatmul.bf16.gmra.mxu0 %v9544
      %v9616 = vpop.f32.mrf.mxu0
      %v9617 = vadd.f32 0.0, %v9616
      %v9618 = vpop.f32.mrf.mxu0
      %v9619 = vadd.f32 0.0, %v9618
      %9620 = vmatmul.bf16.gmra.mxu0 %v9547
      %v9621 = vpop.f32.mrf.mxu0
      %v9622 = vadd.f32 0.0, %v9621
      %v9623 = vpop.f32.mrf.mxu0
      %v9624 = vadd.f32 0.0, %v9623
      %9625 = vmatmul.bf16.gmra.mxu0 %v9550
      %v9626 = vpop.f32.mrf.mxu0
      %v9627 = vadd.f32 0.0, %v9626
      %v9628 = vpop.f32.mrf.mxu0
      %v9629 = vadd.f32 0.0, %v9628
      %9630 = vmatmul.bf16.gmra.mxu0 %v9553
      %v9631 = vpop.f32.mrf.mxu0
      %v9632 = vadd.f32 0.0, %v9631
      %v9633 = vpop.f32.mrf.mxu0
      %v9634 = vadd.f32 0.0, %v9633
      %9635 = vmatmul.bf16.gmra.mxu0 %v9556
      %v9636 = vpop.f32.mrf.mxu0
      %v9637 = vadd.f32 0.0, %v9636
      %v9638 = vpop.f32.mrf.mxu0
      %v9639 = vadd.f32 0.0, %v9638
      %9640 = vmatmul.bf16.gmra.mxu0 %v9559
      %v9641 = vpop.f32.mrf.mxu0
      %v9642 = vadd.f32 0.0, %v9641
      %v9643 = vpop.f32.mrf.mxu0
      %v9644 = vadd.f32 0.0, %v9643
      %9645 = vmatmul.bf16.gmra.mxu0 %v9562
      %v9646 = vpop.f32.mrf.mxu0
      %v9647 = vadd.f32 0.0, %v9646
      %v9648 = vpop.f32.mrf.mxu0
      %v9649 = vadd.f32 0.0, %v9648
      %9650 = vmatmul.bf16.gmra.mxu0 %v9565
      %v9651 = vpop.f32.mrf.mxu0
      %v9652 = vadd.f32 0.0, %v9651
      %v9653 = vpop.f32.mrf.mxu0
      %v9654 = vadd.f32 0.0, %v9653
      %9655 = vdwg.mxu0
      %v9656 = vadd.f32 %v9230, %v9577
      %v9657 = vadd.f32 %v9231, %v9579
      %v9658 = vadd.f32 %v9232, %v9582
      %v9659 = vadd.f32 %v9233, %v9584
      %v9660 = vadd.f32 %v9234, %v9587
      %v9661 = vadd.f32 %v9235, %v9589
      %v9662 = vadd.f32 %v9236, %v9592
      %v9663 = vadd.f32 %v9237, %v9594
      %v9664 = vadd.f32 %v9238, %v9597
      %v9665 = vadd.f32 %v9239, %v9599
      %v9666 = vadd.f32 %v9240, %v9602
      %v9667 = vadd.f32 %v9241, %v9604
      %v9668 = vadd.f32 %v9242, %v9607
      %v9669 = vadd.f32 %v9243, %v9609
      %v9670 = vadd.f32 %v9244, %v9612
      %v9671 = vadd.f32 %v9245, %v9614
      %v9672 = vadd.f32 %v9246, %v9617
      %v9673 = vadd.f32 %v9247, %v9619
      %v9674 = vadd.f32 %v9248, %v9622
      %v9675 = vadd.f32 %v9249, %v9624
      %v9676 = vadd.f32 %v9250, %v9627
      %v9677 = vadd.f32 %v9251, %v9629
      %v9678 = vadd.f32 %v9252, %v9632
      %v9679 = vadd.f32 %v9253, %v9634
      %v9680 = vadd.f32 %v9254, %v9637
      %v9681 = vadd.f32 %v9255, %v9639
      %v9682 = vadd.f32 %v9256, %v9642
      %v9683 = vadd.f32 %v9257, %v9644
      %v9684 = vadd.f32 %v9258, %v9647
      %v9685 = vadd.f32 %v9259, %v9649
      %v9686 = vadd.f32 %v9260, %v9652
      %v9687 = vadd.f32 %v9261, %v9654
      %s9688 = scalar_lea.vmem [#allocation3], 24
      %v9689 = vld [vmem:[%s9688] sm:$0xf]
      %v9690 = vld [vmem:[%s9688 + $0x4] sm:$0xf]
      %v9691 = vld [vmem:[%s9688 + $0xc] sm:$0xf]
      %v9692 = vld [vmem:[%s9688 + $0x10] sm:$0xf]
      %v9693 = vld [vmem:[%s9688 + $0x18] sm:$0xf]
      %v9694 = vld [vmem:[%s9688 + $0x1c] sm:$0xf]
      %v9695 = vld [vmem:[%s9688 + $0x24] sm:$0xf]
      %v9696 = vld [vmem:[%s9688 + $0x28] sm:$0xf]
      %v9697 = vld [vmem:[%s9688 + $0x30] sm:$0xf]
      %v9698 = vld [vmem:[%s9688 + $0x34] sm:$0xf]
      %v9699 = vld [vmem:[%s9688 + $0x3c] sm:$0xf]
      %v9700 = vld [vmem:[%s9688 + $0x40] sm:$0xf]
      %v9701 = vld [vmem:[%s9688 + $0x48] sm:$0xf]
      %v9702 = vld [vmem:[%s9688 + $0x4c] sm:$0xf]
      %v9703 = vld [vmem:[%s9688 + $0x54] sm:$0xf]
      %v9704 = vld [vmem:[%s9688 + $0x58] sm:$0xf]
      %v9705 = vld [vmem:[%s9688 + $0x60] sm:$0xf]
      %v9706 = vld [vmem:[%s9688 + $0x64] sm:$0xf]
      %v9707 = vld [vmem:[%s9688 + $0x6c] sm:$0xf]
      %v9708 = vld [vmem:[%s9688 + $0x70] sm:$0xf]
      %v9709 = vld [vmem:[%s9688 + $0x78] sm:$0xf]
      %v9710 = vld [vmem:[%s9688 + $0x7c] sm:$0xf]
      %v9711 = vld [vmem:[%s9688 + $0x84] sm:$0xf]
      %v9712 = vld [vmem:[%s9688 + $0x88] sm:$0xf]
      %v9713 = vld [vmem:[%s9688 + $0x90] sm:$0xf]
      %v9714 = vld [vmem:[%s9688 + $0x94] sm:$0xf]
      %v9715 = vld [vmem:[%s9688 + $0x9c] sm:$0xf]
      %v9716 = vld [vmem:[%s9688 + $0xa0] sm:$0xf]
      %v9717 = vld [vmem:[%s9688 + $0xa8] sm:$0xf]
      %v9718 = vld [vmem:[%s9688 + $0xac] sm:$0xf]
      %v9719 = vld [vmem:[%s9688 + $0xb4] sm:$0xf]
      %v9720 = vld [vmem:[%s9688 + $0xb8] sm:$0xf]
      %s9721 = scalar_lea.vmem %s6, 192
      %v9722 = vld [vmem:[%s9721] sm:$0xf]
      %v9723 = vld [vmem:[%s9721 + $0x4] sm:$0xf]
      %v9724 = vld [vmem:[%s9721 + $0x8] sm:$0xf]
      %v9725 = vld [vmem:[%s9721 + $0xc] sm:$0xf]
      %v9726 = vld [vmem:[%s9721 + $0x10] sm:$0xf]
      %v9727 = vld [vmem:[%s9721 + $0x14] sm:$0xf]
      %v9728 = vld [vmem:[%s9721 + $0x18] sm:$0xf]
      %v9729 = vld [vmem:[%s9721 + $0x1c] sm:$0xf]
      %v9762 = vunpack.c.l.b16 %v9689
      %v9763 = vunpack.c.l.b16 %v9690
      %v9764 = vunpack.c.l.b16 %v9691
      %v9765 = vunpack.c.l.b16 %v9692
      %v9766 = vunpack.c.l.b16 %v9693
      %v9767 = vunpack.c.l.b16 %v9694
      %v9768 = vunpack.c.l.b16 %v9695
      %v9769 = vunpack.c.l.b16 %v9696
      %v9770 = vunpack.c.l.b16 %v9697
      %v9771 = vunpack.c.l.b16 %v9698
      %v9772 = vunpack.c.l.b16 %v9699
      %v9773 = vunpack.c.l.b16 %v9700
      %v9774 = vunpack.c.l.b16 %v9701
      %v9775 = vunpack.c.l.b16 %v9702
      %v9776 = vunpack.c.l.b16 %v9703
      %v9777 = vunpack.c.l.b16 %v9704
      %v9778 = vunpack.c.l.b16 %v9705
      %v9779 = vunpack.c.l.b16 %v9706
      %v9780 = vunpack.c.l.b16 %v9707
      %v9781 = vunpack.c.l.b16 %v9708
      %v9782 = vunpack.c.l.b16 %v9709
      %v9783 = vunpack.c.l.b16 %v9710
      %v9784 = vunpack.c.l.b16 %v9711
      %v9785 = vunpack.c.l.b16 %v9712
      %v9786 = vunpack.c.l.b16 %v9713
      %v9787 = vunpack.c.l.b16 %v9714
      %v9788 = vunpack.c.l.b16 %v9715
      %v9789 = vunpack.c.l.b16 %v9716
      %v9790 = vunpack.c.l.b16 %v9717
      %v9791 = vunpack.c.l.b16 %v9718
      %v9792 = vunpack.c.l.b16 %v9719
      %v9793 = vunpack.c.l.b16 %v9720
      %v9794 = vpack.c.b16 %v9763, %v9762
      %v9795 = vpack.c.b16 %v9765, %v9764
      %v9796 = vpack.c.b16 %v9767, %v9766
      %v9797 = vpack.c.b16 %v9769, %v9768
      %v9798 = vpack.c.b16 %v9771, %v9770
      %v9799 = vpack.c.b16 %v9773, %v9772
      %v9800 = vpack.c.b16 %v9775, %v9774
      %v9801 = vpack.c.b16 %v9777, %v9776
      %v9802 = vpack.c.b16 %v9779, %v9778
      %v9803 = vpack.c.b16 %v9781, %v9780
      %v9804 = vpack.c.b16 %v9783, %v9782
      %v9805 = vpack.c.b16 %v9785, %v9784
      %v9806 = vpack.c.b16 %v9787, %v9786
      %v9807 = vpack.c.b16 %v9789, %v9788
      %v9808 = vpack.c.b16 %v9791, %v9790
      %v9809 = vpack.c.b16 %v9793, %v9792
      %v9818 = vunpack.c.l.b16 %v9722
      %v9819 = vunpack.c.l.b16 %v9723
      %v9820 = vunpack.c.l.b16 %v9724
      %v9821 = vunpack.c.l.b16 %v9725
      %v9822 = vunpack.c.l.b16 %v9726
      %v9823 = vunpack.c.l.b16 %v9727
      %v9824 = vunpack.c.l.b16 %v9728
      %v9825 = vunpack.c.l.b16 %v9729
      %v9826 = vpack.c.b16 %v9819, %v9818
      %v9827 = vpack.c.b16 %v9821, %v9820
      %v9828 = vpack.c.b16 %v9823, %v9822
      %v9829 = vpack.c.b16 %v9825, %v9824
      %v9835 = vsel %vm1573, %v9794, 0
      %v9838 = vsel %vm1573, %v9795, 0
      %v9841 = vsel %vm1573, %v9796, 0
      %v9844 = vsel %vm1573, %v9797, 0
      %v9847 = vsel %vm1573, %v9798, 0
      %v9850 = vsel %vm1573, %v9799, 0
      %v9853 = vsel %vm1573, %v9800, 0
      %v9856 = vsel %vm1573, %v9801, 0
      %v9859 = vsel %vm1573, %v9802, 0
      %v9862 = vsel %vm1573, %v9803, 0
      %v9865 = vsel %vm1573, %v9804, 0
      %v9868 = vsel %vm1573, %v9805, 0
      %v9871 = vsel %vm1573, %v9806, 0
      %v9874 = vsel %vm1573, %v9807, 0
      %v9877 = vsel %vm1573, %v9808, 0
      %v9880 = vsel %vm1573, %v9809, 0
      %9882 = vmatpush.bf16.msra.mxu0 0
      %9883 = vmatpush.bf16.msra.mxu0 0
      %9884 = vmatpush.bf16.msra.mxu0 0
      %9885 = vmatpush.bf16.msra.mxu0 0
      %9886 = vmatpush.bf16.msra.mxu0 %v9829
      %9887 = vmatpush.bf16.msra.mxu0 %v9828
      %9888 = vmatpush.bf16.msra.mxu0 %v9827
      %9889 = vmatpush.bf16.msra.mxu0 %v9826
      %9890 = vmatmul.bf16.gmra.mxu0 %v9835
      %v9891 = vpop.f32.mrf.mxu0
      %v9892 = vadd.f32 0.0, %v9891
      %v9893 = vpop.f32.mrf.mxu0
      %v9894 = vadd.f32 0.0, %v9893
      %9895 = vmatmul.bf16.gmra.mxu0 %v9838
      %v9896 = vpop.f32.mrf.mxu0
      %v9897 = vadd.f32 0.0, %v9896
      %v9898 = vpop.f32.mrf.mxu0
      %v9899 = vadd.f32 0.0, %v9898
      %9900 = vmatmul.bf16.gmra.mxu0 %v9841
      %v9901 = vpop.f32.mrf.mxu0
      %v9902 = vadd.f32 0.0, %v9901
      %v9903 = vpop.f32.mrf.mxu0
      %v9904 = vadd.f32 0.0, %v9903
      %9905 = vmatmul.bf16.gmra.mxu0 %v9844
      %v9906 = vpop.f32.mrf.mxu0
      %v9907 = vadd.f32 0.0, %v9906
      %v9908 = vpop.f32.mrf.mxu0
      %v9909 = vadd.f32 0.0, %v9908
      %9910 = vmatmul.bf16.gmra.mxu0 %v9847
      %v9911 = vpop.f32.mrf.mxu0
      %v9912 = vadd.f32 0.0, %v9911
      %v9913 = vpop.f32.mrf.mxu0
      %v9914 = vadd.f32 0.0, %v9913
      %9915 = vmatmul.bf16.gmra.mxu0 %v9850
      %v9916 = vpop.f32.mrf.mxu0
      %v9917 = vadd.f32 0.0, %v9916
      %v9918 = vpop.f32.mrf.mxu0
      %v9919 = vadd.f32 0.0, %v9918
      %9920 = vmatmul.bf16.gmra.mxu0 %v9853
      %v9921 = vpop.f32.mrf.mxu0
      %v9922 = vadd.f32 0.0, %v9921
      %v9923 = vpop.f32.mrf.mxu0
      %v9924 = vadd.f32 0.0, %v9923
      %9925 = vmatmul.bf16.gmra.mxu0 %v9856
      %v9926 = vpop.f32.mrf.mxu0
      %v9927 = vadd.f32 0.0, %v9926
      %v9928 = vpop.f32.mrf.mxu0
      %v9929 = vadd.f32 0.0, %v9928
      %9930 = vmatmul.bf16.gmra.mxu0 %v9859
      %v9931 = vpop.f32.mrf.mxu0
      %v9932 = vadd.f32 0.0, %v9931
      %v9933 = vpop.f32.mrf.mxu0
      %v9934 = vadd.f32 0.0, %v9933
      %9935 = vmatmul.bf16.gmra.mxu0 %v9862
      %v9936 = vpop.f32.mrf.mxu0
      %v9937 = vadd.f32 0.0, %v9936
      %v9938 = vpop.f32.mrf.mxu0
      %v9939 = vadd.f32 0.0, %v9938
      %9940 = vmatmul.bf16.gmra.mxu0 %v9865
      %v9941 = vpop.f32.mrf.mxu0
      %v9942 = vadd.f32 0.0, %v9941
      %v9943 = vpop.f32.mrf.mxu0
      %v9944 = vadd.f32 0.0, %v9943
      %9945 = vmatmul.bf16.gmra.mxu0 %v9868
      %v9946 = vpop.f32.mrf.mxu0
      %v9947 = vadd.f32 0.0, %v9946
      %v9948 = vpop.f32.mrf.mxu0
      %v9949 = vadd.f32 0.0, %v9948
      %9950 = vmatmul.bf16.gmra.mxu0 %v9871
      %v9951 = vpop.f32.mrf.mxu0
      %v9952 = vadd.f32 0.0, %v9951
      %v9953 = vpop.f32.mrf.mxu0
      %v9954 = vadd.f32 0.0, %v9953
      %9955 = vmatmul.bf16.gmra.mxu0 %v9874
      %v9956 = vpop.f32.mrf.mxu0
      %v9957 = vadd.f32 0.0, %v9956
      %v9958 = vpop.f32.mrf.mxu0
      %v9959 = vadd.f32 0.0, %v9958
      %9960 = vmatmul.bf16.gmra.mxu0 %v9877
      %v9961 = vpop.f32.mrf.mxu0
      %v9962 = vadd.f32 0.0, %v9961
      %v9963 = vpop.f32.mrf.mxu0
      %v9964 = vadd.f32 0.0, %v9963
      %9965 = vmatmul.bf16.gmra.mxu0 %v9880
      %v9966 = vpop.f32.mrf.mxu0
      %v9967 = vadd.f32 0.0, %v9966
      %v9968 = vpop.f32.mrf.mxu0
      %v9969 = vadd.f32 0.0, %v9968
      %9970 = vdwg.mxu0
      %v9971 = vadd.f32 %v9656, %v9892
      %v9972 = vadd.f32 %v9657, %v9894
      %v9973 = vadd.f32 %v9658, %v9897
      %v9974 = vadd.f32 %v9659, %v9899
      %v9975 = vadd.f32 %v9660, %v9902
      %v9976 = vadd.f32 %v9661, %v9904
      %v9977 = vadd.f32 %v9662, %v9907
      %v9978 = vadd.f32 %v9663, %v9909
      %v9979 = vadd.f32 %v9664, %v9912
      %v9980 = vadd.f32 %v9665, %v9914
      %v9981 = vadd.f32 %v9666, %v9917
      %v9982 = vadd.f32 %v9667, %v9919
      %v9983 = vadd.f32 %v9668, %v9922
      %v9984 = vadd.f32 %v9669, %v9924
      %v9985 = vadd.f32 %v9670, %v9927
      %v9986 = vadd.f32 %v9671, %v9929
      %v9987 = vadd.f32 %v9672, %v9932
      %v9988 = vadd.f32 %v9673, %v9934
      %v9989 = vadd.f32 %v9674, %v9937
      %v9990 = vadd.f32 %v9675, %v9939
      %v9991 = vadd.f32 %v9676, %v9942
      %v9992 = vadd.f32 %v9677, %v9944
      %v9993 = vadd.f32 %v9678, %v9947
      %v9994 = vadd.f32 %v9679, %v9949
      %v9995 = vadd.f32 %v9680, %v9952
      %v9996 = vadd.f32 %v9681, %v9954
      %v9997 = vadd.f32 %v9682, %v9957
      %v9998 = vadd.f32 %v9683, %v9959
      %v9999 = vadd.f32 %v9684, %v9962
      %v10000 = vadd.f32 %v9685, %v9964
      %v10001 = vadd.f32 %v9686, %v9967
      %v10002 = vadd.f32 %v9687, %v9969
      %v10003 = vld [vmem:[%s9688] sm:$0xf]
      %v10004 = vld [vmem:[%s9688 + $0x4] sm:$0xf]
      %v10005 = vld [vmem:[%s9688 + $0x8] sm:$0x1]
      %v10006 = vld [vmem:[%s9688 + $0xc] sm:$0xf]
      %v10007 = vld [vmem:[%s9688 + $0x10] sm:$0xf]
      %v10008 = vld [vmem:[%s9688 + $0x14] sm:$0x1]
      %v10009 = vld [vmem:[%s9688 + $0x18] sm:$0xf]
      %v10010 = vld [vmem:[%s9688 + $0x1c] sm:$0xf]
      %v10011 = vld [vmem:[%s9688 + $0x20] sm:$0x1]
      %v10012 = vld [vmem:[%s9688 + $0x24] sm:$0xf]
      %v10013 = vld [vmem:[%s9688 + $0x28] sm:$0xf]
      %v10014 = vld [vmem:[%s9688 + $0x2c] sm:$0x1]
      %v10015 = vld [vmem:[%s9688 + $0x30] sm:$0xf]
      %v10016 = vld [vmem:[%s9688 + $0x34] sm:$0xf]
      %v10017 = vld [vmem:[%s9688 + $0x38] sm:$0x1]
      %v10018 = vld [vmem:[%s9688 + $0x3c] sm:$0xf]
      %v10019 = vld [vmem:[%s9688 + $0x40] sm:$0xf]
      %v10020 = vld [vmem:[%s9688 + $0x44] sm:$0x1]
      %v10021 = vld [vmem:[%s9688 + $0x48] sm:$0xf]
      %v10022 = vld [vmem:[%s9688 + $0x4c] sm:$0xf]
      %v10023 = vld [vmem:[%s9688 + $0x50] sm:$0x1]
      %v10024 = vld [vmem:[%s9688 + $0x54] sm:$0xf]
      %v10025 = vld [vmem:[%s9688 + $0x58] sm:$0xf]
      %v10026 = vld [vmem:[%s9688 + $0x5c] sm:$0x1]
      %v10027 = vld [vmem:[%s9688 + $0x60] sm:$0xf]
      %v10028 = vld [vmem:[%s9688 + $0x64] sm:$0xf]
      %v10029 = vld [vmem:[%s9688 + $0x68] sm:$0x1]
      %v10030 = vld [vmem:[%s9688 + $0x6c] sm:$0xf]
      %v10031 = vld [vmem:[%s9688 + $0x70] sm:$0xf]
      %v10032 = vld [vmem:[%s9688 + $0x74] sm:$0x1]
      %v10033 = vld [vmem:[%s9688 + $0x78] sm:$0xf]
      %v10034 = vld [vmem:[%s9688 + $0x7c] sm:$0xf]
      %v10035 = vld [vmem:[%s9688 + $0x80] sm:$0x1]
      %v10036 = vld [vmem:[%s9688 + $0x84] sm:$0xf]
      %v10037 = vld [vmem:[%s9688 + $0x88] sm:$0xf]
      %v10038 = vld [vmem:[%s9688 + $0x8c] sm:$0x1]
      %v10039 = vld [vmem:[%s9688 + $0x90] sm:$0xf]
      %v10040 = vld [vmem:[%s9688 + $0x94] sm:$0xf]
      %v10041 = vld [vmem:[%s9688 + $0x98] sm:$0x1]
      %v10042 = vld [vmem:[%s9688 + $0x9c] sm:$0xf]
      %v10043 = vld [vmem:[%s9688 + $0xa0] sm:$0xf]
      %v10044 = vld [vmem:[%s9688 + $0xa4] sm:$0x1]
      %v10045 = vld [vmem:[%s9688 + $0xa8] sm:$0xf]
      %v10046 = vld [vmem:[%s9688 + $0xac] sm:$0xf]
      %v10047 = vld [vmem:[%s9688 + $0xb0] sm:$0x1]
      %v10048 = vld [vmem:[%s9688 + $0xb4] sm:$0xf]
      %v10049 = vld [vmem:[%s9688 + $0xb8] sm:$0xf]
      %v10050 = vld [vmem:[%s9688 + $0xbc] sm:$0x1]
      %v10052 = vshrl.u32 %v10003, 16
      %v10054 = vrot.slane %v10052, 4
      %v10055 = vshll.u32 %v10003, 16
      %v10057 = vrot.slane %v10055, 5
      %v10058 = vor.u32 %v10054, %v10057
      %v10059 = vrot.slane %v10058, 4
      %v10061 = vshll.u32 %v10004, 16
      %v10063 = vrot.slane %v10061, 5
      %v10064 = vsel %vm1107, %v10059, %v10063
      %v10065 = vshrl.u32 %v10004, 16
      %v10067 = vrot.slane %v10065, 4
      %v10068 = vor.u32 %v10067, %v10063
      %v10069 = vrot.slane %v10068, 4
      %v10071 = vshll.u32 %v10005, 16
      %v10073 = vrot.slane %v10071, 5
      %v10074 = vsel %vm1107, %v10069, %v10073
      %v10076 = vshrl.u32 %v10006, 16
      %v10078 = vrot.slane %v10076, 4
      %v10079 = vshll.u32 %v10006, 16
      %v10081 = vrot.slane %v10079, 5
      %v10082 = vor.u32 %v10078, %v10081
      %v10083 = vrot.slane %v10082, 4
      %v10085 = vshll.u32 %v10007, 16
      %v10087 = vrot.slane %v10085, 5
      %v10088 = vsel %vm1107, %v10083, %v10087
      %v10089 = vshrl.u32 %v10007, 16
      %v10091 = vrot.slane %v10089, 4
      %v10092 = vor.u32 %v10091, %v10087
      %v10093 = vrot.slane %v10092, 4
      %v10095 = vshll.u32 %v10008, 16
      %v10097 = vrot.slane %v10095, 5
      %v10098 = vsel %vm1107, %v10093, %v10097
      %v10100 = vshrl.u32 %v10009, 16
      %v10102 = vrot.slane %v10100, 4
      %v10103 = vshll.u32 %v10009, 16
      %v10105 = vrot.slane %v10103, 5
      %v10106 = vor.u32 %v10102, %v10105
      %v10107 = vrot.slane %v10106, 4
      %v10109 = vshll.u32 %v10010, 16
      %v10111 = vrot.slane %v10109, 5
      %v10112 = vsel %vm1107, %v10107, %v10111
      %v10113 = vshrl.u32 %v10010, 16
      %v10115 = vrot.slane %v10113, 4
      %v10116 = vor.u32 %v10115, %v10111
      %v10117 = vrot.slane %v10116, 4
      %v10119 = vshll.u32 %v10011, 16
      %v10121 = vrot.slane %v10119, 5
      %v10122 = vsel %vm1107, %v10117, %v10121
      %v10124 = vshrl.u32 %v10012, 16
      %v10126 = vrot.slane %v10124, 4
      %v10127 = vshll.u32 %v10012, 16
      %v10129 = vrot.slane %v10127, 5
      %v10130 = vor.u32 %v10126, %v10129
      %v10131 = vrot.slane %v10130, 4
      %v10133 = vshll.u32 %v10013, 16
      %v10135 = vrot.slane %v10133, 5
      %v10136 = vsel %vm1107, %v10131, %v10135
      %v10137 = vshrl.u32 %v10013, 16
      %v10139 = vrot.slane %v10137, 4
      %v10140 = vor.u32 %v10139, %v10135
      %v10141 = vrot.slane %v10140, 4
      %v10143 = vshll.u32 %v10014, 16
      %v10145 = vrot.slane %v10143, 5
      %v10146 = vsel %vm1107, %v10141, %v10145
      %v10148 = vshrl.u32 %v10015, 16
      %v10150 = vrot.slane %v10148, 4
      %v10151 = vshll.u32 %v10015, 16
      %v10153 = vrot.slane %v10151, 5
      %v10154 = vor.u32 %v10150, %v10153
      %v10155 = vrot.slane %v10154, 4
      %v10157 = vshll.u32 %v10016, 16
      %v10159 = vrot.slane %v10157, 5
      %v10160 = vsel %vm1107, %v10155, %v10159
      %v10161 = vshrl.u32 %v10016, 16
      %v10163 = vrot.slane %v10161, 4
      %v10164 = vor.u32 %v10163, %v10159
      %v10165 = vrot.slane %v10164, 4
      %v10167 = vshll.u32 %v10017, 16
      %v10169 = vrot.slane %v10167, 5
      %v10170 = vsel %vm1107, %v10165, %v10169
      %v10172 = vshrl.u32 %v10018, 16
      %v10174 = vrot.slane %v10172, 4
      %v10175 = vshll.u32 %v10018, 16
      %v10177 = vrot.slane %v10175, 5
      %v10178 = vor.u32 %v10174, %v10177
      %v10179 = vrot.slane %v10178, 4
      %v10181 = vshll.u32 %v10019, 16
      %v10183 = vrot.slane %v10181, 5
      %v10184 = vsel %vm1107, %v10179, %v10183
      %v10185 = vshrl.u32 %v10019, 16
      %v10187 = vrot.slane %v10185, 4
      %v10188 = vor.u32 %v10187, %v10183
      %v10189 = vrot.slane %v10188, 4
      %v10191 = vshll.u32 %v10020, 16
      %v10193 = vrot.slane %v10191, 5
      %v10194 = vsel %vm1107, %v10189, %v10193
      %v10196 = vshrl.u32 %v10021, 16
      %v10198 = vrot.slane %v10196, 4
      %v10199 = vshll.u32 %v10021, 16
      %v10201 = vrot.slane %v10199, 5
      %v10202 = vor.u32 %v10198, %v10201
      %v10203 = vrot.slane %v10202, 4
      %v10205 = vshll.u32 %v10022, 16
      %v10207 = vrot.slane %v10205, 5
      %v10208 = vsel %vm1107, %v10203, %v10207
      %v10209 = vshrl.u32 %v10022, 16
      %v10211 = vrot.slane %v10209, 4
      %v10212 = vor.u32 %v10211, %v10207
      %v10213 = vrot.slane %v10212, 4
      %v10215 = vshll.u32 %v10023, 16
      %v10217 = vrot.slane %v10215, 5
      %v10218 = vsel %vm1107, %v10213, %v10217
      %v10220 = vshrl.u32 %v10024, 16
      %v10222 = vrot.slane %v10220, 4
      %v10223 = vshll.u32 %v10024, 16
      %v10225 = vrot.slane %v10223, 5
      %v10226 = vor.u32 %v10222, %v10225
      %v10227 = vrot.slane %v10226, 4
      %v10229 = vshll.u32 %v10025, 16
      %v10231 = vrot.slane %v10229, 5
      %v10232 = vsel %vm1107, %v10227, %v10231
      %v10233 = vshrl.u32 %v10025, 16
      %v10235 = vrot.slane %v10233, 4
      %v10236 = vor.u32 %v10235, %v10231
      %v10237 = vrot.slane %v10236, 4
      %v10239 = vshll.u32 %v10026, 16
      %v10241 = vrot.slane %v10239, 5
      %v10242 = vsel %vm1107, %v10237, %v10241
      %v10244 = vshrl.u32 %v10027, 16
      %v10246 = vrot.slane %v10244, 4
      %v10247 = vshll.u32 %v10027, 16
      %v10249 = vrot.slane %v10247, 5
      %v10250 = vor.u32 %v10246, %v10249
      %v10251 = vrot.slane %v10250, 4
      %v10253 = vshll.u32 %v10028, 16
      %v10255 = vrot.slane %v10253, 5
      %v10256 = vsel %vm1107, %v10251, %v10255
      %v10257 = vshrl.u32 %v10028, 16
      %v10259 = vrot.slane %v10257, 4
      %v10260 = vor.u32 %v10259, %v10255
      %v10261 = vrot.slane %v10260, 4
      %v10263 = vshll.u32 %v10029, 16
      %v10265 = vrot.slane %v10263, 5
      %v10266 = vsel %vm1107, %v10261, %v10265
      %v10268 = vshrl.u32 %v10030, 16
      %v10270 = vrot.slane %v10268, 4
      %v10271 = vshll.u32 %v10030, 16
      %v10273 = vrot.slane %v10271, 5
      %v10274 = vor.u32 %v10270, %v10273
      %v10275 = vrot.slane %v10274, 4
      %v10277 = vshll.u32 %v10031, 16
      %v10279 = vrot.slane %v10277, 5
      %v10280 = vsel %vm1107, %v10275, %v10279
      %v10281 = vshrl.u32 %v10031, 16
      %v10283 = vrot.slane %v10281, 4
      %v10284 = vor.u32 %v10283, %v10279
      %v10285 = vrot.slane %v10284, 4
      %v10287 = vshll.u32 %v10032, 16
      %v10289 = vrot.slane %v10287, 5
      %v10290 = vsel %vm1107, %v10285, %v10289
      %v10292 = vshrl.u32 %v10033, 16
      %v10294 = vrot.slane %v10292, 4
      %v10295 = vshll.u32 %v10033, 16
      %v10297 = vrot.slane %v10295, 5
      %v10298 = vor.u32 %v10294, %v10297
      %v10299 = vrot.slane %v10298, 4
      %v10301 = vshll.u32 %v10034, 16
      %v10303 = vrot.slane %v10301, 5
      %v10304 = vsel %vm1107, %v10299, %v10303
      %v10305 = vshrl.u32 %v10034, 16
      %v10307 = vrot.slane %v10305, 4
      %v10308 = vor.u32 %v10307, %v10303
      %v10309 = vrot.slane %v10308, 4
      %v10311 = vshll.u32 %v10035, 16
      %v10313 = vrot.slane %v10311, 5
      %v10314 = vsel %vm1107, %v10309, %v10313
      %v10316 = vshrl.u32 %v10036, 16
      %v10318 = vrot.slane %v10316, 4
      %v10319 = vshll.u32 %v10036, 16
      %v10321 = vrot.slane %v10319, 5
      %v10322 = vor.u32 %v10318, %v10321
      %v10323 = vrot.slane %v10322, 4
      %v10325 = vshll.u32 %v10037, 16
      %v10327 = vrot.slane %v10325, 5
      %v10328 = vsel %vm1107, %v10323, %v10327
      %v10329 = vshrl.u32 %v10037, 16
      %v10331 = vrot.slane %v10329, 4
      %v10332 = vor.u32 %v10331, %v10327
      %v10333 = vrot.slane %v10332, 4
      %v10335 = vshll.u32 %v10038, 16
      %v10337 = vrot.slane %v10335, 5
      %v10338 = vsel %vm1107, %v10333, %v10337
      %v10340 = vshrl.u32 %v10039, 16
      %v10342 = vrot.slane %v10340, 4
      %v10343 = vshll.u32 %v10039, 16
      %v10345 = vrot.slane %v10343, 5
      %v10346 = vor.u32 %v10342, %v10345
      %v10347 = vrot.slane %v10346, 4
      %v10349 = vshll.u32 %v10040, 16
      %v10351 = vrot.slane %v10349, 5
      %v10352 = vsel %vm1107, %v10347, %v10351
      %v10353 = vshrl.u32 %v10040, 16
      %v10355 = vrot.slane %v10353, 4
      %v10356 = vor.u32 %v10355, %v10351
      %v10357 = vrot.slane %v10356, 4
      %v10359 = vshll.u32 %v10041, 16
      %v10361 = vrot.slane %v10359, 5
      %v10362 = vsel %vm1107, %v10357, %v10361
      %v10364 = vshrl.u32 %v10042, 16
      %v10366 = vrot.slane %v10364, 4
      %v10367 = vshll.u32 %v10042, 16
      %v10369 = vrot.slane %v10367, 5
      %v10370 = vor.u32 %v10366, %v10369
      %v10371 = vrot.slane %v10370, 4
      %v10373 = vshll.u32 %v10043, 16
      %v10375 = vrot.slane %v10373, 5
      %v10376 = vsel %vm1107, %v10371, %v10375
      %v10377 = vshrl.u32 %v10043, 16
      %v10379 = vrot.slane %v10377, 4
      %v10380 = vor.u32 %v10379, %v10375
      %v10381 = vrot.slane %v10380, 4
      %v10383 = vshll.u32 %v10044, 16
      %v10385 = vrot.slane %v10383, 5
      %v10386 = vsel %vm1107, %v10381, %v10385
      %v10388 = vshrl.u32 %v10045, 16
      %v10390 = vrot.slane %v10388, 4
      %v10391 = vshll.u32 %v10045, 16
      %v10393 = vrot.slane %v10391, 5
      %v10394 = vor.u32 %v10390, %v10393
      %v10395 = vrot.slane %v10394, 4
      %v10397 = vshll.u32 %v10046, 16
      %v10399 = vrot.slane %v10397, 5
      %v10400 = vsel %vm1107, %v10395, %v10399
      %v10401 = vshrl.u32 %v10046, 16
      %v10403 = vrot.slane %v10401, 4
      %v10404 = vor.u32 %v10403, %v10399
      %v10405 = vrot.slane %v10404, 4
      %v10407 = vshll.u32 %v10047, 16
      %v10409 = vrot.slane %v10407, 5
      %v10410 = vsel %vm1107, %v10405, %v10409
      %v10412 = vshrl.u32 %v10048, 16
      %v10414 = vrot.slane %v10412, 4
      %v10415 = vshll.u32 %v10048, 16
      %v10417 = vrot.slane %v10415, 5
      %v10418 = vor.u32 %v10414, %v10417
      %v10419 = vrot.slane %v10418, 4
      %v10421 = vshll.u32 %v10049, 16
      %v10423 = vrot.slane %v10421, 5
      %v10424 = vsel %vm1107, %v10419, %v10423
      %v10425 = vshrl.u32 %v10049, 16
      %v10427 = vrot.slane %v10425, 4
      %v10428 = vor.u32 %v10427, %v10423
      %v10429 = vrot.slane %v10428, 4
      %v10431 = vshll.u32 %v10050, 16
      %v10433 = vrot.slane %v10431, 5
      %v10434 = vsel %vm1107, %v10429, %v10433
      %s10435 = scalar_lea.vmem %s6, 224
      %v10436 = vld [vmem:[%s10435] sm:$0xf]
      %v10437 = vld [vmem:[%s10435 + $0x4] sm:$0xf]
      %v10438 = vld [vmem:[%s10435 + $0x8] sm:$0xf]
      %v10439 = vld [vmem:[%s10435 + $0xc] sm:$0xf]
      %v10440 = vld [vmem:[%s10435 + $0x10] sm:$0xf]
      %v10441 = vld [vmem:[%s10435 + $0x14] sm:$0xf]
      %v10442 = vld [vmem:[%s10435 + $0x18] sm:$0xf]
      %v10443 = vld [vmem:[%s10435 + $0x1c] sm:$0xf]
      %v10444 = vunpack.c.l.b16 %v10064
      %v10445 = vunpack.c.l.b16 %v10074
      %v10446 = vunpack.c.l.b16 %v10088
      %v10447 = vunpack.c.l.b16 %v10098
      %v10448 = vunpack.c.l.b16 %v10112
      %v10449 = vunpack.c.l.b16 %v10122
      %v10450 = vunpack.c.l.b16 %v10136
      %v10451 = vunpack.c.l.b16 %v10146
      %v10452 = vunpack.c.l.b16 %v10160
      %v10453 = vunpack.c.l.b16 %v10170
      %v10454 = vunpack.c.l.b16 %v10184
      %v10455 = vunpack.c.l.b16 %v10194
      %v10456 = vunpack.c.l.b16 %v10208
      %v10457 = vunpack.c.l.b16 %v10218
      %v10458 = vunpack.c.l.b16 %v10232
      %v10459 = vunpack.c.l.b16 %v10242
      %v10460 = vunpack.c.l.b16 %v10256
      %v10461 = vunpack.c.l.b16 %v10266
      %v10462 = vunpack.c.l.b16 %v10280
      %v10463 = vunpack.c.l.b16 %v10290
      %v10464 = vunpack.c.l.b16 %v10304
      %v10465 = vunpack.c.l.b16 %v10314
      %v10466 = vunpack.c.l.b16 %v10328
      %v10467 = vunpack.c.l.b16 %v10338
      %v10468 = vunpack.c.l.b16 %v10352
      %v10469 = vunpack.c.l.b16 %v10362
      %v10470 = vunpack.c.l.b16 %v10376
      %v10471 = vunpack.c.l.b16 %v10386
      %v10472 = vunpack.c.l.b16 %v10400
      %v10473 = vunpack.c.l.b16 %v10410
      %v10474 = vunpack.c.l.b16 %v10424
      %v10475 = vunpack.c.l.b16 %v10434
      %v10476 = vpack.c.b16 %v10445, %v10444
      %v10477 = vpack.c.b16 %v10447, %v10446
      %v10478 = vpack.c.b16 %v10449, %v10448
      %v10479 = vpack.c.b16 %v10451, %v10450
      %v10480 = vpack.c.b16 %v10453, %v10452
      %v10481 = vpack.c.b16 %v10455, %v10454
      %v10482 = vpack.c.b16 %v10457, %v10456
      %v10483 = vpack.c.b16 %v10459, %v10458
      %v10484 = vpack.c.b16 %v10461, %v10460
      %v10485 = vpack.c.b16 %v10463, %v10462
      %v10486 = vpack.c.b16 %v10465, %v10464
      %v10487 = vpack.c.b16 %v10467, %v10466
      %v10488 = vpack.c.b16 %v10469, %v10468
      %v10489 = vpack.c.b16 %v10471, %v10470
      %v10490 = vpack.c.b16 %v10473, %v10472
      %v10491 = vpack.c.b16 %v10475, %v10474
      %v10500 = vunpack.c.l.b16 %v10436
      %v10501 = vunpack.c.l.b16 %v10437
      %v10502 = vunpack.c.l.b16 %v10438
      %v10503 = vunpack.c.l.b16 %v10439
      %v10504 = vunpack.c.l.b16 %v10440
      %v10505 = vunpack.c.l.b16 %v10441
      %v10506 = vunpack.c.l.b16 %v10442
      %v10507 = vunpack.c.l.b16 %v10443
      %v10508 = vpack.c.b16 %v10501, %v10500
      %v10509 = vpack.c.b16 %v10503, %v10502
      %v10510 = vpack.c.b16 %v10505, %v10504
      %v10511 = vpack.c.b16 %v10507, %v10506
      %v10517 = vsel %vm1573, %v10476, 0
      %v10520 = vsel %vm1573, %v10477, 0
      %v10523 = vsel %vm1573, %v10478, 0
      %v10526 = vsel %vm1573, %v10479, 0
      %v10529 = vsel %vm1573, %v10480, 0
      %v10532 = vsel %vm1573, %v10481, 0
      %v10535 = vsel %vm1573, %v10482, 0
      %v10538 = vsel %vm1573, %v10483, 0
      %v10541 = vsel %vm1573, %v10484, 0
      %v10544 = vsel %vm1573, %v10485, 0
      %v10547 = vsel %vm1573, %v10486, 0
      %v10550 = vsel %vm1573, %v10487, 0
      %v10553 = vsel %vm1573, %v10488, 0
      %v10556 = vsel %vm1573, %v10489, 0
      %v10559 = vsel %vm1573, %v10490, 0
      %v10562 = vsel %vm1573, %v10491, 0
      %10564 = vmatpush.bf16.msra.mxu0 0
      %10565 = vmatpush.bf16.msra.mxu0 0
      %10566 = vmatpush.bf16.msra.mxu0 0
      %10567 = vmatpush.bf16.msra.mxu0 0
      %10568 = vmatpush.bf16.msra.mxu0 %v10511
      %10569 = vmatpush.bf16.msra.mxu0 %v10510
      %10570 = vmatpush.bf16.msra.mxu0 %v10509
      %10571 = vmatpush.bf16.msra.mxu0 %v10508
      %10572 = vmatmul.bf16.gmra.mxu0 %v10517
      %v10573 = vpop.f32.mrf.mxu0
      %v10574 = vadd.f32 0.0, %v10573
      %v10575 = vpop.f32.mrf.mxu0
      %v10576 = vadd.f32 0.0, %v10575
      %10577 = vmatmul.bf16.gmra.mxu0 %v10520
      %v10578 = vpop.f32.mrf.mxu0
      %v10579 = vadd.f32 0.0, %v10578
      %v10580 = vpop.f32.mrf.mxu0
      %v10581 = vadd.f32 0.0, %v10580
      %10582 = vmatmul.bf16.gmra.mxu0 %v10523
      %v10583 = vpop.f32.mrf.mxu0
      %v10584 = vadd.f32 0.0, %v10583
      %v10585 = vpop.f32.mrf.mxu0
      %v10586 = vadd.f32 0.0, %v10585
      %10587 = vmatmul.bf16.gmra.mxu0 %v10526
      %v10588 = vpop.f32.mrf.mxu0
      %v10589 = vadd.f32 0.0, %v10588
      %v10590 = vpop.f32.mrf.mxu0
      %v10591 = vadd.f32 0.0, %v10590
      %10592 = vmatmul.bf16.gmra.mxu0 %v10529
      %v10593 = vpop.f32.mrf.mxu0
      %v10594 = vadd.f32 0.0, %v10593
      %v10595 = vpop.f32.mrf.mxu0
      %v10596 = vadd.f32 0.0, %v10595
      %10597 = vmatmul.bf16.gmra.mxu0 %v10532
      %v10598 = vpop.f32.mrf.mxu0
      %v10599 = vadd.f32 0.0, %v10598
      %v10600 = vpop.f32.mrf.mxu0
      %v10601 = vadd.f32 0.0, %v10600
      %10602 = vmatmul.bf16.gmra.mxu0 %v10535
      %v10603 = vpop.f32.mrf.mxu0
      %v10604 = vadd.f32 0.0, %v10603
      %v10605 = vpop.f32.mrf.mxu0
      %v10606 = vadd.f32 0.0, %v10605
      %10607 = vmatmul.bf16.gmra.mxu0 %v10538
      %v10608 = vpop.f32.mrf.mxu0
      %v10609 = vadd.f32 0.0, %v10608
      %v10610 = vpop.f32.mrf.mxu0
      %v10611 = vadd.f32 0.0, %v10610
      %10612 = vmatmul.bf16.gmra.mxu0 %v10541
      %v10613 = vpop.f32.mrf.mxu0
      %v10614 = vadd.f32 0.0, %v10613
      %v10615 = vpop.f32.mrf.mxu0
      %v10616 = vadd.f32 0.0, %v10615
      %10617 = vmatmul.bf16.gmra.mxu0 %v10544
      %v10618 = vpop.f32.mrf.mxu0
      %v10619 = vadd.f32 0.0, %v10618
      %v10620 = vpop.f32.mrf.mxu0
      %v10621 = vadd.f32 0.0, %v10620
      %10622 = vmatmul.bf16.gmra.mxu0 %v10547
      %v10623 = vpop.f32.mrf.mxu0
      %v10624 = vadd.f32 0.0, %v10623
      %v10625 = vpop.f32.mrf.mxu0
      %v10626 = vadd.f32 0.0, %v10625
      %10627 = vmatmul.bf16.gmra.mxu0 %v10550
      %v10628 = vpop.f32.mrf.mxu0
      %v10629 = vadd.f32 0.0, %v10628
      %v10630 = vpop.f32.mrf.mxu0
      %v10631 = vadd.f32 0.0, %v10630
      %10632 = vmatmul.bf16.gmra.mxu0 %v10553
      %v10633 = vpop.f32.mrf.mxu0
      %v10634 = vadd.f32 0.0, %v10633
      %v10635 = vpop.f32.mrf.mxu0
      %v10636 = vadd.f32 0.0, %v10635
      %10637 = vmatmul.bf16.gmra.mxu0 %v10556
      %v10638 = vpop.f32.mrf.mxu0
      %v10639 = vadd.f32 0.0, %v10638
      %v10640 = vpop.f32.mrf.mxu0
      %v10641 = vadd.f32 0.0, %v10640
      %10642 = vmatmul.bf16.gmra.mxu0 %v10559
      %v10643 = vpop.f32.mrf.mxu0
      %v10644 = vadd.f32 0.0, %v10643
      %v10645 = vpop.f32.mrf.mxu0
      %v10646 = vadd.f32 0.0, %v10645
      %10647 = vmatmul.bf16.gmra.mxu0 %v10562
      %v10648 = vpop.f32.mrf.mxu0
      %v10649 = vadd.f32 0.0, %v10648
      %v10650 = vpop.f32.mrf.mxu0
      %v10651 = vadd.f32 0.0, %v10650
      %10652 = vdwg.mxu0
      %v10653 = vadd.f32 %v9971, %v10574
      %v10654 = vadd.f32 %v9972, %v10576
      %v10655 = vadd.f32 %v9973, %v10579
      %v10656 = vadd.f32 %v9974, %v10581
      %v10657 = vadd.f32 %v9975, %v10584
      %v10658 = vadd.f32 %v9976, %v10586
      %v10659 = vadd.f32 %v9977, %v10589
      %v10660 = vadd.f32 %v9978, %v10591
      %v10661 = vadd.f32 %v9979, %v10594
      %v10662 = vadd.f32 %v9980, %v10596
      %v10663 = vadd.f32 %v9981, %v10599
      %v10664 = vadd.f32 %v9982, %v10601
      %v10665 = vadd.f32 %v9983, %v10604
      %v10666 = vadd.f32 %v9984, %v10606
      %v10667 = vadd.f32 %v9985, %v10609
      %v10668 = vadd.f32 %v9986, %v10611
      %v10669 = vadd.f32 %v9987, %v10614
      %v10670 = vadd.f32 %v9988, %v10616
      %v10671 = vadd.f32 %v9989, %v10619
      %v10672 = vadd.f32 %v9990, %v10621
      %v10673 = vadd.f32 %v9991, %v10624
      %v10674 = vadd.f32 %v9992, %v10626
      %v10675 = vadd.f32 %v9993, %v10629
      %v10676 = vadd.f32 %v9994, %v10631
      %v10677 = vadd.f32 %v9995, %v10634
      %v10678 = vadd.f32 %v9996, %v10636
      %v10679 = vadd.f32 %v9997, %v10639
      %v10680 = vadd.f32 %v9998, %v10641
      %v10681 = vadd.f32 %v9999, %v10644
      %v10682 = vadd.f32 %v10000, %v10646
      %v10683 = vadd.f32 %v10001, %v10649
      %v10684 = vadd.f32 %v10002, %v10651
      %v10685 = vld [vmem:[%s9688] sm:$0xe]
      %v10686 = vld [vmem:[%s9688 + $0xc] sm:$0xe]
      %v10687 = vld [vmem:[%s9688 + $0x18] sm:$0xe]
      %v10688 = vld [vmem:[%s9688 + $0x24] sm:$0xe]
      %v10689 = vld [vmem:[%s9688 + $0x30] sm:$0xe]
      %v10690 = vld [vmem:[%s9688 + $0x3c] sm:$0xe]
      %v10691 = vld [vmem:[%s9688 + $0x48] sm:$0xe]
      %v10692 = vld [vmem:[%s9688 + $0x54] sm:$0xe]
      %v10693 = vld [vmem:[%s9688 + $0x60] sm:$0xe]
      %v10694 = vld [vmem:[%s9688 + $0x6c] sm:$0xe]
      %v10695 = vld [vmem:[%s9688 + $0x78] sm:$0xe]
      %v10696 = vld [vmem:[%s9688 + $0x84] sm:$0xe]
      %v10697 = vld [vmem:[%s9688 + $0x90] sm:$0xe]
      %v10698 = vld [vmem:[%s9688 + $0x9c] sm:$0xe]
      %v10699 = vld [vmem:[%s9688 + $0xa8] sm:$0xe]
      %v10700 = vld [vmem:[%s9688 + $0xb4] sm:$0xe]
      %v10749 = vrot.slane %v10685, 5
      %v10750 = vrot.slane %v10749, 4
      %v10751 = vrot.slane %v10004, 5
      %v10752 = vsel %vm2002, %v10750, %v10751
      %v10753 = vrot.slane %v10751, 4
      %v10754 = vrot.slane %v10005, 5
      %v10755 = vsel %vm2002, %v10753, %v10754
      %v10756 = vrot.slane %v10686, 5
      %v10757 = vrot.slane %v10756, 4
      %v10758 = vrot.slane %v10007, 5
      %v10759 = vsel %vm2002, %v10757, %v10758
      %v10760 = vrot.slane %v10758, 4
      %v10761 = vrot.slane %v10008, 5
      %v10762 = vsel %vm2002, %v10760, %v10761
      %v10763 = vrot.slane %v10687, 5
      %v10764 = vrot.slane %v10763, 4
      %v10765 = vrot.slane %v10010, 5
      %v10766 = vsel %vm2002, %v10764, %v10765
      %v10767 = vrot.slane %v10765, 4
      %v10768 = vrot.slane %v10011, 5
      %v10769 = vsel %vm2002, %v10767, %v10768
      %v10770 = vrot.slane %v10688, 5
      %v10771 = vrot.slane %v10770, 4
      %v10772 = vrot.slane %v10013, 5
      %v10773 = vsel %vm2002, %v10771, %v10772
      %v10774 = vrot.slane %v10772, 4
      %v10775 = vrot.slane %v10014, 5
      %v10776 = vsel %vm2002, %v10774, %v10775
      %v10777 = vrot.slane %v10689, 5
      %v10778 = vrot.slane %v10777, 4
      %v10779 = vrot.slane %v10016, 5
      %v10780 = vsel %vm2002, %v10778, %v10779
      %v10781 = vrot.slane %v10779, 4
      %v10782 = vrot.slane %v10017, 5
      %v10783 = vsel %vm2002, %v10781, %v10782
      %v10784 = vrot.slane %v10690, 5
      %v10785 = vrot.slane %v10784, 4
      %v10786 = vrot.slane %v10019, 5
      %v10787 = vsel %vm2002, %v10785, %v10786
      %v10788 = vrot.slane %v10786, 4
      %v10789 = vrot.slane %v10020, 5
      %v10790 = vsel %vm2002, %v10788, %v10789
      %v10791 = vrot.slane %v10691, 5
      %v10792 = vrot.slane %v10791, 4
      %v10793 = vrot.slane %v10022, 5
      %v10794 = vsel %vm2002, %v10792, %v10793
      %v10795 = vrot.slane %v10793, 4
      %v10796 = vrot.slane %v10023, 5
      %v10797 = vsel %vm2002, %v10795, %v10796
      %v10798 = vrot.slane %v10692, 5
      %v10799 = vrot.slane %v10798, 4
      %v10800 = vrot.slane %v10025, 5
      %v10801 = vsel %vm2002, %v10799, %v10800
      %v10802 = vrot.slane %v10800, 4
      %v10803 = vrot.slane %v10026, 5
      %v10804 = vsel %vm2002, %v10802, %v10803
      %v10805 = vrot.slane %v10693, 5
      %v10806 = vrot.slane %v10805, 4
      %v10807 = vrot.slane %v10028, 5
      %v10808 = vsel %vm2002, %v10806, %v10807
      %v10809 = vrot.slane %v10807, 4
      %v10810 = vrot.slane %v10029, 5
      %v10811 = vsel %vm2002, %v10809, %v10810
      %v10812 = vrot.slane %v10694, 5
      %v10813 = vrot.slane %v10812, 4
      %v10814 = vrot.slane %v10031, 5
      %v10815 = vsel %vm2002, %v10813, %v10814
      %v10816 = vrot.slane %v10814, 4
      %v10817 = vrot.slane %v10032, 5
      %v10818 = vsel %vm2002, %v10816, %v10817
      %v10819 = vrot.slane %v10695, 5
      %v10820 = vrot.slane %v10819, 4
      %v10821 = vrot.slane %v10034, 5
      %v10822 = vsel %vm2002, %v10820, %v10821
      %v10823 = vrot.slane %v10821, 4
      %v10824 = vrot.slane %v10035, 5
      %v10825 = vsel %vm2002, %v10823, %v10824
      %v10826 = vrot.slane %v10696, 5
      %v10827 = vrot.slane %v10826, 4
      %v10828 = vrot.slane %v10037, 5
      %v10829 = vsel %vm2002, %v10827, %v10828
      %v10830 = vrot.slane %v10828, 4
      %v10831 = vrot.slane %v10038, 5
      %v10832 = vsel %vm2002, %v10830, %v10831
      %v10833 = vrot.slane %v10697, 5
      %v10834 = vrot.slane %v10833, 4
      %v10835 = vrot.slane %v10040, 5
      %v10836 = vsel %vm2002, %v10834, %v10835
      %v10837 = vrot.slane %v10835, 4
      %v10838 = vrot.slane %v10041, 5
      %v10839 = vsel %vm2002, %v10837, %v10838
      %v10840 = vrot.slane %v10698, 5
      %v10841 = vrot.slane %v10840, 4
      %v10842 = vrot.slane %v10043, 5
      %v10843 = vsel %vm2002, %v10841, %v10842
      %v10844 = vrot.slane %v10842, 4
      %v10845 = vrot.slane %v10044, 5
      %v10846 = vsel %vm2002, %v10844, %v10845
      %v10847 = vrot.slane %v10699, 5
      %v10848 = vrot.slane %v10847, 4
      %v10849 = vrot.slane %v10046, 5
      %v10850 = vsel %vm2002, %v10848, %v10849
      %v10851 = vrot.slane %v10849, 4
      %v10852 = vrot.slane %v10047, 5
      %v10853 = vsel %vm2002, %v10851, %v10852
      %v10854 = vrot.slane %v10700, 5
      %v10855 = vrot.slane %v10854, 4
      %v10856 = vrot.slane %v10049, 5
      %v10857 = vsel %vm2002, %v10855, %v10856
      %v10858 = vrot.slane %v10856, 4
      %v10859 = vrot.slane %v10050, 5
      %v10860 = vsel %vm2002, %v10858, %v10859
      %s10861 = scalar_lea.vmem %s6, 256
      %v10862 = vld [vmem:[%s10861] sm:$0xf]
      %v10863 = vld [vmem:[%s10861 + $0x4] sm:$0xf]
      %v10864 = vld [vmem:[%s10861 + $0x8] sm:$0xf]
      %v10865 = vld [vmem:[%s10861 + $0xc] sm:$0xf]
      %v10866 = vld [vmem:[%s10861 + $0x10] sm:$0xf]
      %v10867 = vld [vmem:[%s10861 + $0x14] sm:$0xf]
      %v10868 = vld [vmem:[%s10861 + $0x18] sm:$0xf]
      %v10869 = vld [vmem:[%s10861 + $0x1c] sm:$0xf]
      %v10870 = vunpack.c.l.b16 %v10752
      %v10871 = vunpack.c.l.b16 %v10755
      %v10872 = vunpack.c.l.b16 %v10759
      %v10873 = vunpack.c.l.b16 %v10762
      %v10874 = vunpack.c.l.b16 %v10766
      %v10875 = vunpack.c.l.b16 %v10769
      %v10876 = vunpack.c.l.b16 %v10773
      %v10877 = vunpack.c.l.b16 %v10776
      %v10878 = vunpack.c.l.b16 %v10780
      %v10879 = vunpack.c.l.b16 %v10783
      %v10880 = vunpack.c.l.b16 %v10787
      %v10881 = vunpack.c.l.b16 %v10790
      %v10882 = vunpack.c.l.b16 %v10794
      %v10883 = vunpack.c.l.b16 %v10797
      %v10884 = vunpack.c.l.b16 %v10801
      %v10885 = vunpack.c.l.b16 %v10804
      %v10886 = vunpack.c.l.b16 %v10808
      %v10887 = vunpack.c.l.b16 %v10811
      %v10888 = vunpack.c.l.b16 %v10815
      %v10889 = vunpack.c.l.b16 %v10818
      %v10890 = vunpack.c.l.b16 %v10822
      %v10891 = vunpack.c.l.b16 %v10825
      %v10892 = vunpack.c.l.b16 %v10829
      %v10893 = vunpack.c.l.b16 %v10832
      %v10894 = vunpack.c.l.b16 %v10836
      %v10895 = vunpack.c.l.b16 %v10839
      %v10896 = vunpack.c.l.b16 %v10843
      %v10897 = vunpack.c.l.b16 %v10846
      %v10898 = vunpack.c.l.b16 %v10850
      %v10899 = vunpack.c.l.b16 %v10853
      %v10900 = vunpack.c.l.b16 %v10857
      %v10901 = vunpack.c.l.b16 %v10860
      %v10902 = vpack.c.b16 %v10871, %v10870
      %v10903 = vpack.c.b16 %v10873, %v10872
      %v10904 = vpack.c.b16 %v10875, %v10874
      %v10905 = vpack.c.b16 %v10877, %v10876
      %v10906 = vpack.c.b16 %v10879, %v10878
      %v10907 = vpack.c.b16 %v10881, %v10880
      %v10908 = vpack.c.b16 %v10883, %v10882
      %v10909 = vpack.c.b16 %v10885, %v10884
      %v10910 = vpack.c.b16 %v10887, %v10886
      %v10911 = vpack.c.b16 %v10889, %v10888
      %v10912 = vpack.c.b16 %v10891, %v10890
      %v10913 = vpack.c.b16 %v10893, %v10892
      %v10914 = vpack.c.b16 %v10895, %v10894
      %v10915 = vpack.c.b16 %v10897, %v10896
      %v10916 = vpack.c.b16 %v10899, %v10898
      %v10917 = vpack.c.b16 %v10901, %v10900
      %v10926 = vunpack.c.l.b16 %v10862
      %v10927 = vunpack.c.l.b16 %v10863
      %v10928 = vunpack.c.l.b16 %v10864
      %v10929 = vunpack.c.l.b16 %v10865
      %v10930 = vunpack.c.l.b16 %v10866
      %v10931 = vunpack.c.l.b16 %v10867
      %v10932 = vunpack.c.l.b16 %v10868
      %v10933 = vunpack.c.l.b16 %v10869
      %v10934 = vpack.c.b16 %v10927, %v10926
      %v10935 = vpack.c.b16 %v10929, %v10928
      %v10936 = vpack.c.b16 %v10931, %v10930
      %v10937 = vpack.c.b16 %v10933, %v10932
      %v10943 = vsel %vm1573, %v10902, 0
      %v10946 = vsel %vm1573, %v10903, 0
      %v10949 = vsel %vm1573, %v10904, 0
      %v10952 = vsel %vm1573, %v10905, 0
      %v10955 = vsel %vm1573, %v10906, 0
      %v10958 = vsel %vm1573, %v10907, 0
      %v10961 = vsel %vm1573, %v10908, 0
      %v10964 = vsel %vm1573, %v10909, 0
      %v10967 = vsel %vm1573, %v10910, 0
      %v10970 = vsel %vm1573, %v10911, 0
      %v10973 = vsel %vm1573, %v10912, 0
      %v10976 = vsel %vm1573, %v10913, 0
      %v10979 = vsel %vm1573, %v10914, 0
      %v10982 = vsel %vm1573, %v10915, 0
      %v10985 = vsel %vm1573, %v10916, 0
      %v10988 = vsel %vm1573, %v10917, 0
      %10990 = vmatpush.bf16.msra.mxu0 0
      %10991 = vmatpush.bf16.msra.mxu0 0
      %10992 = vmatpush.bf16.msra.mxu0 0
      %10993 = vmatpush.bf16.msra.mxu0 0
      %10994 = vmatpush.bf16.msra.mxu0 %v10937
      %10995 = vmatpush.bf16.msra.mxu0 %v10936
      %10996 = vmatpush.bf16.msra.mxu0 %v10935
      %10997 = vmatpush.bf16.msra.mxu0 %v10934
      %10998 = vmatmul.bf16.gmra.mxu0 %v10943
      %v10999 = vpop.f32.mrf.mxu0
      %v11000 = vadd.f32 0.0, %v10999
      %v11001 = vpop.f32.mrf.mxu0
      %v11002 = vadd.f32 0.0, %v11001
      %11003 = vmatmul.bf16.gmra.mxu0 %v10946
      %v11004 = vpop.f32.mrf.mxu0
      %v11005 = vadd.f32 0.0, %v11004
      %v11006 = vpop.f32.mrf.mxu0
      %v11007 = vadd.f32 0.0, %v11006
      %11008 = vmatmul.bf16.gmra.mxu0 %v10949
      %v11009 = vpop.f32.mrf.mxu0
      %v11010 = vadd.f32 0.0, %v11009
      %v11011 = vpop.f32.mrf.mxu0
      %v11012 = vadd.f32 0.0, %v11011
      %11013 = vmatmul.bf16.gmra.mxu0 %v10952
      %v11014 = vpop.f32.mrf.mxu0
      %v11015 = vadd.f32 0.0, %v11014
      %v11016 = vpop.f32.mrf.mxu0
      %v11017 = vadd.f32 0.0, %v11016
      %11018 = vmatmul.bf16.gmra.mxu0 %v10955
      %v11019 = vpop.f32.mrf.mxu0
      %v11020 = vadd.f32 0.0, %v11019
      %v11021 = vpop.f32.mrf.mxu0
      %v11022 = vadd.f32 0.0, %v11021
      %11023 = vmatmul.bf16.gmra.mxu0 %v10958
      %v11024 = vpop.f32.mrf.mxu0
      %v11025 = vadd.f32 0.0, %v11024
      %v11026 = vpop.f32.mrf.mxu0
      %v11027 = vadd.f32 0.0, %v11026
      %11028 = vmatmul.bf16.gmra.mxu0 %v10961
      %v11029 = vpop.f32.mrf.mxu0
      %v11030 = vadd.f32 0.0, %v11029
      %v11031 = vpop.f32.mrf.mxu0
      %v11032 = vadd.f32 0.0, %v11031
      %11033 = vmatmul.bf16.gmra.mxu0 %v10964
      %v11034 = vpop.f32.mrf.mxu0
      %v11035 = vadd.f32 0.0, %v11034
      %v11036 = vpop.f32.mrf.mxu0
      %v11037 = vadd.f32 0.0, %v11036
      %11038 = vmatmul.bf16.gmra.mxu0 %v10967
      %v11039 = vpop.f32.mrf.mxu0
      %v11040 = vadd.f32 0.0, %v11039
      %v11041 = vpop.f32.mrf.mxu0
      %v11042 = vadd.f32 0.0, %v11041
      %11043 = vmatmul.bf16.gmra.mxu0 %v10970
      %v11044 = vpop.f32.mrf.mxu0
      %v11045 = vadd.f32 0.0, %v11044
      %v11046 = vpop.f32.mrf.mxu0
      %v11047 = vadd.f32 0.0, %v11046
      %11048 = vmatmul.bf16.gmra.mxu0 %v10973
      %v11049 = vpop.f32.mrf.mxu0
      %v11050 = vadd.f32 0.0, %v11049
      %v11051 = vpop.f32.mrf.mxu0
      %v11052 = vadd.f32 0.0, %v11051
      %11053 = vmatmul.bf16.gmra.mxu0 %v10976
      %v11054 = vpop.f32.mrf.mxu0
      %v11055 = vadd.f32 0.0, %v11054
      %v11056 = vpop.f32.mrf.mxu0
      %v11057 = vadd.f32 0.0, %v11056
      %11058 = vmatmul.bf16.gmra.mxu0 %v10979
      %v11059 = vpop.f32.mrf.mxu0
      %v11060 = vadd.f32 0.0, %v11059
      %v11061 = vpop.f32.mrf.mxu0
      %v11062 = vadd.f32 0.0, %v11061
      %11063 = vmatmul.bf16.gmra.mxu0 %v10982
      %v11064 = vpop.f32.mrf.mxu0
      %v11065 = vadd.f32 0.0, %v11064
      %v11066 = vpop.f32.mrf.mxu0
      %v11067 = vadd.f32 0.0, %v11066
      %11068 = vmatmul.bf16.gmra.mxu0 %v10985
      %v11069 = vpop.f32.mrf.mxu0
      %v11070 = vadd.f32 0.0, %v11069
      %v11071 = vpop.f32.mrf.mxu0
      %v11072 = vadd.f32 0.0, %v11071
      %11073 = vmatmul.bf16.gmra.mxu0 %v10988
      %v11074 = vpop.f32.mrf.mxu0
      %v11075 = vadd.f32 0.0, %v11074
      %v11076 = vpop.f32.mrf.mxu0
      %v11077 = vadd.f32 0.0, %v11076
      %11078 = vdwg.mxu0
      %v11079 = vadd.f32 %v10653, %v11000
      %v11080 = vadd.f32 %v10654, %v11002
      %v11081 = vadd.f32 %v10655, %v11005
      %v11082 = vadd.f32 %v10656, %v11007
      %v11083 = vadd.f32 %v10657, %v11010
      %v11084 = vadd.f32 %v10658, %v11012
      %v11085 = vadd.f32 %v10659, %v11015
      %v11086 = vadd.f32 %v10660, %v11017
      %v11087 = vadd.f32 %v10661, %v11020
      %v11088 = vadd.f32 %v10662, %v11022
      %v11089 = vadd.f32 %v10663, %v11025
      %v11090 = vadd.f32 %v10664, %v11027
      %v11091 = vadd.f32 %v10665, %v11030
      %v11092 = vadd.f32 %v10666, %v11032
      %v11093 = vadd.f32 %v10667, %v11035
      %v11094 = vadd.f32 %v10668, %v11037
      %v11095 = vadd.f32 %v10669, %v11040
      %v11096 = vadd.f32 %v10670, %v11042
      %v11097 = vadd.f32 %v10671, %v11045
      %v11098 = vadd.f32 %v10672, %v11047
      %v11099 = vadd.f32 %v10673, %v11050
      %v11100 = vadd.f32 %v10674, %v11052
      %v11101 = vadd.f32 %v10675, %v11055
      %v11102 = vadd.f32 %v10676, %v11057
      %v11103 = vadd.f32 %v10677, %v11060
      %v11104 = vadd.f32 %v10678, %v11062
      %v11105 = vadd.f32 %v10679, %v11065
      %v11106 = vadd.f32 %v10680, %v11067
      %v11107 = vadd.f32 %v10681, %v11070
      %v11108 = vadd.f32 %v10682, %v11072
      %v11109 = vadd.f32 %v10683, %v11075
      %v11110 = vadd.f32 %v10684, %v11077
      %v11111 = vsel %vm1573, %v11079, 0.0
      %v11112 = vsel %vm1573, %v11080, 0.0
      %v11113 = vadd.f32 %v11111, %v11112
      %v11114 = vsel %vm1573, %v11081, 0.0
      %v11115 = vadd.f32 %v11113, %v11114
      %v11116 = vsel %vm1573, %v11082, 0.0
      %v11117 = vadd.f32 %v11115, %v11116
      %v11118 = vsel %vm1573, %v11083, 0.0
      %v11119 = vadd.f32 %v11117, %v11118
      %v11120 = vsel %vm1573, %v11084, 0.0
      %v11121 = vadd.f32 %v11119, %v11120
      %v11122 = vsel %vm1573, %v11085, 0.0
      %v11123 = vadd.f32 %v11121, %v11122
      %v11124 = vsel %vm1573, %v11086, 0.0
      %v11125 = vadd.f32 %v11123, %v11124
      %v11126 = vsel %vm1573, %v11087, 0.0
      %v11127 = vadd.f32 %v11125, %v11126
      %v11128 = vsel %vm1573, %v11088, 0.0
      %v11129 = vadd.f32 %v11127, %v11128
      %v11130 = vsel %vm1573, %v11089, 0.0
      %v11131 = vadd.f32 %v11129, %v11130
      %v11132 = vsel %vm1573, %v11090, 0.0
      %v11133 = vadd.f32 %v11131, %v11132
      %v11134 = vsel %vm1573, %v11091, 0.0
      %v11135 = vadd.f32 %v11133, %v11134
      %v11136 = vsel %vm1573, %v11092, 0.0
      %v11137 = vadd.f32 %v11135, %v11136
      %v11138 = vsel %vm1573, %v11093, 0.0
      %v11139 = vadd.f32 %v11137, %v11138
      %v11140 = vsel %vm1573, %v11094, 0.0
      %v11141 = vadd.f32 %v11139, %v11140
      %v11142 = vsel %vm1573, %v11095, 0.0
      %v11143 = vadd.f32 %v11141, %v11142
      %v11144 = vsel %vm1573, %v11096, 0.0
      %v11145 = vadd.f32 %v11143, %v11144
      %v11146 = vsel %vm1573, %v11097, 0.0
      %v11147 = vadd.f32 %v11145, %v11146
      %v11148 = vsel %vm1573, %v11098, 0.0
      %v11149 = vadd.f32 %v11147, %v11148
      %v11150 = vsel %vm1573, %v11099, 0.0
      %v11151 = vadd.f32 %v11149, %v11150
      %v11152 = vsel %vm1573, %v11100, 0.0
      %v11153 = vadd.f32 %v11151, %v11152
      %v11154 = vsel %vm1573, %v11101, 0.0
      %v11155 = vadd.f32 %v11153, %v11154
      %v11156 = vsel %vm1573, %v11102, 0.0
      %v11157 = vadd.f32 %v11155, %v11156
      %v11158 = vsel %vm1573, %v11103, 0.0
      %v11159 = vadd.f32 %v11157, %v11158
      %v11160 = vsel %vm1573, %v11104, 0.0
      %v11161 = vadd.f32 %v11159, %v11160
      %v11162 = vsel %vm1573, %v11105, 0.0
      %v11163 = vadd.f32 %v11161, %v11162
      %v11164 = vsel %vm1573, %v11106, 0.0
      %v11165 = vadd.f32 %v11163, %v11164
      %v11166 = vsel %vm1573, %v11107, 0.0
      %v11167 = vadd.f32 %v11165, %v11166
      %v11168 = vsel %vm1573, %v11108, 0.0
      %v11169 = vadd.f32 %v11167, %v11168
      %v11170 = vsel %vm1573, %v11109, 0.0
      %v11171 = vadd.f32 %v11169, %v11170
      %v11172 = vsel %vm1573, %v11110, 0.0
      %v11173 = vadd.f32 %v11171, %v11172
      %v11174 = vrot.slane %v11173, 4
      %v11175 = vadd.f32 %v11173, %v11174
      %v11176 = vrot.slane %v11175, 2
      %v11177 = vadd.f32 %v11175, %v11176
      %v11178 = vrot.slane %v11177, 1
      %v11179 = vadd.f32 %v11177, %v11178
      %v11181 = vsel %vm1573, %v11179, 0
      %11183 = vmatpush.msra.mxu0 0.0
      %11184 = vmatpush.msra.mxu0 0.0
      %11185 = vmatpush.msra.mxu0 0.0
      %11186 = vmatpush.msra.mxu0 0.0
      %11187 = vmatpush.msra.mxu0 0.0
      %11188 = vmatpush.msra.mxu0 0.0
      %11189 = vmatpush.msra.mxu0 0.0
      %11190 = vmatpush.msra.mxu0 0.0
      %11191 = vmatpush.msra.mxu0 %v422
      %11192 = vmatpush.msra.mxu0 %v421
      %11193 = vmatpush.msra.mxu0 %v420
      %11194 = vmatpush.msra.mxu0 %v419
      %11195 = vmatpush.msra.mxu0 %v418
      %11196 = vmatpush.msra.mxu0 %v417
      %11197 = vmatpush.msra.mxu0 %v416
      %11198 = vmatpush.msra.mxu0 %v415
      %11199 = vmatmul.f32.gmra.mxu0 %v11181
      %v11200 = vpop.f32.mrf.mxu0
      %v11201 = vadd.f32 0.0, %v11200
      %11202 = vdwg.mxu0
      %v11203 = vmul.f32 %v11201, 0.001953125
      %v11204 = vsub.f32 %v11203, %v6954
      %v11205 = vperm.slane %v11204, 0
      %v11206 = vsub.f32 %v11079, %v11205
      %v11207 = vsub.f32 %v11080, %v11205
      %v11208 = vsub.f32 %v11081, %v11205
      %v11209 = vsub.f32 %v11082, %v11205
      %v11210 = vsub.f32 %v11083, %v11205
      %v11211 = vsub.f32 %v11084, %v11205
      %v11212 = vsub.f32 %v11085, %v11205
      %v11213 = vsub.f32 %v11086, %v11205
      %v11214 = vsub.f32 %v11087, %v11205
      %v11215 = vsub.f32 %v11088, %v11205
      %v11216 = vsub.f32 %v11089, %v11205
      %v11217 = vsub.f32 %v11090, %v11205
      %v11218 = vsub.f32 %v11091, %v11205
      %v11219 = vsub.f32 %v11092, %v11205
      %v11220 = vsub.f32 %v11093, %v11205
      %v11221 = vsub.f32 %v11094, %v11205
      %v11222 = vsub.f32 %v11095, %v11205
      %v11223 = vsub.f32 %v11096, %v11205
      %v11224 = vsub.f32 %v11097, %v11205
      %v11225 = vsub.f32 %v11098, %v11205
      %v11226 = vsub.f32 %v11099, %v11205
      %v11227 = vsub.f32 %v11100, %v11205
      %v11228 = vsub.f32 %v11101, %v11205
      %v11229 = vsub.f32 %v11102, %v11205
      %v11230 = vsub.f32 %v11103, %v11205
      %v11231 = vsub.f32 %v11104, %v11205
      %v11232 = vsub.f32 %v11105, %v11205
      %v11233 = vsub.f32 %v11106, %v11205
      %v11234 = vsub.f32 %v11107, %v11205
      %v11235 = vsub.f32 %v11108, %v11205
      %v11236 = vsub.f32 %v11109, %v11205
      %v11237 = vsub.f32 %v11110, %v11205
      %v11238 = vmul.f32 %v11206, %v11206
      %v11239 = vmul.f32 %v11207, %v11207
      %v11240 = vmul.f32 %v11208, %v11208
      %v11241 = vmul.f32 %v11209, %v11209
      %v11242 = vmul.f32 %v11210, %v11210
      %v11243 = vmul.f32 %v11211, %v11211
      %v11244 = vmul.f32 %v11212, %v11212
      %v11245 = vmul.f32 %v11213, %v11213
      %v11246 = vmul.f32 %v11214, %v11214
      %v11247 = vmul.f32 %v11215, %v11215
      %v11248 = vmul.f32 %v11216, %v11216
      %v11249 = vmul.f32 %v11217, %v11217
      %v11250 = vmul.f32 %v11218, %v11218
      %v11251 = vmul.f32 %v11219, %v11219
      %v11252 = vmul.f32 %v11220, %v11220
      %v11253 = vmul.f32 %v11221, %v11221
      %v11254 = vmul.f32 %v11222, %v11222
      %v11255 = vmul.f32 %v11223, %v11223
      %v11256 = vmul.f32 %v11224, %v11224
      %v11257 = vmul.f32 %v11225, %v11225
      %v11258 = vmul.f32 %v11226, %v11226
      %v11259 = vmul.f32 %v11227, %v11227
      %v11260 = vmul.f32 %v11228, %v11228
      %v11261 = vmul.f32 %v11229, %v11229
      %v11262 = vmul.f32 %v11230, %v11230
      %v11263 = vmul.f32 %v11231, %v11231
      %v11264 = vmul.f32 %v11232, %v11232
      %v11265 = vmul.f32 %v11233, %v11233
      %v11266 = vmul.f32 %v11234, %v11234
      %v11267 = vmul.f32 %v11235, %v11235
      %v11268 = vmul.f32 %v11236, %v11236
      %v11269 = vmul.f32 %v11237, %v11237
      %v11270 = vsel %vm1573, %v11238, 0.0
      %v11271 = vsel %vm1573, %v11239, 0.0
      %v11272 = vadd.f32 %v11270, %v11271
      %v11273 = vsel %vm1573, %v11240, 0.0
      %v11274 = vadd.f32 %v11272, %v11273
      %v11275 = vsel %vm1573, %v11241, 0.0
      %v11276 = vadd.f32 %v11274, %v11275
      %v11277 = vsel %vm1573, %v11242, 0.0
      %v11278 = vadd.f32 %v11276, %v11277
      %v11279 = vsel %vm1573, %v11243, 0.0
      %v11280 = vadd.f32 %v11278, %v11279
      %v11281 = vsel %vm1573, %v11244, 0.0
      %v11282 = vadd.f32 %v11280, %v11281
      %v11283 = vsel %vm1573, %v11245, 0.0
      %v11284 = vadd.f32 %v11282, %v11283
      %v11285 = vsel %vm1573, %v11246, 0.0
      %v11286 = vadd.f32 %v11284, %v11285
      %v11287 = vsel %vm1573, %v11247, 0.0
      %v11288 = vadd.f32 %v11286, %v11287
      %v11289 = vsel %vm1573, %v11248, 0.0
      %v11290 = vadd.f32 %v11288, %v11289
      %v11291 = vsel %vm1573, %v11249, 0.0
      %v11292 = vadd.f32 %v11290, %v11291
      %v11293 = vsel %vm1573, %v11250, 0.0
      %v11294 = vadd.f32 %v11292, %v11293
      %v11295 = vsel %vm1573, %v11251, 0.0
      %v11296 = vadd.f32 %v11294, %v11295
      %v11297 = vsel %vm1573, %v11252, 0.0
      %v11298 = vadd.f32 %v11296, %v11297
      %v11299 = vsel %vm1573, %v11253, 0.0
      %v11300 = vadd.f32 %v11298, %v11299
      %v11301 = vsel %vm1573, %v11254, 0.0
      %v11302 = vadd.f32 %v11300, %v11301
      %v11303 = vsel %vm1573, %v11255, 0.0
      %v11304 = vadd.f32 %v11302, %v11303
      %v11305 = vsel %vm1573, %v11256, 0.0
      %v11306 = vadd.f32 %v11304, %v11305
      %v11307 = vsel %vm1573, %v11257, 0.0
      %v11308 = vadd.f32 %v11306, %v11307
      %v11309 = vsel %vm1573, %v11258, 0.0
      %v11310 = vadd.f32 %v11308, %v11309
      %v11311 = vsel %vm1573, %v11259, 0.0
      %v11312 = vadd.f32 %v11310, %v11311
      %v11313 = vsel %vm1573, %v11260, 0.0
      %v11314 = vadd.f32 %v11312, %v11313
      %v11315 = vsel %vm1573, %v11261, 0.0
      %v11316 = vadd.f32 %v11314, %v11315
      %v11317 = vsel %vm1573, %v11262, 0.0
      %v11318 = vadd.f32 %v11316, %v11317
      %v11319 = vsel %vm1573, %v11263, 0.0
      %v11320 = vadd.f32 %v11318, %v11319
      %v11321 = vsel %vm1573, %v11264, 0.0
      %v11322 = vadd.f32 %v11320, %v11321
      %v11323 = vsel %vm1573, %v11265, 0.0
      %v11324 = vadd.f32 %v11322, %v11323
      %v11325 = vsel %vm1573, %v11266, 0.0
      %v11326 = vadd.f32 %v11324, %v11325
      %v11327 = vsel %vm1573, %v11267, 0.0
      %v11328 = vadd.f32 %v11326, %v11327
      %v11329 = vsel %vm1573, %v11268, 0.0
      %v11330 = vadd.f32 %v11328, %v11329
      %v11331 = vsel %vm1573, %v11269, 0.0
      %v11332 = vadd.f32 %v11330, %v11331
      %v11333 = vrot.slane %v11332, 4
      %v11334 = vadd.f32 %v11332, %v11333
      %v11335 = vrot.slane %v11334, 2
      %v11336 = vadd.f32 %v11334, %v11335
      %v11337 = vrot.slane %v11336, 1
      %v11338 = vadd.f32 %v11336, %v11337
      %v11340 = vsel %vm1573, %v11338, 0
      %11342 = vmatpush.msra.mxu0 0.0
      %11343 = vmatpush.msra.mxu0 0.0
      %11344 = vmatpush.msra.mxu0 0.0
      %11345 = vmatpush.msra.mxu0 0.0
      %11346 = vmatpush.msra.mxu0 0.0
      %11347 = vmatpush.msra.mxu0 0.0
      %11348 = vmatpush.msra.mxu0 0.0
      %11349 = vmatpush.msra.mxu0 0.0
      %11350 = vmatpush.msra.mxu0 %v422
      %11351 = vmatpush.msra.mxu0 %v421
      %11352 = vmatpush.msra.mxu0 %v420
      %11353 = vmatpush.msra.mxu0 %v419
      %11354 = vmatpush.msra.mxu0 %v418
      %11355 = vmatpush.msra.mxu0 %v417
      %11356 = vmatpush.msra.mxu0 %v416
      %11357 = vmatpush.msra.mxu0 %v415
      %11358 = vmatmul.f32.gmra.mxu0 %v11340
      %v11359 = vpop.f32.mrf.mxu0
      %v11360 = vadd.f32 0.0, %v11359
      %11361 = vdwg.mxu0
      %v11362 = vmul.f32 %v11360, 0.001953125
      %v11363 = vadd.f32 %v11362, 1e-05
      %v11364 = vrsqrt.pop %v11363
      %v11365 = vmul.f32 %v11364, %v11363
      %v11366 = vmul.f32 %v11365, %v11364
      %v11367 = vmul.f32 0.5, %v11366
      %v11368 = vsub.f32 1.5, %v11367
      %v11369 = vmul.f32 %v11364, %v11368
      %vm11370 = vweird.f32 %v11363
      %vm11371 = vweird.f32 %v11364
      %vm11372 = vmor %vm11370, %vm11371
      %v11373 = vsel %vm11372, %v11364, %v11369
      %v11374 = vmul.f32 %v11373, %v6955
      %v11375 = vperm.slane %v11374, 0
      %v11376 = vmul.f32 %v11206, %v11375
      %v11377 = vmul.f32 %v11207, %v11375
      %v11378 = vmul.f32 %v11208, %v11375
      %v11379 = vmul.f32 %v11209, %v11375
      %v11380 = vmul.f32 %v11210, %v11375
      %v11381 = vmul.f32 %v11211, %v11375
      %v11382 = vmul.f32 %v11212, %v11375
      %v11383 = vmul.f32 %v11213, %v11375
      %v11384 = vmul.f32 %v11214, %v11375
      %v11385 = vmul.f32 %v11215, %v11375
      %v11386 = vmul.f32 %v11216, %v11375
      %v11387 = vmul.f32 %v11217, %v11375
      %v11388 = vmul.f32 %v11218, %v11375
      %v11389 = vmul.f32 %v11219, %v11375
      %v11390 = vmul.f32 %v11220, %v11375
      %v11391 = vmul.f32 %v11221, %v11375
      %v11392 = vmul.f32 %v11222, %v11375
      %v11393 = vmul.f32 %v11223, %v11375
      %v11394 = vmul.f32 %v11224, %v11375
      %v11395 = vmul.f32 %v11225, %v11375
      %v11396 = vmul.f32 %v11226, %v11375
      %v11397 = vmul.f32 %v11227, %v11375
      %v11398 = vmul.f32 %v11228, %v11375
      %v11399 = vmul.f32 %v11229, %v11375
      %v11400 = vmul.f32 %v11230, %v11375
      %v11401 = vmul.f32 %v11231, %v11375
      %v11402 = vmul.f32 %v11232, %v11375
      %v11403 = vmul.f32 %v11233, %v11375
      %v11404 = vmul.f32 %v11234, %v11375
      %v11405 = vmul.f32 %v11235, %v11375
      %v11406 = vmul.f32 %v11236, %v11375
      %v11407 = vmul.f32 %v11237, %v11375
      %v11409 = vperm.slane %v6956, 0
      %v11411 = vadd.f32 %v11376, %v11409
      %v11412 = vadd.f32 %v11377, %v11409
      %v11413 = vadd.f32 %v11378, %v11409
      %v11414 = vadd.f32 %v11379, %v11409
      %v11415 = vadd.f32 %v11380, %v11409
      %v11416 = vadd.f32 %v11381, %v11409
      %v11417 = vadd.f32 %v11382, %v11409
      %v11418 = vadd.f32 %v11383, %v11409
      %v11419 = vadd.f32 %v11384, %v11409
      %v11420 = vadd.f32 %v11385, %v11409
      %v11421 = vadd.f32 %v11386, %v11409
      %v11422 = vadd.f32 %v11387, %v11409
      %v11423 = vadd.f32 %v11388, %v11409
      %v11424 = vadd.f32 %v11389, %v11409
      %v11425 = vadd.f32 %v11390, %v11409
      %v11426 = vadd.f32 %v11391, %v11409
      %v11427 = vadd.f32 %v11392, %v11409
      %v11428 = vadd.f32 %v11393, %v11409
      %v11429 = vadd.f32 %v11394, %v11409
      %v11430 = vadd.f32 %v11395, %v11409
      %v11431 = vadd.f32 %v11396, %v11409
      %v11432 = vadd.f32 %v11397, %v11409
      %v11433 = vadd.f32 %v11398, %v11409
      %v11434 = vadd.f32 %v11399, %v11409
      %v11435 = vadd.f32 %v11400, %v11409
      %v11436 = vadd.f32 %v11401, %v11409
      %v11437 = vadd.f32 %v11402, %v11409
      %v11438 = vadd.f32 %v11403, %v11409
      %v11439 = vadd.f32 %v11404, %v11409
      %v11440 = vadd.f32 %v11405, %v11409
      %v11441 = vadd.f32 %v11406, %v11409
      %v11442 = vadd.f32 %v11407, %v11409
      %v11443 = vmul.f32 %v11411, 0.70710677
      %v11444 = vmul.f32 %v11412, 0.70710677
      %v11445 = vmul.f32 %v11413, 0.70710677
      %v11446 = vmul.f32 %v11414, 0.70710677
      %v11447 = vmul.f32 %v11415, 0.70710677
      %v11448 = vmul.f32 %v11416, 0.70710677
      %v11449 = vmul.f32 %v11417, 0.70710677
      %v11450 = vmul.f32 %v11418, 0.70710677
      %v11451 = vmul.f32 %v11419, 0.70710677
      %v11452 = vmul.f32 %v11420, 0.70710677
      %v11453 = vmul.f32 %v11421, 0.70710677
      %v11454 = vmul.f32 %v11422, 0.70710677
      %v11455 = vmul.f32 %v11423, 0.70710677
      %v11456 = vmul.f32 %v11424, 0.70710677
      %v11457 = vmul.f32 %v11425, 0.70710677
      %v11458 = vmul.f32 %v11426, 0.70710677
      %v11459 = vmul.f32 %v11427, 0.70710677
      %v11460 = vmul.f32 %v11428, 0.70710677
      %v11461 = vmul.f32 %v11429, 0.70710677
      %v11462 = vmul.f32 %v11430, 0.70710677
      %v11463 = vmul.f32 %v11431, 0.70710677
      %v11464 = vmul.f32 %v11432, 0.70710677
      %v11465 = vmul.f32 %v11433, 0.70710677
      %v11466 = vmul.f32 %v11434, 0.70710677
      %v11467 = vmul.f32 %v11435, 0.70710677
      %v11468 = vmul.f32 %v11436, 0.70710677
      %v11469 = vmul.f32 %v11437, 0.70710677
      %v11470 = vmul.f32 %v11438, 0.70710677
      %v11471 = vmul.f32 %v11439, 0.70710677
      %v11472 = vmul.f32 %v11440, 0.70710677
      %v11473 = vmul.f32 %v11441, 0.70710677
      %v11474 = vmul.f32 %v11442, 0.70710677
      %v11475 = vand.u32 2147483647, %v11443
      %v11476 = vand.u32 2147483647, %v11444
      %v11477 = vand.u32 2147483647, %v11445
      %v11478 = vand.u32 2147483647, %v11446
      %v11479 = vand.u32 2147483647, %v11447
      %v11480 = vand.u32 2147483647, %v11448
      %v11481 = vand.u32 2147483647, %v11449
      %v11482 = vand.u32 2147483647, %v11450
      %v11483 = vand.u32 2147483647, %v11451
      %v11484 = vand.u32 2147483647, %v11452
      %v11485 = vand.u32 2147483647, %v11453
      %v11486 = vand.u32 2147483647, %v11454
      %v11487 = vand.u32 2147483647, %v11455
      %v11488 = vand.u32 2147483647, %v11456
      %v11489 = vand.u32 2147483647, %v11457
      %v11490 = vand.u32 2147483647, %v11458
      %v11491 = vand.u32 2147483647, %v11459
      %v11492 = vand.u32 2147483647, %v11460
      %v11493 = vand.u32 2147483647, %v11461
      %v11494 = vand.u32 2147483647, %v11462
      %v11495 = vand.u32 2147483647, %v11463
      %v11496 = vand.u32 2147483647, %v11464
      %v11497 = vand.u32 2147483647, %v11465
      %v11498 = vand.u32 2147483647, %v11466
      %v11499 = vand.u32 2147483647, %v11467
      %v11500 = vand.u32 2147483647, %v11468
      %v11501 = vand.u32 2147483647, %v11469
      %v11502 = vand.u32 2147483647, %v11470
      %v11503 = vand.u32 2147483647, %v11471
      %v11504 = vand.u32 2147483647, %v11472
      %v11505 = vand.u32 2147483647, %v11473
      %v11506 = vand.u32 2147483647, %v11474
      %v11507 = vmul.f32 %v11475, 0.3275911
      %v11508 = vmul.f32 %v11476, 0.3275911
      %v11509 = vmul.f32 %v11477, 0.3275911
      %v11510 = vmul.f32 %v11478, 0.3275911
      %v11511 = vmul.f32 %v11479, 0.3275911
      %v11512 = vmul.f32 %v11480, 0.3275911
      %v11513 = vmul.f32 %v11481, 0.3275911
      %v11514 = vmul.f32 %v11482, 0.3275911
      %v11515 = vmul.f32 %v11483, 0.3275911
      %v11516 = vmul.f32 %v11484, 0.3275911
      %v11517 = vmul.f32 %v11485, 0.3275911
      %v11518 = vmul.f32 %v11486, 0.3275911
      %v11519 = vmul.f32 %v11487, 0.3275911
      %v11520 = vmul.f32 %v11488, 0.3275911
      %v11521 = vmul.f32 %v11489, 0.3275911
      %v11522 = vmul.f32 %v11490, 0.3275911
      %v11523 = vmul.f32 %v11491, 0.3275911
      %v11524 = vmul.f32 %v11492, 0.3275911
      %v11525 = vmul.f32 %v11493, 0.3275911
      %v11526 = vmul.f32 %v11494, 0.3275911
      %v11527 = vmul.f32 %v11495, 0.3275911
      %v11528 = vmul.f32 %v11496, 0.3275911
      %v11529 = vmul.f32 %v11497, 0.3275911
      %v11530 = vmul.f32 %v11498, 0.3275911
      %v11531 = vmul.f32 %v11499, 0.3275911
      %v11532 = vmul.f32 %v11500, 0.3275911
      %v11533 = vmul.f32 %v11501, 0.3275911
      %v11534 = vmul.f32 %v11502, 0.3275911
      %v11535 = vmul.f32 %v11503, 0.3275911
      %v11536 = vmul.f32 %v11504, 0.3275911
      %v11537 = vmul.f32 %v11505, 0.3275911
      %v11538 = vmul.f32 %v11506, 0.3275911
      %v11539 = vadd.f32 %v11507, 1.0
      %v11540 = vadd.f32 %v11508, 1.0
      %v11541 = vadd.f32 %v11509, 1.0
      %v11542 = vadd.f32 %v11510, 1.0
      %v11543 = vadd.f32 %v11511, 1.0
      %v11544 = vadd.f32 %v11512, 1.0
      %v11545 = vadd.f32 %v11513, 1.0
      %v11546 = vadd.f32 %v11514, 1.0
      %v11547 = vadd.f32 %v11515, 1.0
      %v11548 = vadd.f32 %v11516, 1.0
      %v11549 = vadd.f32 %v11517, 1.0
      %v11550 = vadd.f32 %v11518, 1.0
      %v11551 = vadd.f32 %v11519, 1.0
      %v11552 = vadd.f32 %v11520, 1.0
      %v11553 = vadd.f32 %v11521, 1.0
      %v11554 = vadd.f32 %v11522, 1.0
      %v11555 = vadd.f32 %v11523, 1.0
      %v11556 = vadd.f32 %v11524, 1.0
      %v11557 = vadd.f32 %v11525, 1.0
      %v11558 = vadd.f32 %v11526, 1.0
      %v11559 = vadd.f32 %v11527, 1.0
      %v11560 = vadd.f32 %v11528, 1.0
      %v11561 = vadd.f32 %v11529, 1.0
      %v11562 = vadd.f32 %v11530, 1.0
      %v11563 = vadd.f32 %v11531, 1.0
      %v11564 = vadd.f32 %v11532, 1.0
      %v11565 = vadd.f32 %v11533, 1.0
      %v11566 = vadd.f32 %v11534, 1.0
      %v11567 = vadd.f32 %v11535, 1.0
      %v11568 = vadd.f32 %v11536, 1.0
      %v11569 = vadd.f32 %v11537, 1.0
      %v11570 = vadd.f32 %v11538, 1.0
      %v11571 = vrcp.pop %v11539
      %v11572 = vrcp.pop %v11540
      %v11573 = vrcp.pop %v11541
      %v11574 = vrcp.pop %v11542
      %v11575 = vrcp.pop %v11543
      %v11576 = vrcp.pop %v11544
      %v11577 = vrcp.pop %v11545
      %v11578 = vrcp.pop %v11546
      %v11579 = vrcp.pop %v11547
      %v11580 = vrcp.pop %v11548
      %v11581 = vrcp.pop %v11549
      %v11582 = vrcp.pop %v11550
      %v11583 = vrcp.pop %v11551
      %v11584 = vrcp.pop %v11552
      %v11585 = vrcp.pop %v11553
      %v11586 = vrcp.pop %v11554
      %v11587 = vrcp.pop %v11555
      %v11588 = vrcp.pop %v11556
      %v11589 = vrcp.pop %v11557
      %v11590 = vrcp.pop %v11558
      %v11591 = vrcp.pop %v11559
      %v11592 = vrcp.pop %v11560
      %v11593 = vrcp.pop %v11561
      %v11594 = vrcp.pop %v11562
      %v11595 = vrcp.pop %v11563
      %v11596 = vrcp.pop %v11564
      %v11597 = vrcp.pop %v11565
      %v11598 = vrcp.pop %v11566
      %v11599 = vrcp.pop %v11567
      %v11600 = vrcp.pop %v11568
      %v11601 = vrcp.pop %v11569
      %v11602 = vrcp.pop %v11570
      %v11603 = vmul.f32 %v11571, 1.0614054
      %v11604 = vmul.f32 %v11572, 1.0614054
      %v11605 = vmul.f32 %v11573, 1.0614054
      %v11606 = vmul.f32 %v11574, 1.0614054
      %v11607 = vmul.f32 %v11575, 1.0614054
      %v11608 = vmul.f32 %v11576, 1.0614054
      %v11609 = vmul.f32 %v11577, 1.0614054
      %v11610 = vmul.f32 %v11578, 1.0614054
      %v11611 = vmul.f32 %v11579, 1.0614054
      %v11612 = vmul.f32 %v11580, 1.0614054
      %v11613 = vmul.f32 %v11581, 1.0614054
      %v11614 = vmul.f32 %v11582, 1.0614054
      %v11615 = vmul.f32 %v11583, 1.0614054
      %v11616 = vmul.f32 %v11584, 1.0614054
      %v11617 = vmul.f32 %v11585, 1.0614054
      %v11618 = vmul.f32 %v11586, 1.0614054
      %v11619 = vmul.f32 %v11587, 1.0614054
      %v11620 = vmul.f32 %v11588, 1.0614054
      %v11621 = vmul.f32 %v11589, 1.0614054
      %v11622 = vmul.f32 %v11590, 1.0614054
      %v11623 = vmul.f32 %v11591, 1.0614054
      %v11624 = vmul.f32 %v11592, 1.0614054
      %v11625 = vmul.f32 %v11593, 1.0614054
      %v11626 = vmul.f32 %v11594, 1.0614054
      %v11627 = vmul.f32 %v11595, 1.0614054
      %v11628 = vmul.f32 %v11596, 1.0614054
      %v11629 = vmul.f32 %v11597, 1.0614054
      %v11630 = vmul.f32 %v11598, 1.0614054
      %v11631 = vmul.f32 %v11599, 1.0614054
      %v11632 = vmul.f32 %v11600, 1.0614054
      %v11633 = vmul.f32 %v11601, 1.0614054
      %v11634 = vmul.f32 %v11602, 1.0614054
      %v11635 = vsub.f32 %v11603, 1.4531521
      %v11636 = vsub.f32 %v11604, 1.4531521
      %v11637 = vsub.f32 %v11605, 1.4531521
      %v11638 = vsub.f32 %v11606, 1.4531521
      %v11639 = vsub.f32 %v11607, 1.4531521
      %v11640 = vsub.f32 %v11608, 1.4531521
      %v11641 = vsub.f32 %v11609, 1.4531521
      %v11642 = vsub.f32 %v11610, 1.4531521
      %v11643 = vsub.f32 %v11611, 1.4531521
      %v11644 = vsub.f32 %v11612, 1.4531521
      %v11645 = vsub.f32 %v11613, 1.4531521
      %v11646 = vsub.f32 %v11614, 1.4531521
      %v11647 = vsub.f32 %v11615, 1.4531521
      %v11648 = vsub.f32 %v11616, 1.4531521
      %v11649 = vsub.f32 %v11617, 1.4531521
      %v11650 = vsub.f32 %v11618, 1.4531521
      %v11651 = vsub.f32 %v11619, 1.4531521
      %v11652 = vsub.f32 %v11620, 1.4531521
      %v11653 = vsub.f32 %v11621, 1.4531521
      %v11654 = vsub.f32 %v11622, 1.4531521
      %v11655 = vsub.f32 %v11623, 1.4531521
      %v11656 = vsub.f32 %v11624, 1.4531521
      %v11657 = vsub.f32 %v11625, 1.4531521
      %v11658 = vsub.f32 %v11626, 1.4531521
      %v11659 = vsub.f32 %v11627, 1.4531521
      %v11660 = vsub.f32 %v11628, 1.4531521
      %v11661 = vsub.f32 %v11629, 1.4531521
      %v11662 = vsub.f32 %v11630, 1.4531521
      %v11663 = vsub.f32 %v11631, 1.4531521
      %v11664 = vsub.f32 %v11632, 1.4531521
      %v11665 = vsub.f32 %v11633, 1.4531521
      %v11666 = vsub.f32 %v11634, 1.4531521
      %v11667 = vmul.f32 %v11635, %v11571
      %v11668 = vmul.f32 %v11636, %v11572
      %v11669 = vmul.f32 %v11637, %v11573
      %v11670 = vmul.f32 %v11638, %v11574
      %v11671 = vmul.f32 %v11639, %v11575
      %v11672 = vmul.f32 %v11640, %v11576
      %v11673 = vmul.f32 %v11641, %v11577
      %v11674 = vmul.f32 %v11642, %v11578
      %v11675 = vmul.f32 %v11643, %v11579
      %v11676 = vmul.f32 %v11644, %v11580
      %v11677 = vmul.f32 %v11645, %v11581
      %v11678 = vmul.f32 %v11646, %v11582
      %v11679 = vmul.f32 %v11647, %v11583
      %v11680 = vmul.f32 %v11648, %v11584
      %v11681 = vmul.f32 %v11649, %v11585
      %v11682 = vmul.f32 %v11650, %v11586
      %v11683 = vmul.f32 %v11651, %v11587
      %v11684 = vmul.f32 %v11652, %v11588
      %v11685 = vmul.f32 %v11653, %v11589
      %v11686 = vmul.f32 %v11654, %v11590
      %v11687 = vmul.f32 %v11655, %v11591
      %v11688 = vmul.f32 %v11656, %v11592
      %v11689 = vmul.f32 %v11657, %v11593
      %v11690 = vmul.f32 %v11658, %v11594
      %v11691 = vmul.f32 %v11659, %v11595
      %v11692 = vmul.f32 %v11660, %v11596
      %v11693 = vmul.f32 %v11661, %v11597
      %v11694 = vmul.f32 %v11662, %v11598
      %v11695 = vmul.f32 %v11663, %v11599
      %v11696 = vmul.f32 %v11664, %v11600
      %v11697 = vmul.f32 %v11665, %v11601
      %v11698 = vmul.f32 %v11666, %v11602
      %v11699 = vadd.f32 %v11667, 1.4214138
      %v11700 = vadd.f32 %v11668, 1.4214138
      %v11701 = vadd.f32 %v11669, 1.4214138
      %v11702 = vadd.f32 %v11670, 1.4214138
      %v11703 = vadd.f32 %v11671, 1.4214138
      %v11704 = vadd.f32 %v11672, 1.4214138
      %v11705 = vadd.f32 %v11673, 1.4214138
      %v11706 = vadd.f32 %v11674, 1.4214138
      %v11707 = vadd.f32 %v11675, 1.4214138
      %v11708 = vadd.f32 %v11676, 1.4214138
      %v11709 = vadd.f32 %v11677, 1.4214138
      %v11710 = vadd.f32 %v11678, 1.4214138
      %v11711 = vadd.f32 %v11679, 1.4214138
      %v11712 = vadd.f32 %v11680, 1.4214138
      %v11713 = vadd.f32 %v11681, 1.4214138
      %v11714 = vadd.f32 %v11682, 1.4214138
      %v11715 = vadd.f32 %v11683, 1.4214138
      %v11716 = vadd.f32 %v11684, 1.4214138
      %v11717 = vadd.f32 %v11685, 1.4214138
      %v11718 = vadd.f32 %v11686, 1.4214138
      %v11719 = vadd.f32 %v11687, 1.4214138
      %v11720 = vadd.f32 %v11688, 1.4214138
      %v11721 = vadd.f32 %v11689, 1.4214138
      %v11722 = vadd.f32 %v11690, 1.4214138
      %v11723 = vadd.f32 %v11691, 1.4214138
      %v11724 = vadd.f32 %v11692, 1.4214138
      %v11725 = vadd.f32 %v11693, 1.4214138
      %v11726 = vadd.f32 %v11694, 1.4214138
      %v11727 = vadd.f32 %v11695, 1.4214138
      %v11728 = vadd.f32 %v11696, 1.4214138
      %v11729 = vadd.f32 %v11697, 1.4214138
      %v11730 = vadd.f32 %v11698, 1.4214138
      %v11731 = vmul.f32 %v11699, %v11571
      %v11732 = vmul.f32 %v11700, %v11572
      %v11733 = vmul.f32 %v11701, %v11573
      %v11734 = vmul.f32 %v11702, %v11574
      %v11735 = vmul.f32 %v11703, %v11575
      %v11736 = vmul.f32 %v11704, %v11576
      %v11737 = vmul.f32 %v11705, %v11577
      %v11738 = vmul.f32 %v11706, %v11578
      %v11739 = vmul.f32 %v11707, %v11579
      %v11740 = vmul.f32 %v11708, %v11580
      %v11741 = vmul.f32 %v11709, %v11581
      %v11742 = vmul.f32 %v11710, %v11582
      %v11743 = vmul.f32 %v11711, %v11583
      %v11744 = vmul.f32 %v11712, %v11584
      %v11745 = vmul.f32 %v11713, %v11585
      %v11746 = vmul.f32 %v11714, %v11586
      %v11747 = vmul.f32 %v11715, %v11587
      %v11748 = vmul.f32 %v11716, %v11588
      %v11749 = vmul.f32 %v11717, %v11589
      %v11750 = vmul.f32 %v11718, %v11590
      %v11751 = vmul.f32 %v11719, %v11591
      %v11752 = vmul.f32 %v11720, %v11592
      %v11753 = vmul.f32 %v11721, %v11593
      %v11754 = vmul.f32 %v11722, %v11594
      %v11755 = vmul.f32 %v11723, %v11595
      %v11756 = vmul.f32 %v11724, %v11596
      %v11757 = vmul.f32 %v11725, %v11597
      %v11758 = vmul.f32 %v11726, %v11598
      %v11759 = vmul.f32 %v11727, %v11599
      %v11760 = vmul.f32 %v11728, %v11600
      %v11761 = vmul.f32 %v11729, %v11601
      %v11762 = vmul.f32 %v11730, %v11602
      %v11763 = vsub.f32 %v11731, 0.28449672
      %v11764 = vsub.f32 %v11732, 0.28449672
      %v11765 = vsub.f32 %v11733, 0.28449672
      %v11766 = vsub.f32 %v11734, 0.28449672
      %v11767 = vsub.f32 %v11735, 0.28449672
      %v11768 = vsub.f32 %v11736, 0.28449672
      %v11769 = vsub.f32 %v11737, 0.28449672
      %v11770 = vsub.f32 %v11738, 0.28449672
      %v11771 = vsub.f32 %v11739, 0.28449672
      %v11772 = vsub.f32 %v11740, 0.28449672
      %v11773 = vsub.f32 %v11741, 0.28449672
      %v11774 = vsub.f32 %v11742, 0.28449672
      %v11775 = vsub.f32 %v11743, 0.28449672
      %v11776 = vsub.f32 %v11744, 0.28449672
      %v11777 = vsub.f32 %v11745, 0.28449672
      %v11778 = vsub.f32 %v11746, 0.28449672
      %v11779 = vsub.f32 %v11747, 0.28449672
      %v11780 = vsub.f32 %v11748, 0.28449672
      %v11781 = vsub.f32 %v11749, 0.28449672
      %v11782 = vsub.f32 %v11750, 0.28449672
      %v11783 = vsub.f32 %v11751, 0.28449672
      %v11784 = vsub.f32 %v11752, 0.28449672
      %v11785 = vsub.f32 %v11753, 0.28449672
      %v11786 = vsub.f32 %v11754, 0.28449672
      %v11787 = vsub.f32 %v11755, 0.28449672
      %v11788 = vsub.f32 %v11756, 0.28449672
      %v11789 = vsub.f32 %v11757, 0.28449672
      %v11790 = vsub.f32 %v11758, 0.28449672
      %v11791 = vsub.f32 %v11759, 0.28449672
      %v11792 = vsub.f32 %v11760, 0.28449672
      %v11793 = vsub.f32 %v11761, 0.28449672
      %v11794 = vsub.f32 %v11762, 0.28449672
      %v11795 = vmul.f32 %v11763, %v11571
      %v11796 = vmul.f32 %v11764, %v11572
      %v11797 = vmul.f32 %v11765, %v11573
      %v11798 = vmul.f32 %v11766, %v11574
      %v11799 = vmul.f32 %v11767, %v11575
      %v11800 = vmul.f32 %v11768, %v11576
      %v11801 = vmul.f32 %v11769, %v11577
      %v11802 = vmul.f32 %v11770, %v11578
      %v11803 = vmul.f32 %v11771, %v11579
      %v11804 = vmul.f32 %v11772, %v11580
      %v11805 = vmul.f32 %v11773, %v11581
      %v11806 = vmul.f32 %v11774, %v11582
      %v11807 = vmul.f32 %v11775, %v11583
      %v11808 = vmul.f32 %v11776, %v11584
      %v11809 = vmul.f32 %v11777, %v11585
      %v11810 = vmul.f32 %v11778, %v11586
      %v11811 = vmul.f32 %v11779, %v11587
      %v11812 = vmul.f32 %v11780, %v11588
      %v11813 = vmul.f32 %v11781, %v11589
      %v11814 = vmul.f32 %v11782, %v11590
      %v11815 = vmul.f32 %v11783, %v11591
      %v11816 = vmul.f32 %v11784, %v11592
      %v11817 = vmul.f32 %v11785, %v11593
      %v11818 = vmul.f32 %v11786, %v11594
      %v11819 = vmul.f32 %v11787, %v11595
      %v11820 = vmul.f32 %v11788, %v11596
      %v11821 = vmul.f32 %v11789, %v11597
      %v11822 = vmul.f32 %v11790, %v11598
      %v11823 = vmul.f32 %v11791, %v11599
      %v11824 = vmul.f32 %v11792, %v11600
      %v11825 = vmul.f32 %v11793, %v11601
      %v11826 = vmul.f32 %v11794, %v11602
      %v11827 = vadd.f32 %v11795, 0.2548296
      %v11828 = vadd.f32 %v11796, 0.2548296
      %v11829 = vadd.f32 %v11797, 0.2548296
      %v11830 = vadd.f32 %v11798, 0.2548296
      %v11831 = vadd.f32 %v11799, 0.2548296
      %v11832 = vadd.f32 %v11800, 0.2548296
      %v11833 = vadd.f32 %v11801, 0.2548296
      %v11834 = vadd.f32 %v11802, 0.2548296
      %v11835 = vadd.f32 %v11803, 0.2548296
      %v11836 = vadd.f32 %v11804, 0.2548296
      %v11837 = vadd.f32 %v11805, 0.2548296
      %v11838 = vadd.f32 %v11806, 0.2548296
      %v11839 = vadd.f32 %v11807, 0.2548296
      %v11840 = vadd.f32 %v11808, 0.2548296
      %v11841 = vadd.f32 %v11809, 0.2548296
      %v11842 = vadd.f32 %v11810, 0.2548296
      %v11843 = vadd.f32 %v11811, 0.2548296
      %v11844 = vadd.f32 %v11812, 0.2548296
      %v11845 = vadd.f32 %v11813, 0.2548296
      %v11846 = vadd.f32 %v11814, 0.2548296
      %v11847 = vadd.f32 %v11815, 0.2548296
      %v11848 = vadd.f32 %v11816, 0.2548296
      %v11849 = vadd.f32 %v11817, 0.2548296
      %v11850 = vadd.f32 %v11818, 0.2548296
      %v11851 = vadd.f32 %v11819, 0.2548296
      %v11852 = vadd.f32 %v11820, 0.2548296
      %v11853 = vadd.f32 %v11821, 0.2548296
      %v11854 = vadd.f32 %v11822, 0.2548296
      %v11855 = vadd.f32 %v11823, 0.2548296
      %v11856 = vadd.f32 %v11824, 0.2548296
      %v11857 = vadd.f32 %v11825, 0.2548296
      %v11858 = vadd.f32 %v11826, 0.2548296
      %v11859 = vmul.f32 %v11827, %v11571
      %v11860 = vmul.f32 %v11828, %v11572
      %v11861 = vmul.f32 %v11829, %v11573
      %v11862 = vmul.f32 %v11830, %v11574
      %v11863 = vmul.f32 %v11831, %v11575
      %v11864 = vmul.f32 %v11832, %v11576
      %v11865 = vmul.f32 %v11833, %v11577
      %v11866 = vmul.f32 %v11834, %v11578
      %v11867 = vmul.f32 %v11835, %v11579
      %v11868 = vmul.f32 %v11836, %v11580
      %v11869 = vmul.f32 %v11837, %v11581
      %v11870 = vmul.f32 %v11838, %v11582
      %v11871 = vmul.f32 %v11839, %v11583
      %v11872 = vmul.f32 %v11840, %v11584
      %v11873 = vmul.f32 %v11841, %v11585
      %v11874 = vmul.f32 %v11842, %v11586
      %v11875 = vmul.f32 %v11843, %v11587
      %v11876 = vmul.f32 %v11844, %v11588
      %v11877 = vmul.f32 %v11845, %v11589
      %v11878 = vmul.f32 %v11846, %v11590
      %v11879 = vmul.f32 %v11847, %v11591
      %v11880 = vmul.f32 %v11848, %v11592
      %v11881 = vmul.f32 %v11849, %v11593
      %v11882 = vmul.f32 %v11850, %v11594
      %v11883 = vmul.f32 %v11851, %v11595
      %v11884 = vmul.f32 %v11852, %v11596
      %v11885 = vmul.f32 %v11853, %v11597
      %v11886 = vmul.f32 %v11854, %v11598
      %v11887 = vmul.f32 %v11855, %v11599
      %v11888 = vmul.f32 %v11856, %v11600
      %v11889 = vmul.f32 %v11857, %v11601
      %v11890 = vmul.f32 %v11858, %v11602
      %v11891 = vsub.f32 0.0, %v11475
      %v11892 = vsub.f32 0.0, %v11476
      %v11893 = vsub.f32 0.0, %v11477
      %v11894 = vsub.f32 0.0, %v11478
      %v11895 = vsub.f32 0.0, %v11479
      %v11896 = vsub.f32 0.0, %v11480
      %v11897 = vsub.f32 0.0, %v11481
      %v11898 = vsub.f32 0.0, %v11482
      %v11899 = vsub.f32 0.0, %v11483
      %v11900 = vsub.f32 0.0, %v11484
      %v11901 = vsub.f32 0.0, %v11485
      %v11902 = vsub.f32 0.0, %v11486
      %v11903 = vsub.f32 0.0, %v11487
      %v11904 = vsub.f32 0.0, %v11488
      %v11905 = vsub.f32 0.0, %v11489
      %v11906 = vsub.f32 0.0, %v11490
      %v11907 = vsub.f32 0.0, %v11491
      %v11908 = vsub.f32 0.0, %v11492
      %v11909 = vsub.f32 0.0, %v11493
      %v11910 = vsub.f32 0.0, %v11494
      %v11911 = vsub.f32 0.0, %v11495
      %v11912 = vsub.f32 0.0, %v11496
      %v11913 = vsub.f32 0.0, %v11497
      %v11914 = vsub.f32 0.0, %v11498
      %v11915 = vsub.f32 0.0, %v11499
      %v11916 = vsub.f32 0.0, %v11500
      %v11917 = vsub.f32 0.0, %v11501
      %v11918 = vsub.f32 0.0, %v11502
      %v11919 = vsub.f32 0.0, %v11503
      %v11920 = vsub.f32 0.0, %v11504
      %v11921 = vsub.f32 0.0, %v11505
      %v11922 = vsub.f32 0.0, %v11506
      %v11923 = vmul.f32 %v11891, %v11475
      %v11924 = vmul.f32 %v11892, %v11476
      %v11925 = vmul.f32 %v11893, %v11477
      %v11926 = vmul.f32 %v11894, %v11478
      %v11927 = vmul.f32 %v11895, %v11479
      %v11928 = vmul.f32 %v11896, %v11480
      %v11929 = vmul.f32 %v11897, %v11481
      %v11930 = vmul.f32 %v11898, %v11482
      %v11931 = vmul.f32 %v11899, %v11483
      %v11932 = vmul.f32 %v11900, %v11484
      %v11933 = vmul.f32 %v11901, %v11485
      %v11934 = vmul.f32 %v11902, %v11486
      %v11935 = vmul.f32 %v11903, %v11487
      %v11936 = vmul.f32 %v11904, %v11488
      %v11937 = vmul.f32 %v11905, %v11489
      %v11938 = vmul.f32 %v11906, %v11490
      %v11939 = vmul.f32 %v11907, %v11491
      %v11940 = vmul.f32 %v11908, %v11492
      %v11941 = vmul.f32 %v11909, %v11493
      %v11942 = vmul.f32 %v11910, %v11494
      %v11943 = vmul.f32 %v11911, %v11495
      %v11944 = vmul.f32 %v11912, %v11496
      %v11945 = vmul.f32 %v11913, %v11497
      %v11946 = vmul.f32 %v11914, %v11498
      %v11947 = vmul.f32 %v11915, %v11499
      %v11948 = vmul.f32 %v11916, %v11500
      %v11949 = vmul.f32 %v11917, %v11501
      %v11950 = vmul.f32 %v11918, %v11502
      %v11951 = vmul.f32 %v11919, %v11503
      %v11952 = vmul.f32 %v11920, %v11504
      %v11953 = vmul.f32 %v11921, %v11505
      %v11954 = vmul.f32 %v11922, %v11506
      %v11955 = vmul.f32 %v11923, 1.442695
      %v11956 = vpow.pop %v11955
      %v11957 = vmul.f32 %v11924, 1.442695
      %v11958 = vpow.pop %v11957
      %v11959 = vmul.f32 %v11925, 1.442695
      %v11960 = vpow.pop %v11959
      %v11961 = vmul.f32 %v11926, 1.442695
      %v11962 = vpow.pop %v11961
      %v11963 = vmul.f32 %v11927, 1.442695
      %v11964 = vpow.pop %v11963
      %v11965 = vmul.f32 %v11928, 1.442695
      %v11966 = vpow.pop %v11965
      %v11967 = vmul.f32 %v11929, 1.442695
      %v11968 = vpow.pop %v11967
      %v11969 = vmul.f32 %v11930, 1.442695
      %v11970 = vpow.pop %v11969
      %v11971 = vmul.f32 %v11931, 1.442695
      %v11972 = vpow.pop %v11971
      %v11973 = vmul.f32 %v11932, 1.442695
      %v11974 = vpow.pop %v11973
      %v11975 = vmul.f32 %v11933, 1.442695
      %v11976 = vpow.pop %v11975
      %v11977 = vmul.f32 %v11934, 1.442695
      %v11978 = vpow.pop %v11977
      %v11979 = vmul.f32 %v11935, 1.442695
      %v11980 = vpow.pop %v11979
      %v11981 = vmul.f32 %v11936, 1.442695
      %v11982 = vpow.pop %v11981
      %v11983 = vmul.f32 %v11937, 1.442695
      %v11984 = vpow.pop %v11983
      %v11985 = vmul.f32 %v11938, 1.442695
      %v11986 = vpow.pop %v11985
      %v11987 = vmul.f32 %v11939, 1.442695
      %v11988 = vpow.pop %v11987
      %v11989 = vmul.f32 %v11940, 1.442695
      %v11990 = vpow.pop %v11989
      %v11991 = vmul.f32 %v11941, 1.442695
      %v11992 = vpow.pop %v11991
      %v11993 = vmul.f32 %v11942, 1.442695
      %v11994 = vpow.pop %v11993
      %v11995 = vmul.f32 %v11943, 1.442695
      %v11996 = vpow.pop %v11995
      %v11997 = vmul.f32 %v11944, 1.442695
      %v11998 = vpow.pop %v11997
      %v11999 = vmul.f32 %v11945, 1.442695
      %v12000 = vpow.pop %v11999
      %v12001 = vmul.f32 %v11946, 1.442695
      %v12002 = vpow.pop %v12001
      %v12003 = vmul.f32 %v11947, 1.442695
      %v12004 = vpow.pop %v12003
      %v12005 = vmul.f32 %v11948, 1.442695
      %v12006 = vpow.pop %v12005
      %v12007 = vmul.f32 %v11949, 1.442695
      %v12008 = vpow.pop %v12007
      %v12009 = vmul.f32 %v11950, 1.442695
      %v12010 = vpow.pop %v12009
      %v12011 = vmul.f32 %v11951, 1.442695
      %v12012 = vpow.pop %v12011
      %v12013 = vmul.f32 %v11952, 1.442695
      %v12014 = vpow.pop %v12013
      %v12015 = vmul.f32 %v11953, 1.442695
      %v12016 = vpow.pop %v12015
      %v12017 = vmul.f32 %v11954, 1.442695
      %v12018 = vpow.pop %v12017
      %v12019 = vmul.f32 %v11859, %v11956
      %v12020 = vmul.f32 %v11860, %v11958
      %v12021 = vmul.f32 %v11861, %v11960
      %v12022 = vmul.f32 %v11862, %v11962
      %v12023 = vmul.f32 %v11863, %v11964
      %v12024 = vmul.f32 %v11864, %v11966
      %v12025 = vmul.f32 %v11865, %v11968
      %v12026 = vmul.f32 %v11866, %v11970
      %v12027 = vmul.f32 %v11867, %v11972
      %v12028 = vmul.f32 %v11868, %v11974
      %v12029 = vmul.f32 %v11869, %v11976
      %v12030 = vmul.f32 %v11870, %v11978
      %v12031 = vmul.f32 %v11871, %v11980
      %v12032 = vmul.f32 %v11872, %v11982
      %v12033 = vmul.f32 %v11873, %v11984
      %v12034 = vmul.f32 %v11874, %v11986
      %v12035 = vmul.f32 %v11875, %v11988
      %v12036 = vmul.f32 %v11876, %v11990
      %v12037 = vmul.f32 %v11877, %v11992
      %v12038 = vmul.f32 %v11878, %v11994
      %v12039 = vmul.f32 %v11879, %v11996
      %v12040 = vmul.f32 %v11880, %v11998
      %v12041 = vmul.f32 %v11881, %v12000
      %v12042 = vmul.f32 %v11882, %v12002
      %v12043 = vmul.f32 %v11883, %v12004
      %v12044 = vmul.f32 %v11884, %v12006
      %v12045 = vmul.f32 %v11885, %v12008
      %v12046 = vmul.f32 %v11886, %v12010
      %v12047 = vmul.f32 %v11887, %v12012
      %v12048 = vmul.f32 %v11888, %v12014
      %v12049 = vmul.f32 %v11889, %v12016
      %v12050 = vmul.f32 %v11890, %v12018
      %v12051 = vsub.f32 1.0, %v12019
      %v12052 = vsub.f32 1.0, %v12020
      %v12053 = vsub.f32 1.0, %v12021
      %v12054 = vsub.f32 1.0, %v12022
      %v12055 = vsub.f32 1.0, %v12023
      %v12056 = vsub.f32 1.0, %v12024
      %v12057 = vsub.f32 1.0, %v12025
      %v12058 = vsub.f32 1.0, %v12026
      %v12059 = vsub.f32 1.0, %v12027
      %v12060 = vsub.f32 1.0, %v12028
      %v12061 = vsub.f32 1.0, %v12029
      %v12062 = vsub.f32 1.0, %v12030
      %v12063 = vsub.f32 1.0, %v12031
      %v12064 = vsub.f32 1.0, %v12032
      %v12065 = vsub.f32 1.0, %v12033
      %v12066 = vsub.f32 1.0, %v12034
      %v12067 = vsub.f32 1.0, %v12035
      %v12068 = vsub.f32 1.0, %v12036
      %v12069 = vsub.f32 1.0, %v12037
      %v12070 = vsub.f32 1.0, %v12038
      %v12071 = vsub.f32 1.0, %v12039
      %v12072 = vsub.f32 1.0, %v12040
      %v12073 = vsub.f32 1.0, %v12041
      %v12074 = vsub.f32 1.0, %v12042
      %v12075 = vsub.f32 1.0, %v12043
      %v12076 = vsub.f32 1.0, %v12044
      %v12077 = vsub.f32 1.0, %v12045
      %v12078 = vsub.f32 1.0, %v12046
      %v12079 = vsub.f32 1.0, %v12047
      %v12080 = vsub.f32 1.0, %v12048
      %v12081 = vsub.f32 1.0, %v12049
      %v12082 = vsub.f32 1.0, %v12050
      %vm12083 = vcmp.ge.f32.partialorder %v11443, 0.0
      %vm12084 = vcmp.ge.f32.partialorder %v11444, 0.0
      %vm12085 = vcmp.ge.f32.partialorder %v11445, 0.0
      %vm12086 = vcmp.ge.f32.partialorder %v11446, 0.0
      %vm12087 = vcmp.ge.f32.partialorder %v11447, 0.0
      %vm12088 = vcmp.ge.f32.partialorder %v11448, 0.0
      %vm12089 = vcmp.ge.f32.partialorder %v11449, 0.0
      %vm12090 = vcmp.ge.f32.partialorder %v11450, 0.0
      %vm12091 = vcmp.ge.f32.partialorder %v11451, 0.0
      %vm12092 = vcmp.ge.f32.partialorder %v11452, 0.0
      %vm12093 = vcmp.ge.f32.partialorder %v11453, 0.0
      %vm12094 = vcmp.ge.f32.partialorder %v11454, 0.0
      %vm12095 = vcmp.ge.f32.partialorder %v11455, 0.0
      %vm12096 = vcmp.ge.f32.partialorder %v11456, 0.0
      %vm12097 = vcmp.ge.f32.partialorder %v11457, 0.0
      %vm12098 = vcmp.ge.f32.partialorder %v11458, 0.0
      %vm12099 = vcmp.ge.f32.partialorder %v11459, 0.0
      %vm12100 = vcmp.ge.f32.partialorder %v11460, 0.0
      %vm12101 = vcmp.ge.f32.partialorder %v11461, 0.0
      %vm12102 = vcmp.ge.f32.partialorder %v11462, 0.0
      %vm12103 = vcmp.ge.f32.partialorder %v11463, 0.0
      %vm12104 = vcmp.ge.f32.partialorder %v11464, 0.0
      %vm12105 = vcmp.ge.f32.partialorder %v11465, 0.0
      %vm12106 = vcmp.ge.f32.partialorder %v11466, 0.0
      %vm12107 = vcmp.ge.f32.partialorder %v11467, 0.0
      %vm12108 = vcmp.ge.f32.partialorder %v11468, 0.0
      %vm12109 = vcmp.ge.f32.partialorder %v11469, 0.0
      %vm12110 = vcmp.ge.f32.partialorder %v11470, 0.0
      %vm12111 = vcmp.ge.f32.partialorder %v11471, 0.0
      %vm12112 = vcmp.ge.f32.partialorder %v11472, 0.0
      %vm12113 = vcmp.ge.f32.partialorder %v11473, 0.0
      %vm12114 = vcmp.ge.f32.partialorder %v11474, 0.0
      %v12115 = vsub.f32 0.0, %v12051
      %v12116 = vsub.f32 0.0, %v12052
      %v12117 = vsub.f32 0.0, %v12053
      %v12118 = vsub.f32 0.0, %v12054
      %v12119 = vsub.f32 0.0, %v12055
      %v12120 = vsub.f32 0.0, %v12056
      %v12121 = vsub.f32 0.0, %v12057
      %v12122 = vsub.f32 0.0, %v12058
      %v12123 = vsub.f32 0.0, %v12059
      %v12124 = vsub.f32 0.0, %v12060
      %v12125 = vsub.f32 0.0, %v12061
      %v12126 = vsub.f32 0.0, %v12062
      %v12127 = vsub.f32 0.0, %v12063
      %v12128 = vsub.f32 0.0, %v12064
      %v12129 = vsub.f32 0.0, %v12065
      %v12130 = vsub.f32 0.0, %v12066
      %v12131 = vsub.f32 0.0, %v12067
      %v12132 = vsub.f32 0.0, %v12068
      %v12133 = vsub.f32 0.0, %v12069
      %v12134 = vsub.f32 0.0, %v12070
      %v12135 = vsub.f32 0.0, %v12071
      %v12136 = vsub.f32 0.0, %v12072
      %v12137 = vsub.f32 0.0, %v12073
      %v12138 = vsub.f32 0.0, %v12074
      %v12139 = vsub.f32 0.0, %v12075
      %v12140 = vsub.f32 0.0, %v12076
      %v12141 = vsub.f32 0.0, %v12077
      %v12142 = vsub.f32 0.0, %v12078
      %v12143 = vsub.f32 0.0, %v12079
      %v12144 = vsub.f32 0.0, %v12080
      %v12145 = vsub.f32 0.0, %v12081
      %v12146 = vsub.f32 0.0, %v12082
      %v12147 = vsel %vm12083, %v12051, %v12115
      %v12148 = vsel %vm12084, %v12052, %v12116
      %v12149 = vsel %vm12085, %v12053, %v12117
      %v12150 = vsel %vm12086, %v12054, %v12118
      %v12151 = vsel %vm12087, %v12055, %v12119
      %v12152 = vsel %vm12088, %v12056, %v12120
      %v12153 = vsel %vm12089, %v12057, %v12121
      %v12154 = vsel %vm12090, %v12058, %v12122
      %v12155 = vsel %vm12091, %v12059, %v12123
      %v12156 = vsel %vm12092, %v12060, %v12124
      %v12157 = vsel %vm12093, %v12061, %v12125
      %v12158 = vsel %vm12094, %v12062, %v12126
      %v12159 = vsel %vm12095, %v12063, %v12127
      %v12160 = vsel %vm12096, %v12064, %v12128
      %v12161 = vsel %vm12097, %v12065, %v12129
      %v12162 = vsel %vm12098, %v12066, %v12130
      %v12163 = vsel %vm12099, %v12067, %v12131
      %v12164 = vsel %vm12100, %v12068, %v12132
      %v12165 = vsel %vm12101, %v12069, %v12133
      %v12166 = vsel %vm12102, %v12070, %v12134
      %v12167 = vsel %vm12103, %v12071, %v12135
      %v12168 = vsel %vm12104, %v12072, %v12136
      %v12169 = vsel %vm12105, %v12073, %v12137
      %v12170 = vsel %vm12106, %v12074, %v12138
      %v12171 = vsel %vm12107, %v12075, %v12139
      %v12172 = vsel %vm12108, %v12076, %v12140
      %v12173 = vsel %vm12109, %v12077, %v12141
      %v12174 = vsel %vm12110, %v12078, %v12142
      %v12175 = vsel %vm12111, %v12079, %v12143
      %v12176 = vsel %vm12112, %v12080, %v12144
      %v12177 = vsel %vm12113, %v12081, %v12145
      %v12178 = vsel %vm12114, %v12082, %v12146
      %v12179 = vmul.f32 %v11411, 0.5
      %v12180 = vmul.f32 %v11412, 0.5
      %v12181 = vmul.f32 %v11413, 0.5
      %v12182 = vmul.f32 %v11414, 0.5
      %v12183 = vmul.f32 %v11415, 0.5
      %v12184 = vmul.f32 %v11416, 0.5
      %v12185 = vmul.f32 %v11417, 0.5
      %v12186 = vmul.f32 %v11418, 0.5
      %v12187 = vmul.f32 %v11419, 0.5
      %v12188 = vmul.f32 %v11420, 0.5
      %v12189 = vmul.f32 %v11421, 0.5
      %v12190 = vmul.f32 %v11422, 0.5
      %v12191 = vmul.f32 %v11423, 0.5
      %v12192 = vmul.f32 %v11424, 0.5
      %v12193 = vmul.f32 %v11425, 0.5
      %v12194 = vmul.f32 %v11426, 0.5
      %v12195 = vmul.f32 %v11427, 0.5
      %v12196 = vmul.f32 %v11428, 0.5
      %v12197 = vmul.f32 %v11429, 0.5
      %v12198 = vmul.f32 %v11430, 0.5
      %v12199 = vmul.f32 %v11431, 0.5
      %v12200 = vmul.f32 %v11432, 0.5
      %v12201 = vmul.f32 %v11433, 0.5
      %v12202 = vmul.f32 %v11434, 0.5
      %v12203 = vmul.f32 %v11435, 0.5
      %v12204 = vmul.f32 %v11436, 0.5
      %v12205 = vmul.f32 %v11437, 0.5
      %v12206 = vmul.f32 %v11438, 0.5
      %v12207 = vmul.f32 %v11439, 0.5
      %v12208 = vmul.f32 %v11440, 0.5
      %v12209 = vmul.f32 %v11441, 0.5
      %v12210 = vmul.f32 %v11442, 0.5
      %v12211 = vadd.f32 %v12147, 1.0
      %v12212 = vadd.f32 %v12148, 1.0
      %v12213 = vadd.f32 %v12149, 1.0
      %v12214 = vadd.f32 %v12150, 1.0
      %v12215 = vadd.f32 %v12151, 1.0
      %v12216 = vadd.f32 %v12152, 1.0
      %v12217 = vadd.f32 %v12153, 1.0
      %v12218 = vadd.f32 %v12154, 1.0
      %v12219 = vadd.f32 %v12155, 1.0
      %v12220 = vadd.f32 %v12156, 1.0
      %v12221 = vadd.f32 %v12157, 1.0
      %v12222 = vadd.f32 %v12158, 1.0
      %v12223 = vadd.f32 %v12159, 1.0
      %v12224 = vadd.f32 %v12160, 1.0
      %v12225 = vadd.f32 %v12161, 1.0
      %v12226 = vadd.f32 %v12162, 1.0
      %v12227 = vadd.f32 %v12163, 1.0
      %v12228 = vadd.f32 %v12164, 1.0
      %v12229 = vadd.f32 %v12165, 1.0
      %v12230 = vadd.f32 %v12166, 1.0
      %v12231 = vadd.f32 %v12167, 1.0
      %v12232 = vadd.f32 %v12168, 1.0
      %v12233 = vadd.f32 %v12169, 1.0
      %v12234 = vadd.f32 %v12170, 1.0
      %v12235 = vadd.f32 %v12171, 1.0
      %v12236 = vadd.f32 %v12172, 1.0
      %v12237 = vadd.f32 %v12173, 1.0
      %v12238 = vadd.f32 %v12174, 1.0
      %v12239 = vadd.f32 %v12175, 1.0
      %v12240 = vadd.f32 %v12176, 1.0
      %v12241 = vadd.f32 %v12177, 1.0
      %v12242 = vadd.f32 %v12178, 1.0
      %v12243 = vmul.f32 %v12179, %v12211
      %v12244 = vmul.f32 %v12180, %v12212
      %v12245 = vmul.f32 %v12181, %v12213
      %v12246 = vmul.f32 %v12182, %v12214
      %v12247 = vmul.f32 %v12183, %v12215
      %v12248 = vmul.f32 %v12184, %v12216
      %v12249 = vmul.f32 %v12185, %v12217
      %v12250 = vmul.f32 %v12186, %v12218
      %v12251 = vmul.f32 %v12187, %v12219
      %v12252 = vmul.f32 %v12188, %v12220
      %v12253 = vmul.f32 %v12189, %v12221
      %v12254 = vmul.f32 %v12190, %v12222
      %v12255 = vmul.f32 %v12191, %v12223
      %v12256 = vmul.f32 %v12192, %v12224
      %v12257 = vmul.f32 %v12193, %v12225
      %v12258 = vmul.f32 %v12194, %v12226
      %v12259 = vmul.f32 %v12195, %v12227
      %v12260 = vmul.f32 %v12196, %v12228
      %v12261 = vmul.f32 %v12197, %v12229
      %v12262 = vmul.f32 %v12198, %v12230
      %v12263 = vmul.f32 %v12199, %v12231
      %v12264 = vmul.f32 %v12200, %v12232
      %v12265 = vmul.f32 %v12201, %v12233
      %v12266 = vmul.f32 %v12202, %v12234
      %v12267 = vmul.f32 %v12203, %v12235
      %v12268 = vmul.f32 %v12204, %v12236
      %v12269 = vmul.f32 %v12205, %v12237
      %v12270 = vmul.f32 %v12206, %v12238
      %v12271 = vmul.f32 %v12207, %v12239
      %v12272 = vmul.f32 %v12208, %v12240
      %v12273 = vmul.f32 %v12209, %v12241
      %v12274 = vmul.f32 %v12210, %v12242
      %v12275 = vpack.c.bf16 %v12244, %v12243
      %v12276 = vpack.c.bf16 %v12246, %v12245
      %v12277 = vpack.c.bf16 %v12248, %v12247
      %v12278 = vpack.c.bf16 %v12250, %v12249
      %v12279 = vpack.c.bf16 %v12252, %v12251
      %v12280 = vpack.c.bf16 %v12254, %v12253
      %v12281 = vpack.c.bf16 %v12256, %v12255
      %v12282 = vpack.c.bf16 %v12258, %v12257
      %v12283 = vpack.c.bf16 %v12260, %v12259
      %v12284 = vpack.c.bf16 %v12262, %v12261
      %v12285 = vpack.c.bf16 %v12264, %v12263
      %v12286 = vpack.c.bf16 %v12266, %v12265
      %v12287 = vpack.c.bf16 %v12268, %v12267
      %v12288 = vpack.c.bf16 %v12270, %v12269
      %v12289 = vpack.c.bf16 %v12272, %v12271
      %v12290 = vpack.c.bf16 %v12274, %v12273
      %v12291 = vld [vmem:[%s10] sm:$0xf]
      %v12292 = vld [vmem:[%s10 + $0x4] sm:$0xf]
      %v12293 = vld [vmem:[%s10 + $0x8] sm:$0xf]
      %v12294 = vld [vmem:[%s10 + $0xc] sm:$0xf]
      %v12295 = vld [vmem:[%s10 + $0x10] sm:$0xf]
      %v12296 = vld [vmem:[%s10 + $0x14] sm:$0xf]
      %v12297 = vld [vmem:[%s10 + $0x18] sm:$0xf]
      %v12298 = vld [vmem:[%s10 + $0x1c] sm:$0xf]
      %v12299 = vld [vmem:[%s11] sm:$0x1]
      %v12301 = vperm.slane %v12299, 0
      %v12311 = vunpack.c.l.b16 %v12291
      %v12312 = vunpack.c.l.b16 %v12292
      %v12313 = vunpack.c.l.b16 %v12293
      %v12314 = vunpack.c.l.b16 %v12294
      %v12315 = vunpack.c.l.b16 %v12295
      %v12316 = vunpack.c.l.b16 %v12296
      %v12317 = vunpack.c.l.b16 %v12297
      %v12318 = vunpack.c.l.b16 %v12298
      %v12319 = vpack.c.b16 %v12312, %v12311
      %v12320 = vpack.c.b16 %v12314, %v12313
      %v12321 = vpack.c.b16 %v12316, %v12315
      %v12322 = vpack.c.b16 %v12318, %v12317
      %v12328 = vsel %vm1573, %v12275, 0
      %v12331 = vsel %vm1573, %v12276, 0
      %v12334 = vsel %vm1573, %v12277, 0
      %v12337 = vsel %vm1573, %v12278, 0
      %v12340 = vsel %vm1573, %v12279, 0
      %v12343 = vsel %vm1573, %v12280, 0
      %v12346 = vsel %vm1573, %v12281, 0
      %v12349 = vsel %vm1573, %v12282, 0
      %v12352 = vsel %vm1573, %v12283, 0
      %v12355 = vsel %vm1573, %v12284, 0
      %v12358 = vsel %vm1573, %v12285, 0
      %v12361 = vsel %vm1573, %v12286, 0
      %v12364 = vsel %vm1573, %v12287, 0
      %v12367 = vsel %vm1573, %v12288, 0
      %v12370 = vsel %vm1573, %v12289, 0
      %v12373 = vsel %vm1573, %v12290, 0
      %12375 = vmatpush.bf16.msra.mxu0 0
      %12376 = vmatpush.bf16.msra.mxu0 0
      %12377 = vmatpush.bf16.msra.mxu0 0
      %12378 = vmatpush.bf16.msra.mxu0 0
      %12379 = vmatpush.bf16.msra.mxu0 %v12322
      %12380 = vmatpush.bf16.msra.mxu0 %v12321
      %12381 = vmatpush.bf16.msra.mxu0 %v12320
      %12382 = vmatpush.bf16.msra.mxu0 %v12319
      %12383 = vmatmul.bf16.gmra.mxu0 %v12328
      %v12384 = vpop.f32.mrf.mxu0
      %v12385 = vadd.f32 %v12301, %v12384
      %v12386 = vpop.f32.mrf.mxu0
      %v12387 = vadd.f32 %v12301, %v12386
      %12388 = vmatmul.bf16.gmra.mxu0 %v12331
      %v12389 = vpop.f32.mrf.mxu0
      %v12390 = vadd.f32 %v12301, %v12389
      %v12391 = vpop.f32.mrf.mxu0
      %v12392 = vadd.f32 %v12301, %v12391
      %12393 = vmatmul.bf16.gmra.mxu0 %v12334
      %v12394 = vpop.f32.mrf.mxu0
      %v12395 = vadd.f32 %v12301, %v12394
      %v12396 = vpop.f32.mrf.mxu0
      %v12397 = vadd.f32 %v12301, %v12396
      %12398 = vmatmul.bf16.gmra.mxu0 %v12337
      %v12399 = vpop.f32.mrf.mxu0
      %v12400 = vadd.f32 %v12301, %v12399
      %v12401 = vpop.f32.mrf.mxu0
      %v12402 = vadd.f32 %v12301, %v12401
      %12403 = vmatmul.bf16.gmra.mxu0 %v12340
      %v12404 = vpop.f32.mrf.mxu0
      %v12405 = vadd.f32 %v12301, %v12404
      %v12406 = vpop.f32.mrf.mxu0
      %v12407 = vadd.f32 %v12301, %v12406
      %12408 = vmatmul.bf16.gmra.mxu0 %v12343
      %v12409 = vpop.f32.mrf.mxu0
      %v12410 = vadd.f32 %v12301, %v12409
      %v12411 = vpop.f32.mrf.mxu0
      %v12412 = vadd.f32 %v12301, %v12411
      %12413 = vmatmul.bf16.gmra.mxu0 %v12346
      %v12414 = vpop.f32.mrf.mxu0
      %v12415 = vadd.f32 %v12301, %v12414
      %v12416 = vpop.f32.mrf.mxu0
      %v12417 = vadd.f32 %v12301, %v12416
      %12418 = vmatmul.bf16.gmra.mxu0 %v12349
      %v12419 = vpop.f32.mrf.mxu0
      %v12420 = vadd.f32 %v12301, %v12419
      %v12421 = vpop.f32.mrf.mxu0
      %v12422 = vadd.f32 %v12301, %v12421
      %12423 = vmatmul.bf16.gmra.mxu0 %v12352
      %v12424 = vpop.f32.mrf.mxu0
      %v12425 = vadd.f32 %v12301, %v12424
      %v12426 = vpop.f32.mrf.mxu0
      %v12427 = vadd.f32 %v12301, %v12426
      %12428 = vmatmul.bf16.gmra.mxu0 %v12355
      %v12429 = vpop.f32.mrf.mxu0
      %v12430 = vadd.f32 %v12301, %v12429
      %v12431 = vpop.f32.mrf.mxu0
      %v12432 = vadd.f32 %v12301, %v12431
      %12433 = vmatmul.bf16.gmra.mxu0 %v12358
      %v12434 = vpop.f32.mrf.mxu0
      %v12435 = vadd.f32 %v12301, %v12434
      %v12436 = vpop.f32.mrf.mxu0
      %v12437 = vadd.f32 %v12301, %v12436
      %12438 = vmatmul.bf16.gmra.mxu0 %v12361
      %v12439 = vpop.f32.mrf.mxu0
      %v12440 = vadd.f32 %v12301, %v12439
      %v12441 = vpop.f32.mrf.mxu0
      %v12442 = vadd.f32 %v12301, %v12441
      %12443 = vmatmul.bf16.gmra.mxu0 %v12364
      %v12444 = vpop.f32.mrf.mxu0
      %v12445 = vadd.f32 %v12301, %v12444
      %v12446 = vpop.f32.mrf.mxu0
      %v12447 = vadd.f32 %v12301, %v12446
      %12448 = vmatmul.bf16.gmra.mxu0 %v12367
      %v12449 = vpop.f32.mrf.mxu0
      %v12450 = vadd.f32 %v12301, %v12449
      %v12451 = vpop.f32.mrf.mxu0
      %v12452 = vadd.f32 %v12301, %v12451
      %12453 = vmatmul.bf16.gmra.mxu0 %v12370
      %v12454 = vpop.f32.mrf.mxu0
      %v12455 = vadd.f32 %v12301, %v12454
      %v12456 = vpop.f32.mrf.mxu0
      %v12457 = vadd.f32 %v12301, %v12456
      %12458 = vmatmul.bf16.gmra.mxu0 %v12373
      %v12459 = vpop.f32.mrf.mxu0
      %v12460 = vadd.f32 %v12301, %v12459
      %v12461 = vpop.f32.mrf.mxu0
      %v12462 = vadd.f32 %v12301, %v12461
      %12463 = vdwg.mxu0
      %12464 = vst [vmem:[%s413] sm:$0xff] %v12385
      %12465 = vst [vmem:[%s413 + $0x8] sm:$0xff] %v12387
      %12466 = vst [vmem:[%s413 + $0x10] sm:$0xff] %v12390
      %12467 = vst [vmem:[%s413 + $0x18] sm:$0xff] %v12392
      %12468 = vst [vmem:[%s413 + $0x20] sm:$0xff] %v12395
      %12469 = vst [vmem:[%s413 + $0x28] sm:$0xff] %v12397
      %12470 = vst [vmem:[%s413 + $0x30] sm:$0xff] %v12400
      %12471 = vst [vmem:[%s413 + $0x38] sm:$0xff] %v12402
      %12472 = vst [vmem:[%s413 + $0x40] sm:$0xff] %v12405
      %12473 = vst [vmem:[%s413 + $0x48] sm:$0xff] %v12407
      %12474 = vst [vmem:[%s413 + $0x50] sm:$0xff] %v12410
      %12475 = vst [vmem:[%s413 + $0x58] sm:$0xff] %v12412
      %12476 = vst [vmem:[%s413 + $0x60] sm:$0xff] %v12415
      %12477 = vst [vmem:[%s413 + $0x68] sm:$0xff] %v12417
      %12478 = vst [vmem:[%s413 + $0x70] sm:$0xff] %v12420
      %12479 = vst [vmem:[%s413 + $0x78] sm:$0xff] %v12422
      %12480 = vst [vmem:[%s413 + $0x80] sm:$0xff] %v12425
      %12481 = vst [vmem:[%s413 + $0x88] sm:$0xff] %v12427
      %12482 = vst [vmem:[%s413 + $0x90] sm:$0xff] %v12430
      %12483 = vst [vmem:[%s413 + $0x98] sm:$0xff] %v12432
      %12484 = vst [vmem:[%s413 + $0xa0] sm:$0xff] %v12435
      %12485 = vst [vmem:[%s413 + $0xa8] sm:$0xff] %v12437
      %12486 = vst [vmem:[%s413 + $0xb0] sm:$0xff] %v12440
      %12487 = vst [vmem:[%s413 + $0xb8] sm:$0xff] %v12442
      %12488 = vst [vmem:[%s413 + $0xc0] sm:$0xff] %v12445
      %12489 = vst [vmem:[%s413 + $0xc8] sm:$0xff] %v12447
      %12490 = vst [vmem:[%s413 + $0xd0] sm:$0xff] %v12450
      %12491 = vst [vmem:[%s413 + $0xd8] sm:$0xff] %v12452
      %12492 = vst [vmem:[%s413 + $0xe0] sm:$0xff] %v12455
      %12493 = vst [vmem:[%s413 + $0xe8] sm:$0xff] %v12457
      %12494 = vst [vmem:[%s413 + $0xf0] sm:$0xff] %v12460
      %12495 = vst [vmem:[%s413 + $0xf8] sm:$0xff] %v12462
      %p12496 = scmp.lt.s32.totalorder %s23, 1
      %s12497 = scalar_select %p12496, %s23, 1
      %s12498 = smul.addr %s12497, 32
      %s12499 = smul.addr %s12498, 8
      %s12500 = scalar_lea.vmem %s12, %s12499
      // Predicated region
      $region69: #{decoder_block.1} parent=67 // pred_check
        %p12501 = pneg %p298
      $region70: #{decoder_block.1} parent=67 // pred_check_branch
        %12503 = sbr.rel (%p12501) target = $region72
      $region71: #{decoder_block.1} parent=67 // pred_region
        _
      $region72: #{decoder_block.1} parent=67 // pred_fallthru
        _
    $region68: #{decoder_block.1} parent=5 // pred_fallthru
      _
    %p12504 = scmp.le.s32.totalorder 2, %s18
    // Predicated region
    $region73: #{decoder_block.1} parent=5 // pred_check
      %p12505 = pneg %p12504
    $region74: #{decoder_block.1} parent=5 // pred_check_branch
      %12507 = sbr.rel (%p12505) target = $region76
    $region75: #{decoder_block.1} parent=5 // pred_region
      %s12508 = ssub.s32 %s18, 2
      // Predicated region
      $region77: #{decoder_block.1} parent=75 // pred_check
        %p12509 = pneg %p304
      $region78: #{decoder_block.1} parent=75 // pred_check_branch
        %12511 = sbr.rel (%p12509) target = $region80
      $region79: #{decoder_block.1} parent=75 // pred_region
        %p12512 = scmp.lt.s32.totalorder %s24, 1
        %s12513 = scalar_select %p12512, %s24, 1
        %s12514 = smul.addr %s12513, 32
        %s12515 = smul.addr %s12514, 8
        %s12516 = scalar_lea.vmem %s12, %s12515
      $region80: #{decoder_block.1} parent=75 // pred_fallthru
        _
    $region76: #{decoder_block.1} parent=5 // pred_fallthru
      _
  $region6: #{decoder_block.1} parent=0 // loop_footer
    %s22 = sadd.s32 1, %s18
  $region7: #{decoder_block.1} parent=0 // loop_footer_branch
    %17 = sbr.rel target = $region3
  $region8: #{decoder_block.1} parent=0 // loop_exit
    _

</llo_original>
